<compile_context>
chip_gen: v7x
topology: tpu7x:2x2x1
jax: 0.10.0
libtpu: 0.0.40
codegen_flags: <defaults>
</compile_context>

<pallas_src>
import jax
import jax.numpy as jnp
from jax.experimental import pallas as pl
from jax.experimental.pallas import tpu as pltpu


# ------------------------- glue: bilinear resize (align_corners=False) -------
def _src_index(out_size, in_size):
    scale = in_size / out_size
    src = (jnp.arange(out_size, dtype=jnp.float32) + 0.5) * scale - 0.5
    src = jnp.maximum(src, 0.0)                     # PyTorch clamps negatives
    i0 = jnp.minimum(jnp.floor(src).astype(jnp.int32), in_size - 1)
    i1 = jnp.minimum(i0 + 1, in_size - 1)
    w1 = src - i0.astype(jnp.float32)
    w0 = 1.0 - w1
    return i0, i1, w0, w1


def bilinear_resize_nchw(x, out_h, out_w):
    _, _, in_h, in_w = x.shape
    y0, y1, wy0, wy1 = _src_index(out_h, in_h)
    x0, x1, wx0, wx1 = _src_index(out_w, in_w)

    def cols(r):
        c0 = jnp.take(r, x0, axis=3)
        c1 = jnp.take(r, x1, axis=3)
        return c0 * wx0[None, None, None, :] + c1 * wx1[None, None, None, :]

    row0 = cols(jnp.take(x, y0, axis=2))
    row1 = cols(jnp.take(x, y1, axis=2))
    return row0 * wy0[None, None, :, None] + row1 * wy1[None, None, :, None]


def _vmem_limit_bytes():
    """Generation-aware VMEM limit: ~100 MiB on v5e/v6e, ~56 MiB on v7x."""
    cap = None
    try:
        cap = getattr(pltpu.get_tpu_info(), "vmem_capacity_bytes", None)
    except Exception:
        cap = None
    if not cap:
        cap = 64 * 1024 * 1024
    return int(min(cap * 7 // 8, 100 * 1024 * 1024))


# ------------------------------- Pallas ASPP ---------------------------------
def aspp_pallas(x_nchw, edge_nchw, params, rates=(6, 12, 18), tile_h=None):
    N, Cin, H, W = x_nchw.shape
    R = params["w_img"].shape[0]          # reduction_dim
    Pmax = max(rates)
    PAD_H = Pmax                           # leading-dim slices are free
    PAD_W = ((Pmax + 7) // 8) * 8          # sublane-aligned interior offset
    Hpad, Wpad = H + 2 * PAD_H, W + 2 * PAD_W

    if tile_h is None:                     # pick a row-tile that divides H
        tile_h = H
        for cand in (16, 8):
            if H % cand == 0 and H > cand:
                tile_h = cand
                break
    assert H % tile_h == 0
    T = H // tile_h
    TILE_H = tile_h

    # NCHW -> NHWC (channels on lanes); bf16 feeds the MXU & halves input DMA.
    x_nhwc = jnp.transpose(x_nchw, (0, 2, 3, 1)).astype(jnp.bfloat16)

    # edge -> bilinear resize to (H, W) in f32 (glue), then NHWC.
    edge_r = bilinear_resize_nchw(edge_nchw.astype(jnp.float32), H, W)
    edge_nhwc = jnp.transpose(edge_r, (0, 2, 3, 1))                 # (N,H,W,1)

    # PyTorch OIHW weights -> kernel-friendly layouts.
    w_img = params["w_img"][:, :, 0, 0].T.astype(jnp.float32)        # (Cin, R)
    w_edge = params["w_edge"][:, 0, 0, 0][None, :].astype(jnp.float32)  # (1,R)

    # Fused center weights: [1x1 | d6 center | d12 center | d18 center].
    centers = [params[k][:, :, 1, 1].T for k in ("w_d6", "w_d12", "w_d18")]
    w_ctr = jnp.concatenate(
        [params["w_1x1"][:, :, 0, 0].T] + centers, axis=1
    ).astype(jnp.bfloat16)                                           # (Cin,4R)

    def dil_w(w):
        # OIHW (R, Cin, 3, 3) -> (ky, kx, Cin, R)
        return jnp.transpose(w, (2, 3, 1, 0)).astype(jnp.bfloat16)

    w_dil = [dil_w(params[k]) for k in ("w_d6", "w_d12", "w_d18")]

    def kernel(x_ref, edge_ref, wimg_ref, wedge_ref, wctr_ref,
               wd6_ref, wd12_ref, wd18_ref, o_ref, xp_scr, img_scr, acc_scr):
        t = pl.program_id(1)
        out_dt = o_ref.dtype

        # ---- once per batch element (inner t axis is sequential/"arbitrary"):
        # build the zero-halo padded copy and the global-average-pool branch.
        @pl.when(t == 0)
        def _():
            x_full = x_ref[0]                                # (H, W, Cin) bf16
            # Zero only the border strips; the interior is overwritten below.
            xp_scr[0:PAD_H, :, :] = jnp.zeros((PAD_H, Wpad, Cin), jnp.bfloat16)
            xp_scr[PAD_H + H:PAD_H + H + PAD_H, :, :] = (
                jnp.zeros((PAD_H, Wpad, Cin), jnp.bfloat16))
            xp_scr[PAD_H:PAD_H + H, 0:PAD_W, :] = (
                jnp.zeros((H, PAD_W, Cin), jnp.bfloat16))
            xp_scr[PAD_H:PAD_H + H, PAD_W + W:PAD_W + W + PAD_W, :] = (
                jnp.zeros((H, PAD_W, Cin), jnp.bfloat16))
            xp_scr[PAD_H:PAD_H + H, PAD_W:PAD_W + W, :] = x_full

            # Global average pool on the MXU: ones-row matmul, f32 accumulate.
            xf_full = x_full.reshape(H * W, Cin)
            ones_row = jnp.ones((1, H * W), jnp.bfloat16)
            s = jnp.dot(ones_row, xf_full, preferred_element_type=jnp.float32)
            mean = s * (1.0 / float(H * W))                  # (1, Cin) f32
            img_scr[...] = jnp.maximum(
                jnp.dot(mean, wimg_ref[...],
                        preferred_element_type=jnp.float32), 0.0)   # (1, R)

        row0 = t * TILE_H

        # --- branch 0: image pooling -> 1x1 -> ReLU -> "bilinear" (broadcast).
        img = img_scr[...].astype(out_dt).reshape(1, 1, R)
        o_ref[0, :, :, 0:R] = jnp.broadcast_to(img, (TILE_H, W, R))

        # --- branch 1: edge 1x1 conv (1 -> R) + ReLU, f32 outer product.
        e = edge_ref[0]                                      # (TILE_H, W, 1)
        o_ref[0, :, :, R:2 * R] = jnp.maximum(
            e * wedge_ref[...].reshape(1, 1, R), 0.0).astype(out_dt)

        # --- fused center matmul: [1x1 | d6 ctr | d12 ctr | d18 ctr] share LHS.
        xf = xp_scr[pl.ds(PAD_H + row0, TILE_H),
                    PAD_W:PAD_W + W, :].reshape(TILE_H * W, Cin)
        yc = jnp.dot(xf, wctr_ref[...],
                     preferred_element_type=jnp.float32)     # (TILE_H*W, 4R)

        # --- branch 2: plain 1x1 conv + ReLU.
        o_ref[0, :, :, 2 * R:3 * R] = jnp.maximum(
            yc[:, 0:R], 0.0).reshape(TILE_H, W, R).astype(out_dt)

        # --- branches 3..5: dilated 3x3 convs (padding = dilation) + ReLU.
        # Per rate: 3 W-shifted views (dx = -r, 0, +r) built once; ky taps are
        # free leading-dim slices; per-tap K=Cin matmuls accumulate into one
        # persistent f32 scratch; center tap comes from the fused matmul above.
        for bi, (r, wref) in enumerate(
                zip(rates, (wd6_ref, wd12_ref, wd18_ref))):
            acc_scr[...] = yc[:, (1 + bi) * R:(2 + bi) * R]
            row_lo = PAD_H + row0 - r
            span = TILE_H + 2 * r
            for dxi, dxo in enumerate((-r, 0, r)):
                v = xp_scr[pl.ds(row_lo, span),
                           PAD_W + dxo:PAD_W + dxo + W, :].reshape(
                               span * W, Cin)
                part = None
                for ky in range(3):
                    if ky == 1 and dxi == 1:
                        continue                             # center already in
                    lhs = v[ky * r * W:ky * r * W + TILE_H * W]
                    d = jnp.dot(lhs, wref[ky, dxi],
                                preferred_element_type=jnp.float32)
                    part = d if part is None else part + d
                acc_scr[...] += part
            lo = (3 + bi) * R
            o_ref[0, :, :, lo:lo + R] = jnp.maximum(
                acc_scr[...], 0.0).reshape(TILE_H, W, R).astype(out_dt)

    out_nhwc = pl.pallas_call(
        kernel,
        out_shape=jax.ShapeDtypeStruct((N, H, W, 6 * R), jnp.bfloat16),
        grid_spec=pltpu.PrefetchScalarGridSpec(
            num_scalar_prefetch=0,
            grid=(N, T),
            in_specs=[
                pl.BlockSpec((1, H, W, Cin), lambda n, t: (n, 0, 0, 0)),
                pl.BlockSpec((1, TILE_H, W, 1), lambda n, t: (n, t, 0, 0)),
                pl.BlockSpec((Cin, R), lambda n, t: (0, 0)),
                pl.BlockSpec((1, R), lambda n, t: (0, 0)),
                pl.BlockSpec((Cin, 4 * R), lambda n, t: (0, 0)),
                pl.BlockSpec((3, 3, Cin, R), lambda n, t: (0, 0, 0, 0)),
                pl.BlockSpec((3, 3, Cin, R), lambda n, t: (0, 0, 0, 0)),
                pl.BlockSpec((3, 3, Cin, R), lambda n, t: (0, 0, 0, 0)),
            ],
            out_specs=pl.BlockSpec((1, TILE_H, W, 6 * R),
                                   lambda n, t: (n, t, 0, 0)),
            scratch_shapes=[
                pltpu.VMEM((Hpad, Wpad, Cin), jnp.bfloat16),   # zero-halo copy
                pltpu.VMEM((1, R), jnp.float32),               # pooled branch
                pltpu.VMEM((TILE_H * W, R), jnp.float32),      # dilated acc
            ]),
        compiler_params=pltpu.CompilerParams(
            # t==0 per-batch init requires the row-tile axis to be sequential.
            dimension_semantics=("parallel", "arbitrary"),
            vmem_limit_bytes=_vmem_limit_bytes()),
    )(x_nhwc, edge_nhwc, w_img, w_edge, w_ctr, *w_dil)

    # NHWC bf16 -> NCHW f32 (cast fuses with the transpose).
    return jnp.transpose(out_nhwc, (0, 3, 1, 2)).astype(jnp.float32)


# ------------------------------- plain-JAX reference --------------------------
def reference_aspp(x, edge, params, rates=(6, 12, 18)):
    N, Cin, H, W = x.shape

    def conv(inp, w, dil=1, pad=0):
        return jax.lax.conv_general_dilated(
            inp, w, window_strides=(1, 1),
            padding=[(pad, pad), (pad, pad)], rhs_dilation=(dil, dil),
            dimension_numbers=("NCHW", "OIHW", "NCHW"),
            precision=jax.lax.Precision.HIGHEST)

    relu = lambda t: jnp.maximum(t, 0.0)
    mean = jnp.mean(x, axis=(2, 3), keepdims=True)
    img = relu(conv(mean, params["w_img"]))
    img = jnp.broadcast_to(img, (N, img.shape[1], H, W))     # bilinear from 1x1
    edge_r = bilinear_resize_nchw(edge, H, W)
    edge_f = relu(conv(edge_r, params["w_edge"]))
    outs = [img, edge_f, relu(conv(x, params["w_1x1"]))]
    for r, k in zip(rates, ("w_d6", "w_d12", "w_d18")):
        outs.append(relu(conv(x, params[k], dil=r, pad=r)))
    return jnp.concatenate(outs, axis=1)


# ----------------------------------- main -------------------------------------
if __name__ == "__main__":
    key = jax.random.PRNGKey(0)
    N, Cin, H, W = 2, 4, 16, 16
    R = 32                                 # reduction_dim (kept small for test)
    ks = jax.random.split(key, 8)

    x = jax.random.normal(ks[0], (N, Cin, H, W), jnp.float32)
    edge = jax.random.normal(ks[1], (N, 1, 8, 8), jnp.float32)

    # Deterministic synthetic parameters (Conv2d OIHW weight shapes, no bias).
    params = {
        "w_img":  0.1 * jax.random.normal(ks[2], (R, Cin, 1, 1), jnp.float32),
        "w_edge": 0.1 * jax.random.normal(ks[3], (R, 1, 1, 1), jnp.float32),
        "w_1x1":  0.1 * jax.random.normal(ks[4], (R, Cin, 1, 1), jnp.float32),
        "w_d6":   0.1 * jax.random.normal(ks[5], (R, Cin, 3, 3), jnp.float32),
        "w_d12":  0.1 * jax.random.normal(ks[6], (R, Cin, 3, 3), jnp.float32),
        "w_d18":  0.1 * jax.random.normal(ks[7], (R, Cin, 3, 3), jnp.float32),
    }

    # Default tile_h for H=16 is 8 -> 2 row tiles per batch (tiling exercised).
    out = aspp_pallas(x, edge, params, rates=(6, 12, 18))
    out = jax.block_until_ready(out)

    assert out.shape == (N, 6 * R, H, W), out.shape
    ref = reference_aspp(x, edge, params, rates=(6, 12, 18))
    assert bool(jnp.allclose(out, ref, rtol=1e-2, atol=2e-2)), "mismatch vs reference"

    print("KERNEL_OK")
</pallas_src>

<mosaic_0001>
module attributes {stable_mosaic.version = 11 : i64} {
  func.func @kernel(%arg0: i32, %arg1: i32, %arg2: memref<1x16x16x4xbf16, #tpu.memory_space<vmem>>, %arg3: memref<1x8x16x1xf32, #tpu.memory_space<vmem>>, %arg4: memref<4x32xf32, #tpu.memory_space<vmem>>, %arg5: memref<1x32xf32, #tpu.memory_space<vmem>>, %arg6: memref<4x128xbf16, #tpu.memory_space<vmem>>, %arg7: memref<3x3x4x32xbf16, #tpu.memory_space<vmem>>, %arg8: memref<3x3x4x32xbf16, #tpu.memory_space<vmem>>, %arg9: memref<3x3x4x32xbf16, #tpu.memory_space<vmem>>, %arg10: memref<1x8x16x192xbf16, #tpu.memory_space<vmem>>, %arg11: memref<52x64x4xbf16, #tpu.memory_space<vmem>>, %arg12: memref<1x32xf32, #tpu.memory_space<vmem>>, %arg13: memref<128x32xf32, #tpu.memory_space<vmem>>) attributes {dimension_semantics = [#tpu.dimension_semantics<parallel>, #tpu.dimension_semantics<arbitrary>], iteration_bounds = array<i64: 2, 2>, scalar_prefetch = 0 : i64, scratch_operands = 3 : i64, tpu.core_type = #tpu.core_type<tc>, window_params = [{transform_indices = @transform_0, window_bounds = array<i64: 1, 16, 16, 4>}, {transform_indices = @transform_1, window_bounds = array<i64: 1, 8, 16, 1>}, {pipeline_mode = #tpu.pipeline_mode<synchronous>, transform_indices = @transform_2, window_bounds = array<i64: 4, 32>}, {pipeline_mode = #tpu.pipeline_mode<synchronous>, transform_indices = @transform_3, window_bounds = array<i64: 1, 32>}, {pipeline_mode = #tpu.pipeline_mode<synchronous>, transform_indices = @transform_4, window_bounds = array<i64: 4, 128>}, {pipeline_mode = #tpu.pipeline_mode<synchronous>, transform_indices = @transform_5, window_bounds = array<i64: 3, 3, 4, 32>}, {pipeline_mode = #tpu.pipeline_mode<synchronous>, transform_indices = @transform_6, window_bounds = array<i64: 3, 3, 4, 32>}, {pipeline_mode = #tpu.pipeline_mode<synchronous>, transform_indices = @transform_7, window_bounds = array<i64: 3, 3, 4, 32>}, {transform_indices = @transform_8, window_bounds = array<i64: 1, 8, 16, 192>}]} {
    %c0_i32 = arith.constant 0 : i32
    %0 = arith.cmpi eq, %arg1, %c0_i32 : i32
    %1 = arith.extui %0 : i1 to i32
    %c0_i32_0 = arith.constant 0 : i32
    %2 = arith.cmpi ne, %1, %c0_i32_0 : i32
    scf.if %2 {
      %c0_217 = arith.constant 0 : index
      %c0_218 = arith.constant 0 : index
      %c0_219 = arith.constant 0 : index
      %c0_220 = arith.constant 0 : index
      %240 = vector.load %arg2[%c0_217, %c0_218, %c0_219, %c0_220] : memref<1x16x16x4xbf16, #tpu.memory_space<vmem>>, vector<1x16x16x4xbf16>
      %241 = vector.shape_cast %240 : vector<1x16x16x4xbf16> to vector<16x16x4xbf16>
      %cst_221 = arith.constant 0.000000e+00 : bf16
      %242 = vector.broadcast %cst_221 : bf16 to vector<18x64x4xbf16>
      %c0_222 = arith.constant 0 : index
      %c0_223 = arith.constant 0 : index
      %c0_224 = arith.constant 0 : index
      %243 = vector.load %arg11[%c0_222, %c0_223, %c0_224] : memref<52x64x4xbf16, #tpu.memory_space<vmem>>, vector<18x64x4xbf16>
      tpu.vector_store %arg11[%c0_222, %c0_223, %c0_224], %242 {strides = array<i32>} : memref<52x64x4xbf16, #tpu.memory_space<vmem>>, vector<18x64x4xbf16>,
      %cst_225 = arith.constant 0.000000e+00 : bf16
      %244 = vector.broadcast %cst_225 : bf16 to vector<18x64x4xbf16>
      %c34 = arith.constant 34 : index
      %c0_226 = arith.constant 0 : index
      %c0_227 = arith.constant 0 : index
      %245 = vector.load %arg11[%c34, %c0_226, %c0_227] : memref<52x64x4xbf16, #tpu.memory_space<vmem>>, vector<18x64x4xbf16>
      tpu.vector_store %arg11[%c34, %c0_226, %c0_227], %244 {strides = array<i32>} : memref<52x64x4xbf16, #tpu.memory_space<vmem>>, vector<18x64x4xbf16>,
      %cst_228 = arith.constant 0.000000e+00 : bf16
      %246 = vector.broadcast %cst_228 : bf16 to vector<16x24x4xbf16>
      %c18_229 = arith.constant 18 : index
      %c0_230 = arith.constant 0 : index
      %c0_231 = arith.constant 0 : index
      %247 = vector.load %arg11[%c18_229, %c0_230, %c0_231] : memref<52x64x4xbf16, #tpu.memory_space<vmem>>, vector<16x24x4xbf16>
      tpu.vector_store %arg11[%c18_229, %c0_230, %c0_231], %246 {strides = array<i32>} : memref<52x64x4xbf16, #tpu.memory_space<vmem>>, vector<16x24x4xbf16>,
      %cst_232 = arith.constant 0.000000e+00 : bf16
      %248 = vector.broadcast %cst_232 : bf16 to vector<16x24x4xbf16>
      %c18_233 = arith.constant 18 : index
      %c40 = arith.constant 40 : index
      %c0_234 = arith.constant 0 : index
      %249 = vector.load %arg11[%c18_233, %c40, %c0_234] : memref<52x64x4xbf16, #tpu.memory_space<vmem>>, vector<16x24x4xbf16>
      tpu.vector_store %arg11[%c18_233, %c40, %c0_234], %248 {strides = array<i32>} : memref<52x64x4xbf16, #tpu.memory_space<vmem>>, vector<16x24x4xbf16>,
      %c18_235 = arith.constant 18 : index
      %c24_236 = arith.constant 24 : index
      %c0_237 = arith.constant 0 : index
      %250 = vector.load %arg11[%c18_235, %c24_236, %c0_237] : memref<52x64x4xbf16, #tpu.memory_space<vmem>>, vector<16x16x4xbf16>
      tpu.vector_store %arg11[%c18_235, %c24_236, %c0_237], %241 {strides = array<i32>} : memref<52x64x4xbf16, #tpu.memory_space<vmem>>, vector<16x16x4xbf16>,
      %251 = vector.shape_cast %241 : vector<16x16x4xbf16> to vector<256x4xbf16>
      %cst_238 = arith.constant 1.000000e+00 : bf16
      %252 = vector.broadcast %cst_238 : bf16 to vector<1x256xbf16>
      %cst_239 = arith.constant dense<0.000000e+00> : vector<1x4xf32>
      %253 = tpu.matmul %252, %251, %cst_239 {dimension_numbers = #tpu.dot_dimension_numbers<[1], [0], [0], [1], [0, 0, 1, 1], [], []>} : vector<1x256xbf16>, vector<256x4xbf16>, vector<1x4xf32> -> vector<1x4xf32>
      %cst_240 = arith.constant 3.906250e-03 : f32
      %254 = vector.broadcast %cst_240 : f32 to vector<1x4xf32>
      %255 = arith.mulf %253, %254 : vector<1x4xf32>
      %c0_241 = arith.constant 0 : index
      %c0_242 = arith.constant 0 : index
      %256 = vector.load %arg4[%c0_241, %c0_242] : memref<4x32xf32, #tpu.memory_space<vmem>>, vector<4x32xf32>
      %cst_243 = arith.constant dense<0.000000e+00> : vector<1x32xf32>
      %257 = tpu.matmul %255, %256, %cst_243 {dimension_numbers = #tpu.dot_dimension_numbers<[1], [0], [0], [1], [0, 0, 1, 1], [], []>} : vector<1x4xf32>, vector<4x32xf32>, vector<1x32xf32> -> vector<1x32xf32>
      %cst_244 = arith.constant 0.000000e+00 : f32
      %258 = vector.broadcast %cst_244 : f32 to vector<1x32xf32>
      %259 = arith.maximumf %257, %258 : vector<1x32xf32>
      %c0_245 = arith.constant 0 : index
      %c0_246 = arith.constant 0 : index
      %260 = vector.load %arg12[%c0_245, %c0_246] : memref<1x32xf32, #tpu.memory_space<vmem>>, vector<1x32xf32>
      tpu.vector_store %arg12[%c0_245, %c0_246], %259 {strides = array<i32>} : memref<1x32xf32, #tpu.memory_space<vmem>>, vector<1x32xf32>,
    } else {
    }
    %c8_i32 = arith.constant 8 : i32
    %3 = arith.muli %arg1, %c8_i32 : i32
    %c0 = arith.constant 0 : index
    %c0_1 = arith.constant 0 : index
    %4 = vector.load %arg12[%c0, %c0_1] : memref<1x32xf32, #tpu.memory_space<vmem>>, vector<1x32xf32>
    %5 = arith.truncf %4 : vector<1x32xf32> to vector<1x32xbf16>
    %6 = vector.shape_cast %5 : vector<1x32xbf16> to vector<1x1x32xbf16>
    %7 = vector.shape_cast %6 : vector<1x1x32xbf16> to vector<1x1x32xbf16>
    %8 = vector.broadcast %7 : vector<1x1x32xbf16> to vector<8x16x32xbf16>
    %c0_2 = arith.constant 0 : index
    %c0_3 = arith.constant 0 : index
    %c0_4 = arith.constant 0 : index
    %c0_5 = arith.constant 0 : index
    %9 = vector.load %arg10[%c0_2, %c0_3, %c0_4, %c0_5] : memref<1x8x16x192xbf16, #tpu.memory_space<vmem>>, vector<1x8x16x32xbf16>
    %10 = vector.shape_cast %9 : vector<1x8x16x32xbf16> to vector<8x16x32xbf16>
    %11 = vector.shape_cast %8 : vector<8x16x32xbf16> to vector<1x8x16x32xbf16>
    tpu.vector_store %arg10[%c0_2, %c0_3, %c0_4, %c0_5], %11 {strides = array<i32>} : memref<1x8x16x192xbf16, #tpu.memory_space<vmem>>, vector<1x8x16x32xbf16>,
    %c0_6 = arith.constant 0 : index
    %c0_7 = arith.constant 0 : index
    %c0_8 = arith.constant 0 : index
    %c0_9 = arith.constant 0 : index
    %12 = vector.load %arg3[%c0_6, %c0_7, %c0_8, %c0_9] : memref<1x8x16x1xf32, #tpu.memory_space<vmem>>, vector<1x8x16x1xf32>
    %13 = vector.shape_cast %12 : vector<1x8x16x1xf32> to vector<8x16x1xf32>
    %c0_10 = arith.constant 0 : index
    %c0_11 = arith.constant 0 : index
    %14 = vector.load %arg5[%c0_10, %c0_11] : memref<1x32xf32, #tpu.memory_space<vmem>>, vector<1x32xf32>
    %15 = vector.shape_cast %14 : vector<1x32xf32> to vector<1x1x32xf32>
    %16 = vector.broadcast %13 : vector<8x16x1xf32> to vector<8x16x32xf32>
    %17 = vector.broadcast %15 : vector<1x1x32xf32> to vector<8x16x32xf32>
    %18 = arith.mulf %16, %17 : vector<8x16x32xf32>
    %cst = arith.constant 0.000000e+00 : f32
    %19 = vector.broadcast %cst : f32 to vector<8x16x32xf32>
    %20 = arith.maximumf %18, %19 : vector<8x16x32xf32>
    %21 = arith.truncf %20 : vector<8x16x32xf32> to vector<8x16x32xbf16>
    %c0_12 = arith.constant 0 : index
    %c0_13 = arith.constant 0 : index
    %c0_14 = arith.constant 0 : index
    %c32 = arith.constant 32 : index
    %22 = vector.load %arg10[%c0_12, %c0_13, %c0_14, %c32] : memref<1x8x16x192xbf16, #tpu.memory_space<vmem>>, vector<1x8x16x32xbf16>
    %23 = vector.shape_cast %22 : vector<1x8x16x32xbf16> to vector<8x16x32xbf16>
    %24 = vector.shape_cast %21 : vector<8x16x32xbf16> to vector<1x8x16x32xbf16>
    tpu.vector_store %arg10[%c0_12, %c0_13, %c0_14, %c32], %24 {strides = array<i32>} : memref<1x8x16x192xbf16, #tpu.memory_space<vmem>>, vector<1x8x16x32xbf16>,
    %c18_i32 = arith.constant 18 : i32
    %25 = arith.addi %c18_i32, %3 : i32
    %26 = arith.index_cast %25 : i32 to index
    %c24 = arith.constant 24 : index
    %c0_15 = arith.constant 0 : index
    %27 = vector.load %arg11[%26, %c24, %c0_15] : memref<52x64x4xbf16, #tpu.memory_space<vmem>>, vector<8x16x4xbf16>
    %28 = vector.shape_cast %27 : vector<8x16x4xbf16> to vector<128x4xbf16>
    %c0_16 = arith.constant 0 : index
    %c0_17 = arith.constant 0 : index
    %29 = vector.load %arg6[%c0_16, %c0_17] : memref<4x128xbf16, #tpu.memory_space<vmem>>, vector<4x128xbf16>
    %cst_18 = arith.constant dense<0.000000e+00> : vector<128x128xf32>
    %30 = tpu.matmul %28, %29, %cst_18 {dimension_numbers = #tpu.dot_dimension_numbers<[1], [0], [0], [1], [0, 0, 1, 1], [], []>} : vector<128x4xbf16>, vector<4x128xbf16>, vector<128x128xf32> -> vector<128x128xf32>
    %31 = vector.extract_strided_slice %30 {offsets = [0, 0], sizes = [128, 32], strides = [1, 1]} : vector<128x128xf32> to vector<128x32xf32>
    %cst_19 = arith.constant 0.000000e+00 : f32
    %32 = vector.broadcast %cst_19 : f32 to vector<128x32xf32>
    %33 = arith.maximumf %31, %32 : vector<128x32xf32>
    %34 = vector.shape_cast %33 : vector<128x32xf32> to vector<8x16x32xf32>
    %35 = arith.truncf %34 : vector<8x16x32xf32> to vector<8x16x32xbf16>
    %c0_20 = arith.constant 0 : index
    %c0_21 = arith.constant 0 : index
    %c0_22 = arith.constant 0 : index
    %c64 = arith.constant 64 : index
    %36 = vector.load %arg10[%c0_20, %c0_21, %c0_22, %c64] : memref<1x8x16x192xbf16, #tpu.memory_space<vmem>>, vector<1x8x16x32xbf16>
    %37 = vector.shape_cast %36 : vector<1x8x16x32xbf16> to vector<8x16x32xbf16>
    %38 = vector.shape_cast %35 : vector<8x16x32xbf16> to vector<1x8x16x32xbf16>
    tpu.vector_store %arg10[%c0_20, %c0_21, %c0_22, %c64], %38 {strides = array<i32>} : memref<1x8x16x192xbf16, #tpu.memory_space<vmem>>, vector<1x8x16x32xbf16>,
    %39 = vector.extract_strided_slice %30 {offsets = [0, 32], sizes = [128, 32], strides = [1, 1]} : vector<128x128xf32> to vector<128x32xf32>
    %c0_23 = arith.constant 0 : index
    %c0_24 = arith.constant 0 : index
    %40 = vector.load %arg13[%c0_23, %c0_24] : memref<128x32xf32, #tpu.memory_space<vmem>>, vector<128x32xf32>
    tpu.vector_store %arg13[%c0_23, %c0_24], %39 {strides = array<i32>} : memref<128x32xf32, #tpu.memory_space<vmem>>, vector<128x32xf32>,
    %c18_i32_25 = arith.constant 18 : i32
    %41 = arith.addi %c18_i32_25, %3 : i32
    %c6_i32 = arith.constant 6 : i32
    %42 = arith.subi %41, %c6_i32 : i32
    %43 = arith.index_cast %42 : i32 to index
    %c18 = arith.constant 18 : index
    %c0_26 = arith.constant 0 : index
    %44 = vector.load %arg11[%43, %c18, %c0_26] : memref<52x64x4xbf16, #tpu.memory_space<vmem>>, vector<20x16x4xbf16>
    %45 = vector.shape_cast %44 : vector<20x16x4xbf16> to vector<320x4xbf16>
    %46 = vector.extract_strided_slice %45 {offsets = [0, 0], sizes = [128, 4], strides = [1, 1]} : vector<320x4xbf16> to vector<128x4xbf16>
    %c0_27 = arith.constant 0 : index
    %c0_28 = arith.constant 0 : index
    %c0_29 = arith.constant 0 : index
    %c0_30 = arith.constant 0 : index
    %47 = vector.load %arg7[%c0_27, %c0_28, %c0_29, %c0_30] : memref<3x3x4x32xbf16, #tpu.memory_space<vmem>>, vector<1x1x4x32xbf16>
    %48 = vector.shape_cast %47 : vector<1x1x4x32xbf16> to vector<4x32xbf16>
    %cst_31 = arith.constant dense<0.000000e+00> : vector<128x32xf32>
    %49 = tpu.matmul %46, %48, %cst_31 {dimension_numbers = #tpu.dot_dimension_numbers<[1], [0], [0], [1], [0, 0, 1, 1], [], []>} : vector<128x4xbf16>, vector<4x32xbf16>, vector<128x32xf32> -> vector<128x32xf32>
    %50 = vector.extract_strided_slice %45 {offsets = [96, 0], sizes = [128, 4], strides = [1, 1]} : vector<320x4xbf16> to vector<128x4xbf16>
    %c1 = arith.constant 1 : index
    %c0_32 = arith.constant 0 : index
    %c0_33 = arith.constant 0 : index
    %c0_34 = arith.constant 0 : index
    %51 = vector.load %arg7[%c1, %c0_32, %c0_33, %c0_34] : memref<3x3x4x32xbf16, #tpu.memory_space<vmem>>, vector<1x1x4x32xbf16>
    %52 = vector.shape_cast %51 : vector<1x1x4x32xbf16> to vector<4x32xbf16>
    %cst_35 = arith.constant dense<0.000000e+00> : vector<128x32xf32>
    %53 = tpu.matmul %50, %52, %cst_35 {dimension_numbers = #tpu.dot_dimension_numbers<[1], [0], [0], [1], [0, 0, 1, 1], [], []>} : vector<128x4xbf16>, vector<4x32xbf16>, vector<128x32xf32> -> vector<128x32xf32>
    %54 = arith.addf %49, %53 : vector<128x32xf32>
    %55 = vector.extract_strided_slice %45 {offsets = [192, 0], sizes = [128, 4], strides = [1, 1]} : vector<320x4xbf16> to vector<128x4xbf16>
    %c2 = arith.constant 2 : index
    %c0_36 = arith.constant 0 : index
    %c0_37 = arith.constant 0 : index
    %c0_38 = arith.constant 0 : index
    %56 = vector.load %arg7[%c2, %c0_36, %c0_37, %c0_38] : memref<3x3x4x32xbf16, #tpu.memory_space<vmem>>, vector<1x1x4x32xbf16>
    %57 = vector.shape_cast %56 : vector<1x1x4x32xbf16> to vector<4x32xbf16>
    %cst_39 = arith.constant dense<0.000000e+00> : vector<128x32xf32>
    %58 = tpu.matmul %55, %57, %cst_39 {dimension_numbers = #tpu.dot_dimension_numbers<[1], [0], [0], [1], [0, 0, 1, 1], [], []>} : vector<128x4xbf16>, vector<4x32xbf16>, vector<128x32xf32> -> vector<128x32xf32>
    %59 = arith.addf %54, %58 : vector<128x32xf32>
    %c0_40 = arith.constant 0 : index
    %c0_41 = arith.constant 0 : index
    %60 = vector.load %arg13[%c0_40, %c0_41] : memref<128x32xf32, #tpu.memory_space<vmem>>, vector<128x32xf32>
    %61 = arith.addf %60, %59 : vector<128x32xf32>
    %c0_42 = arith.constant 0 : index
    %c0_43 = arith.constant 0 : index
    %62 = vector.load %arg13[%c0_42, %c0_43] : memref<128x32xf32, #tpu.memory_space<vmem>>, vector<128x32xf32>
    tpu.vector_store %arg13[%c0_42, %c0_43], %61 {strides = array<i32>} : memref<128x32xf32, #tpu.memory_space<vmem>>, vector<128x32xf32>,
    %63 = arith.index_cast %42 : i32 to index
    %c24_44 = arith.constant 24 : index
    %c0_45 = arith.constant 0 : index
    %64 = vector.load %arg11[%63, %c24_44, %c0_45] : memref<52x64x4xbf16, #tpu.memory_space<vmem>>, vector<20x16x4xbf16>
    %65 = vector.shape_cast %64 : vector<20x16x4xbf16> to vector<320x4xbf16>
    %66 = vector.extract_strided_slice %65 {offsets = [0, 0], sizes = [128, 4], strides = [1, 1]} : vector<320x4xbf16> to vector<128x4xbf16>
    %c0_46 = arith.constant 0 : index
    %c1_47 = arith.constant 1 : index
    %c0_48 = arith.constant 0 : index
    %c0_49 = arith.constant 0 : index
    %67 = vector.load %arg7[%c0_46, %c1_47, %c0_48, %c0_49] : memref<3x3x4x32xbf16, #tpu.memory_space<vmem>>, vector<1x1x4x32xbf16>
    %68 = vector.shape_cast %67 : vector<1x1x4x32xbf16> to vector<4x32xbf16>
    %cst_50 = arith.constant dense<0.000000e+00> : vector<128x32xf32>
    %69 = tpu.matmul %66, %68, %cst_50 {dimension_numbers = #tpu.dot_dimension_numbers<[1], [0], [0], [1], [0, 0, 1, 1], [], []>} : vector<128x4xbf16>, vector<4x32xbf16>, vector<128x32xf32> -> vector<128x32xf32>
    %70 = vector.extract_strided_slice %65 {offsets = [192, 0], sizes = [128, 4], strides = [1, 1]} : vector<320x4xbf16> to vector<128x4xbf16>
    %c2_51 = arith.constant 2 : index
    %c1_52 = arith.constant 1 : index
    %c0_53 = arith.constant 0 : index
    %c0_54 = arith.constant 0 : index
    %71 = vector.load %arg7[%c2_51, %c1_52, %c0_53, %c0_54] : memref<3x3x4x32xbf16, #tpu.memory_space<vmem>>, vector<1x1x4x32xbf16>
    %72 = vector.shape_cast %71 : vector<1x1x4x32xbf16> to vector<4x32xbf16>
    %cst_55 = arith.constant dense<0.000000e+00> : vector<128x32xf32>
    %73 = tpu.matmul %70, %72, %cst_55 {dimension_numbers = #tpu.dot_dimension_numbers<[1], [0], [0], [1], [0, 0, 1, 1], [], []>} : vector<128x4xbf16>, vector<4x32xbf16>, vector<128x32xf32> -> vector<128x32xf32>
    %74 = arith.addf %69, %73 : vector<128x32xf32>
    %c0_56 = arith.constant 0 : index
    %c0_57 = arith.constant 0 : index
    %75 = vector.load %arg13[%c0_56, %c0_57] : memref<128x32xf32, #tpu.memory_space<vmem>>, vector<128x32xf32>
    %76 = arith.addf %75, %74 : vector<128x32xf32>
    %c0_58 = arith.constant 0 : index
    %c0_59 = arith.constant 0 : index
    %77 = vector.load %arg13[%c0_58, %c0_59] : memref<128x32xf32, #tpu.memory_space<vmem>>, vector<128x32xf32>
    tpu.vector_store %arg13[%c0_58, %c0_59], %76 {strides = array<i32>} : memref<128x32xf32, #tpu.memory_space<vmem>>, vector<128x32xf32>,
    %78 = arith.index_cast %42 : i32 to index
    %c30 = arith.constant 30 : index
    %c0_60 = arith.constant 0 : index
    %79 = vector.load %arg11[%78, %c30, %c0_60] : memref<52x64x4xbf16, #tpu.memory_space<vmem>>, vector<20x16x4xbf16>
    %80 = vector.shape_cast %79 : vector<20x16x4xbf16> to vector<320x4xbf16>
    %81 = vector.extract_strided_slice %80 {offsets = [0, 0], sizes = [128, 4], strides = [1, 1]} : vector<320x4xbf16> to vector<128x4xbf16>
    %c0_61 = arith.constant 0 : index
    %c2_62 = arith.constant 2 : index
    %c0_63 = arith.constant 0 : index
    %c0_64 = arith.constant 0 : index
    %82 = vector.load %arg7[%c0_61, %c2_62, %c0_63, %c0_64] : memref<3x3x4x32xbf16, #tpu.memory_space<vmem>>, vector<1x1x4x32xbf16>
    %83 = vector.shape_cast %82 : vector<1x1x4x32xbf16> to vector<4x32xbf16>
    %cst_65 = arith.constant dense<0.000000e+00> : vector<128x32xf32>
    %84 = tpu.matmul %81, %83, %cst_65 {dimension_numbers = #tpu.dot_dimension_numbers<[1], [0], [0], [1], [0, 0, 1, 1], [], []>} : vector<128x4xbf16>, vector<4x32xbf16>, vector<128x32xf32> -> vector<128x32xf32>
    %85 = vector.extract_strided_slice %80 {offsets = [96, 0], sizes = [128, 4], strides = [1, 1]} : vector<320x4xbf16> to vector<128x4xbf16>
    %c1_66 = arith.constant 1 : index
    %c2_67 = arith.constant 2 : index
    %c0_68 = arith.constant 0 : index
    %c0_69 = arith.constant 0 : index
    %86 = vector.load %arg7[%c1_66, %c2_67, %c0_68, %c0_69] : memref<3x3x4x32xbf16, #tpu.memory_space<vmem>>, vector<1x1x4x32xbf16>
    %87 = vector.shape_cast %86 : vector<1x1x4x32xbf16> to vector<4x32xbf16>
    %cst_70 = arith.constant dense<0.000000e+00> : vector<128x32xf32>
    %88 = tpu.matmul %85, %87, %cst_70 {dimension_numbers = #tpu.dot_dimension_numbers<[1], [0], [0], [1], [0, 0, 1, 1], [], []>} : vector<128x4xbf16>, vector<4x32xbf16>, vector<128x32xf32> -> vector<128x32xf32>
    %89 = arith.addf %84, %88 : vector<128x32xf32>
    %90 = vector.extract_strided_slice %80 {offsets = [192, 0], sizes = [128, 4], strides = [1, 1]} : vector<320x4xbf16> to vector<128x4xbf16>
    %c2_71 = arith.constant 2 : index
    %c2_72 = arith.constant 2 : index
    %c0_73 = arith.constant 0 : index
    %c0_74 = arith.constant 0 : index
    %91 = vector.load %arg7[%c2_71, %c2_72, %c0_73, %c0_74] : memref<3x3x4x32xbf16, #tpu.memory_space<vmem>>, vector<1x1x4x32xbf16>
    %92 = vector.shape_cast %91 : vector<1x1x4x32xbf16> to vector<4x32xbf16>
    %cst_75 = arith.constant dense<0.000000e+00> : vector<128x32xf32>
    %93 = tpu.matmul %90, %92, %cst_75 {dimension_numbers = #tpu.dot_dimension_numbers<[1], [0], [0], [1], [0, 0, 1, 1], [], []>} : vector<128x4xbf16>, vector<4x32xbf16>, vector<128x32xf32> -> vector<128x32xf32>
    %94 = arith.addf %89, %93 : vector<128x32xf32>
    %c0_76 = arith.constant 0 : index
    %c0_77 = arith.constant 0 : index
    %95 = vector.load %arg13[%c0_76, %c0_77] : memref<128x32xf32, #tpu.memory_space<vmem>>, vector<128x32xf32>
    %96 = arith.addf %95, %94 : vector<128x32xf32>
    %c0_78 = arith.constant 0 : index
    %c0_79 = arith.constant 0 : index
    %97 = vector.load %arg13[%c0_78, %c0_79] : memref<128x32xf32, #tpu.memory_space<vmem>>, vector<128x32xf32>
    tpu.vector_store %arg13[%c0_78, %c0_79], %96 {strides = array<i32>} : memref<128x32xf32, #tpu.memory_space<vmem>>, vector<128x32xf32>,
    %c0_80 = arith.constant 0 : index
    %c0_81 = arith.constant 0 : index
    %98 = vector.load %arg13[%c0_80, %c0_81] : memref<128x32xf32, #tpu.memory_space<vmem>>, vector<128x32xf32>
    %cst_82 = arith.constant 0.000000e+00 : f32
    %99 = vector.broadcast %cst_82 : f32 to vector<128x32xf32>
    %100 = arith.maximumf %98, %99 : vector<128x32xf32>
    %101 = vector.shape_cast %100 : vector<128x32xf32> to vector<8x16x32xf32>
    %102 = arith.truncf %101 : vector<8x16x32xf32> to vector<8x16x32xbf16>
    %c0_83 = arith.constant 0 : index
    %c0_84 = arith.constant 0 : index
    %c0_85 = arith.constant 0 : index
    %c96 = arith.constant 96 : index
    %103 = vector.load %arg10[%c0_83, %c0_84, %c0_85, %c96] : memref<1x8x16x192xbf16, #tpu.memory_space<vmem>>, vector<1x8x16x32xbf16>
    %104 = vector.shape_cast %103 : vector<1x8x16x32xbf16> to vector<8x16x32xbf16>
    %105 = vector.shape_cast %102 : vector<8x16x32xbf16> to vector<1x8x16x32xbf16>
    tpu.vector_store %arg10[%c0_83, %c0_84, %c0_85, %c96], %105 {strides = array<i32>} : memref<1x8x16x192xbf16, #tpu.memory_space<vmem>>, vector<1x8x16x32xbf16>,
    %106 = vector.extract_strided_slice %30 {offsets = [0, 64], sizes = [128, 32], strides = [1, 1]} : vector<128x128xf32> to vector<128x32xf32>
    %c0_86 = arith.constant 0 : index
    %c0_87 = arith.constant 0 : index
    %107 = vector.load %arg13[%c0_86, %c0_87] : memref<128x32xf32, #tpu.memory_space<vmem>>, vector<128x32xf32>
    tpu.vector_store %arg13[%c0_86, %c0_87], %106 {strides = array<i32>} : memref<128x32xf32, #tpu.memory_space<vmem>>, vector<128x32xf32>,
    %c18_i32_88 = arith.constant 18 : i32
    %108 = arith.addi %c18_i32_88, %3 : i32
    %c12_i32 = arith.constant 12 : i32
    %109 = arith.subi %108, %c12_i32 : i32
    %110 = arith.index_cast %109 : i32 to index
    %c12 = arith.constant 12 : index
    %c0_89 = arith.constant 0 : index
    %111 = vector.load %arg11[%110, %c12, %c0_89] : memref<52x64x4xbf16, #tpu.memory_space<vmem>>, vector<32x16x4xbf16>
    %112 = vector.shape_cast %111 : vector<32x16x4xbf16> to vector<512x4xbf16>
    %113 = vector.extract_strided_slice %112 {offsets = [0, 0], sizes = [128, 4], strides = [1, 1]} : vector<512x4xbf16> to vector<128x4xbf16>
    %c0_90 = arith.constant 0 : index
    %c0_91 = arith.constant 0 : index
    %c0_92 = arith.constant 0 : index
    %c0_93 = arith.constant 0 : index
    %114 = vector.load %arg8[%c0_90, %c0_91, %c0_92, %c0_93] : memref<3x3x4x32xbf16, #tpu.memory_space<vmem>>, vector<1x1x4x32xbf16>
    %115 = vector.shape_cast %114 : vector<1x1x4x32xbf16> to vector<4x32xbf16>
    %cst_94 = arith.constant dense<0.000000e+00> : vector<128x32xf32>
    %116 = tpu.matmul %113, %115, %cst_94 {dimension_numbers = #tpu.dot_dimension_numbers<[1], [0], [0], [1], [0, 0, 1, 1], [], []>} : vector<128x4xbf16>, vector<4x32xbf16>, vector<128x32xf32> -> vector<128x32xf32>
    %117 = vector.extract_strided_slice %112 {offsets = [192, 0], sizes = [128, 4], strides = [1, 1]} : vector<512x4xbf16> to vector<128x4xbf16>
    %c1_95 = arith.constant 1 : index
    %c0_96 = arith.constant 0 : index
    %c0_97 = arith.constant 0 : index
    %c0_98 = arith.constant 0 : index
    %118 = vector.load %arg8[%c1_95, %c0_96, %c0_97, %c0_98] : memref<3x3x4x32xbf16, #tpu.memory_space<vmem>>, vector<1x1x4x32xbf16>
    %119 = vector.shape_cast %118 : vector<1x1x4x32xbf16> to vector<4x32xbf16>
    %cst_99 = arith.constant dense<0.000000e+00> : vector<128x32xf32>
    %120 = tpu.matmul %117, %119, %cst_99 {dimension_numbers = #tpu.dot_dimension_numbers<[1], [0], [0], [1], [0, 0, 1, 1], [], []>} : vector<128x4xbf16>, vector<4x32xbf16>, vector<128x32xf32> -> vector<128x32xf32>
    %121 = arith.addf %116, %120 : vector<128x32xf32>
    %122 = vector.extract_strided_slice %112 {offsets = [384, 0], sizes = [128, 4], strides = [1, 1]} : vector<512x4xbf16> to vector<128x4xbf16>
    %c2_100 = arith.constant 2 : index
    %c0_101 = arith.constant 0 : index
    %c0_102 = arith.constant 0 : index
    %c0_103 = arith.constant 0 : index
    %123 = vector.load %arg8[%c2_100, %c0_101, %c0_102, %c0_103] : memref<3x3x4x32xbf16, #tpu.memory_space<vmem>>, vector<1x1x4x32xbf16>
    %124 = vector.shape_cast %123 : vector<1x1x4x32xbf16> to vector<4x32xbf16>
    %cst_104 = arith.constant dense<0.000000e+00> : vector<128x32xf32>
    %125 = tpu.matmul %122, %124, %cst_104 {dimension_numbers = #tpu.dot_dimension_numbers<[1], [0], [0], [1], [0, 0, 1, 1], [], []>} : vector<128x4xbf16>, vector<4x32xbf16>, vector<128x32xf32> -> vector<128x32xf32>
    %126 = arith.addf %121, %125 : vector<128x32xf32>
    %c0_105 = arith.constant 0 : index
    %c0_106 = arith.constant 0 : index
    %127 = vector.load %arg13[%c0_105, %c0_106] : memref<128x32xf32, #tpu.memory_space<vmem>>, vector<128x32xf32>
    %128 = arith.addf %127, %126 : vector<128x32xf32>
    %c0_107 = arith.constant 0 : index
    %c0_108 = arith.constant 0 : index
    %129 = vector.load %arg13[%c0_107, %c0_108] : memref<128x32xf32, #tpu.memory_space<vmem>>, vector<128x32xf32>
    tpu.vector_store %arg13[%c0_107, %c0_108], %128 {strides = array<i32>} : memref<128x32xf32, #tpu.memory_space<vmem>>, vector<128x32xf32>,
    %130 = arith.index_cast %109 : i32 to index
    %c24_109 = arith.constant 24 : index
    %c0_110 = arith.constant 0 : index
    %131 = vector.load %arg11[%130, %c24_109, %c0_110] : memref<52x64x4xbf16, #tpu.memory_space<vmem>>, vector<32x16x4xbf16>
    %132 = vector.shape_cast %131 : vector<32x16x4xbf16> to vector<512x4xbf16>
    %133 = vector.extract_strided_slice %132 {offsets = [0, 0], sizes = [128, 4], strides = [1, 1]} : vector<512x4xbf16> to vector<128x4xbf16>
    %c0_111 = arith.constant 0 : index
    %c1_112 = arith.constant 1 : index
    %c0_113 = arith.constant 0 : index
    %c0_114 = arith.constant 0 : index
    %134 = vector.load %arg8[%c0_111, %c1_112, %c0_113, %c0_114] : memref<3x3x4x32xbf16, #tpu.memory_space<vmem>>, vector<1x1x4x32xbf16>
    %135 = vector.shape_cast %134 : vector<1x1x4x32xbf16> to vector<4x32xbf16>
    %cst_115 = arith.constant dense<0.000000e+00> : vector<128x32xf32>
    %136 = tpu.matmul %133, %135, %cst_115 {dimension_numbers = #tpu.dot_dimension_numbers<[1], [0], [0], [1], [0, 0, 1, 1], [], []>} : vector<128x4xbf16>, vector<4x32xbf16>, vector<128x32xf32> -> vector<128x32xf32>
    %137 = vector.extract_strided_slice %132 {offsets = [384, 0], sizes = [128, 4], strides = [1, 1]} : vector<512x4xbf16> to vector<128x4xbf16>
    %c2_116 = arith.constant 2 : index
    %c1_117 = arith.constant 1 : index
    %c0_118 = arith.constant 0 : index
    %c0_119 = arith.constant 0 : index
    %138 = vector.load %arg8[%c2_116, %c1_117, %c0_118, %c0_119] : memref<3x3x4x32xbf16, #tpu.memory_space<vmem>>, vector<1x1x4x32xbf16>
    %139 = vector.shape_cast %138 : vector<1x1x4x32xbf16> to vector<4x32xbf16>
    %cst_120 = arith.constant dense<0.000000e+00> : vector<128x32xf32>
    %140 = tpu.matmul %137, %139, %cst_120 {dimension_numbers = #tpu.dot_dimension_numbers<[1], [0], [0], [1], [0, 0, 1, 1], [], []>} : vector<128x4xbf16>, vector<4x32xbf16>, vector<128x32xf32> -> vector<128x32xf32>
    %141 = arith.addf %136, %140 : vector<128x32xf32>
    %c0_121 = arith.constant 0 : index
    %c0_122 = arith.constant 0 : index
    %142 = vector.load %arg13[%c0_121, %c0_122] : memref<128x32xf32, #tpu.memory_space<vmem>>, vector<128x32xf32>
    %143 = arith.addf %142, %141 : vector<128x32xf32>
    %c0_123 = arith.constant 0 : index
    %c0_124 = arith.constant 0 : index
    %144 = vector.load %arg13[%c0_123, %c0_124] : memref<128x32xf32, #tpu.memory_space<vmem>>, vector<128x32xf32>
    tpu.vector_store %arg13[%c0_123, %c0_124], %143 {strides = array<i32>} : memref<128x32xf32, #tpu.memory_space<vmem>>, vector<128x32xf32>,
    %145 = arith.index_cast %109 : i32 to index
    %c36 = arith.constant 36 : index
    %c0_125 = arith.constant 0 : index
    %146 = vector.load %arg11[%145, %c36, %c0_125] : memref<52x64x4xbf16, #tpu.memory_space<vmem>>, vector<32x16x4xbf16>
    %147 = vector.shape_cast %146 : vector<32x16x4xbf16> to vector<512x4xbf16>
    %148 = vector.extract_strided_slice %147 {offsets = [0, 0], sizes = [128, 4], strides = [1, 1]} : vector<512x4xbf16> to vector<128x4xbf16>
    %c0_126 = arith.constant 0 : index
    %c2_127 = arith.constant 2 : index
    %c0_128 = arith.constant 0 : index
    %c0_129 = arith.constant 0 : index
    %149 = vector.load %arg8[%c0_126, %c2_127, %c0_128, %c0_129] : memref<3x3x4x32xbf16, #tpu.memory_space<vmem>>, vector<1x1x4x32xbf16>
    %150 = vector.shape_cast %149 : vector<1x1x4x32xbf16> to vector<4x32xbf16>
    %cst_130 = arith.constant dense<0.000000e+00> : vector<128x32xf32>
    %151 = tpu.matmul %148, %150, %cst_130 {dimension_numbers = #tpu.dot_dimension_numbers<[1], [0], [0], [1], [0, 0, 1, 1], [], []>} : vector<128x4xbf16>, vector<4x32xbf16>, vector<128x32xf32> -> vector<128x32xf32>
    %152 = vector.extract_strided_slice %147 {offsets = [192, 0], sizes = [128, 4], strides = [1, 1]} : vector<512x4xbf16> to vector<128x4xbf16>
    %c1_131 = arith.constant 1 : index
    %c2_132 = arith.constant 2 : index
    %c0_133 = arith.constant 0 : index
    %c0_134 = arith.constant 0 : index
    %153 = vector.load %arg8[%c1_131, %c2_132, %c0_133, %c0_134] : memref<3x3x4x32xbf16, #tpu.memory_space<vmem>>, vector<1x1x4x32xbf16>
    %154 = vector.shape_cast %153 : vector<1x1x4x32xbf16> to vector<4x32xbf16>
    %cst_135 = arith.constant dense<0.000000e+00> : vector<128x32xf32>
    %155 = tpu.matmul %152, %154, %cst_135 {dimension_numbers = #tpu.dot_dimension_numbers<[1], [0], [0], [1], [0, 0, 1, 1], [], []>} : vector<128x4xbf16>, vector<4x32xbf16>, vector<128x32xf32> -> vector<128x32xf32>
    %156 = arith.addf %151, %155 : vector<128x32xf32>
    %157 = vector.extract_strided_slice %147 {offsets = [384, 0], sizes = [128, 4], strides = [1, 1]} : vector<512x4xbf16> to vector<128x4xbf16>
    %c2_136 = arith.constant 2 : index
    %c2_137 = arith.constant 2 : index
    %c0_138 = arith.constant 0 : index
    %c0_139 = arith.constant 0 : index
    %158 = vector.load %arg8[%c2_136, %c2_137, %c0_138, %c0_139] : memref<3x3x4x32xbf16, #tpu.memory_space<vmem>>, vector<1x1x4x32xbf16>
    %159 = vector.shape_cast %158 : vector<1x1x4x32xbf16> to vector<4x32xbf16>
    %cst_140 = arith.constant dense<0.000000e+00> : vector<128x32xf32>
    %160 = tpu.matmul %157, %159, %cst_140 {dimension_numbers = #tpu.dot_dimension_numbers<[1], [0], [0], [1], [0, 0, 1, 1], [], []>} : vector<128x4xbf16>, vector<4x32xbf16>, vector<128x32xf32> -> vector<128x32xf32>
    %161 = arith.addf %156, %160 : vector<128x32xf32>
    %c0_141 = arith.constant 0 : index
    %c0_142 = arith.constant 0 : index
    %162 = vector.load %arg13[%c0_141, %c0_142] : memref<128x32xf32, #tpu.memory_space<vmem>>, vector<128x32xf32>
    %163 = arith.addf %162, %161 : vector<128x32xf32>
    %c0_143 = arith.constant 0 : index
    %c0_144 = arith.constant 0 : index
    %164 = vector.load %arg13[%c0_143, %c0_144] : memref<128x32xf32, #tpu.memory_space<vmem>>, vector<128x32xf32>
    tpu.vector_store %arg13[%c0_143, %c0_144], %163 {strides = array<i32>} : memref<128x32xf32, #tpu.memory_space<vmem>>, vector<128x32xf32>,
    %c0_145 = arith.constant 0 : index
    %c0_146 = arith.constant 0 : index
    %165 = vector.load %arg13[%c0_145, %c0_146] : memref<128x32xf32, #tpu.memory_space<vmem>>, vector<128x32xf32>
    %cst_147 = arith.constant 0.000000e+00 : f32
    %166 = vector.broadcast %cst_147 : f32 to vector<128x32xf32>
    %167 = arith.maximumf %165, %166 : vector<128x32xf32>
    %168 = vector.shape_cast %167 : vector<128x32xf32> to vector<8x16x32xf32>
    %169 = arith.truncf %168 : vector<8x16x32xf32> to vector<8x16x32xbf16>
    %c0_148 = arith.constant 0 : index
    %c0_149 = arith.constant 0 : index
    %c0_150 = arith.constant 0 : index
    %c128 = arith.constant 128 : index
    %170 = vector.load %arg10[%c0_148, %c0_149, %c0_150, %c128] : memref<1x8x16x192xbf16, #tpu.memory_space<vmem>>, vector<1x8x16x32xbf16>
    %171 = vector.shape_cast %170 : vector<1x8x16x32xbf16> to vector<8x16x32xbf16>
    %172 = vector.shape_cast %169 : vector<8x16x32xbf16> to vector<1x8x16x32xbf16>
    tpu.vector_store %arg10[%c0_148, %c0_149, %c0_150, %c128], %172 {strides = array<i32>} : memref<1x8x16x192xbf16, #tpu.memory_space<vmem>>, vector<1x8x16x32xbf16>,
    %173 = vector.extract_strided_slice %30 {offsets = [0, 96], sizes = [128, 32], strides = [1, 1]} : vector<128x128xf32> to vector<128x32xf32>
    %c0_151 = arith.constant 0 : index
    %c0_152 = arith.constant 0 : index
    %174 = vector.load %arg13[%c0_151, %c0_152] : memref<128x32xf32, #tpu.memory_space<vmem>>, vector<128x32xf32>
    tpu.vector_store %arg13[%c0_151, %c0_152], %173 {strides = array<i32>} : memref<128x32xf32, #tpu.memory_space<vmem>>, vector<128x32xf32>,
    %c18_i32_153 = arith.constant 18 : i32
    %175 = arith.addi %c18_i32_153, %3 : i32
    %c18_i32_154 = arith.constant 18 : i32
    %176 = arith.subi %175, %c18_i32_154 : i32
    %177 = arith.index_cast %176 : i32 to index
    %c6 = arith.constant 6 : index
    %c0_155 = arith.constant 0 : index
    %178 = vector.load %arg11[%177, %c6, %c0_155] : memref<52x64x4xbf16, #tpu.memory_space<vmem>>, vector<44x16x4xbf16>
    %179 = vector.shape_cast %178 : vector<44x16x4xbf16> to vector<704x4xbf16>
    %180 = vector.extract_strided_slice %179 {offsets = [0, 0], sizes = [128, 4], strides = [1, 1]} : vector<704x4xbf16> to vector<128x4xbf16>
    %c0_156 = arith.constant 0 : index
    %c0_157 = arith.constant 0 : index
    %c0_158 = arith.constant 0 : index
    %c0_159 = arith.constant 0 : index
    %181 = vector.load %arg9[%c0_156, %c0_157, %c0_158, %c0_159] : memref<3x3x4x32xbf16, #tpu.memory_space<vmem>>, vector<1x1x4x32xbf16>
    %182 = vector.shape_cast %181 : vector<1x1x4x32xbf16> to vector<4x32xbf16>
    %cst_160 = arith.constant dense<0.000000e+00> : vector<128x32xf32>
    %183 = tpu.matmul %180, %182, %cst_160 {dimension_numbers = #tpu.dot_dimension_numbers<[1], [0], [0], [1], [0, 0, 1, 1], [], []>} : vector<128x4xbf16>, vector<4x32xbf16>, vector<128x32xf32> -> vector<128x32xf32>
    %184 = vector.extract_strided_slice %179 {offsets = [288, 0], sizes = [128, 4], strides = [1, 1]} : vector<704x4xbf16> to vector<128x4xbf16>
    %c1_161 = arith.constant 1 : index
    %c0_162 = arith.constant 0 : index
    %c0_163 = arith.constant 0 : index
    %c0_164 = arith.constant 0 : index
    %185 = vector.load %arg9[%c1_161, %c0_162, %c0_163, %c0_164] : memref<3x3x4x32xbf16, #tpu.memory_space<vmem>>, vector<1x1x4x32xbf16>
    %186 = vector.shape_cast %185 : vector<1x1x4x32xbf16> to vector<4x32xbf16>
    %cst_165 = arith.constant dense<0.000000e+00> : vector<128x32xf32>
    %187 = tpu.matmul %184, %186, %cst_165 {dimension_numbers = #tpu.dot_dimension_numbers<[1], [0], [0], [1], [0, 0, 1, 1], [], []>} : vector<128x4xbf16>, vector<4x32xbf16>, vector<128x32xf32> -> vector<128x32xf32>
    %188 = arith.addf %183, %187 : vector<128x32xf32>
    %189 = vector.extract_strided_slice %179 {offsets = [576, 0], sizes = [128, 4], strides = [1, 1]} : vector<704x4xbf16> to vector<128x4xbf16>
    %c2_166 = arith.constant 2 : index
    %c0_167 = arith.constant 0 : index
    %c0_168 = arith.constant 0 : index
    %c0_169 = arith.constant 0 : index
    %190 = vector.load %arg9[%c2_166, %c0_167, %c0_168, %c0_169] : memref<3x3x4x32xbf16, #tpu.memory_space<vmem>>, vector<1x1x4x32xbf16>
    %191 = vector.shape_cast %190 : vector<1x1x4x32xbf16> to vector<4x32xbf16>
    %cst_170 = arith.constant dense<0.000000e+00> : vector<128x32xf32>
    %192 = tpu.matmul %189, %191, %cst_170 {dimension_numbers = #tpu.dot_dimension_numbers<[1], [0], [0], [1], [0, 0, 1, 1], [], []>} : vector<128x4xbf16>, vector<4x32xbf16>, vector<128x32xf32> -> vector<128x32xf32>
    %193 = arith.addf %188, %192 : vector<128x32xf32>
    %c0_171 = arith.constant 0 : index
    %c0_172 = arith.constant 0 : index
    %194 = vector.load %arg13[%c0_171, %c0_172] : memref<128x32xf32, #tpu.memory_space<vmem>>, vector<128x32xf32>
    %195 = arith.addf %194, %193 : vector<128x32xf32>
    %c0_173 = arith.constant 0 : index
    %c0_174 = arith.constant 0 : index
    %196 = vector.load %arg13[%c0_173, %c0_174] : memref<128x32xf32, #tpu.memory_space<vmem>>, vector<128x32xf32>
    tpu.vector_store %arg13[%c0_173, %c0_174], %195 {strides = array<i32>} : memref<128x32xf32, #tpu.memory_space<vmem>>, vector<128x32xf32>,
    %197 = arith.index_cast %176 : i32 to index
    %c24_175 = arith.constant 24 : index
    %c0_176 = arith.constant 0 : index
    %198 = vector.load %arg11[%197, %c24_175, %c0_176] : memref<52x64x4xbf16, #tpu.memory_space<vmem>>, vector<44x16x4xbf16>
    %199 = vector.shape_cast %198 : vector<44x16x4xbf16> to vector<704x4xbf16>
    %200 = vector.extract_strided_slice %199 {offsets = [0, 0], sizes = [128, 4], strides = [1, 1]} : vector<704x4xbf16> to vector<128x4xbf16>
    %c0_177 = arith.constant 0 : index
    %c1_178 = arith.constant 1 : index
    %c0_179 = arith.constant 0 : index
    %c0_180 = arith.constant 0 : index
    %201 = vector.load %arg9[%c0_177, %c1_178, %c0_179, %c0_180] : memref<3x3x4x32xbf16, #tpu.memory_space<vmem>>, vector<1x1x4x32xbf16>
    %202 = vector.shape_cast %201 : vector<1x1x4x32xbf16> to vector<4x32xbf16>
    %cst_181 = arith.constant dense<0.000000e+00> : vector<128x32xf32>
    %203 = tpu.matmul %200, %202, %cst_181 {dimension_numbers = #tpu.dot_dimension_numbers<[1], [0], [0], [1], [0, 0, 1, 1], [], []>} : vector<128x4xbf16>, vector<4x32xbf16>, vector<128x32xf32> -> vector<128x32xf32>
    %204 = vector.extract_strided_slice %199 {offsets = [576, 0], sizes = [128, 4], strides = [1, 1]} : vector<704x4xbf16> to vector<128x4xbf16>
    %c2_182 = arith.constant 2 : index
    %c1_183 = arith.constant 1 : index
    %c0_184 = arith.constant 0 : index
    %c0_185 = arith.constant 0 : index
    %205 = vector.load %arg9[%c2_182, %c1_183, %c0_184, %c0_185] : memref<3x3x4x32xbf16, #tpu.memory_space<vmem>>, vector<1x1x4x32xbf16>
    %206 = vector.shape_cast %205 : vector<1x1x4x32xbf16> to vector<4x32xbf16>
    %cst_186 = arith.constant dense<0.000000e+00> : vector<128x32xf32>
    %207 = tpu.matmul %204, %206, %cst_186 {dimension_numbers = #tpu.dot_dimension_numbers<[1], [0], [0], [1], [0, 0, 1, 1], [], []>} : vector<128x4xbf16>, vector<4x32xbf16>, vector<128x32xf32> -> vector<128x32xf32>
    %208 = arith.addf %203, %207 : vector<128x32xf32>
    %c0_187 = arith.constant 0 : index
    %c0_188 = arith.constant 0 : index
    %209 = vector.load %arg13[%c0_187, %c0_188] : memref<128x32xf32, #tpu.memory_space<vmem>>, vector<128x32xf32>
    %210 = arith.addf %209, %208 : vector<128x32xf32>
    %c0_189 = arith.constant 0 : index
    %c0_190 = arith.constant 0 : index
    %211 = vector.load %arg13[%c0_189, %c0_190] : memref<128x32xf32, #tpu.memory_space<vmem>>, vector<128x32xf32>
    tpu.vector_store %arg13[%c0_189, %c0_190], %210 {strides = array<i32>} : memref<128x32xf32, #tpu.memory_space<vmem>>, vector<128x32xf32>,
    %212 = arith.index_cast %176 : i32 to index
    %c42 = arith.constant 42 : index
    %c0_191 = arith.constant 0 : index
    %213 = vector.load %arg11[%212, %c42, %c0_191] : memref<52x64x4xbf16, #tpu.memory_space<vmem>>, vector<44x16x4xbf16>
    %214 = vector.shape_cast %213 : vector<44x16x4xbf16> to vector<704x4xbf16>
    %215 = vector.extract_strided_slice %214 {offsets = [0, 0], sizes = [128, 4], strides = [1, 1]} : vector<704x4xbf16> to vector<128x4xbf16>
    %c0_192 = arith.constant 0 : index
    %c2_193 = arith.constant 2 : index
    %c0_194 = arith.constant 0 : index
    %c0_195 = arith.constant 0 : index
    %216 = vector.load %arg9[%c0_192, %c2_193, %c0_194, %c0_195] : memref<3x3x4x32xbf16, #tpu.memory_space<vmem>>, vector<1x1x4x32xbf16>
    %217 = vector.shape_cast %216 : vector<1x1x4x32xbf16> to vector<4x32xbf16>
    %cst_196 = arith.constant dense<0.000000e+00> : vector<128x32xf32>
    %218 = tpu.matmul %215, %217, %cst_196 {dimension_numbers = #tpu.dot_dimension_numbers<[1], [0], [0], [1], [0, 0, 1, 1], [], []>} : vector<128x4xbf16>, vector<4x32xbf16>, vector<128x32xf32> -> vector<128x32xf32>
    %219 = vector.extract_strided_slice %214 {offsets = [288, 0], sizes = [128, 4], strides = [1, 1]} : vector<704x4xbf16> to vector<128x4xbf16>
    %c1_197 = arith.constant 1 : index
    %c2_198 = arith.constant 2 : index
    %c0_199 = arith.constant 0 : index
    %c0_200 = arith.constant 0 : index
    %220 = vector.load %arg9[%c1_197, %c2_198, %c0_199, %c0_200] : memref<3x3x4x32xbf16, #tpu.memory_space<vmem>>, vector<1x1x4x32xbf16>
    %221 = vector.shape_cast %220 : vector<1x1x4x32xbf16> to vector<4x32xbf16>
    %cst_201 = arith.constant dense<0.000000e+00> : vector<128x32xf32>
    %222 = tpu.matmul %219, %221, %cst_201 {dimension_numbers = #tpu.dot_dimension_numbers<[1], [0], [0], [1], [0, 0, 1, 1], [], []>} : vector<128x4xbf16>, vector<4x32xbf16>, vector<128x32xf32> -> vector<128x32xf32>
    %223 = arith.addf %218, %222 : vector<128x32xf32>
    %224 = vector.extract_strided_slice %214 {offsets = [576, 0], sizes = [128, 4], strides = [1, 1]} : vector<704x4xbf16> to vector<128x4xbf16>
    %c2_202 = arith.constant 2 : index
    %c2_203 = arith.constant 2 : index
    %c0_204 = arith.constant 0 : index
    %c0_205 = arith.constant 0 : index
    %225 = vector.load %arg9[%c2_202, %c2_203, %c0_204, %c0_205] : memref<3x3x4x32xbf16, #tpu.memory_space<vmem>>, vector<1x1x4x32xbf16>
    %226 = vector.shape_cast %225 : vector<1x1x4x32xbf16> to vector<4x32xbf16>
    %cst_206 = arith.constant dense<0.000000e+00> : vector<128x32xf32>
    %227 = tpu.matmul %224, %226, %cst_206 {dimension_numbers = #tpu.dot_dimension_numbers<[1], [0], [0], [1], [0, 0, 1, 1], [], []>} : vector<128x4xbf16>, vector<4x32xbf16>, vector<128x32xf32> -> vector<128x32xf32>
    %228 = arith.addf %223, %227 : vector<128x32xf32>
    %c0_207 = arith.constant 0 : index
    %c0_208 = arith.constant 0 : index
    %229 = vector.load %arg13[%c0_207, %c0_208] : memref<128x32xf32, #tpu.memory_space<vmem>>, vector<128x32xf32>
    %230 = arith.addf %229, %228 : vector<128x32xf32>
    %c0_209 = arith.constant 0 : index
    %c0_210 = arith.constant 0 : index
    %231 = vector.load %arg13[%c0_209, %c0_210] : memref<128x32xf32, #tpu.memory_space<vmem>>, vector<128x32xf32>
    tpu.vector_store %arg13[%c0_209, %c0_210], %230 {strides = array<i32>} : memref<128x32xf32, #tpu.memory_space<vmem>>, vector<128x32xf32>,
    %c0_211 = arith.constant 0 : index
    %c0_212 = arith.constant 0 : index
    %232 = vector.load %arg13[%c0_211, %c0_212] : memref<128x32xf32, #tpu.memory_space<vmem>>, vector<128x32xf32>
    %cst_213 = arith.constant 0.000000e+00 : f32
    %233 = vector.broadcast %cst_213 : f32 to vector<128x32xf32>
    %234 = arith.maximumf %232, %233 : vector<128x32xf32>
    %235 = vector.shape_cast %234 : vector<128x32xf32> to vector<8x16x32xf32>
    %236 = arith.truncf %235 : vector<8x16x32xf32> to vector<8x16x32xbf16>
    %c0_214 = arith.constant 0 : index
    %c0_215 = arith.constant 0 : index
    %c0_216 = arith.constant 0 : index
    %c160 = arith.constant 160 : index
    %237 = vector.load %arg10[%c0_214, %c0_215, %c0_216, %c160] : memref<1x8x16x192xbf16, #tpu.memory_space<vmem>>, vector<1x8x16x32xbf16>
    %238 = vector.shape_cast %237 : vector<1x8x16x32xbf16> to vector<8x16x32xbf16>
    %239 = vector.shape_cast %236 : vector<8x16x32xbf16> to vector<1x8x16x32xbf16>
    tpu.vector_store %arg10[%c0_214, %c0_215, %c0_216, %c160], %239 {strides = array<i32>} : memref<1x8x16x192xbf16, #tpu.memory_space<vmem>>, vector<1x8x16x32xbf16>,
    return
  }
  func.func @transform_0(%arg0: i32, %arg1: i32) -> (i32, i32, i32, i32) {
    %c0_i32 = arith.constant 0 : i32
    %c0_i32_0 = arith.constant 0 : i32
    %c0_i32_1 = arith.constant 0 : i32
    %c0_i32_2 = arith.constant 0 : i32
    return %arg0, %c0_i32, %c0_i32_0, %c0_i32_1 : i32, i32, i32, i32
  }
  func.func @transform_1(%arg0: i32, %arg1: i32) -> (i32, i32, i32, i32) {
    %c0_i32 = arith.constant 0 : i32
    %c0_i32_0 = arith.constant 0 : i32
    %c0_i32_1 = arith.constant 0 : i32
    return %arg0, %arg1, %c0_i32, %c0_i32_0 : i32, i32, i32, i32
  }
  func.func @transform_2(%arg0: i32, %arg1: i32) -> (i32, i32) {
    %c0_i32 = arith.constant 0 : i32
    %c0_i32_0 = arith.constant 0 : i32
    %c0_i32_1 = arith.constant 0 : i32
    return %c0_i32, %c0_i32_0 : i32, i32
  }
  func.func @transform_3(%arg0: i32, %arg1: i32) -> (i32, i32) {
    %c0_i32 = arith.constant 0 : i32
    %c0_i32_0 = arith.constant 0 : i32
    %c0_i32_1 = arith.constant 0 : i32
    return %c0_i32, %c0_i32_0 : i32, i32
  }
  func.func @transform_4(%arg0: i32, %arg1: i32) -> (i32, i32) {
    %c0_i32 = arith.constant 0 : i32
    %c0_i32_0 = arith.constant 0 : i32
    %c0_i32_1 = arith.constant 0 : i32
    return %c0_i32, %c0_i32_0 : i32, i32
  }
  func.func @transform_5(%arg0: i32, %arg1: i32) -> (i32, i32, i32, i32) {
    %c0_i32 = arith.constant 0 : i32
    %c0_i32_0 = arith.constant 0 : i32
    %c0_i32_1 = arith.constant 0 : i32
    %c0_i32_2 = arith.constant 0 : i32
    %c0_i32_3 = arith.constant 0 : i32
    return %c0_i32, %c0_i32_0, %c0_i32_1, %c0_i32_2 : i32, i32, i32, i32
  }
  func.func @transform_6(%arg0: i32, %arg1: i32) -> (i32, i32, i32, i32) {
    %c0_i32 = arith.constant 0 : i32
    %c0_i32_0 = arith.constant 0 : i32
    %c0_i32_1 = arith.constant 0 : i32
    %c0_i32_2 = arith.constant 0 : i32
    %c0_i32_3 = arith.constant 0 : i32
    return %c0_i32, %c0_i32_0, %c0_i32_1, %c0_i32_2 : i32, i32, i32, i32
  }
  func.func @transform_7(%arg0: i32, %arg1: i32) -> (i32, i32, i32, i32) {
    %c0_i32 = arith.constant 0 : i32
    %c0_i32_0 = arith.constant 0 : i32
    %c0_i32_1 = arith.constant 0 : i32
    %c0_i32_2 = arith.constant 0 : i32
    %c0_i32_3 = arith.constant 0 : i32
    return %c0_i32, %c0_i32_0, %c0_i32_1, %c0_i32_2 : i32, i32, i32, i32
  }
  func.func @transform_8(%arg0: i32, %arg1: i32) -> (i32, i32, i32, i32) {
    %c0_i32 = arith.constant 0 : i32
    %c0_i32_0 = arith.constant 0 : i32
    %c0_i32_1 = arith.constant 0 : i32
    return %arg0, %arg1, %c0_i32, %c0_i32_0 : i32, i32, i32, i32
  }
}

</mosaic_0001>

<llo_original>
// kernel: tpu_custom_call.1
$region0: #{tpu_custom_call.1}
  #allocation0 [shape = 'u32[]', space=smem, size = 0x4, offset = 0x4, fixed_abs, tag = 'smem constant byte address 0x4 - core index']
  #allocation1 [shape = 'u32[144,128]{1,0:T(1,128)}', space=vmem, size = 0x12000, scoped, tag = 'internal scratch']
  #allocation2 [shape = 'bf16[52,64,4]{2,1,0:T(16,128)(2,1)}', space=vmem, size = 0xd0000, scoped, tag = 'scratch operand']
  #allocation3 [shape = 'f32[1,32]{1,0:T(1,128)}', space=vmem, size = 0x200, scoped, tag = 'scratch operand']
  #allocation4 [shape = 'f32[128,32]{1,0:T(8,128)}', space=vmem, size = 0x10000, scoped, tag = 'scratch operand']
  %s0 = inlined_call_operand.vmem [shape: bf16[2,16,16,4], index: 0, kind: input, shape index: {}]
  %s1 = inlined_call_operand.vmem [shape: f32[2,16,16,1], index: 1, kind: input, shape index: {}]
  %s2 = inlined_call_operand.vmem [shape: f32[4,32], index: 2, kind: input, shape index: {}]
  %s3 = inlined_call_operand.vmem [shape: f32[1,32], index: 3, kind: input, shape index: {}]
  %s4 = inlined_call_operand.vmem [shape: bf16[4,128], index: 4, kind: input, shape index: {}]
  %s5 = inlined_call_operand.vmem [shape: bf16[3,3,4,32], index: 5, kind: input, shape index: {}]
  %s6 = inlined_call_operand.vmem [shape: bf16[3,3,4,32], index: 6, kind: input, shape index: {}]
  %s7 = inlined_call_operand.vmem [shape: bf16[3,3,4,32], index: 7, kind: input, shape index: {}]
  %s8 = inlined_call_operand.hbm [shape: bf16[2,16,16,192], index: 8, kind: output, shape index: {}]
  %s9 = sld [smem:[#allocation0]]
  $region69: #{tpu_custom_call.1} parent=0
    _
  %s11 = ssub.s32 1, %s9
  %s12 = scalar_select 0, %s11, %s9
  $region1: #{tpu_custom_call.1} parent=0
    #allocation5 [shape = 'u8[131072]{0}', space=vmem, size = 0x20000, scoped, tag = 'output window, operand 0']
    #allocation6 [shape = 's32[2]{0}', space=sflag, size = 0x8, scoped, tag = 'scoped memory for tpu_custom_call.1']
    %13 = vsyncpa [#allocation6], 0
    %s14 = scalar_lea.sflag [#allocation6], 1
    %15 = vsyncpa %s14, 0
    loop: start=0, step=1, limit=6
    $region2: #{tpu_custom_call.1} parent=1 // loop_pre_header
      _
    $region3: #{tpu_custom_call.1} parent=1 // loop_header
      %s17 = sphi 0, %s21
      %p18 = scmp.ge.s32.totalorder %s17, 6
      %s24 = sphi 0, %s36
      %s25 = sphi 0, %s32
      %s26 = sphi 0, %s24
      %s27 = sphi 0, %s25
      %s28 = sphi 0, %s26
      %s29 = sphi 0, %s27
      %s39 = sphi 0, %s41
      %s42 = sphi 0, %s39
      %s43 = sphi 0, %s42
      %s59 = sphi 0, %s43
      %s67 = sphi 0, %s69
      %s70 = sphi 0, %s67
      %s71 = sphi 0, %s70
      %s87 = sphi 0, %s71
      %s91 = sphi 0, %s91
      %s93 = sphi 0, %s91
      %s94 = sphi 0, %s93
      %s108 = sphi 0, %s94
      %s112 = sphi 0, %s112
      %s114 = sphi 0, %s112
      %s115 = sphi 0, %s114
      %s129 = sphi 0, %s115
      %s133 = sphi 0, %s133
      %s135 = sphi 0, %s133
      %s136 = sphi 0, %s135
      %s150 = sphi 0, %s136
      %s154 = sphi 0, %s154
      %s156 = sphi 0, %s154
      %s157 = sphi 0, %s156
      %s171 = sphi 0, %s157
      %s175 = sphi 0, %s175
      %s177 = sphi 0, %s175
      %s178 = sphi 0, %s177
      %s192 = sphi 0, %s178
      %s196 = sphi 0, %s196
      %s198 = sphi 0, %s196
      %s199 = sphi 0, %s198
      %s213 = sphi 0, %s199
      %s221 = sphi 0, %s223
      %s224 = sphi 0, %s221
      %s225 = sphi 0, %s224
      %s241 = sphi 0, %s225
    $region4: #{tpu_custom_call.1} parent=1 // loop_header_branch
      %20 = sbr.rel (%p18) target = $region8
    $region5: #{tpu_custom_call.1} parent=1 // loop_body
      %s22 = ssub.s32 %s17, 1
      %s23 = ssub.s32 %s17, 2
      %s30 = sadd.s32 1, %s25
      %p31 = scmp.ge.s32.totalorder %s30, 2
      %s32 = scalar_select %p31, 0, %s30
      %s33 = sadd.s32 1, %s24
      %s34 = scalar_select %p31, %s33, %s24
      %p35 = scmp.ge.s32.totalorder %s34, 2
      %s36 = scalar_select %p35, 0, %s34
      %s37 = ssub.s32 %s24, %s36
      %p38 = scmp.eq.s32.totalorder %s37, 0
      %s40 = sadd.s32 %s39, 1
      %s41 = scalar_select %p38, %s39, %s40
      %p44 = pneg %p38
      %p45 = scmp.eq.s32.totalorder %s17, 3
      %p46 = por %p44, %p45
      %p47 = scmp.ne.s32.totalorder %s39, %s42
      %p48 = scmp.eq.s32.totalorder %s17, 0
      %p49 = por %p47, %p48
      %p50 = scmp.ne.s32.totalorder %s39, %s42
      %p51 = scmp.eq.s32.totalorder %s22, 3
      %p52 = por %p50, %p51
      %p53 = scmp.ne.s32.totalorder %s42, %s43
      %p54 = scmp.eq.s32.totalorder %s22, 0
      %p55 = por %p53, %p54
      %p56 = scmp.ne.s32.totalorder %s42, %s43
      %p57 = scmp.eq.s32.totalorder %s23, 3
      %p58 = por %p56, %p57
      %p60 = scmp.ne.s32.totalorder %s43, %s59
      %p61 = scmp.eq.s32.totalorder %s23, 0
      %p62 = por %p60, %p61
      %s63 = ssub.s32 %s24, %s36
      %s64 = ssub.s32 %s25, %s32
      %s65 = sor.u32 %s63, %s64
      %p66 = scmp.eq.s32.totalorder %s65, 0
      %s68 = sadd.s32 %s67, 1
      %s69 = scalar_select %p66, %s67, %s68
      %p72 = pneg %p66
      %p73 = scmp.eq.s32.totalorder %s17, 3
      %p74 = por %p72, %p73
      %p75 = scmp.ne.s32.totalorder %s67, %s70
      %p76 = scmp.eq.s32.totalorder %s17, 0
      %p77 = por %p75, %p76
      %p78 = scmp.ne.s32.totalorder %s67, %s70
      %p79 = scmp.eq.s32.totalorder %s22, 3
      %p80 = por %p78, %p79
      %p81 = scmp.ne.s32.totalorder %s70, %s71
      %p82 = scmp.eq.s32.totalorder %s22, 0
      %p83 = por %p81, %p82
      %p84 = scmp.ne.s32.totalorder %s70, %s71
      %p85 = scmp.eq.s32.totalorder %s23, 3
      %p86 = por %p84, %p85
      %p88 = scmp.ne.s32.totalorder %s71, %s87
      %p89 = scmp.eq.s32.totalorder %s23, 0
      %p90 = por %p88, %p89
      %s92 = sadd.s32 %s91, 1
      %p95 = scmp.eq.s32.totalorder %s17, 3
      %p96 = scmp.ne.s32.totalorder %s91, %s93
      %p97 = scmp.eq.s32.totalorder %s17, 0
      %p98 = por %p96, %p97
      %p99 = scmp.ne.s32.totalorder %s91, %s93
      %p100 = scmp.eq.s32.totalorder %s22, 3
      %p101 = por %p99, %p100
      %p102 = scmp.ne.s32.totalorder %s93, %s94
      %p103 = scmp.eq.s32.totalorder %s22, 0
      %p104 = por %p102, %p103
      %p105 = scmp.ne.s32.totalorder %s93, %s94
      %p106 = scmp.eq.s32.totalorder %s23, 3
      %p107 = por %p105, %p106
      %p109 = scmp.ne.s32.totalorder %s94, %s108
      %p110 = scmp.eq.s32.totalorder %s23, 0
      %p111 = por %p109, %p110
      %s113 = sadd.s32 %s112, 1
      %p116 = scmp.eq.s32.totalorder %s17, 3
      %p117 = scmp.ne.s32.totalorder %s112, %s114
      %p118 = scmp.eq.s32.totalorder %s17, 0
      %p119 = por %p117, %p118
      %p120 = scmp.ne.s32.totalorder %s112, %s114
      %p121 = scmp.eq.s32.totalorder %s22, 3
      %p122 = por %p120, %p121
      %p123 = scmp.ne.s32.totalorder %s114, %s115
      %p124 = scmp.eq.s32.totalorder %s22, 0
      %p125 = por %p123, %p124
      %p126 = scmp.ne.s32.totalorder %s114, %s115
      %p127 = scmp.eq.s32.totalorder %s23, 3
      %p128 = por %p126, %p127
      %p130 = scmp.ne.s32.totalorder %s115, %s129
      %p131 = scmp.eq.s32.totalorder %s23, 0
      %p132 = por %p130, %p131
      %s134 = sadd.s32 %s133, 1
      %p137 = scmp.eq.s32.totalorder %s17, 3
      %p138 = scmp.ne.s32.totalorder %s133, %s135
      %p139 = scmp.eq.s32.totalorder %s17, 0
      %p140 = por %p138, %p139
      %p141 = scmp.ne.s32.totalorder %s133, %s135
      %p142 = scmp.eq.s32.totalorder %s22, 3
      %p143 = por %p141, %p142
      %p144 = scmp.ne.s32.totalorder %s135, %s136
      %p145 = scmp.eq.s32.totalorder %s22, 0
      %p146 = por %p144, %p145
      %p147 = scmp.ne.s32.totalorder %s135, %s136
      %p148 = scmp.eq.s32.totalorder %s23, 3
      %p149 = por %p147, %p148
      %p151 = scmp.ne.s32.totalorder %s136, %s150
      %p152 = scmp.eq.s32.totalorder %s23, 0
      %p153 = por %p151, %p152
      %s155 = sadd.s32 %s154, 1
      %p158 = scmp.eq.s32.totalorder %s17, 3
      %p159 = scmp.ne.s32.totalorder %s154, %s156
      %p160 = scmp.eq.s32.totalorder %s17, 0
      %p161 = por %p159, %p160
      %p162 = scmp.ne.s32.totalorder %s154, %s156
      %p163 = scmp.eq.s32.totalorder %s22, 3
      %p164 = por %p162, %p163
      %p165 = scmp.ne.s32.totalorder %s156, %s157
      %p166 = scmp.eq.s32.totalorder %s22, 0
      %p167 = por %p165, %p166
      %p168 = scmp.ne.s32.totalorder %s156, %s157
      %p169 = scmp.eq.s32.totalorder %s23, 3
      %p170 = por %p168, %p169
      %p172 = scmp.ne.s32.totalorder %s157, %s171
      %p173 = scmp.eq.s32.totalorder %s23, 0
      %p174 = por %p172, %p173
      %s176 = sadd.s32 %s175, 1
      %p179 = scmp.eq.s32.totalorder %s17, 3
      %p180 = scmp.ne.s32.totalorder %s175, %s177
      %p181 = scmp.eq.s32.totalorder %s17, 0
      %p182 = por %p180, %p181
      %p183 = scmp.ne.s32.totalorder %s175, %s177
      %p184 = scmp.eq.s32.totalorder %s22, 3
      %p185 = por %p183, %p184
      %p186 = scmp.ne.s32.totalorder %s177, %s178
      %p187 = scmp.eq.s32.totalorder %s22, 0
      %p188 = por %p186, %p187
      %p189 = scmp.ne.s32.totalorder %s177, %s178
      %p190 = scmp.eq.s32.totalorder %s23, 3
      %p191 = por %p189, %p190
      %p193 = scmp.ne.s32.totalorder %s178, %s192
      %p194 = scmp.eq.s32.totalorder %s23, 0
      %p195 = por %p193, %p194
      %s197 = sadd.s32 %s196, 1
      %p200 = scmp.eq.s32.totalorder %s17, 3
      %p201 = scmp.ne.s32.totalorder %s196, %s198
      %p202 = scmp.eq.s32.totalorder %s17, 0
      %p203 = por %p201, %p202
      %p204 = scmp.ne.s32.totalorder %s196, %s198
      %p205 = scmp.eq.s32.totalorder %s22, 3
      %p206 = por %p204, %p205
      %p207 = scmp.ne.s32.totalorder %s198, %s199
      %p208 = scmp.eq.s32.totalorder %s22, 0
      %p209 = por %p207, %p208
      %p210 = scmp.ne.s32.totalorder %s198, %s199
      %p211 = scmp.eq.s32.totalorder %s23, 3
      %p212 = por %p210, %p211
      %p214 = scmp.ne.s32.totalorder %s199, %s213
      %p215 = scmp.eq.s32.totalorder %s23, 0
      %p216 = por %p214, %p215
      %s217 = ssub.s32 %s24, %s36
      %s218 = ssub.s32 %s25, %s32
      %s219 = sor.u32 %s217, %s218
      %p220 = scmp.eq.s32.totalorder %s219, 0
      %s222 = sadd.s32 %s221, 1
      %s223 = scalar_select %p220, %s221, %s222
      %p226 = pneg %p220
      %p227 = scmp.eq.s32.totalorder %s17, 3
      %p228 = por %p226, %p227
      %p229 = scmp.ne.s32.totalorder %s221, %s224
      %p230 = scmp.eq.s32.totalorder %s17, 0
      %p231 = por %p229, %p230
      %p232 = scmp.ne.s32.totalorder %s221, %s224
      %p233 = scmp.eq.s32.totalorder %s22, 3
      %p234 = por %p232, %p233
      %p235 = scmp.ne.s32.totalorder %s224, %s225
      %p236 = scmp.eq.s32.totalorder %s22, 0
      %p237 = por %p235, %p236
      %p238 = scmp.ne.s32.totalorder %s224, %s225
      %p239 = scmp.eq.s32.totalorder %s23, 3
      %p240 = por %p238, %p239
      %p242 = scmp.ne.s32.totalorder %s225, %s241
      %p243 = scmp.eq.s32.totalorder %s23, 0
      %p244 = por %p242, %p243
      %p245 = scmp.le.s32.totalorder 1, %s17
      %p246 = scmp.lt.s32.totalorder %s17, 5
      %p247 = pnand %p245, %p246
      %p248 = pneg %p247
      // Predicated region
      $region9: #{tpu_custom_call.1} parent=5 // pred_check
        _
      $region10: #{tpu_custom_call.1} parent=5 // pred_check_branch
        %250 = sbr.rel (%p247) target = $region12
      $region11: #{tpu_custom_call.1} parent=5 // pred_region
        %s251 = ssub.s32 %s17, 1
        // Predicated region
        $region13: #{tpu_custom_call.1} parent=11 // pred_check
          %p252 = pneg %p104
        $region14: #{tpu_custom_call.1} parent=11 // pred_check_branch
          %254 = sbr.rel (%p252) target = $region16
        $region15: #{tpu_custom_call.1} parent=11 // pred_region
          _
        $region16: #{tpu_custom_call.1} parent=11 // pred_fallthru
          _
        // Predicated region
        $region17: #{tpu_custom_call.1} parent=11 // pred_check
          %p255 = pneg %p125
        $region18: #{tpu_custom_call.1} parent=11 // pred_check_branch
          %257 = sbr.rel (%p255) target = $region20
        $region19: #{tpu_custom_call.1} parent=11 // pred_region
          _
        $region20: #{tpu_custom_call.1} parent=11 // pred_fallthru
          _
        // Predicated region
        $region21: #{tpu_custom_call.1} parent=11 // pred_check
          %p258 = pneg %p146
        $region22: #{tpu_custom_call.1} parent=11 // pred_check_branch
          %260 = sbr.rel (%p258) target = $region24
        $region23: #{tpu_custom_call.1} parent=11 // pred_region
          _
        $region24: #{tpu_custom_call.1} parent=11 // pred_fallthru
          _
        // Predicated region
        $region25: #{tpu_custom_call.1} parent=11 // pred_check
          %p261 = pneg %p167
        $region26: #{tpu_custom_call.1} parent=11 // pred_check_branch
          %263 = sbr.rel (%p261) target = $region28
        $region27: #{tpu_custom_call.1} parent=11 // pred_region
          _
        $region28: #{tpu_custom_call.1} parent=11 // pred_fallthru
          _
        // Predicated region
        $region29: #{tpu_custom_call.1} parent=11 // pred_check
          %p264 = pneg %p188
        $region30: #{tpu_custom_call.1} parent=11 // pred_check_branch
          %266 = sbr.rel (%p264) target = $region32
        $region31: #{tpu_custom_call.1} parent=11 // pred_region
          _
        $region32: #{tpu_custom_call.1} parent=11 // pred_fallthru
          _
        // Predicated region
        $region33: #{tpu_custom_call.1} parent=11 // pred_check
          %p267 = pneg %p209
        $region34: #{tpu_custom_call.1} parent=11 // pred_check_branch
          %269 = sbr.rel (%p267) target = $region36
        $region35: #{tpu_custom_call.1} parent=11 // pred_region
          _
        $region36: #{tpu_custom_call.1} parent=11 // pred_fallthru
          _
      $region12: #{tpu_custom_call.1} parent=5 // pred_fallthru
        _
      %p270 = scmp.lt.s32.totalorder %s17, 4
      // Predicated region
      $region37: #{tpu_custom_call.1} parent=5 // pred_check
        %p271 = pneg %p270
      $region38: #{tpu_custom_call.1} parent=5 // pred_check_branch
        %273 = sbr.rel (%p271) target = $region40
      $region39: #{tpu_custom_call.1} parent=5 // pred_region
        // Predicated region
        $region41: #{tpu_custom_call.1} parent=39 // pred_check
          %p274 = pneg %p49
        $region42: #{tpu_custom_call.1} parent=39 // pred_check_branch
          %276 = sbr.rel (%p274) target = $region44
        $region43: #{tpu_custom_call.1} parent=39 // pred_region
          %p277 = scmp.lt.s32.totalorder %s24, 1
          %s278 = scalar_select %p277, %s24, 1
          %s279 = smul.addr %s278, 32
          %s280 = smul.addr %s279, 4
          %s281 = scalar_lea.vmem %s0, %s280
        $region44: #{tpu_custom_call.1} parent=39 // pred_fallthru
          _
        // Predicated region
        $region45: #{tpu_custom_call.1} parent=39 // pred_check
          %p282 = pneg %p77
        $region46: #{tpu_custom_call.1} parent=39 // pred_check_branch
          %284 = sbr.rel (%p282) target = $region48
        $region47: #{tpu_custom_call.1} parent=39 // pred_region
          %s285 = smul.u32 8, %s25
          %p286 = scmp.lt.s32.totalorder %s24, 1
          %s287 = scalar_select %p286, %s24, 1
          %p288 = scmp.lt.s32.totalorder %s285, 15
          %s289 = scalar_select %p288, %s285, 15
          %s290 = smul.addr %s289, 2
          %s291 = smul.addr %s287, 32
          %s292 = sadd.s32 %s290, %s291
          %s293 = smul.addr %s292, 8
          %s294 = scalar_lea.vmem %s1, %s293
          %s295 = smul.u32 8, %s25
        $region48: #{tpu_custom_call.1} parent=39 // pred_fallthru
          _
      $region40: #{tpu_custom_call.1} parent=5 // pred_fallthru
        _
      %p296 = scmp.le.s32.totalorder 1, %s17
      %p297 = scmp.lt.s32.totalorder %s17, 5
      %p298 = pnand %p296, %p297
      %p299 = pneg %p298
      // Predicated region
      $region49: #{tpu_custom_call.1} parent=5 // pred_check
        _
      $region50: #{tpu_custom_call.1} parent=5 // pred_check_branch
        %301 = sbr.rel (%p298) target = $region52
      $region51: #{tpu_custom_call.1} parent=5 // pred_region
        %s302 = ssub.s32 %s17, 1
        %p303 = scmp.lt.s32.totalorder %s26, 1
        %s304 = scalar_select %p303, %s26, 1
        %s305 = smul.addr %s304, 32
        %s306 = smul.addr %s305, 4
        %s307 = scalar_lea.vmem %s0, %s306
        %p308 = pneg %p55
        %p309 = pneg %p52
        %s310 = smul.u32 8, %s27
        %p311 = scmp.lt.s32.totalorder %s26, 1
        %s312 = scalar_select %p311, %s26, 1
        %p313 = scmp.lt.s32.totalorder %s310, 15
        %s314 = scalar_select %p313, %s310, 15
        %s315 = smul.addr %s314, 2
        %s316 = smul.addr %s312, 32
        %s317 = sadd.s32 %s315, %s316
        %s318 = smul.addr %s317, 8
        %s319 = scalar_lea.vmem %s1, %s318
        %p320 = pneg %p83
        %p321 = pneg %p80
        %p322 = pneg %p104
        %p323 = pneg %p101
        %p324 = pneg %p125
        %p325 = pneg %p122
        %p326 = pneg %p146
        %p327 = pneg %p143
        %p328 = pneg %p167
        %p329 = pneg %p164
        %p330 = pneg %p188
        %p331 = pneg %p185
        %p332 = pneg %p209
        %p333 = pneg %p206
        %p334 = pneg %p237
        %p335 = pneg %p234
        %s336 = sand.u32 %s224, 1
        %s337 = scalar_lea.sflag [#allocation6], %s336
        %s338 = sand.u32 %s224, 1
        %s339 = smul.addr %s338, 128
        %s340 = scalar_lea.vmem [#allocation5], %s339
        %p341 = scmp.lt.s32.totalorder %s26, 1
        %s342 = scalar_select %p341, %s26, 1
        %s343 = smul.addr %s342, 32
        %s344 = smul.addr %s343, 4
        %s345 = scalar_lea.vmem %s0, %s344
        %s346 = smul.u32 8, %s27
        %p347 = scmp.lt.s32.totalorder %s26, 1
        %s348 = scalar_select %p347, %s26, 1
        %p349 = scmp.lt.s32.totalorder %s346, 15
        %s350 = scalar_select %p349, %s346, 15
        %s351 = smul.addr %s350, 2
        %s352 = smul.addr %s348, 32
        %s353 = sadd.s32 %s351, %s352
        %s354 = smul.addr %s353, 8
        %s355 = scalar_lea.vmem %s1, %s354
        %s356 = smul.u32 8, %s27
        %s357 = smul.u32 8, %s27
        %p360 = scmp.eq.s32.totalorder %s27, 0
        // Predicated region
        $region53: #{tpu_custom_call.1} parent=51 // pred_check
          %p361 = pneg %p360
        $region54: #{tpu_custom_call.1} parent=51 // pred_check_branch
          %363 = sbr.rel (%p361) target = $region56
        $region55: #{tpu_custom_call.1} parent=51 // pred_region
          %v364 = vld [vmem:[%s345] sm:$0xf]
          %v365 = vld [vmem:[%s345 + $0x4] sm:$0xf]
          %v366 = vld [vmem:[%s345 + $0x8] sm:$0xf]
          %v367 = vld [vmem:[%s345 + $0xc] sm:$0xf]
          %v368 = vld [vmem:[%s345 + $0x10] sm:$0xf]
          %v369 = vld [vmem:[%s345 + $0x14] sm:$0xf]
          %v370 = vld [vmem:[%s345 + $0x18] sm:$0xf]
          %v371 = vld [vmem:[%s345 + $0x1c] sm:$0xf]
          %v372 = vld [vmem:[%s345 + $0x20] sm:$0xf]
          %v373 = vld [vmem:[%s345 + $0x24] sm:$0xf]
          %v374 = vld [vmem:[%s345 + $0x28] sm:$0xf]
          %v375 = vld [vmem:[%s345 + $0x2c] sm:$0xf]
          %v376 = vld [vmem:[%s345 + $0x30] sm:$0xf]
          %v377 = vld [vmem:[%s345 + $0x34] sm:$0xf]
          %v378 = vld [vmem:[%s345 + $0x38] sm:$0xf]
          %v379 = vld [vmem:[%s345 + $0x3c] sm:$0xf]
          %v380 = vld [vmem:[%s345 + $0x40] sm:$0xf]
          %v381 = vld [vmem:[%s345 + $0x44] sm:$0xf]
          %v382 = vld [vmem:[%s345 + $0x48] sm:$0xf]
          %v383 = vld [vmem:[%s345 + $0x4c] sm:$0xf]
          %v384 = vld [vmem:[%s345 + $0x50] sm:$0xf]
          %v385 = vld [vmem:[%s345 + $0x54] sm:$0xf]
          %v386 = vld [vmem:[%s345 + $0x58] sm:$0xf]
          %v387 = vld [vmem:[%s345 + $0x5c] sm:$0xf]
          %v388 = vld [vmem:[%s345 + $0x60] sm:$0xf]
          %v389 = vld [vmem:[%s345 + $0x64] sm:$0xf]
          %v390 = vld [vmem:[%s345 + $0x68] sm:$0xf]
          %v391 = vld [vmem:[%s345 + $0x6c] sm:$0xf]
          %v392 = vld [vmem:[%s345 + $0x70] sm:$0xf]
          %v393 = vld [vmem:[%s345 + $0x74] sm:$0xf]
          %v394 = vld [vmem:[%s345 + $0x78] sm:$0xf]
          %v395 = vld [vmem:[%s345 + $0x7c] sm:$0xf]
          %vm396 = vcmask 31744
          %397 = vst.msk [vmem:[#allocation2] sm:$0xff] %vm396, 0
          %398 = vst.msk [vmem:[#allocation2 + $0x8] sm:$0xff] %vm396, 0
          %399 = vst.msk [vmem:[#allocation2 + $0x10] sm:$0xff] %vm396, 0
          %400 = vst.msk [vmem:[#allocation2 + $0x18] sm:$0xff] %vm396, 0
          %401 = vst.msk [vmem:[#allocation2 + $0x20] sm:$0xff] %vm396, 0
          %402 = vst.msk [vmem:[#allocation2 + $0x28] sm:$0xff] %vm396, 0
          %403 = vst.msk [vmem:[#allocation2 + $0x30] sm:$0xff] %vm396, 0
          %404 = vst.msk [vmem:[#allocation2 + $0x38] sm:$0xff] %vm396, 0
          %405 = vst.msk [vmem:[#allocation2 + $0x40] sm:$0xff] %vm396, 0
          %406 = vst.msk [vmem:[#allocation2 + $0x48] sm:$0xff] %vm396, 0
          %407 = vst.msk [vmem:[#allocation2 + $0x50] sm:$0xff] %vm396, 0
          %408 = vst.msk [vmem:[#allocation2 + $0x58] sm:$0xff] %vm396, 0
          %409 = vst.msk [vmem:[#allocation2 + $0x60] sm:$0xff] %vm396, 0
          %410 = vst.msk [vmem:[#allocation2 + $0x68] sm:$0xff] %vm396, 0
          %411 = vst.msk [vmem:[#allocation2 + $0x70] sm:$0xff] %vm396, 0
          %412 = vst.msk [vmem:[#allocation2 + $0x78] sm:$0xff] %vm396, 0
          %413 = vst.msk [vmem:[#allocation2 + $0x80] sm:$0xff] %vm396, 0
          %414 = vst.msk [vmem:[#allocation2 + $0x88] sm:$0xff] %vm396, 0
          %415 = vst.msk [vmem:[#allocation2 + $0x90] sm:$0xff] %vm396, 0
          %416 = vst.msk [vmem:[#allocation2 + $0x98] sm:$0xff] %vm396, 0
          %417 = vst.msk [vmem:[#allocation2 + $0xa0] sm:$0xff] %vm396, 0
          %418 = vst.msk [vmem:[#allocation2 + $0xa8] sm:$0xff] %vm396, 0
          %419 = vst.msk [vmem:[#allocation2 + $0xb0] sm:$0xff] %vm396, 0
          %420 = vst.msk [vmem:[#allocation2 + $0xb8] sm:$0xff] %vm396, 0
          %421 = vst.msk [vmem:[#allocation2 + $0xc0] sm:$0xff] %vm396, 0
          %422 = vst.msk [vmem:[#allocation2 + $0xc8] sm:$0xff] %vm396, 0
          %423 = vst.msk [vmem:[#allocation2 + $0xd0] sm:$0xff] %vm396, 0
          %424 = vst.msk [vmem:[#allocation2 + $0xd8] sm:$0xff] %vm396, 0
          %425 = vst.msk [vmem:[#allocation2 + $0xe0] sm:$0xff] %vm396, 0
          %426 = vst.msk [vmem:[#allocation2 + $0xe8] sm:$0xff] %vm396, 0
          %427 = vst.msk [vmem:[#allocation2 + $0xf0] sm:$0xff] %vm396, 0
          %428 = vst.msk [vmem:[#allocation2 + $0xf8] sm:$0xff] %vm396, 0
          %429 = vst.msk [vmem:[#allocation2 + $0x100] sm:$0xff] %vm396, 0
          %430 = vst.msk [vmem:[#allocation2 + $0x108] sm:$0xff] %vm396, 0
          %431 = vst.msk [vmem:[#allocation2 + $0x110] sm:$0xff] %vm396, 0
          %432 = vst.msk [vmem:[#allocation2 + $0x118] sm:$0xff] %vm396, 0
          %433 = vst.msk [vmem:[#allocation2 + $0x120] sm:$0xff] %vm396, 0
          %434 = vst.msk [vmem:[#allocation2 + $0x128] sm:$0xff] %vm396, 0
          %435 = vst.msk [vmem:[#allocation2 + $0x130] sm:$0xff] %vm396, 0
          %436 = vst.msk [vmem:[#allocation2 + $0x138] sm:$0xff] %vm396, 0
          %437 = vst.msk [vmem:[#allocation2 + $0x140] sm:$0xff] %vm396, 0
          %438 = vst.msk [vmem:[#allocation2 + $0x148] sm:$0xff] %vm396, 0
          %439 = vst.msk [vmem:[#allocation2 + $0x150] sm:$0xff] %vm396, 0
          %440 = vst.msk [vmem:[#allocation2 + $0x158] sm:$0xff] %vm396, 0
          %441 = vst.msk [vmem:[#allocation2 + $0x160] sm:$0xff] %vm396, 0
          %442 = vst.msk [vmem:[#allocation2 + $0x168] sm:$0xff] %vm396, 0
          %443 = vst.msk [vmem:[#allocation2 + $0x170] sm:$0xff] %vm396, 0
          %444 = vst.msk [vmem:[#allocation2 + $0x178] sm:$0xff] %vm396, 0
          %445 = vst.msk [vmem:[#allocation2 + $0x180] sm:$0xff] %vm396, 0
          %446 = vst.msk [vmem:[#allocation2 + $0x188] sm:$0xff] %vm396, 0
          %447 = vst.msk [vmem:[#allocation2 + $0x190] sm:$0xff] %vm396, 0
          %448 = vst.msk [vmem:[#allocation2 + $0x198] sm:$0xff] %vm396, 0
          %449 = vst.msk [vmem:[#allocation2 + $0x1a0] sm:$0xff] %vm396, 0
          %450 = vst.msk [vmem:[#allocation2 + $0x1a8] sm:$0xff] %vm396, 0
          %451 = vst.msk [vmem:[#allocation2 + $0x1b0] sm:$0xff] %vm396, 0
          %452 = vst.msk [vmem:[#allocation2 + $0x1b8] sm:$0xff] %vm396, 0
          %453 = vst.msk [vmem:[#allocation2 + $0x1c0] sm:$0xff] %vm396, 0
          %454 = vst.msk [vmem:[#allocation2 + $0x1c8] sm:$0xff] %vm396, 0
          %455 = vst.msk [vmem:[#allocation2 + $0x1d0] sm:$0xff] %vm396, 0
          %456 = vst.msk [vmem:[#allocation2 + $0x1d8] sm:$0xff] %vm396, 0
          %457 = vst.msk [vmem:[#allocation2 + $0x1e0] sm:$0xff] %vm396, 0
          %458 = vst.msk [vmem:[#allocation2 + $0x1e8] sm:$0xff] %vm396, 0
          %459 = vst.msk [vmem:[#allocation2 + $0x1f0] sm:$0xff] %vm396, 0
          %460 = vst.msk [vmem:[#allocation2 + $0x1f8] sm:$0xff] %vm396, 0
          %461 = vst.msk [vmem:[#allocation2 + $0x200] sm:$0xff] %vm396, 0
          %462 = vst.msk [vmem:[#allocation2 + $0x208] sm:$0xff] %vm396, 0
          %463 = vst.msk [vmem:[#allocation2 + $0x210] sm:$0xff] %vm396, 0
          %464 = vst.msk [vmem:[#allocation2 + $0x218] sm:$0xff] %vm396, 0
          %465 = vst.msk [vmem:[#allocation2 + $0x220] sm:$0xff] %vm396, 0
          %466 = vst.msk [vmem:[#allocation2 + $0x228] sm:$0xff] %vm396, 0
          %467 = vst.msk [vmem:[#allocation2 + $0x230] sm:$0xff] %vm396, 0
          %468 = vst.msk [vmem:[#allocation2 + $0x238] sm:$0xff] %vm396, 0
          %s469 = scalar_lea.vmem [#allocation2], 1088
          %470 = vst.msk [vmem:[%s469] sm:$0xff] %vm396, 0
          %471 = vst.msk [vmem:[%s469 + $0x8] sm:$0xff] %vm396, 0
          %472 = vst.msk [vmem:[%s469 + $0x10] sm:$0xff] %vm396, 0
          %473 = vst.msk [vmem:[%s469 + $0x18] sm:$0xff] %vm396, 0
          %474 = vst.msk [vmem:[%s469 + $0x20] sm:$0xff] %vm396, 0
          %475 = vst.msk [vmem:[%s469 + $0x28] sm:$0xff] %vm396, 0
          %476 = vst.msk [vmem:[%s469 + $0x30] sm:$0xff] %vm396, 0
          %477 = vst.msk [vmem:[%s469 + $0x38] sm:$0xff] %vm396, 0
          %478 = vst.msk [vmem:[%s469 + $0x40] sm:$0xff] %vm396, 0
          %479 = vst.msk [vmem:[%s469 + $0x48] sm:$0xff] %vm396, 0
          %480 = vst.msk [vmem:[%s469 + $0x50] sm:$0xff] %vm396, 0
          %481 = vst.msk [vmem:[%s469 + $0x58] sm:$0xff] %vm396, 0
          %482 = vst.msk [vmem:[%s469 + $0x60] sm:$0xff] %vm396, 0
          %483 = vst.msk [vmem:[%s469 + $0x68] sm:$0xff] %vm396, 0
          %484 = vst.msk [vmem:[%s469 + $0x70] sm:$0xff] %vm396, 0
          %485 = vst.msk [vmem:[%s469 + $0x78] sm:$0xff] %vm396, 0
          %486 = vst.msk [vmem:[%s469 + $0x80] sm:$0xff] %vm396, 0
          %487 = vst.msk [vmem:[%s469 + $0x88] sm:$0xff] %vm396, 0
          %488 = vst.msk [vmem:[%s469 + $0x90] sm:$0xff] %vm396, 0
          %489 = vst.msk [vmem:[%s469 + $0x98] sm:$0xff] %vm396, 0
          %490 = vst.msk [vmem:[%s469 + $0xa0] sm:$0xff] %vm396, 0
          %491 = vst.msk [vmem:[%s469 + $0xa8] sm:$0xff] %vm396, 0
          %492 = vst.msk [vmem:[%s469 + $0xb0] sm:$0xff] %vm396, 0
          %493 = vst.msk [vmem:[%s469 + $0xb8] sm:$0xff] %vm396, 0
          %494 = vst.msk [vmem:[%s469 + $0xc0] sm:$0xff] %vm396, 0
          %495 = vst.msk [vmem:[%s469 + $0xc8] sm:$0xff] %vm396, 0
          %496 = vst.msk [vmem:[%s469 + $0xd0] sm:$0xff] %vm396, 0
          %497 = vst.msk [vmem:[%s469 + $0xd8] sm:$0xff] %vm396, 0
          %498 = vst.msk [vmem:[%s469 + $0xe0] sm:$0xff] %vm396, 0
          %499 = vst.msk [vmem:[%s469 + $0xe8] sm:$0xff] %vm396, 0
          %500 = vst.msk [vmem:[%s469 + $0xf0] sm:$0xff] %vm396, 0
          %501 = vst.msk [vmem:[%s469 + $0xf8] sm:$0xff] %vm396, 0
          %502 = vst.msk [vmem:[%s469 + $0x100] sm:$0xff] %vm396, 0
          %503 = vst.msk [vmem:[%s469 + $0x108] sm:$0xff] %vm396, 0
          %504 = vst.msk [vmem:[%s469 + $0x110] sm:$0xff] %vm396, 0
          %505 = vst.msk [vmem:[%s469 + $0x118] sm:$0xff] %vm396, 0
          %506 = vst.msk [vmem:[%s469 + $0x120] sm:$0xff] %vm396, 0
          %507 = vst.msk [vmem:[%s469 + $0x128] sm:$0xff] %vm396, 0
          %508 = vst.msk [vmem:[%s469 + $0x130] sm:$0xff] %vm396, 0
          %509 = vst.msk [vmem:[%s469 + $0x138] sm:$0xff] %vm396, 0
          %510 = vst.msk [vmem:[%s469 + $0x140] sm:$0xff] %vm396, 0
          %511 = vst.msk [vmem:[%s469 + $0x148] sm:$0xff] %vm396, 0
          %512 = vst.msk [vmem:[%s469 + $0x150] sm:$0xff] %vm396, 0
          %513 = vst.msk [vmem:[%s469 + $0x158] sm:$0xff] %vm396, 0
          %514 = vst.msk [vmem:[%s469 + $0x160] sm:$0xff] %vm396, 0
          %515 = vst.msk [vmem:[%s469 + $0x168] sm:$0xff] %vm396, 0
          %516 = vst.msk [vmem:[%s469 + $0x170] sm:$0xff] %vm396, 0
          %517 = vst.msk [vmem:[%s469 + $0x178] sm:$0xff] %vm396, 0
          %518 = vst.msk [vmem:[%s469 + $0x180] sm:$0xff] %vm396, 0
          %519 = vst.msk [vmem:[%s469 + $0x188] sm:$0xff] %vm396, 0
          %520 = vst.msk [vmem:[%s469 + $0x190] sm:$0xff] %vm396, 0
          %521 = vst.msk [vmem:[%s469 + $0x198] sm:$0xff] %vm396, 0
          %522 = vst.msk [vmem:[%s469 + $0x1a0] sm:$0xff] %vm396, 0
          %523 = vst.msk [vmem:[%s469 + $0x1a8] sm:$0xff] %vm396, 0
          %524 = vst.msk [vmem:[%s469 + $0x1b0] sm:$0xff] %vm396, 0
          %525 = vst.msk [vmem:[%s469 + $0x1b8] sm:$0xff] %vm396, 0
          %526 = vst.msk [vmem:[%s469 + $0x1c0] sm:$0xff] %vm396, 0
          %527 = vst.msk [vmem:[%s469 + $0x1c8] sm:$0xff] %vm396, 0
          %528 = vst.msk [vmem:[%s469 + $0x1d0] sm:$0xff] %vm396, 0
          %529 = vst.msk [vmem:[%s469 + $0x1d8] sm:$0xff] %vm396, 0
          %530 = vst.msk [vmem:[%s469 + $0x1e0] sm:$0xff] %vm396, 0
          %531 = vst.msk [vmem:[%s469 + $0x1e8] sm:$0xff] %vm396, 0
          %532 = vst.msk [vmem:[%s469 + $0x1f0] sm:$0xff] %vm396, 0
          %533 = vst.msk [vmem:[%s469 + $0x1f8] sm:$0xff] %vm396, 0
          %534 = vst.msk [vmem:[%s469 + $0x200] sm:$0xff] %vm396, 0
          %535 = vst.msk [vmem:[%s469 + $0x208] sm:$0xff] %vm396, 0
          %536 = vst.msk [vmem:[%s469 + $0x210] sm:$0xff] %vm396, 0
          %537 = vst.msk [vmem:[%s469 + $0x218] sm:$0xff] %vm396, 0
          %538 = vst.msk [vmem:[%s469 + $0x220] sm:$0xff] %vm396, 0
          %539 = vst.msk [vmem:[%s469 + $0x228] sm:$0xff] %vm396, 0
          %540 = vst.msk [vmem:[%s469 + $0x230] sm:$0xff] %vm396, 0
          %541 = vst.msk [vmem:[%s469 + $0x238] sm:$0xff] %vm396, 0
          %s542 = scalar_lea.vmem [#allocation2], 576
          %543 = vst.msk [vmem:[%s542] sm:$0xff] %vm396, 0
          %vm544 = vcmask 27648
          %545 = vst.msk [vmem:[%s542 + $0x8] sm:$0xf] %vm544, 0
          %546 = vst.msk [vmem:[%s542 + $0x20] sm:$0xff] %vm396, 0
          %547 = vst.msk [vmem:[%s542 + $0x28] sm:$0xf] %vm544, 0
          %548 = vst.msk [vmem:[%s542 + $0x40] sm:$0xff] %vm396, 0
          %549 = vst.msk [vmem:[%s542 + $0x48] sm:$0xf] %vm544, 0
          %550 = vst.msk [vmem:[%s542 + $0x60] sm:$0xff] %vm396, 0
          %551 = vst.msk [vmem:[%s542 + $0x68] sm:$0xf] %vm544, 0
          %552 = vst.msk [vmem:[%s542 + $0x80] sm:$0xff] %vm396, 0
          %553 = vst.msk [vmem:[%s542 + $0x88] sm:$0xf] %vm544, 0
          %554 = vst.msk [vmem:[%s542 + $0xa0] sm:$0xff] %vm396, 0
          %555 = vst.msk [vmem:[%s542 + $0xa8] sm:$0xf] %vm544, 0
          %556 = vst.msk [vmem:[%s542 + $0xc0] sm:$0xff] %vm396, 0
          %557 = vst.msk [vmem:[%s542 + $0xc8] sm:$0xf] %vm544, 0
          %558 = vst.msk [vmem:[%s542 + $0xe0] sm:$0xff] %vm396, 0
          %559 = vst.msk [vmem:[%s542 + $0xe8] sm:$0xf] %vm544, 0
          %560 = vst.msk [vmem:[%s542 + $0x100] sm:$0xff] %vm396, 0
          %561 = vst.msk [vmem:[%s542 + $0x108] sm:$0xf] %vm544, 0
          %562 = vst.msk [vmem:[%s542 + $0x120] sm:$0xff] %vm396, 0
          %563 = vst.msk [vmem:[%s542 + $0x128] sm:$0xf] %vm544, 0
          %564 = vst.msk [vmem:[%s542 + $0x140] sm:$0xff] %vm396, 0
          %565 = vst.msk [vmem:[%s542 + $0x148] sm:$0xf] %vm544, 0
          %566 = vst.msk [vmem:[%s542 + $0x160] sm:$0xff] %vm396, 0
          %567 = vst.msk [vmem:[%s542 + $0x168] sm:$0xf] %vm544, 0
          %568 = vst.msk [vmem:[%s542 + $0x180] sm:$0xff] %vm396, 0
          %569 = vst.msk [vmem:[%s542 + $0x188] sm:$0xf] %vm544, 0
          %570 = vst.msk [vmem:[%s542 + $0x1a0] sm:$0xff] %vm396, 0
          %571 = vst.msk [vmem:[%s542 + $0x1a8] sm:$0xf] %vm544, 0
          %572 = vst.msk [vmem:[%s542 + $0x1c0] sm:$0xff] %vm396, 0
          %573 = vst.msk [vmem:[%s542 + $0x1c8] sm:$0xf] %vm544, 0
          %574 = vst.msk [vmem:[%s542 + $0x1e0] sm:$0xff] %vm396, 0
          %575 = vst.msk [vmem:[%s542 + $0x1e8] sm:$0xf] %vm544, 0
          %vm576 = vcmask 31748
          %577 = vst.msk [vmem:[%s542 + $0x10] sm:$0xf0] %vm576, 0
          %578 = vst.msk [vmem:[%s542 + $0x18] sm:$0xff] %vm396, 0
          %579 = vst.msk [vmem:[%s542 + $0x30] sm:$0xf0] %vm576, 0
          %580 = vst.msk [vmem:[%s542 + $0x38] sm:$0xff] %vm396, 0
          %581 = vst.msk [vmem:[%s542 + $0x50] sm:$0xf0] %vm576, 0
          %582 = vst.msk [vmem:[%s542 + $0x58] sm:$0xff] %vm396, 0
          %583 = vst.msk [vmem:[%s542 + $0x70] sm:$0xf0] %vm576, 0
          %584 = vst.msk [vmem:[%s542 + $0x78] sm:$0xff] %vm396, 0
          %585 = vst.msk [vmem:[%s542 + $0x90] sm:$0xf0] %vm576, 0
          %586 = vst.msk [vmem:[%s542 + $0x98] sm:$0xff] %vm396, 0
          %587 = vst.msk [vmem:[%s542 + $0xb0] sm:$0xf0] %vm576, 0
          %588 = vst.msk [vmem:[%s542 + $0xb8] sm:$0xff] %vm396, 0
          %589 = vst.msk [vmem:[%s542 + $0xd0] sm:$0xf0] %vm576, 0
          %590 = vst.msk [vmem:[%s542 + $0xd8] sm:$0xff] %vm396, 0
          %591 = vst.msk [vmem:[%s542 + $0xf0] sm:$0xf0] %vm576, 0
          %592 = vst.msk [vmem:[%s542 + $0xf8] sm:$0xff] %vm396, 0
          %593 = vst.msk [vmem:[%s542 + $0x110] sm:$0xf0] %vm576, 0
          %594 = vst.msk [vmem:[%s542 + $0x118] sm:$0xff] %vm396, 0
          %595 = vst.msk [vmem:[%s542 + $0x130] sm:$0xf0] %vm576, 0
          %596 = vst.msk [vmem:[%s542 + $0x138] sm:$0xff] %vm396, 0
          %597 = vst.msk [vmem:[%s542 + $0x150] sm:$0xf0] %vm576, 0
          %598 = vst.msk [vmem:[%s542 + $0x158] sm:$0xff] %vm396, 0
          %599 = vst.msk [vmem:[%s542 + $0x170] sm:$0xf0] %vm576, 0
          %600 = vst.msk [vmem:[%s542 + $0x178] sm:$0xff] %vm396, 0
          %601 = vst.msk [vmem:[%s542 + $0x190] sm:$0xf0] %vm576, 0
          %602 = vst.msk [vmem:[%s542 + $0x198] sm:$0xff] %vm396, 0
          %603 = vst.msk [vmem:[%s542 + $0x1b0] sm:$0xf0] %vm576, 0
          %604 = vst.msk [vmem:[%s542 + $0x1b8] sm:$0xff] %vm396, 0
          %605 = vst.msk [vmem:[%s542 + $0x1d0] sm:$0xf0] %vm576, 0
          %606 = vst.msk [vmem:[%s542 + $0x1d8] sm:$0xff] %vm396, 0
          %607 = vst.msk [vmem:[%s542 + $0x1f0] sm:$0xf0] %vm576, 0
          %608 = vst.msk [vmem:[%s542 + $0x1f8] sm:$0xff] %vm396, 0
          %v641 = vunpack.c.l.b16 %v364
          %v642 = vunpack.c.l.b16 %v365
          %v643 = vunpack.c.l.b16 %v366
          %v644 = vunpack.c.l.b16 %v367
          %v645 = vunpack.c.l.b16 %v368
          %v646 = vunpack.c.l.b16 %v369
          %v647 = vunpack.c.l.b16 %v370
          %v648 = vunpack.c.l.b16 %v371
          %v649 = vunpack.c.l.b16 %v372
          %v650 = vunpack.c.l.b16 %v373
          %v651 = vunpack.c.l.b16 %v374
          %v652 = vunpack.c.l.b16 %v375
          %v653 = vunpack.c.l.b16 %v376
          %v654 = vunpack.c.l.b16 %v377
          %v655 = vunpack.c.l.b16 %v378
          %v656 = vunpack.c.l.b16 %v379
          %v657 = vunpack.c.l.b16 %v380
          %v658 = vunpack.c.l.b16 %v381
          %v659 = vunpack.c.l.b16 %v382
          %v660 = vunpack.c.l.b16 %v383
          %v661 = vunpack.c.l.b16 %v384
          %v662 = vunpack.c.l.b16 %v385
          %v663 = vunpack.c.l.b16 %v386
          %v664 = vunpack.c.l.b16 %v387
          %v665 = vunpack.c.l.b16 %v388
          %v666 = vunpack.c.l.b16 %v389
          %v667 = vunpack.c.l.b16 %v390
          %v668 = vunpack.c.l.b16 %v391
          %v669 = vunpack.c.l.b16 %v392
          %v670 = vunpack.c.l.b16 %v393
          %v671 = vunpack.c.l.b16 %v394
          %v672 = vunpack.c.l.b16 %v395
          %v673 = vpack.c.b16 %v641, %v641
          %v674 = vpack.c.b16 %v642, %v642
          %v675 = vpack.c.b16 %v643, %v643
          %v676 = vpack.c.b16 %v644, %v644
          %v677 = vpack.c.b16 %v645, %v645
          %v678 = vpack.c.b16 %v646, %v646
          %v679 = vpack.c.b16 %v647, %v647
          %v680 = vpack.c.b16 %v648, %v648
          %v681 = vpack.c.b16 %v649, %v649
          %v682 = vpack.c.b16 %v650, %v650
          %v683 = vpack.c.b16 %v651, %v651
          %v684 = vpack.c.b16 %v652, %v652
          %v685 = vpack.c.b16 %v653, %v653
          %v686 = vpack.c.b16 %v654, %v654
          %v687 = vpack.c.b16 %v655, %v655
          %v688 = vpack.c.b16 %v656, %v656
          %v689 = vpack.c.b16 %v657, %v657
          %v690 = vpack.c.b16 %v658, %v658
          %v691 = vpack.c.b16 %v659, %v659
          %v692 = vpack.c.b16 %v660, %v660
          %v693 = vpack.c.b16 %v661, %v661
          %v694 = vpack.c.b16 %v662, %v662
          %v695 = vpack.c.b16 %v663, %v663
          %v696 = vpack.c.b16 %v664, %v664
          %v697 = vpack.c.b16 %v665, %v665
          %v698 = vpack.c.b16 %v666, %v666
          %v699 = vpack.c.b16 %v667, %v667
          %v700 = vpack.c.b16 %v668, %v668
          %v701 = vpack.c.b16 %v669, %v669
          %v702 = vpack.c.b16 %v670, %v670
          %v703 = vpack.c.b16 %v671, %v671
          %v704 = vpack.c.b16 %v672, %v672
          %737 = vst.msk [vmem:[%s542 + $0x8] sm:$0xf0] %vm576, %v673
          %738 = vst.msk [vmem:[%s542 + $0x10] sm:$0xf] %vm544, %v674
          %739 = vst.msk [vmem:[%s542 + $0x28] sm:$0xf0] %vm576, %v675
          %740 = vst.msk [vmem:[%s542 + $0x30] sm:$0xf] %vm544, %v676
          %741 = vst.msk [vmem:[%s542 + $0x48] sm:$0xf0] %vm576, %v677
          %742 = vst.msk [vmem:[%s542 + $0x50] sm:$0xf] %vm544, %v678
          %743 = vst.msk [vmem:[%s542 + $0x68] sm:$0xf0] %vm576, %v679
          %744 = vst.msk [vmem:[%s542 + $0x70] sm:$0xf] %vm544, %v680
          %745 = vst.msk [vmem:[%s542 + $0x88] sm:$0xf0] %vm576, %v681
          %746 = vst.msk [vmem:[%s542 + $0x90] sm:$0xf] %vm544, %v682
          %747 = vst.msk [vmem:[%s542 + $0xa8] sm:$0xf0] %vm576, %v683
          %748 = vst.msk [vmem:[%s542 + $0xb0] sm:$0xf] %vm544, %v684
          %749 = vst.msk [vmem:[%s542 + $0xc8] sm:$0xf0] %vm576, %v685
          %750 = vst.msk [vmem:[%s542 + $0xd0] sm:$0xf] %vm544, %v686
          %751 = vst.msk [vmem:[%s542 + $0xe8] sm:$0xf0] %vm576, %v687
          %752 = vst.msk [vmem:[%s542 + $0xf0] sm:$0xf] %vm544, %v688
          %753 = vst.msk [vmem:[%s542 + $0x108] sm:$0xf0] %vm576, %v689
          %754 = vst.msk [vmem:[%s542 + $0x110] sm:$0xf] %vm544, %v690
          %755 = vst.msk [vmem:[%s542 + $0x128] sm:$0xf0] %vm576, %v691
          %756 = vst.msk [vmem:[%s542 + $0x130] sm:$0xf] %vm544, %v692
          %757 = vst.msk [vmem:[%s542 + $0x148] sm:$0xf0] %vm576, %v693
          %758 = vst.msk [vmem:[%s542 + $0x150] sm:$0xf] %vm544, %v694
          %759 = vst.msk [vmem:[%s542 + $0x168] sm:$0xf0] %vm576, %v695
          %760 = vst.msk [vmem:[%s542 + $0x170] sm:$0xf] %vm544, %v696
          %761 = vst.msk [vmem:[%s542 + $0x188] sm:$0xf0] %vm576, %v697
          %762 = vst.msk [vmem:[%s542 + $0x190] sm:$0xf] %vm544, %v698
          %763 = vst.msk [vmem:[%s542 + $0x1a8] sm:$0xf0] %vm576, %v699
          %764 = vst.msk [vmem:[%s542 + $0x1b0] sm:$0xf] %vm544, %v700
          %765 = vst.msk [vmem:[%s542 + $0x1c8] sm:$0xf0] %vm576, %v701
          %766 = vst.msk [vmem:[%s542 + $0x1d0] sm:$0xf] %vm544, %v702
          %767 = vst.msk [vmem:[%s542 + $0x1e8] sm:$0xf0] %vm576, %v703
          %768 = vst.msk [vmem:[%s542 + $0x1f0] sm:$0xf] %vm544, %v704
          %v769 = vpack.c.b16 %v642, %v641
          %v770 = vpack.c.b16 %v644, %v643
          %v771 = vpack.c.b16 %v646, %v645
          %v772 = vpack.c.b16 %v648, %v647
          %v773 = vpack.c.b16 %v650, %v649
          %v774 = vpack.c.b16 %v652, %v651
          %v775 = vpack.c.b16 %v654, %v653
          %v776 = vpack.c.b16 %v656, %v655
          %v777 = vpack.c.b16 %v658, %v657
          %v778 = vpack.c.b16 %v660, %v659
          %v779 = vpack.c.b16 %v662, %v661
          %v780 = vpack.c.b16 %v664, %v663
          %v781 = vpack.c.b16 %v666, %v665
          %v782 = vpack.c.b16 %v668, %v667
          %v783 = vpack.c.b16 %v670, %v669
          %v784 = vpack.c.b16 %v672, %v671
          %801 = vmatprep.subr.bf16.mxu0 0
          %802 = vmatpush1.bf16.msra.mxu0 %v769
          %803 = vmatprep.subr.bf16.mxu0 0
          %804 = vmatpush1.bf16.msra.mxu0 %v770
          %805 = vmatprep.subr.bf16.mxu0 0
          %806 = vmatpush1.bf16.msra.mxu0 %v771
          %807 = vmatprep.subr.bf16.mxu0 0
          %808 = vmatpush1.bf16.msra.mxu0 %v772
          %809 = vmatprep.subr.bf16.mxu0 0
          %810 = vmatpush1.bf16.msra.mxu0 %v773
          %811 = vmatprep.subr.bf16.mxu0 0
          %812 = vmatpush1.bf16.msra.mxu0 %v774
          %813 = vmatprep.subr.bf16.mxu0 0
          %814 = vmatpush1.bf16.msra.mxu0 %v775
          %815 = vmatprep.subr.bf16.mxu0 0
          %816 = vmatpush1.bf16.msra.mxu0 %v776
          %817 = vmatprep.subr.bf16.mxu0 0
          %818 = vmatpush1.bf16.msra.mxu0 %v777
          %819 = vmatprep.subr.bf16.mxu0 0
          %820 = vmatpush1.bf16.msra.mxu0 %v778
          %821 = vmatprep.subr.bf16.mxu0 0
          %822 = vmatpush1.bf16.msra.mxu0 %v779
          %823 = vmatprep.subr.bf16.mxu0 0
          %824 = vmatpush1.bf16.msra.mxu0 %v780
          %825 = vmatprep.subr.bf16.mxu0 0
          %826 = vmatpush1.bf16.msra.mxu0 %v781
          %827 = vmatprep.subr.bf16.mxu0 0
          %828 = vmatpush1.bf16.msra.mxu0 %v782
          %829 = vmatprep.subr.bf16.mxu0 0
          %830 = vmatpush1.bf16.msra.mxu0 %v783
          %831 = vmatprep.subr.bf16.mxu0 0
          %832 = vmatpush1.bf16.msra.mxu0 %v784
          %833 = vmatprep.mubr.bf16.mxu0 1065369472
          %834 = vmatmul.mubr.bf16.gmra.mrb[0].mxu0 1065369472
          %v835 = vpop.f32.mrb[0].mxu0
          %v836 = vadd.f32 0.0, %v835
          %v837 = vpop.f32.mrb[0].mxu0
          %v838 = vpop.f32.mrb[0].mxu0
          %v839 = vpop.f32.mrb[0].mxu0
          %840 = vdwg.mxu0
          %v841 = vmul.f32 %v836, 0.00390625
          %v842 = vld [vmem:[%s2] sm:$0xf]
          %v844 = vsel %vm396, %v841, 0
          %vm846 = vcmask 1043456
          %v848 = vsel %vm846, %v842, 0
          %850 = vmatprep.subr.mxu0 0.0
          %851 = vmatpush1.msra.mxu0 %v848
          %852 = vmatprep.subr.mxu0 0.0
          %853 = vmatpush1.msra.mxu0 0.0
          %854 = vmatprep.subr.mxu0 0.0
          %855 = vmatpush1.msra.mxu0 0.0
          %856 = vmatprep.subr.mxu0 0.0
          %857 = vmatpush1.msra.mxu0 0.0
          %858 = vmatprep.subr.mxu0 0.0
          %859 = vmatpush1.msra.mxu0 0.0
          %860 = vmatprep.subr.mxu0 0.0
          %861 = vmatpush1.msra.mxu0 0.0
          %862 = vmatprep.subr.mxu0 0.0
          %863 = vmatpush1.msra.mxu0 0.0
          %864 = vmatprep.subr.mxu0 0.0
          %865 = vmatpush1.msra.mxu0 0.0
          %866 = vmatprep.subr.mxu0 0.0
          %867 = vmatpush1.msra.mxu0 0.0
          %868 = vmatprep.subr.mxu0 0.0
          %869 = vmatpush1.msra.mxu0 0.0
          %870 = vmatprep.subr.mxu0 0.0
          %871 = vmatpush1.msra.mxu0 0.0
          %872 = vmatprep.subr.mxu0 0.0
          %873 = vmatpush1.msra.mxu0 0.0
          %874 = vmatprep.subr.mxu0 0.0
          %875 = vmatpush1.msra.mxu0 0.0
          %876 = vmatprep.subr.mxu0 0.0
          %877 = vmatpush1.msra.mxu0 0.0
          %878 = vmatprep.subr.mxu0 0.0
          %879 = vmatpush1.msra.mxu0 0.0
          %880 = vmatprep.subr.mxu0 0.0
          %881 = vmatpush1.msra.mxu0 0.0
          %882 = vmatprep.subr.mxu0 0.0
          %883 = vmatpush1.msra.mxu0 0.0
          %884 = vmatprep.subr.mxu0 0.0
          %885 = vmatpush1.msra.mxu0 0.0
          %886 = vmatprep.subr.mxu0 0.0
          %887 = vmatpush1.msra.mxu0 0.0
          %888 = vmatprep.subr.mxu0 0.0
          %889 = vmatpush1.msra.mxu0 0.0
          %890 = vmatprep.subr.mxu0 0.0
          %891 = vmatpush1.msra.mxu0 0.0
          %892 = vmatprep.subr.mxu0 0.0
          %893 = vmatpush1.msra.mxu0 0.0
          %894 = vmatprep.subr.mxu0 0.0
          %895 = vmatpush1.msra.mxu0 0.0
          %896 = vmatprep.subr.mxu0 0.0
          %897 = vmatpush1.msra.mxu0 0.0
          %898 = vmatprep.subr.mxu0 0.0
          %899 = vmatpush1.msra.mxu0 0.0
          %900 = vmatprep.subr.mxu0 0.0
          %901 = vmatpush1.msra.mxu0 0.0
          %902 = vmatprep.subr.mxu0 0.0
          %903 = vmatpush1.msra.mxu0 0.0
          %904 = vmatprep.subr.mxu0 0.0
          %905 = vmatpush1.msra.mxu0 0.0
          %906 = vmatprep.subr.mxu0 0.0
          %907 = vmatpush1.msra.mxu0 0.0
          %908 = vmatprep.subr.mxu0 0.0
          %909 = vmatpush1.msra.mxu0 0.0
          %910 = vmatprep.subr.mxu0 0.0
          %911 = vmatpush1.msra.mxu0 0.0
          %912 = vmatprep.subr.mxu0 0.0
          %913 = vmatpush1.msra.mxu0 0.0
          %914 = vmatprep.mubr.f32.mxu0 0.0
          %915 = vmatmul.mubr.f32.gmra.mrb[0].mxu0 %v844
          %v916 = vpop.f32.mrb[0].mxu0
          %v917 = vadd.f32 0.0, %v916
          %v918 = vpop.f32.mrb[0].mxu0
          %919 = vdwg.mxu0
          %v920 = vmax.f32 %v917, 0.0
          %vm921 = vcmask 253952
          %922 = vst.msk [vmem:[#allocation3] sm:$0x1] %vm921, %v920
        $region56: #{tpu_custom_call.1} parent=51 // pred_fallthru
          _
        %s923 = smul.u32 %s27, 8
        %v924 = vld [vmem:[#allocation3] sm:$0x1]
        %v925 = vpack.c.bf16 %v924, %v924
        %v927 = vpack.i.b16 %v925, %v925
        %v929 = vlaneseq
        %v930 = vshrl.u32 %v929, 7
        %v931 = vsub.s32 0, %v930
        %v932 = vrot.slane %v927, %v931
        %v934 = vunpack.c.l.b16 %v932
        %v935 = vpack.c.b16 %v934, %v934
        %vm937 = vcmask 257024
        %938 = vst.msk [vmem:[%s340] sm:$0xf] %vm937, %v935
        %939 = vst.msk [vmem:[%s340 + $0x8] sm:$0xf] %vm937, %v935
        %940 = vst.msk [vmem:[%s340 + $0x10] sm:$0xf] %vm937, %v935
        %941 = vst.msk [vmem:[%s340 + $0x18] sm:$0xf] %vm937, %v935
        %942 = vst.msk [vmem:[%s340 + $0x20] sm:$0xf] %vm937, %v935
        %943 = vst.msk [vmem:[%s340 + $0x28] sm:$0xf] %vm937, %v935
        %944 = vst.msk [vmem:[%s340 + $0x30] sm:$0xf] %vm937, %v935
        %945 = vst.msk [vmem:[%s340 + $0x38] sm:$0xf] %vm937, %v935
        %946 = vst.msk [vmem:[%s340 + $0x40] sm:$0xf] %vm937, %v935
        %947 = vst.msk [vmem:[%s340 + $0x48] sm:$0xf] %vm937, %v935
        %948 = vst.msk [vmem:[%s340 + $0x50] sm:$0xf] %vm937, %v935
        %949 = vst.msk [vmem:[%s340 + $0x58] sm:$0xf] %vm937, %v935
        %950 = vst.msk [vmem:[%s340 + $0x60] sm:$0xf] %vm937, %v935
        %951 = vst.msk [vmem:[%s340 + $0x68] sm:$0xf] %vm937, %v935
        %952 = vst.msk [vmem:[%s340 + $0x70] sm:$0xf] %vm937, %v935
        %953 = vst.msk [vmem:[%s340 + $0x78] sm:$0xf] %vm937, %v935
        %v954 = vld [vmem:[%s355] sm:$0xff]
        %v955 = vld [vmem:[%s355 + $0x8] sm:$0xff]
        %v956 = vld [vmem:[%s355 + $0x10] sm:$0xff]
        %v957 = vld [vmem:[%s355 + $0x18] sm:$0xff]
        %v958 = vld [vmem:[%s355 + $0x20] sm:$0xff]
        %v959 = vld [vmem:[%s355 + $0x28] sm:$0xff]
        %v960 = vld [vmem:[%s355 + $0x30] sm:$0xff]
        %v961 = vld [vmem:[%s355 + $0x38] sm:$0xff]
        %v962 = vld [vmem:[%s355 + $0x40] sm:$0xff]
        %v963 = vld [vmem:[%s355 + $0x48] sm:$0xff]
        %v964 = vld [vmem:[%s355 + $0x50] sm:$0xff]
        %v965 = vld [vmem:[%s355 + $0x58] sm:$0xff]
        %v966 = vld [vmem:[%s355 + $0x60] sm:$0xff]
        %v967 = vld [vmem:[%s355 + $0x68] sm:$0xff]
        %v968 = vld [vmem:[%s355 + $0x70] sm:$0xff]
        %v969 = vld [vmem:[%s355 + $0x78] sm:$0xff]
        %v970 = vld [vmem:[%s3] sm:$0x1]
        %972 = vset.pattern.permute.xlu0 0
        %973 = vperm.xlu0 %972, %v954
        %v974 = vpop.permute.xlu0 %973
        %977 = vset.pattern.permute.xlu0 0
        %978 = vperm.xlu0 %977, %v955
        %v979 = vpop.permute.xlu0 %978
        %982 = vset.pattern.permute.xlu0 0
        %983 = vperm.xlu0 %982, %v956
        %v984 = vpop.permute.xlu0 %983
        %987 = vset.pattern.permute.xlu0 0
        %988 = vperm.xlu0 %987, %v957
        %v989 = vpop.permute.xlu0 %988
        %992 = vset.pattern.permute.xlu0 0
        %993 = vperm.xlu0 %992, %v958
        %v994 = vpop.permute.xlu0 %993
        %997 = vset.pattern.permute.xlu0 0
        %998 = vperm.xlu0 %997, %v959
        %v999 = vpop.permute.xlu0 %998
        %1002 = vset.pattern.permute.xlu0 0
        %1003 = vperm.xlu0 %1002, %v960
        %v1004 = vpop.permute.xlu0 %1003
        %1007 = vset.pattern.permute.xlu0 0
        %1008 = vperm.xlu0 %1007, %v961
        %v1009 = vpop.permute.xlu0 %1008
        %1012 = vset.pattern.permute.xlu0 0
        %1013 = vperm.xlu0 %1012, %v962
        %v1014 = vpop.permute.xlu0 %1013
        %1017 = vset.pattern.permute.xlu0 0
        %1018 = vperm.xlu0 %1017, %v963
        %v1019 = vpop.permute.xlu0 %1018
        %1022 = vset.pattern.permute.xlu0 0
        %1023 = vperm.xlu0 %1022, %v964
        %v1024 = vpop.permute.xlu0 %1023
        %1027 = vset.pattern.permute.xlu0 0
        %1028 = vperm.xlu0 %1027, %v965
        %v1029 = vpop.permute.xlu0 %1028
        %1032 = vset.pattern.permute.xlu0 0
        %1033 = vperm.xlu0 %1032, %v966
        %v1034 = vpop.permute.xlu0 %1033
        %1037 = vset.pattern.permute.xlu0 0
        %1038 = vperm.xlu0 %1037, %v967
        %v1039 = vpop.permute.xlu0 %1038
        %1042 = vset.pattern.permute.xlu0 0
        %1043 = vperm.xlu0 %1042, %v968
        %v1044 = vpop.permute.xlu0 %1043
        %1047 = vset.pattern.permute.xlu0 0
        %1048 = vperm.xlu0 %1047, %v969
        %v1049 = vpop.permute.xlu0 %1048
        %v1052 = vlaneseq
        %v1053 = vshrl.u32 %v1052, 7
        %v1054 = vsub.s32 0, %v1053
        %v1055 = vrot.slane %v970, %v1054
        %v1057 = vmul.f32 %v974, %v1055
        %v1058 = vmul.f32 %v979, %v1055
        %v1059 = vmul.f32 %v984, %v1055
        %v1060 = vmul.f32 %v989, %v1055
        %v1061 = vmul.f32 %v994, %v1055
        %v1062 = vmul.f32 %v999, %v1055
        %v1063 = vmul.f32 %v1004, %v1055
        %v1064 = vmul.f32 %v1009, %v1055
        %v1065 = vmul.f32 %v1014, %v1055
        %v1066 = vmul.f32 %v1019, %v1055
        %v1067 = vmul.f32 %v1024, %v1055
        %v1068 = vmul.f32 %v1029, %v1055
        %v1069 = vmul.f32 %v1034, %v1055
        %v1070 = vmul.f32 %v1039, %v1055
        %v1071 = vmul.f32 %v1044, %v1055
        %v1072 = vmul.f32 %v1049, %v1055
        %v1073 = vmax.f32 %v1057, 0.0
        %v1074 = vmax.f32 %v1058, 0.0
        %v1075 = vmax.f32 %v1059, 0.0
        %v1076 = vmax.f32 %v1060, 0.0
        %v1077 = vmax.f32 %v1061, 0.0
        %v1078 = vmax.f32 %v1062, 0.0
        %v1079 = vmax.f32 %v1063, 0.0
        %v1080 = vmax.f32 %v1064, 0.0
        %v1081 = vmax.f32 %v1065, 0.0
        %v1082 = vmax.f32 %v1066, 0.0
        %v1083 = vmax.f32 %v1067, 0.0
        %v1084 = vmax.f32 %v1068, 0.0
        %v1085 = vmax.f32 %v1069, 0.0
        %v1086 = vmax.f32 %v1070, 0.0
        %v1087 = vmax.f32 %v1071, 0.0
        %v1088 = vmax.f32 %v1072, 0.0
        %v1089 = vpack.c.bf16 %v1074, %v1073
        %v1090 = vpack.c.bf16 %v1076, %v1075
        %v1091 = vpack.c.bf16 %v1078, %v1077
        %v1092 = vpack.c.bf16 %v1080, %v1079
        %v1093 = vpack.c.bf16 %v1082, %v1081
        %v1094 = vpack.c.bf16 %v1084, %v1083
        %v1095 = vpack.c.bf16 %v1086, %v1085
        %v1096 = vpack.c.bf16 %v1088, %v1087
        %v1105 = vunpack.c.l.b16 %v1089
        %v1106 = vunpack.c.h.b16 %v1089
        %v1107 = vunpack.c.l.b16 %v1090
        %v1108 = vunpack.c.h.b16 %v1090
        %v1109 = vunpack.c.l.b16 %v1091
        %v1110 = vunpack.c.h.b16 %v1091
        %v1111 = vunpack.c.l.b16 %v1092
        %v1112 = vunpack.c.h.b16 %v1092
        %v1113 = vunpack.c.l.b16 %v1093
        %v1114 = vunpack.c.h.b16 %v1093
        %v1115 = vunpack.c.l.b16 %v1094
        %v1116 = vunpack.c.h.b16 %v1094
        %v1117 = vunpack.c.l.b16 %v1095
        %v1118 = vunpack.c.h.b16 %v1095
        %v1119 = vunpack.c.l.b16 %v1096
        %v1120 = vunpack.c.h.b16 %v1096
        %v1121 = vpack.c.b16 %v1105, %v1105
        %v1122 = vpack.c.b16 %v1106, %v1106
        %v1123 = vpack.c.b16 %v1107, %v1107
        %v1124 = vpack.c.b16 %v1108, %v1108
        %v1125 = vpack.c.b16 %v1109, %v1109
        %v1126 = vpack.c.b16 %v1110, %v1110
        %v1127 = vpack.c.b16 %v1111, %v1111
        %v1128 = vpack.c.b16 %v1112, %v1112
        %v1129 = vpack.c.b16 %v1113, %v1113
        %v1130 = vpack.c.b16 %v1114, %v1114
        %v1131 = vpack.c.b16 %v1115, %v1115
        %v1132 = vpack.c.b16 %v1116, %v1116
        %v1133 = vpack.c.b16 %v1117, %v1117
        %v1134 = vpack.c.b16 %v1118, %v1118
        %v1135 = vpack.c.b16 %v1119, %v1119
        %v1136 = vpack.c.b16 %v1120, %v1120
        %1137 = vrot.lane.b32.xlu0 %v1121, 32
        %v1138 = vpop.permute.xlu0 %1137
        %1139 = vrot.lane.b32.xlu0 %v1122, 32
        %v1140 = vpop.permute.xlu0 %1139
        %1141 = vrot.lane.b32.xlu0 %v1123, 32
        %v1142 = vpop.permute.xlu0 %1141
        %1143 = vrot.lane.b32.xlu0 %v1124, 32
        %v1144 = vpop.permute.xlu0 %1143
        %1145 = vrot.lane.b32.xlu0 %v1125, 32
        %v1146 = vpop.permute.xlu0 %1145
        %1147 = vrot.lane.b32.xlu0 %v1126, 32
        %v1148 = vpop.permute.xlu0 %1147
        %1149 = vrot.lane.b32.xlu0 %v1127, 32
        %v1150 = vpop.permute.xlu0 %1149
        %1151 = vrot.lane.b32.xlu0 %v1128, 32
        %v1152 = vpop.permute.xlu0 %1151
        %1153 = vrot.lane.b32.xlu0 %v1129, 32
        %v1154 = vpop.permute.xlu0 %1153
        %1155 = vrot.lane.b32.xlu0 %v1130, 32
        %v1156 = vpop.permute.xlu0 %1155
        %1157 = vrot.lane.b32.xlu0 %v1131, 32
        %v1158 = vpop.permute.xlu0 %1157
        %1159 = vrot.lane.b32.xlu0 %v1132, 32
        %v1160 = vpop.permute.xlu0 %1159
        %1161 = vrot.lane.b32.xlu0 %v1133, 32
        %v1162 = vpop.permute.xlu0 %1161
        %1163 = vrot.lane.b32.xlu0 %v1134, 32
        %v1164 = vpop.permute.xlu0 %1163
        %1165 = vrot.lane.b32.xlu0 %v1135, 32
        %v1166 = vpop.permute.xlu0 %1165
        %1167 = vrot.lane.b32.xlu0 %v1136, 32
        %v1168 = vpop.permute.xlu0 %1167
        %vm1185 = vcmask 519424
        %1186 = vst.msk [vmem:[%s340] sm:$0xf] %vm1185, %v1138
        %1187 = vst.msk [vmem:[%s340 + $0x8] sm:$0xf] %vm1185, %v1140
        %1188 = vst.msk [vmem:[%s340 + $0x10] sm:$0xf] %vm1185, %v1142
        %1189 = vst.msk [vmem:[%s340 + $0x18] sm:$0xf] %vm1185, %v1144
        %1190 = vst.msk [vmem:[%s340 + $0x20] sm:$0xf] %vm1185, %v1146
        %1191 = vst.msk [vmem:[%s340 + $0x28] sm:$0xf] %vm1185, %v1148
        %1192 = vst.msk [vmem:[%s340 + $0x30] sm:$0xf] %vm1185, %v1150
        %1193 = vst.msk [vmem:[%s340 + $0x38] sm:$0xf] %vm1185, %v1152
        %1194 = vst.msk [vmem:[%s340 + $0x40] sm:$0xf] %vm1185, %v1154
        %1195 = vst.msk [vmem:[%s340 + $0x48] sm:$0xf] %vm1185, %v1156
        %1196 = vst.msk [vmem:[%s340 + $0x50] sm:$0xf] %vm1185, %v1158
        %1197 = vst.msk [vmem:[%s340 + $0x58] sm:$0xf] %vm1185, %v1160
        %1198 = vst.msk [vmem:[%s340 + $0x60] sm:$0xf] %vm1185, %v1162
        %1199 = vst.msk [vmem:[%s340 + $0x68] sm:$0xf] %vm1185, %v1164
        %1200 = vst.msk [vmem:[%s340 + $0x70] sm:$0xf] %vm1185, %v1166
        %1201 = vst.msk [vmem:[%s340 + $0x78] sm:$0xf] %vm1185, %v1168
        %s1202 = sadd.s32 %s923, 18
        %s1203 = smul.u32 %s1202, 4
        %s1204 = smul.addr %s1203, 8
        %s1205 = scalar_lea.vmem [#allocation2], %s1204
        %v1206 = vld [vmem:[%s1205 + $0x8] sm:$0xf0]
        %v1207 = vld [vmem:[%s1205 + $0x10] sm:$0xf]
        %v1208 = vld [vmem:[%s1205 + $0x28] sm:$0xf0]
        %v1209 = vld [vmem:[%s1205 + $0x30] sm:$0xf]
        %v1210 = vld [vmem:[%s1205 + $0x48] sm:$0xf0]
        %v1211 = vld [vmem:[%s1205 + $0x50] sm:$0xf]
        %v1212 = vld [vmem:[%s1205 + $0x68] sm:$0xf0]
        %v1213 = vld [vmem:[%s1205 + $0x70] sm:$0xf]
        %v1214 = vld [vmem:[%s1205 + $0x88] sm:$0xf0]
        %v1215 = vld [vmem:[%s1205 + $0x90] sm:$0xf]
        %v1216 = vld [vmem:[%s1205 + $0xa8] sm:$0xf0]
        %v1217 = vld [vmem:[%s1205 + $0xb0] sm:$0xf]
        %v1218 = vld [vmem:[%s1205 + $0xc8] sm:$0xf0]
        %v1219 = vld [vmem:[%s1205 + $0xd0] sm:$0xf]
        %v1220 = vld [vmem:[%s1205 + $0xe8] sm:$0xf0]
        %v1221 = vld [vmem:[%s1205 + $0xf0] sm:$0xf]
        %vm1238 = vcmask 1043456
        %v1239 = vrot.slane %v1206, 4
        %v1240 = vrot.slane %v1207, 4
        %v1241 = vsel %vm1238, %v1239, %v1240
        %v1242 = vrot.slane %v1208, 4
        %v1243 = vrot.slane %v1209, 4
        %v1244 = vsel %vm1238, %v1242, %v1243
        %v1245 = vrot.slane %v1210, 4
        %v1246 = vrot.slane %v1211, 4
        %v1247 = vsel %vm1238, %v1245, %v1246
        %v1248 = vrot.slane %v1212, 4
        %v1249 = vrot.slane %v1213, 4
        %v1250 = vsel %vm1238, %v1248, %v1249
        %v1251 = vrot.slane %v1214, 4
        %v1252 = vrot.slane %v1215, 4
        %v1253 = vsel %vm1238, %v1251, %v1252
        %v1254 = vrot.slane %v1216, 4
        %v1255 = vrot.slane %v1217, 4
        %v1256 = vsel %vm1238, %v1254, %v1255
        %v1257 = vrot.slane %v1218, 4
        %v1258 = vrot.slane %v1219, 4
        %v1259 = vsel %vm1238, %v1257, %v1258
        %v1260 = vrot.slane %v1220, 4
        %v1261 = vrot.slane %v1221, 4
        %v1262 = vsel %vm1238, %v1260, %v1261
        %v1263 = vld [vmem:[%s4] sm:$0x3]
        %vm1264 = vcmask 31744
        %v1266 = vsel %vm1264, %v1241, 0
        %v1269 = vsel %vm1264, %v1244, 0
        %v1272 = vsel %vm1264, %v1247, 0
        %v1275 = vsel %vm1264, %v1250, 0
        %v1278 = vsel %vm1264, %v1253, 0
        %v1281 = vsel %vm1264, %v1256, 0
        %v1284 = vsel %vm1264, %v1259, 0
        %v1287 = vsel %vm1264, %v1262, 0
        %vm1289 = vcmask 1041408
        %v1291 = vsel %vm1289, %v1263, 0
        %1293 = vmatprep.subr.bf16.mxu0 0
        %1294 = vmatpush1.bf16.msra.mxu0 %v1291
        %1295 = vmatprep.subr.bf16.mxu0 0
        %1296 = vmatpush1.bf16.msra.mxu0 0
        %1297 = vmatprep.subr.bf16.mxu0 0
        %1298 = vmatpush1.bf16.msra.mxu0 0
        %1299 = vmatprep.subr.bf16.mxu0 0
        %1300 = vmatpush1.bf16.msra.mxu0 0
        %1301 = vmatprep.subr.bf16.mxu0 0
        %1302 = vmatpush1.bf16.msra.mxu0 0
        %1303 = vmatprep.subr.bf16.mxu0 0
        %1304 = vmatpush1.bf16.msra.mxu0 0
        %1305 = vmatprep.subr.bf16.mxu0 0
        %1306 = vmatpush1.bf16.msra.mxu0 0
        %1307 = vmatprep.subr.bf16.mxu0 0
        %1308 = vmatpush1.bf16.msra.mxu0 0
        %1309 = vmatprep.subr.bf16.mxu0 0
        %1310 = vmatpush1.bf16.msra.mxu0 0
        %1311 = vmatprep.subr.bf16.mxu0 0
        %1312 = vmatpush1.bf16.msra.mxu0 0
        %1313 = vmatprep.subr.bf16.mxu0 0
        %1314 = vmatpush1.bf16.msra.mxu0 0
        %1315 = vmatprep.subr.bf16.mxu0 0
        %1316 = vmatpush1.bf16.msra.mxu0 0
        %1317 = vmatprep.subr.bf16.mxu0 0
        %1318 = vmatpush1.bf16.msra.mxu0 0
        %1319 = vmatprep.subr.bf16.mxu0 0
        %1320 = vmatpush1.bf16.msra.mxu0 0
        %1321 = vmatprep.subr.bf16.mxu0 0
        %1322 = vmatpush1.bf16.msra.mxu0 0
        %1323 = vmatprep.subr.bf16.mxu0 0
        %1324 = vmatpush1.bf16.msra.mxu0 0
        %1325 = vmatprep.mubr.bf16.mxu0 0
        %1326 = vmatmul.mubr.bf16.gmra.mrb[0].mxu0 %v1266
        %v1327 = vpop.f32.mrb[0].mxu0
        %v1328 = vadd.f32 0.0, %v1327
        %v1329 = vpop.f32.mrb[0].mxu0
        %v1330 = vpop.f32.mrb[0].mxu0
        %v1331 = vadd.f32 0.0, %v1330
        %v1332 = vpop.f32.mrb[0].mxu0
        %1333 = vmatprep.mubr.bf16.mxu0 0
        %1334 = vmatmul.mubr.bf16.gmra.mrb[0].mxu0 %v1269
        %v1335 = vpop.f32.mrb[0].mxu0
        %v1336 = vadd.f32 0.0, %v1335
        %v1337 = vpop.f32.mrb[0].mxu0
        %v1338 = vpop.f32.mrb[0].mxu0
        %v1339 = vadd.f32 0.0, %v1338
        %v1340 = vpop.f32.mrb[0].mxu0
        %1341 = vmatprep.mubr.bf16.mxu0 0
        %1342 = vmatmul.mubr.bf16.gmra.mrb[0].mxu0 %v1272
        %v1343 = vpop.f32.mrb[0].mxu0
        %v1344 = vadd.f32 0.0, %v1343
        %v1345 = vpop.f32.mrb[0].mxu0
        %v1346 = vpop.f32.mrb[0].mxu0
        %v1347 = vadd.f32 0.0, %v1346
        %v1348 = vpop.f32.mrb[0].mxu0
        %1349 = vmatprep.mubr.bf16.mxu0 0
        %1350 = vmatmul.mubr.bf16.gmra.mrb[0].mxu0 %v1275
        %v1351 = vpop.f32.mrb[0].mxu0
        %v1352 = vadd.f32 0.0, %v1351
        %v1353 = vpop.f32.mrb[0].mxu0
        %v1354 = vpop.f32.mrb[0].mxu0
        %v1355 = vadd.f32 0.0, %v1354
        %v1356 = vpop.f32.mrb[0].mxu0
        %1357 = vmatprep.mubr.bf16.mxu0 0
        %1358 = vmatmul.mubr.bf16.gmra.mrb[0].mxu0 %v1278
        %v1359 = vpop.f32.mrb[0].mxu0
        %v1360 = vadd.f32 0.0, %v1359
        %v1361 = vpop.f32.mrb[0].mxu0
        %v1362 = vpop.f32.mrb[0].mxu0
        %v1363 = vadd.f32 0.0, %v1362
        %v1364 = vpop.f32.mrb[0].mxu0
        %1365 = vmatprep.mubr.bf16.mxu0 0
        %1366 = vmatmul.mubr.bf16.gmra.mrb[0].mxu0 %v1281
        %v1367 = vpop.f32.mrb[0].mxu0
        %v1368 = vadd.f32 0.0, %v1367
        %v1369 = vpop.f32.mrb[0].mxu0
        %v1370 = vpop.f32.mrb[0].mxu0
        %v1371 = vadd.f32 0.0, %v1370
        %v1372 = vpop.f32.mrb[0].mxu0
        %1373 = vmatprep.mubr.bf16.mxu0 0
        %1374 = vmatmul.mubr.bf16.gmra.mrb[0].mxu0 %v1284
        %v1375 = vpop.f32.mrb[0].mxu0
        %v1376 = vadd.f32 0.0, %v1375
        %v1377 = vpop.f32.mrb[0].mxu0
        %v1378 = vpop.f32.mrb[0].mxu0
        %v1379 = vadd.f32 0.0, %v1378
        %v1380 = vpop.f32.mrb[0].mxu0
        %1381 = vmatprep.mubr.bf16.mxu0 0
        %1382 = vmatmul.mubr.bf16.gmra.mrb[0].mxu0 %v1287
        %v1383 = vpop.f32.mrb[0].mxu0
        %v1384 = vadd.f32 0.0, %v1383
        %v1385 = vpop.f32.mrb[0].mxu0
        %v1386 = vpop.f32.mrb[0].mxu0
        %v1387 = vadd.f32 0.0, %v1386
        %v1388 = vpop.f32.mrb[0].mxu0
        %1389 = vdwg.mxu0
        %v1390 = vmax.f32 %v1328, 0.0
        %v1391 = vmax.f32 %v1331, 0.0
        %v1392 = vmax.f32 %v1336, 0.0
        %v1393 = vmax.f32 %v1339, 0.0
        %v1394 = vmax.f32 %v1344, 0.0
        %v1395 = vmax.f32 %v1347, 0.0
        %v1396 = vmax.f32 %v1352, 0.0
        %v1397 = vmax.f32 %v1355, 0.0
        %v1398 = vmax.f32 %v1360, 0.0
        %v1399 = vmax.f32 %v1363, 0.0
        %v1400 = vmax.f32 %v1368, 0.0
        %v1401 = vmax.f32 %v1371, 0.0
        %v1402 = vmax.f32 %v1376, 0.0
        %v1403 = vmax.f32 %v1379, 0.0
        %v1404 = vmax.f32 %v1384, 0.0
        %v1405 = vmax.f32 %v1387, 0.0
        %v1406 = vpack.c.bf16 %v1391, %v1390
        %v1407 = vpack.c.bf16 %v1393, %v1392
        %v1408 = vpack.c.bf16 %v1395, %v1394
        %v1409 = vpack.c.bf16 %v1397, %v1396
        %v1410 = vpack.c.bf16 %v1399, %v1398
        %v1411 = vpack.c.bf16 %v1401, %v1400
        %v1412 = vpack.c.bf16 %v1403, %v1402
        %v1413 = vpack.c.bf16 %v1405, %v1404
        %v1422 = vunpack.c.l.b16 %v1406
        %v1423 = vunpack.c.h.b16 %v1406
        %v1424 = vunpack.c.l.b16 %v1407
        %v1425 = vunpack.c.h.b16 %v1407
        %v1426 = vunpack.c.l.b16 %v1408
        %v1427 = vunpack.c.h.b16 %v1408
        %v1428 = vunpack.c.l.b16 %v1409
        %v1429 = vunpack.c.h.b16 %v1409
        %v1430 = vunpack.c.l.b16 %v1410
        %v1431 = vunpack.c.h.b16 %v1410
        %v1432 = vunpack.c.l.b16 %v1411
        %v1433 = vunpack.c.h.b16 %v1411
        %v1434 = vunpack.c.l.b16 %v1412
        %v1435 = vunpack.c.h.b16 %v1412
        %v1436 = vunpack.c.l.b16 %v1413
        %v1437 = vunpack.c.h.b16 %v1413
        %v1438 = vpack.c.b16 %v1422, %v1422
        %v1439 = vpack.c.b16 %v1423, %v1423
        %v1440 = vpack.c.b16 %v1424, %v1424
        %v1441 = vpack.c.b16 %v1425, %v1425
        %v1442 = vpack.c.b16 %v1426, %v1426
        %v1443 = vpack.c.b16 %v1427, %v1427
        %v1444 = vpack.c.b16 %v1428, %v1428
        %v1445 = vpack.c.b16 %v1429, %v1429
        %v1446 = vpack.c.b16 %v1430, %v1430
        %v1447 = vpack.c.b16 %v1431, %v1431
        %v1448 = vpack.c.b16 %v1432, %v1432
        %v1449 = vpack.c.b16 %v1433, %v1433
        %v1450 = vpack.c.b16 %v1434, %v1434
        %v1451 = vpack.c.b16 %v1435, %v1435
        %v1452 = vpack.c.b16 %v1436, %v1436
        %v1453 = vpack.c.b16 %v1437, %v1437
        %1454 = vrot.lane.b32.xlu0 %v1438, 64
        %v1455 = vpop.permute.xlu0 %1454
        %1456 = vrot.lane.b32.xlu0 %v1439, 64
        %v1457 = vpop.permute.xlu0 %1456
        %1458 = vrot.lane.b32.xlu0 %v1440, 64
        %v1459 = vpop.permute.xlu0 %1458
        %1460 = vrot.lane.b32.xlu0 %v1441, 64
        %v1461 = vpop.permute.xlu0 %1460
        %1462 = vrot.lane.b32.xlu0 %v1442, 64
        %v1463 = vpop.permute.xlu0 %1462
        %1464 = vrot.lane.b32.xlu0 %v1443, 64
        %v1465 = vpop.permute.xlu0 %1464
        %1466 = vrot.lane.b32.xlu0 %v1444, 64
        %v1467 = vpop.permute.xlu0 %1466
        %1468 = vrot.lane.b32.xlu0 %v1445, 64
        %v1469 = vpop.permute.xlu0 %1468
        %1470 = vrot.lane.b32.xlu0 %v1446, 64
        %v1471 = vpop.permute.xlu0 %1470
        %1472 = vrot.lane.b32.xlu0 %v1447, 64
        %v1473 = vpop.permute.xlu0 %1472
        %1474 = vrot.lane.b32.xlu0 %v1448, 64
        %v1475 = vpop.permute.xlu0 %1474
        %1476 = vrot.lane.b32.xlu0 %v1449, 64
        %v1477 = vpop.permute.xlu0 %1476
        %1478 = vrot.lane.b32.xlu0 %v1450, 64
        %v1479 = vpop.permute.xlu0 %1478
        %1480 = vrot.lane.b32.xlu0 %v1451, 64
        %v1481 = vpop.permute.xlu0 %1480
        %1482 = vrot.lane.b32.xlu0 %v1452, 64
        %v1483 = vpop.permute.xlu0 %1482
        %1484 = vrot.lane.b32.xlu0 %v1453, 64
        %v1485 = vpop.permute.xlu0 %1484
        %vm1502 = vcmask 781824
        %1503 = vst.msk [vmem:[%s340] sm:$0xf] %vm1502, %v1455
        %1504 = vst.msk [vmem:[%s340 + $0x8] sm:$0xf] %vm1502, %v1457
        %1505 = vst.msk [vmem:[%s340 + $0x10] sm:$0xf] %vm1502, %v1459
        %1506 = vst.msk [vmem:[%s340 + $0x18] sm:$0xf] %vm1502, %v1461
        %1507 = vst.msk [vmem:[%s340 + $0x20] sm:$0xf] %vm1502, %v1463
        %1508 = vst.msk [vmem:[%s340 + $0x28] sm:$0xf] %vm1502, %v1465
        %1509 = vst.msk [vmem:[%s340 + $0x30] sm:$0xf] %vm1502, %v1467
        %1510 = vst.msk [vmem:[%s340 + $0x38] sm:$0xf] %vm1502, %v1469
        %1511 = vst.msk [vmem:[%s340 + $0x40] sm:$0xf] %vm1502, %v1471
        %1512 = vst.msk [vmem:[%s340 + $0x48] sm:$0xf] %vm1502, %v1473
        %1513 = vst.msk [vmem:[%s340 + $0x50] sm:$0xf] %vm1502, %v1475
        %1514 = vst.msk [vmem:[%s340 + $0x58] sm:$0xf] %vm1502, %v1477
        %1515 = vst.msk [vmem:[%s340 + $0x60] sm:$0xf] %vm1502, %v1479
        %1516 = vst.msk [vmem:[%s340 + $0x68] sm:$0xf] %vm1502, %v1481
        %1517 = vst.msk [vmem:[%s340 + $0x70] sm:$0xf] %vm1502, %v1483
        %1518 = vst.msk [vmem:[%s340 + $0x78] sm:$0xf] %vm1502, %v1485
        %1535 = vrot.lane.b32.xlu0 %v1328, 96
        %v1536 = vpop.permute.xlu0 %1535
        %1537 = vrot.lane.b32.xlu0 %v1331, 96
        %v1538 = vpop.permute.xlu0 %1537
        %1539 = vrot.lane.b32.xlu0 %v1336, 96
        %v1540 = vpop.permute.xlu0 %1539
        %1541 = vrot.lane.b32.xlu0 %v1339, 96
        %v1542 = vpop.permute.xlu0 %1541
        %1543 = vrot.lane.b32.xlu0 %v1344, 96
        %v1544 = vpop.permute.xlu0 %1543
        %1545 = vrot.lane.b32.xlu0 %v1347, 96
        %v1546 = vpop.permute.xlu0 %1545
        %1547 = vrot.lane.b32.xlu0 %v1352, 96
        %v1548 = vpop.permute.xlu0 %1547
        %1549 = vrot.lane.b32.xlu0 %v1355, 96
        %v1550 = vpop.permute.xlu0 %1549
        %1551 = vrot.lane.b32.xlu0 %v1360, 96
        %v1552 = vpop.permute.xlu0 %1551
        %1553 = vrot.lane.b32.xlu0 %v1363, 96
        %v1554 = vpop.permute.xlu0 %1553
        %1555 = vrot.lane.b32.xlu0 %v1368, 96
        %v1556 = vpop.permute.xlu0 %1555
        %1557 = vrot.lane.b32.xlu0 %v1371, 96
        %v1558 = vpop.permute.xlu0 %1557
        %1559 = vrot.lane.b32.xlu0 %v1376, 96
        %v1560 = vpop.permute.xlu0 %1559
        %1561 = vrot.lane.b32.xlu0 %v1379, 96
        %v1562 = vpop.permute.xlu0 %1561
        %1563 = vrot.lane.b32.xlu0 %v1384, 96
        %v1564 = vpop.permute.xlu0 %1563
        %1565 = vrot.lane.b32.xlu0 %v1387, 96
        %v1566 = vpop.permute.xlu0 %1565
        %vm1583 = vcmask 261120
        %1584 = vst.msk [vmem:[#allocation4] sm:$0xff] %vm1583, %v1536
        %1585 = vst.msk [vmem:[#allocation4 + $0x8] sm:$0xff] %vm1583, %v1538
        %1586 = vst.msk [vmem:[#allocation4 + $0x10] sm:$0xff] %vm1583, %v1540
        %1587 = vst.msk [vmem:[#allocation4 + $0x18] sm:$0xff] %vm1583, %v1542
        %1588 = vst.msk [vmem:[#allocation4 + $0x20] sm:$0xff] %vm1583, %v1544
        %1589 = vst.msk [vmem:[#allocation4 + $0x28] sm:$0xff] %vm1583, %v1546
        %1590 = vst.msk [vmem:[#allocation4 + $0x30] sm:$0xff] %vm1583, %v1548
        %1591 = vst.msk [vmem:[#allocation4 + $0x38] sm:$0xff] %vm1583, %v1550
        %1592 = vst.msk [vmem:[#allocation4 + $0x40] sm:$0xff] %vm1583, %v1552
        %1593 = vst.msk [vmem:[#allocation4 + $0x48] sm:$0xff] %vm1583, %v1554
        %1594 = vst.msk [vmem:[#allocation4 + $0x50] sm:$0xff] %vm1583, %v1556
        %1595 = vst.msk [vmem:[#allocation4 + $0x58] sm:$0xff] %vm1583, %v1558
        %1596 = vst.msk [vmem:[#allocation4 + $0x60] sm:$0xff] %vm1583, %v1560
        %1597 = vst.msk [vmem:[#allocation4 + $0x68] sm:$0xff] %vm1583, %v1562
        %1598 = vst.msk [vmem:[#allocation4 + $0x70] sm:$0xff] %vm1583, %v1564
        %1599 = vst.msk [vmem:[#allocation4 + $0x78] sm:$0xff] %vm1583, %v1566
        %s1600 = sadd.s32 %s923, 12
        %s1601 = smul.u32 %s1600, 4
        %s1602 = smul.addr %s1601, 8
        %s1603 = scalar_lea.vmem [#allocation2], %s1602
        %v1604 = vld [vmem:[%s1603 + $0x8] sm:$0xfe]
        %v1605 = vld [vmem:[%s1603 + $0x10] sm:$0x1]
        %v1606 = vld [vmem:[%s1603 + $0x28] sm:$0xfe]
        %v1607 = vld [vmem:[%s1603 + $0x30] sm:$0x1]
        %v1608 = vld [vmem:[%s1603 + $0x48] sm:$0xfe]
        %v1609 = vld [vmem:[%s1603 + $0x50] sm:$0x1]
        %v1610 = vld [vmem:[%s1603 + $0x68] sm:$0xfe]
        %v1611 = vld [vmem:[%s1603 + $0x70] sm:$0x1]
        %v1612 = vld [vmem:[%s1603 + $0x88] sm:$0xfe]
        %v1613 = vld [vmem:[%s1603 + $0x90] sm:$0x1]
        %v1614 = vld [vmem:[%s1603 + $0xa8] sm:$0xfe]
        %v1615 = vld [vmem:[%s1603 + $0xb0] sm:$0x1]
        %v1616 = vld [vmem:[%s1603 + $0xc8] sm:$0xfe]
        %v1617 = vld [vmem:[%s1603 + $0xd0] sm:$0x1]
        %v1618 = vld [vmem:[%s1603 + $0xe8] sm:$0xfe]
        %v1619 = vld [vmem:[%s1603 + $0xf0] sm:$0x1]
        %v1620 = vld [vmem:[%s1603 + $0x108] sm:$0xfe]
        %v1621 = vld [vmem:[%s1603 + $0x110] sm:$0x1]
        %v1622 = vld [vmem:[%s1603 + $0x128] sm:$0xfe]
        %v1623 = vld [vmem:[%s1603 + $0x130] sm:$0x1]
        %v1624 = vld [vmem:[%s1603 + $0x148] sm:$0xfe]
        %v1625 = vld [vmem:[%s1603 + $0x150] sm:$0x1]
        %v1626 = vld [vmem:[%s1603 + $0x168] sm:$0xfe]
        %v1627 = vld [vmem:[%s1603 + $0x170] sm:$0x1]
        %v1628 = vld [vmem:[%s1603 + $0x188] sm:$0xfe]
        %v1629 = vld [vmem:[%s1603 + $0x190] sm:$0x1]
        %v1630 = vld [vmem:[%s1603 + $0x1a8] sm:$0xfe]
        %v1631 = vld [vmem:[%s1603 + $0x1b0] sm:$0x1]
        %v1632 = vld [vmem:[%s1603 + $0x1c8] sm:$0xfe]
        %v1633 = vld [vmem:[%s1603 + $0x1d0] sm:$0x1]
        %v1634 = vld [vmem:[%s1603 + $0x1e8] sm:$0xfe]
        %v1635 = vld [vmem:[%s1603 + $0x1f0] sm:$0x1]
        %v1636 = vld [vmem:[%s1603 + $0x208] sm:$0xfe]
        %v1637 = vld [vmem:[%s1603 + $0x210] sm:$0x1]
        %v1638 = vld [vmem:[%s1603 + $0x228] sm:$0xfe]
        %v1639 = vld [vmem:[%s1603 + $0x230] sm:$0x1]
        %v1640 = vld [vmem:[%s1603 + $0x248] sm:$0xfe]
        %v1641 = vld [vmem:[%s1603 + $0x250] sm:$0x1]
        %v1642 = vld [vmem:[%s1603 + $0x268] sm:$0xfe]
        %v1643 = vld [vmem:[%s1603 + $0x270] sm:$0x1]
        %vm1684 = vcmask 1046528
        %v1685 = vrot.slane %v1604, 1
        %v1686 = vrot.slane %v1605, 1
        %v1687 = vsel %vm1684, %v1685, %v1686
        %v1688 = vrot.slane %v1606, 1
        %v1689 = vrot.slane %v1607, 1
        %v1690 = vsel %vm1684, %v1688, %v1689
        %v1691 = vrot.slane %v1608, 1
        %v1692 = vrot.slane %v1609, 1
        %v1693 = vsel %vm1684, %v1691, %v1692
        %v1694 = vrot.slane %v1610, 1
        %v1695 = vrot.slane %v1611, 1
        %v1696 = vsel %vm1684, %v1694, %v1695
        %v1697 = vrot.slane %v1612, 1
        %v1698 = vrot.slane %v1613, 1
        %v1699 = vsel %vm1684, %v1697, %v1698
        %v1700 = vrot.slane %v1614, 1
        %v1701 = vrot.slane %v1615, 1
        %v1702 = vsel %vm1684, %v1700, %v1701
        %v1703 = vrot.slane %v1616, 1
        %v1704 = vrot.slane %v1617, 1
        %v1705 = vsel %vm1684, %v1703, %v1704
        %v1706 = vrot.slane %v1618, 1
        %v1707 = vrot.slane %v1619, 1
        %v1708 = vsel %vm1684, %v1706, %v1707
        %v1709 = vrot.slane %v1620, 1
        %v1710 = vrot.slane %v1621, 1
        %v1711 = vsel %vm1684, %v1709, %v1710
        %v1712 = vrot.slane %v1622, 1
        %v1713 = vrot.slane %v1623, 1
        %v1714 = vsel %vm1684, %v1712, %v1713
        %v1715 = vrot.slane %v1624, 1
        %v1716 = vrot.slane %v1625, 1
        %v1717 = vsel %vm1684, %v1715, %v1716
        %v1718 = vrot.slane %v1626, 1
        %v1719 = vrot.slane %v1627, 1
        %v1720 = vsel %vm1684, %v1718, %v1719
        %v1721 = vrot.slane %v1628, 1
        %v1722 = vrot.slane %v1629, 1
        %v1723 = vsel %vm1684, %v1721, %v1722
        %v1724 = vrot.slane %v1630, 1
        %v1725 = vrot.slane %v1631, 1
        %v1726 = vsel %vm1684, %v1724, %v1725
        %v1727 = vrot.slane %v1632, 1
        %v1728 = vrot.slane %v1633, 1
        %v1729 = vsel %vm1684, %v1727, %v1728
        %v1730 = vrot.slane %v1634, 1
        %v1731 = vrot.slane %v1635, 1
        %v1732 = vsel %vm1684, %v1730, %v1731
        %v1733 = vrot.slane %v1636, 1
        %v1734 = vrot.slane %v1637, 1
        %v1735 = vsel %vm1684, %v1733, %v1734
        %v1736 = vrot.slane %v1638, 1
        %v1737 = vrot.slane %v1639, 1
        %v1738 = vsel %vm1684, %v1736, %v1737
        %v1739 = vrot.slane %v1640, 1
        %v1740 = vrot.slane %v1641, 1
        %v1741 = vsel %vm1684, %v1739, %v1740
        %v1742 = vrot.slane %v1642, 1
        %v1743 = vrot.slane %v1643, 1
        %v1744 = vsel %vm1684, %v1742, %v1743
        %v1745 = vld [vmem:[%s5] sm:$0x3]
        %s1746 = scalar_lea.vmem %s5, 6
        %v1747 = vld [vmem:[%s1746] sm:$0x3]
        %v1749 = vsel %vm1264, %v1705, 0
        %v1752 = vsel %vm1264, %v1708, 0
        %v1755 = vsel %vm1264, %v1711, 0
        %v1758 = vsel %vm1264, %v1714, 0
        %v1761 = vsel %vm1264, %v1717, 0
        %v1764 = vsel %vm1264, %v1720, 0
        %v1767 = vsel %vm1264, %v1723, 0
        %v1770 = vsel %vm1264, %v1726, 0
        %v1773 = vsel %vm1289, %v1747, 0
        %1775 = vmatprep.subr.bf16.mxu0 0
        %1776 = vmatpush1.bf16.msra.mxu0 %v1773
        %1777 = vmatprep.subr.bf16.mxu0 0
        %1778 = vmatpush1.bf16.msra.mxu0 0
        %1779 = vmatprep.subr.bf16.mxu0 0
        %1780 = vmatpush1.bf16.msra.mxu0 0
        %1781 = vmatprep.subr.bf16.mxu0 0
        %1782 = vmatpush1.bf16.msra.mxu0 0
        %1783 = vmatprep.subr.bf16.mxu0 0
        %1784 = vmatpush1.bf16.msra.mxu0 0
        %1785 = vmatprep.subr.bf16.mxu0 0
        %1786 = vmatpush1.bf16.msra.mxu0 0
        %1787 = vmatprep.subr.bf16.mxu0 0
        %1788 = vmatpush1.bf16.msra.mxu0 0
        %1789 = vmatprep.subr.bf16.mxu0 0
        %1790 = vmatpush1.bf16.msra.mxu0 0
        %1791 = vmatprep.subr.bf16.mxu0 0
        %1792 = vmatpush1.bf16.msra.mxu0 0
        %1793 = vmatprep.subr.bf16.mxu0 0
        %1794 = vmatpush1.bf16.msra.mxu0 0
        %1795 = vmatprep.subr.bf16.mxu0 0
        %1796 = vmatpush1.bf16.msra.mxu0 0
        %1797 = vmatprep.subr.bf16.mxu0 0
        %1798 = vmatpush1.bf16.msra.mxu0 0
        %1799 = vmatprep.subr.bf16.mxu0 0
        %1800 = vmatpush1.bf16.msra.mxu0 0
        %1801 = vmatprep.subr.bf16.mxu0 0
        %1802 = vmatpush1.bf16.msra.mxu0 0
        %1803 = vmatprep.subr.bf16.mxu0 0
        %1804 = vmatpush1.bf16.msra.mxu0 0
        %1805 = vmatprep.subr.bf16.mxu0 0
        %1806 = vmatpush1.bf16.msra.mxu0 0
        %1807 = vmatprep.mubr.bf16.mxu0 0
        %1808 = vmatmul.mubr.bf16.gmra.mrb[0].mxu0 %v1749
        %v1809 = vpop.f32.mrb[0].mxu0
        %v1810 = vadd.f32 0.0, %v1809
        %v1811 = vpop.f32.mrb[0].mxu0
        %v1812 = vpop.f32.mrb[0].mxu0
        %v1813 = vadd.f32 0.0, %v1812
        %v1814 = vpop.f32.mrb[0].mxu0
        %1815 = vmatprep.mubr.bf16.mxu0 0
        %1816 = vmatmul.mubr.bf16.gmra.mrb[0].mxu0 %v1752
        %v1817 = vpop.f32.mrb[0].mxu0
        %v1818 = vadd.f32 0.0, %v1817
        %v1819 = vpop.f32.mrb[0].mxu0
        %v1820 = vpop.f32.mrb[0].mxu0
        %v1821 = vadd.f32 0.0, %v1820
        %v1822 = vpop.f32.mrb[0].mxu0
        %1823 = vmatprep.mubr.bf16.mxu0 0
        %1824 = vmatmul.mubr.bf16.gmra.mrb[0].mxu0 %v1755
        %v1825 = vpop.f32.mrb[0].mxu0
        %v1826 = vadd.f32 0.0, %v1825
        %v1827 = vpop.f32.mrb[0].mxu0
        %v1828 = vpop.f32.mrb[0].mxu0
        %v1829 = vadd.f32 0.0, %v1828
        %v1830 = vpop.f32.mrb[0].mxu0
        %1831 = vmatprep.mubr.bf16.mxu0 0
        %1832 = vmatmul.mubr.bf16.gmra.mrb[0].mxu0 %v1758
        %v1833 = vpop.f32.mrb[0].mxu0
        %v1834 = vadd.f32 0.0, %v1833
        %v1835 = vpop.f32.mrb[0].mxu0
        %v1836 = vpop.f32.mrb[0].mxu0
        %v1837 = vadd.f32 0.0, %v1836
        %v1838 = vpop.f32.mrb[0].mxu0
        %1839 = vmatprep.mubr.bf16.mxu0 0
        %1840 = vmatmul.mubr.bf16.gmra.mrb[0].mxu0 %v1761
        %v1841 = vpop.f32.mrb[0].mxu0
        %v1842 = vadd.f32 0.0, %v1841
        %v1843 = vpop.f32.mrb[0].mxu0
        %v1844 = vpop.f32.mrb[0].mxu0
        %v1845 = vadd.f32 0.0, %v1844
        %v1846 = vpop.f32.mrb[0].mxu0
        %1847 = vmatprep.mubr.bf16.mxu0 0
        %1848 = vmatmul.mubr.bf16.gmra.mrb[0].mxu0 %v1764
        %v1849 = vpop.f32.mrb[0].mxu0
        %v1850 = vadd.f32 0.0, %v1849
        %v1851 = vpop.f32.mrb[0].mxu0
        %v1852 = vpop.f32.mrb[0].mxu0
        %v1853 = vadd.f32 0.0, %v1852
        %v1854 = vpop.f32.mrb[0].mxu0
        %1855 = vmatprep.mubr.bf16.mxu0 0
        %1856 = vmatmul.mubr.bf16.gmra.mrb[0].mxu0 %v1767
        %v1857 = vpop.f32.mrb[0].mxu0
        %v1858 = vadd.f32 0.0, %v1857
        %v1859 = vpop.f32.mrb[0].mxu0
        %v1860 = vpop.f32.mrb[0].mxu0
        %v1861 = vadd.f32 0.0, %v1860
        %v1862 = vpop.f32.mrb[0].mxu0
        %1863 = vmatprep.mubr.bf16.mxu0 0
        %1864 = vmatmul.mubr.bf16.gmra.mrb[0].mxu0 %v1770
        %v1865 = vpop.f32.mrb[0].mxu0
        %v1866 = vadd.f32 0.0, %v1865
        %v1867 = vpop.f32.mrb[0].mxu0
        %v1868 = vpop.f32.mrb[0].mxu0
        %v1869 = vadd.f32 0.0, %v1868
        %v1870 = vpop.f32.mrb[0].mxu0
        %1871 = vdwg.mxu0
        %v1873 = vsel %vm1264, %v1687, 0
        %v1876 = vsel %vm1264, %v1690, 0
        %v1879 = vsel %vm1264, %v1693, 0
        %v1882 = vsel %vm1264, %v1696, 0
        %v1885 = vsel %vm1264, %v1699, 0
        %v1888 = vsel %vm1264, %v1702, 0
        %v1891 = vsel %vm1289, %v1745, 0
        %1893 = vmatprep.subr.bf16.mxu0 0
        %1894 = vmatpush1.bf16.msra.mxu0 %v1891
        %1895 = vmatprep.subr.bf16.mxu0 0
        %1896 = vmatpush1.bf16.msra.mxu0 0
        %1897 = vmatprep.subr.bf16.mxu0 0
        %1898 = vmatpush1.bf16.msra.mxu0 0
        %1899 = vmatprep.subr.bf16.mxu0 0
        %1900 = vmatpush1.bf16.msra.mxu0 0
        %1901 = vmatprep.subr.bf16.mxu0 0
        %1902 = vmatpush1.bf16.msra.mxu0 0
        %1903 = vmatprep.subr.bf16.mxu0 0
        %1904 = vmatpush1.bf16.msra.mxu0 0
        %1905 = vmatprep.subr.bf16.mxu0 0
        %1906 = vmatpush1.bf16.msra.mxu0 0
        %1907 = vmatprep.subr.bf16.mxu0 0
        %1908 = vmatpush1.bf16.msra.mxu0 0
        %1909 = vmatprep.subr.bf16.mxu0 0
        %1910 = vmatpush1.bf16.msra.mxu0 0
        %1911 = vmatprep.subr.bf16.mxu0 0
        %1912 = vmatpush1.bf16.msra.mxu0 0
        %1913 = vmatprep.subr.bf16.mxu0 0
        %1914 = vmatpush1.bf16.msra.mxu0 0
        %1915 = vmatprep.subr.bf16.mxu0 0
        %1916 = vmatpush1.bf16.msra.mxu0 0
        %1917 = vmatprep.subr.bf16.mxu0 0
        %1918 = vmatpush1.bf16.msra.mxu0 0
        %1919 = vmatprep.subr.bf16.mxu0 0
        %1920 = vmatpush1.bf16.msra.mxu0 0
        %1921 = vmatprep.subr.bf16.mxu0 0
        %1922 = vmatpush1.bf16.msra.mxu0 0
        %1923 = vmatprep.subr.bf16.mxu0 0
        %1924 = vmatpush1.bf16.msra.mxu0 0
        %1925 = vmatprep.mubr.bf16.mxu0 0
        %1926 = vmatmul.mubr.bf16.gmra.mrb[0].mxu0 %v1873
        %v1927 = vpop.f32.mrb[0].mxu0
        %v1928 = vadd.f32 %v1810, %v1927
        %v1929 = vpop.f32.mrb[0].mxu0
        %v1930 = vpop.f32.mrb[0].mxu0
        %v1931 = vadd.f32 %v1813, %v1930
        %v1932 = vpop.f32.mrb[0].mxu0
        %1933 = vmatprep.mubr.bf16.mxu0 0
        %1934 = vmatmul.mubr.bf16.gmra.mrb[0].mxu0 %v1876
        %v1935 = vpop.f32.mrb[0].mxu0
        %v1936 = vadd.f32 %v1818, %v1935
        %v1937 = vpop.f32.mrb[0].mxu0
        %v1938 = vpop.f32.mrb[0].mxu0
        %v1939 = vadd.f32 %v1821, %v1938
        %v1940 = vpop.f32.mrb[0].mxu0
        %1941 = vmatprep.mubr.bf16.mxu0 0
        %1942 = vmatmul.mubr.bf16.gmra.mrb[0].mxu0 %v1879
        %v1943 = vpop.f32.mrb[0].mxu0
        %v1944 = vadd.f32 %v1826, %v1943
        %v1945 = vpop.f32.mrb[0].mxu0
        %v1946 = vpop.f32.mrb[0].mxu0
        %v1947 = vadd.f32 %v1829, %v1946
        %v1948 = vpop.f32.mrb[0].mxu0
        %1949 = vmatprep.mubr.bf16.mxu0 0
        %1950 = vmatmul.mubr.bf16.gmra.mrb[0].mxu0 %v1882
        %v1951 = vpop.f32.mrb[0].mxu0
        %v1952 = vadd.f32 %v1834, %v1951
        %v1953 = vpop.f32.mrb[0].mxu0
        %v1954 = vpop.f32.mrb[0].mxu0
        %v1955 = vadd.f32 %v1837, %v1954
        %v1956 = vpop.f32.mrb[0].mxu0
        %1957 = vmatprep.mubr.bf16.mxu0 0
        %1958 = vmatmul.mubr.bf16.gmra.mrb[0].mxu0 %v1885
        %v1959 = vpop.f32.mrb[0].mxu0
        %v1960 = vadd.f32 %v1842, %v1959
        %v1961 = vpop.f32.mrb[0].mxu0
        %v1962 = vpop.f32.mrb[0].mxu0
        %v1963 = vadd.f32 %v1845, %v1962
        %v1964 = vpop.f32.mrb[0].mxu0
        %1965 = vmatprep.mubr.bf16.mxu0 0
        %1966 = vmatmul.mubr.bf16.gmra.mrb[0].mxu0 %v1888
        %v1967 = vpop.f32.mrb[0].mxu0
        %v1968 = vadd.f32 %v1850, %v1967
        %v1969 = vpop.f32.mrb[0].mxu0
        %v1970 = vpop.f32.mrb[0].mxu0
        %v1971 = vadd.f32 %v1853, %v1970
        %v1972 = vpop.f32.mrb[0].mxu0
        %1973 = vmatprep.mubr.bf16.mxu0 0
        %1974 = vmatmul.mubr.bf16.gmra.mrb[0].mxu0 %v1749
        %v1975 = vpop.f32.mrb[0].mxu0
        %v1976 = vadd.f32 %v1858, %v1975
        %v1977 = vpop.f32.mrb[0].mxu0
        %v1978 = vpop.f32.mrb[0].mxu0
        %v1979 = vadd.f32 %v1861, %v1978
        %v1980 = vpop.f32.mrb[0].mxu0
        %1981 = vmatprep.mubr.bf16.mxu0 0
        %1982 = vmatmul.mubr.bf16.gmra.mrb[0].mxu0 %v1752
        %v1983 = vpop.f32.mrb[0].mxu0
        %v1984 = vadd.f32 %v1866, %v1983
        %v1985 = vpop.f32.mrb[0].mxu0
        %v1986 = vpop.f32.mrb[0].mxu0
        %v1987 = vadd.f32 %v1869, %v1986
        %v1988 = vpop.f32.mrb[0].mxu0
        %1989 = vdwg.mxu0
        %s1990 = scalar_lea.vmem %s5, 12
        %v1991 = vld [vmem:[%s1990] sm:$0x3]
        %v1993 = vsel %vm1264, %v1729, 0
        %v1996 = vsel %vm1264, %v1732, 0
        %v1999 = vsel %vm1264, %v1735, 0
        %v2002 = vsel %vm1264, %v1738, 0
        %v2005 = vsel %vm1264, %v1741, 0
        %v2008 = vsel %vm1264, %v1744, 0
        %v2011 = vsel %vm1289, %v1991, 0
        %2013 = vmatprep.subr.bf16.mxu0 0
        %2014 = vmatpush1.bf16.msra.mxu0 %v2011
        %2015 = vmatprep.subr.bf16.mxu0 0
        %2016 = vmatpush1.bf16.msra.mxu0 0
        %2017 = vmatprep.subr.bf16.mxu0 0
        %2018 = vmatpush1.bf16.msra.mxu0 0
        %2019 = vmatprep.subr.bf16.mxu0 0
        %2020 = vmatpush1.bf16.msra.mxu0 0
        %2021 = vmatprep.subr.bf16.mxu0 0
        %2022 = vmatpush1.bf16.msra.mxu0 0
        %2023 = vmatprep.subr.bf16.mxu0 0
        %2024 = vmatpush1.bf16.msra.mxu0 0
        %2025 = vmatprep.subr.bf16.mxu0 0
        %2026 = vmatpush1.bf16.msra.mxu0 0
        %2027 = vmatprep.subr.bf16.mxu0 0
        %2028 = vmatpush1.bf16.msra.mxu0 0
        %2029 = vmatprep.subr.bf16.mxu0 0
        %2030 = vmatpush1.bf16.msra.mxu0 0
        %2031 = vmatprep.subr.bf16.mxu0 0
        %2032 = vmatpush1.bf16.msra.mxu0 0
        %2033 = vmatprep.subr.bf16.mxu0 0
        %2034 = vmatpush1.bf16.msra.mxu0 0
        %2035 = vmatprep.subr.bf16.mxu0 0
        %2036 = vmatpush1.bf16.msra.mxu0 0
        %2037 = vmatprep.subr.bf16.mxu0 0
        %2038 = vmatpush1.bf16.msra.mxu0 0
        %2039 = vmatprep.subr.bf16.mxu0 0
        %2040 = vmatpush1.bf16.msra.mxu0 0
        %2041 = vmatprep.subr.bf16.mxu0 0
        %2042 = vmatpush1.bf16.msra.mxu0 0
        %2043 = vmatprep.subr.bf16.mxu0 0
        %2044 = vmatpush1.bf16.msra.mxu0 0
        %2045 = vmatprep.mubr.bf16.mxu0 0
        %2046 = vmatmul.mubr.bf16.gmra.mrb[0].mxu0 %v1767
        %v2047 = vpop.f32.mrb[0].mxu0
        %v2048 = vadd.f32 0.0, %v2047
        %v2049 = vpop.f32.mrb[0].mxu0
        %v2050 = vpop.f32.mrb[0].mxu0
        %v2051 = vadd.f32 0.0, %v2050
        %v2052 = vpop.f32.mrb[0].mxu0
        %2053 = vmatprep.mubr.bf16.mxu0 0
        %2054 = vmatmul.mubr.bf16.gmra.mrb[0].mxu0 %v1770
        %v2055 = vpop.f32.mrb[0].mxu0
        %v2056 = vadd.f32 0.0, %v2055
        %v2057 = vpop.f32.mrb[0].mxu0
        %v2058 = vpop.f32.mrb[0].mxu0
        %v2059 = vadd.f32 0.0, %v2058
        %v2060 = vpop.f32.mrb[0].mxu0
        %2061 = vmatprep.mubr.bf16.mxu0 0
        %2062 = vmatmul.mubr.bf16.gmra.mrb[0].mxu0 %v1993
        %v2063 = vpop.f32.mrb[0].mxu0
        %v2064 = vadd.f32 0.0, %v2063
        %v2065 = vpop.f32.mrb[0].mxu0
        %v2066 = vpop.f32.mrb[0].mxu0
        %v2067 = vadd.f32 0.0, %v2066
        %v2068 = vpop.f32.mrb[0].mxu0
        %2069 = vmatprep.mubr.bf16.mxu0 0
        %2070 = vmatmul.mubr.bf16.gmra.mrb[0].mxu0 %v1996
        %v2071 = vpop.f32.mrb[0].mxu0
        %v2072 = vadd.f32 0.0, %v2071
        %v2073 = vpop.f32.mrb[0].mxu0
        %v2074 = vpop.f32.mrb[0].mxu0
        %v2075 = vadd.f32 0.0, %v2074
        %v2076 = vpop.f32.mrb[0].mxu0
        %2077 = vmatprep.mubr.bf16.mxu0 0
        %2078 = vmatmul.mubr.bf16.gmra.mrb[0].mxu0 %v1999
        %v2079 = vpop.f32.mrb[0].mxu0
        %v2080 = vadd.f32 0.0, %v2079
        %v2081 = vpop.f32.mrb[0].mxu0
        %v2082 = vpop.f32.mrb[0].mxu0
        %v2083 = vadd.f32 0.0, %v2082
        %v2084 = vpop.f32.mrb[0].mxu0
        %2085 = vmatprep.mubr.bf16.mxu0 0
        %2086 = vmatmul.mubr.bf16.gmra.mrb[0].mxu0 %v2002
        %v2087 = vpop.f32.mrb[0].mxu0
        %v2088 = vadd.f32 0.0, %v2087
        %v2089 = vpop.f32.mrb[0].mxu0
        %v2090 = vpop.f32.mrb[0].mxu0
        %v2091 = vadd.f32 0.0, %v2090
        %v2092 = vpop.f32.mrb[0].mxu0
        %2093 = vmatprep.mubr.bf16.mxu0 0
        %2094 = vmatmul.mubr.bf16.gmra.mrb[0].mxu0 %v2005
        %v2095 = vpop.f32.mrb[0].mxu0
        %v2096 = vadd.f32 0.0, %v2095
        %v2097 = vpop.f32.mrb[0].mxu0
        %v2098 = vpop.f32.mrb[0].mxu0
        %v2099 = vadd.f32 0.0, %v2098
        %v2100 = vpop.f32.mrb[0].mxu0
        %2101 = vmatprep.mubr.bf16.mxu0 0
        %2102 = vmatmul.mubr.bf16.gmra.mrb[0].mxu0 %v2008
        %v2103 = vpop.f32.mrb[0].mxu0
        %v2104 = vadd.f32 0.0, %v2103
        %v2105 = vpop.f32.mrb[0].mxu0
        %v2106 = vpop.f32.mrb[0].mxu0
        %v2107 = vadd.f32 0.0, %v2106
        %v2108 = vpop.f32.mrb[0].mxu0
        %2109 = vdwg.mxu0
        %v2110 = vadd.f32 %v1928, %v2048
        %v2111 = vadd.f32 %v1931, %v2051
        %v2112 = vadd.f32 %v1936, %v2056
        %v2113 = vadd.f32 %v1939, %v2059
        %v2114 = vadd.f32 %v1944, %v2064
        %v2115 = vadd.f32 %v1947, %v2067
        %v2116 = vadd.f32 %v1952, %v2072
        %v2117 = vadd.f32 %v1955, %v2075
        %v2118 = vadd.f32 %v1960, %v2080
        %v2119 = vadd.f32 %v1963, %v2083
        %v2120 = vadd.f32 %v1968, %v2088
        %v2121 = vadd.f32 %v1971, %v2091
        %v2122 = vadd.f32 %v1976, %v2096
        %v2123 = vadd.f32 %v1979, %v2099
        %v2124 = vadd.f32 %v1984, %v2104
        %v2125 = vadd.f32 %v1987, %v2107
        %v2126 = vld [vmem:[#allocation4] sm:$0xff]
        %v2127 = vld [vmem:[#allocation4 + $0x8] sm:$0xff]
        %v2128 = vld [vmem:[#allocation4 + $0x10] sm:$0xff]
        %v2129 = vld [vmem:[#allocation4 + $0x18] sm:$0xff]
        %v2130 = vld [vmem:[#allocation4 + $0x20] sm:$0xff]
        %v2131 = vld [vmem:[#allocation4 + $0x28] sm:$0xff]
        %v2132 = vld [vmem:[#allocation4 + $0x30] sm:$0xff]
        %v2133 = vld [vmem:[#allocation4 + $0x38] sm:$0xff]
        %v2134 = vld [vmem:[#allocation4 + $0x40] sm:$0xff]
        %v2135 = vld [vmem:[#allocation4 + $0x48] sm:$0xff]
        %v2136 = vld [vmem:[#allocation4 + $0x50] sm:$0xff]
        %v2137 = vld [vmem:[#allocation4 + $0x58] sm:$0xff]
        %v2138 = vld [vmem:[#allocation4 + $0x60] sm:$0xff]
        %v2139 = vld [vmem:[#allocation4 + $0x68] sm:$0xff]
        %v2140 = vld [vmem:[#allocation4 + $0x70] sm:$0xff]
        %v2141 = vld [vmem:[#allocation4 + $0x78] sm:$0xff]
        %v2142 = vadd.f32 %v2126, %v2110
        %v2143 = vadd.f32 %v2127, %v2111
        %v2144 = vadd.f32 %v2128, %v2112
        %v2145 = vadd.f32 %v2129, %v2113
        %v2146 = vadd.f32 %v2130, %v2114
        %v2147 = vadd.f32 %v2131, %v2115
        %v2148 = vadd.f32 %v2132, %v2116
        %v2149 = vadd.f32 %v2133, %v2117
        %v2150 = vadd.f32 %v2134, %v2118
        %v2151 = vadd.f32 %v2135, %v2119
        %v2152 = vadd.f32 %v2136, %v2120
        %v2153 = vadd.f32 %v2137, %v2121
        %v2154 = vadd.f32 %v2138, %v2122
        %v2155 = vadd.f32 %v2139, %v2123
        %v2156 = vadd.f32 %v2140, %v2124
        %v2157 = vadd.f32 %v2141, %v2125
        %2158 = vst.msk [vmem:[#allocation4] sm:$0xff] %vm1583, %v2142
        %2159 = vst.msk [vmem:[#allocation4 + $0x8] sm:$0xff] %vm1583, %v2143
        %2160 = vst.msk [vmem:[#allocation4 + $0x10] sm:$0xff] %vm1583, %v2144
        %2161 = vst.msk [vmem:[#allocation4 + $0x18] sm:$0xff] %vm1583, %v2145
        %2162 = vst.msk [vmem:[#allocation4 + $0x20] sm:$0xff] %vm1583, %v2146
        %2163 = vst.msk [vmem:[#allocation4 + $0x28] sm:$0xff] %vm1583, %v2147
        %2164 = vst.msk [vmem:[#allocation4 + $0x30] sm:$0xff] %vm1583, %v2148
        %2165 = vst.msk [vmem:[#allocation4 + $0x38] sm:$0xff] %vm1583, %v2149
        %2166 = vst.msk [vmem:[#allocation4 + $0x40] sm:$0xff] %vm1583, %v2150
        %2167 = vst.msk [vmem:[#allocation4 + $0x48] sm:$0xff] %vm1583, %v2151
        %2168 = vst.msk [vmem:[#allocation4 + $0x50] sm:$0xff] %vm1583, %v2152
        %2169 = vst.msk [vmem:[#allocation4 + $0x58] sm:$0xff] %vm1583, %v2153
        %2170 = vst.msk [vmem:[#allocation4 + $0x60] sm:$0xff] %vm1583, %v2154
        %2171 = vst.msk [vmem:[#allocation4 + $0x68] sm:$0xff] %vm1583, %v2155
        %2172 = vst.msk [vmem:[#allocation4 + $0x70] sm:$0xff] %vm1583, %v2156
        %2173 = vst.msk [vmem:[#allocation4 + $0x78] sm:$0xff] %vm1583, %v2157
        %v2174 = vld [vmem:[%s1603 + $0x8] sm:$0xf0]
        %v2175 = vld [vmem:[%s1603 + $0x10] sm:$0xf]
        %v2176 = vld [vmem:[%s1603 + $0x28] sm:$0xf0]
        %v2177 = vld [vmem:[%s1603 + $0x30] sm:$0xf]
        %v2178 = vld [vmem:[%s1603 + $0x48] sm:$0xf0]
        %v2179 = vld [vmem:[%s1603 + $0x50] sm:$0xf]
        %v2180 = vld [vmem:[%s1603 + $0x68] sm:$0xf0]
        %v2181 = vld [vmem:[%s1603 + $0x70] sm:$0xf]
        %v2182 = vld [vmem:[%s1603 + $0x88] sm:$0xf0]
        %v2183 = vld [vmem:[%s1603 + $0x90] sm:$0xf]
        %v2184 = vld [vmem:[%s1603 + $0xa8] sm:$0xf0]
        %v2185 = vld [vmem:[%s1603 + $0xb0] sm:$0xf]
        %v2186 = vld [vmem:[%s1603 + $0xc8] sm:$0xf0]
        %v2187 = vld [vmem:[%s1603 + $0xd0] sm:$0xf]
        %v2188 = vld [vmem:[%s1603 + $0xe8] sm:$0xf0]
        %v2189 = vld [vmem:[%s1603 + $0xf0] sm:$0xf]
        %v2190 = vld [vmem:[%s1603 + $0x188] sm:$0xf0]
        %v2191 = vld [vmem:[%s1603 + $0x190] sm:$0xf]
        %v2192 = vld [vmem:[%s1603 + $0x1a8] sm:$0xf0]
        %v2193 = vld [vmem:[%s1603 + $0x1b0] sm:$0xf]
        %v2194 = vld [vmem:[%s1603 + $0x1c8] sm:$0xf0]
        %v2195 = vld [vmem:[%s1603 + $0x1d0] sm:$0xf]
        %v2196 = vld [vmem:[%s1603 + $0x1e8] sm:$0xf0]
        %v2197 = vld [vmem:[%s1603 + $0x1f0] sm:$0xf]
        %v2198 = vld [vmem:[%s1603 + $0x208] sm:$0xf0]
        %v2199 = vld [vmem:[%s1603 + $0x210] sm:$0xf]
        %v2200 = vld [vmem:[%s1603 + $0x228] sm:$0xf0]
        %v2201 = vld [vmem:[%s1603 + $0x230] sm:$0xf]
        %v2202 = vld [vmem:[%s1603 + $0x248] sm:$0xf0]
        %v2203 = vld [vmem:[%s1603 + $0x250] sm:$0xf]
        %v2204 = vld [vmem:[%s1603 + $0x268] sm:$0xf0]
        %v2205 = vld [vmem:[%s1603 + $0x270] sm:$0xf]
        %v2238 = vrot.slane %v2174, 4
        %v2239 = vrot.slane %v2175, 4
        %v2240 = vsel %vm1238, %v2238, %v2239
        %v2241 = vrot.slane %v2176, 4
        %v2242 = vrot.slane %v2177, 4
        %v2243 = vsel %vm1238, %v2241, %v2242
        %v2244 = vrot.slane %v2178, 4
        %v2245 = vrot.slane %v2179, 4
        %v2246 = vsel %vm1238, %v2244, %v2245
        %v2247 = vrot.slane %v2180, 4
        %v2248 = vrot.slane %v2181, 4
        %v2249 = vsel %vm1238, %v2247, %v2248
        %v2250 = vrot.slane %v2182, 4
        %v2251 = vrot.slane %v2183, 4
        %v2252 = vsel %vm1238, %v2250, %v2251
        %v2253 = vrot.slane %v2184, 4
        %v2254 = vrot.slane %v2185, 4
        %v2255 = vsel %vm1238, %v2253, %v2254
        %v2256 = vrot.slane %v2186, 4
        %v2257 = vrot.slane %v2187, 4
        %v2258 = vsel %vm1238, %v2256, %v2257
        %v2259 = vrot.slane %v2188, 4
        %v2260 = vrot.slane %v2189, 4
        %v2261 = vsel %vm1238, %v2259, %v2260
        %v2262 = vrot.slane %v2190, 4
        %v2263 = vrot.slane %v2191, 4
        %v2264 = vsel %vm1238, %v2262, %v2263
        %v2265 = vrot.slane %v2192, 4
        %v2266 = vrot.slane %v2193, 4
        %v2267 = vsel %vm1238, %v2265, %v2266
        %v2268 = vrot.slane %v2194, 4
        %v2269 = vrot.slane %v2195, 4
        %v2270 = vsel %vm1238, %v2268, %v2269
        %v2271 = vrot.slane %v2196, 4
        %v2272 = vrot.slane %v2197, 4
        %v2273 = vsel %vm1238, %v2271, %v2272
        %v2274 = vrot.slane %v2198, 4
        %v2275 = vrot.slane %v2199, 4
        %v2276 = vsel %vm1238, %v2274, %v2275
        %v2277 = vrot.slane %v2200, 4
        %v2278 = vrot.slane %v2201, 4
        %v2279 = vsel %vm1238, %v2277, %v2278
        %v2280 = vrot.slane %v2202, 4
        %v2281 = vrot.slane %v2203, 4
        %v2282 = vsel %vm1238, %v2280, %v2281
        %v2283 = vrot.slane %v2204, 4
        %v2284 = vrot.slane %v2205, 4
        %v2285 = vsel %vm1238, %v2283, %v2284
        %s2286 = scalar_lea.vmem %s5, 2
        %v2287 = vld [vmem:[%s2286] sm:$0x3]
        %s2288 = scalar_lea.vmem %s5, 14
        %v2289 = vld [vmem:[%s2288] sm:$0x3]
        %v2291 = vsel %vm1264, %v2264, 0
        %v2294 = vsel %vm1264, %v2267, 0
        %v2297 = vsel %vm1264, %v2270, 0
        %v2300 = vsel %vm1264, %v2273, 0
        %v2303 = vsel %vm1264, %v2276, 0
        %v2306 = vsel %vm1264, %v2279, 0
        %v2309 = vsel %vm1264, %v2282, 0
        %v2312 = vsel %vm1264, %v2285, 0
        %v2315 = vsel %vm1289, %v2289, 0
        %2317 = vmatprep.subr.bf16.mxu0 0
        %2318 = vmatpush1.bf16.msra.mxu0 %v2315
        %2319 = vmatprep.subr.bf16.mxu0 0
        %2320 = vmatpush1.bf16.msra.mxu0 0
        %2321 = vmatprep.subr.bf16.mxu0 0
        %2322 = vmatpush1.bf16.msra.mxu0 0
        %2323 = vmatprep.subr.bf16.mxu0 0
        %2324 = vmatpush1.bf16.msra.mxu0 0
        %2325 = vmatprep.subr.bf16.mxu0 0
        %2326 = vmatpush1.bf16.msra.mxu0 0
        %2327 = vmatprep.subr.bf16.mxu0 0
        %2328 = vmatpush1.bf16.msra.mxu0 0
        %2329 = vmatprep.subr.bf16.mxu0 0
        %2330 = vmatpush1.bf16.msra.mxu0 0
        %2331 = vmatprep.subr.bf16.mxu0 0
        %2332 = vmatpush1.bf16.msra.mxu0 0
        %2333 = vmatprep.subr.bf16.mxu0 0
        %2334 = vmatpush1.bf16.msra.mxu0 0
        %2335 = vmatprep.subr.bf16.mxu0 0
        %2336 = vmatpush1.bf16.msra.mxu0 0
        %2337 = vmatprep.subr.bf16.mxu0 0
        %2338 = vmatpush1.bf16.msra.mxu0 0
        %2339 = vmatprep.subr.bf16.mxu0 0
        %2340 = vmatpush1.bf16.msra.mxu0 0
        %2341 = vmatprep.subr.bf16.mxu0 0
        %2342 = vmatpush1.bf16.msra.mxu0 0
        %2343 = vmatprep.subr.bf16.mxu0 0
        %2344 = vmatpush1.bf16.msra.mxu0 0
        %2345 = vmatprep.subr.bf16.mxu0 0
        %2346 = vmatpush1.bf16.msra.mxu0 0
        %2347 = vmatprep.subr.bf16.mxu0 0
        %2348 = vmatpush1.bf16.msra.mxu0 0
        %2349 = vmatprep.mubr.bf16.mxu0 0
        %2350 = vmatmul.mubr.bf16.gmra.mrb[0].mxu0 %v2291
        %v2351 = vpop.f32.mrb[0].mxu0
        %v2352 = vadd.f32 0.0, %v2351
        %v2353 = vpop.f32.mrb[0].mxu0
        %v2354 = vpop.f32.mrb[0].mxu0
        %v2355 = vadd.f32 0.0, %v2354
        %v2356 = vpop.f32.mrb[0].mxu0
        %2357 = vmatprep.mubr.bf16.mxu0 0
        %2358 = vmatmul.mubr.bf16.gmra.mrb[0].mxu0 %v2294
        %v2359 = vpop.f32.mrb[0].mxu0
        %v2360 = vadd.f32 0.0, %v2359
        %v2361 = vpop.f32.mrb[0].mxu0
        %v2362 = vpop.f32.mrb[0].mxu0
        %v2363 = vadd.f32 0.0, %v2362
        %v2364 = vpop.f32.mrb[0].mxu0
        %2365 = vmatprep.mubr.bf16.mxu0 0
        %2366 = vmatmul.mubr.bf16.gmra.mrb[0].mxu0 %v2297
        %v2367 = vpop.f32.mrb[0].mxu0
        %v2368 = vadd.f32 0.0, %v2367
        %v2369 = vpop.f32.mrb[0].mxu0
        %v2370 = vpop.f32.mrb[0].mxu0
        %v2371 = vadd.f32 0.0, %v2370
        %v2372 = vpop.f32.mrb[0].mxu0
        %2373 = vmatprep.mubr.bf16.mxu0 0
        %2374 = vmatmul.mubr.bf16.gmra.mrb[0].mxu0 %v2300
        %v2375 = vpop.f32.mrb[0].mxu0
        %v2376 = vadd.f32 0.0, %v2375
        %v2377 = vpop.f32.mrb[0].mxu0
        %v2378 = vpop.f32.mrb[0].mxu0
        %v2379 = vadd.f32 0.0, %v2378
        %v2380 = vpop.f32.mrb[0].mxu0
        %2381 = vmatprep.mubr.bf16.mxu0 0
        %2382 = vmatmul.mubr.bf16.gmra.mrb[0].mxu0 %v2303
        %v2383 = vpop.f32.mrb[0].mxu0
        %v2384 = vadd.f32 0.0, %v2383
        %v2385 = vpop.f32.mrb[0].mxu0
        %v2386 = vpop.f32.mrb[0].mxu0
        %v2387 = vadd.f32 0.0, %v2386
        %v2388 = vpop.f32.mrb[0].mxu0
        %2389 = vmatprep.mubr.bf16.mxu0 0
        %2390 = vmatmul.mubr.bf16.gmra.mrb[0].mxu0 %v2306
        %v2391 = vpop.f32.mrb[0].mxu0
        %v2392 = vadd.f32 0.0, %v2391
        %v2393 = vpop.f32.mrb[0].mxu0
        %v2394 = vpop.f32.mrb[0].mxu0
        %v2395 = vadd.f32 0.0, %v2394
        %v2396 = vpop.f32.mrb[0].mxu0
        %2397 = vmatprep.mubr.bf16.mxu0 0
        %2398 = vmatmul.mubr.bf16.gmra.mrb[0].mxu0 %v2309
        %v2399 = vpop.f32.mrb[0].mxu0
        %v2400 = vadd.f32 0.0, %v2399
        %v2401 = vpop.f32.mrb[0].mxu0
        %v2402 = vpop.f32.mrb[0].mxu0
        %v2403 = vadd.f32 0.0, %v2402
        %v2404 = vpop.f32.mrb[0].mxu0
        %2405 = vmatprep.mubr.bf16.mxu0 0
        %2406 = vmatmul.mubr.bf16.gmra.mrb[0].mxu0 %v2312
        %v2407 = vpop.f32.mrb[0].mxu0
        %v2408 = vadd.f32 0.0, %v2407
        %v2409 = vpop.f32.mrb[0].mxu0
        %v2410 = vpop.f32.mrb[0].mxu0
        %v2411 = vadd.f32 0.0, %v2410
        %v2412 = vpop.f32.mrb[0].mxu0
        %2413 = vdwg.mxu0
        %v2415 = vsel %vm1264, %v2240, 0
        %v2418 = vsel %vm1264, %v2243, 0
        %v2421 = vsel %vm1264, %v2246, 0
        %v2424 = vsel %vm1264, %v2249, 0
        %v2427 = vsel %vm1264, %v2252, 0
        %v2430 = vsel %vm1264, %v2255, 0
        %v2433 = vsel %vm1264, %v2258, 0
        %v2436 = vsel %vm1264, %v2261, 0
        %v2439 = vsel %vm1289, %v2287, 0
        %2441 = vmatprep.subr.bf16.mxu0 0
        %2442 = vmatpush1.bf16.msra.mxu0 %v2439
        %2443 = vmatprep.subr.bf16.mxu0 0
        %2444 = vmatpush1.bf16.msra.mxu0 0
        %2445 = vmatprep.subr.bf16.mxu0 0
        %2446 = vmatpush1.bf16.msra.mxu0 0
        %2447 = vmatprep.subr.bf16.mxu0 0
        %2448 = vmatpush1.bf16.msra.mxu0 0
        %2449 = vmatprep.subr.bf16.mxu0 0
        %2450 = vmatpush1.bf16.msra.mxu0 0
        %2451 = vmatprep.subr.bf16.mxu0 0
        %2452 = vmatpush1.bf16.msra.mxu0 0
        %2453 = vmatprep.subr.bf16.mxu0 0
        %2454 = vmatpush1.bf16.msra.mxu0 0
        %2455 = vmatprep.subr.bf16.mxu0 0
        %2456 = vmatpush1.bf16.msra.mxu0 0
        %2457 = vmatprep.subr.bf16.mxu0 0
        %2458 = vmatpush1.bf16.msra.mxu0 0
        %2459 = vmatprep.subr.bf16.mxu0 0
        %2460 = vmatpush1.bf16.msra.mxu0 0
        %2461 = vmatprep.subr.bf16.mxu0 0
        %2462 = vmatpush1.bf16.msra.mxu0 0
        %2463 = vmatprep.subr.bf16.mxu0 0
        %2464 = vmatpush1.bf16.msra.mxu0 0
        %2465 = vmatprep.subr.bf16.mxu0 0
        %2466 = vmatpush1.bf16.msra.mxu0 0
        %2467 = vmatprep.subr.bf16.mxu0 0
        %2468 = vmatpush1.bf16.msra.mxu0 0
        %2469 = vmatprep.subr.bf16.mxu0 0
        %2470 = vmatpush1.bf16.msra.mxu0 0
        %2471 = vmatprep.subr.bf16.mxu0 0
        %2472 = vmatpush1.bf16.msra.mxu0 0
        %2473 = vmatprep.mubr.bf16.mxu0 0
        %2474 = vmatmul.mubr.bf16.gmra.mrb[0].mxu0 %v2415
        %v2475 = vpop.f32.mrb[0].mxu0
        %v2476 = vadd.f32 %v2352, %v2475
        %v2477 = vpop.f32.mrb[0].mxu0
        %v2478 = vpop.f32.mrb[0].mxu0
        %v2479 = vadd.f32 %v2355, %v2478
        %v2480 = vpop.f32.mrb[0].mxu0
        %2481 = vmatprep.mubr.bf16.mxu0 0
        %2482 = vmatmul.mubr.bf16.gmra.mrb[0].mxu0 %v2418
        %v2483 = vpop.f32.mrb[0].mxu0
        %v2484 = vadd.f32 %v2360, %v2483
        %v2485 = vpop.f32.mrb[0].mxu0
        %v2486 = vpop.f32.mrb[0].mxu0
        %v2487 = vadd.f32 %v2363, %v2486
        %v2488 = vpop.f32.mrb[0].mxu0
        %2489 = vmatprep.mubr.bf16.mxu0 0
        %2490 = vmatmul.mubr.bf16.gmra.mrb[0].mxu0 %v2421
        %v2491 = vpop.f32.mrb[0].mxu0
        %v2492 = vadd.f32 %v2368, %v2491
        %v2493 = vpop.f32.mrb[0].mxu0
        %v2494 = vpop.f32.mrb[0].mxu0
        %v2495 = vadd.f32 %v2371, %v2494
        %v2496 = vpop.f32.mrb[0].mxu0
        %2497 = vmatprep.mubr.bf16.mxu0 0
        %2498 = vmatmul.mubr.bf16.gmra.mrb[0].mxu0 %v2424
        %v2499 = vpop.f32.mrb[0].mxu0
        %v2500 = vadd.f32 %v2376, %v2499
        %v2501 = vpop.f32.mrb[0].mxu0
        %v2502 = vpop.f32.mrb[0].mxu0
        %v2503 = vadd.f32 %v2379, %v2502
        %v2504 = vpop.f32.mrb[0].mxu0
        %2505 = vmatprep.mubr.bf16.mxu0 0
        %2506 = vmatmul.mubr.bf16.gmra.mrb[0].mxu0 %v2427
        %v2507 = vpop.f32.mrb[0].mxu0
        %v2508 = vadd.f32 %v2384, %v2507
        %v2509 = vpop.f32.mrb[0].mxu0
        %v2510 = vpop.f32.mrb[0].mxu0
        %v2511 = vadd.f32 %v2387, %v2510
        %v2512 = vpop.f32.mrb[0].mxu0
        %2513 = vmatprep.mubr.bf16.mxu0 0
        %2514 = vmatmul.mubr.bf16.gmra.mrb[0].mxu0 %v2430
        %v2515 = vpop.f32.mrb[0].mxu0
        %v2516 = vadd.f32 %v2392, %v2515
        %v2517 = vpop.f32.mrb[0].mxu0
        %v2518 = vpop.f32.mrb[0].mxu0
        %v2519 = vadd.f32 %v2395, %v2518
        %v2520 = vpop.f32.mrb[0].mxu0
        %2521 = vmatprep.mubr.bf16.mxu0 0
        %2522 = vmatmul.mubr.bf16.gmra.mrb[0].mxu0 %v2433
        %v2523 = vpop.f32.mrb[0].mxu0
        %v2524 = vadd.f32 %v2400, %v2523
        %v2525 = vpop.f32.mrb[0].mxu0
        %v2526 = vpop.f32.mrb[0].mxu0
        %v2527 = vadd.f32 %v2403, %v2526
        %v2528 = vpop.f32.mrb[0].mxu0
        %2529 = vmatprep.mubr.bf16.mxu0 0
        %2530 = vmatmul.mubr.bf16.gmra.mrb[0].mxu0 %v2436
        %v2531 = vpop.f32.mrb[0].mxu0
        %v2532 = vadd.f32 %v2408, %v2531
        %v2533 = vpop.f32.mrb[0].mxu0
        %v2534 = vpop.f32.mrb[0].mxu0
        %v2535 = vadd.f32 %v2411, %v2534
        %v2536 = vpop.f32.mrb[0].mxu0
        %2537 = vdwg.mxu0
        %v2538 = vld [vmem:[#allocation4] sm:$0xff]
        %v2539 = vld [vmem:[#allocation4 + $0x8] sm:$0xff]
        %v2540 = vld [vmem:[#allocation4 + $0x10] sm:$0xff]
        %v2541 = vld [vmem:[#allocation4 + $0x18] sm:$0xff]
        %v2542 = vld [vmem:[#allocation4 + $0x20] sm:$0xff]
        %v2543 = vld [vmem:[#allocation4 + $0x28] sm:$0xff]
        %v2544 = vld [vmem:[#allocation4 + $0x30] sm:$0xff]
        %v2545 = vld [vmem:[#allocation4 + $0x38] sm:$0xff]
        %v2546 = vld [vmem:[#allocation4 + $0x40] sm:$0xff]
        %v2547 = vld [vmem:[#allocation4 + $0x48] sm:$0xff]
        %v2548 = vld [vmem:[#allocation4 + $0x50] sm:$0xff]
        %v2549 = vld [vmem:[#allocation4 + $0x58] sm:$0xff]
        %v2550 = vld [vmem:[#allocation4 + $0x60] sm:$0xff]
        %v2551 = vld [vmem:[#allocation4 + $0x68] sm:$0xff]
        %v2552 = vld [vmem:[#allocation4 + $0x70] sm:$0xff]
        %v2553 = vld [vmem:[#allocation4 + $0x78] sm:$0xff]
        %v2554 = vadd.f32 %v2538, %v2476
        %v2555 = vadd.f32 %v2539, %v2479
        %v2556 = vadd.f32 %v2540, %v2484
        %v2557 = vadd.f32 %v2541, %v2487
        %v2558 = vadd.f32 %v2542, %v2492
        %v2559 = vadd.f32 %v2543, %v2495
        %v2560 = vadd.f32 %v2544, %v2500
        %v2561 = vadd.f32 %v2545, %v2503
        %v2562 = vadd.f32 %v2546, %v2508
        %v2563 = vadd.f32 %v2547, %v2511
        %v2564 = vadd.f32 %v2548, %v2516
        %v2565 = vadd.f32 %v2549, %v2519
        %v2566 = vadd.f32 %v2550, %v2524
        %v2567 = vadd.f32 %v2551, %v2527
        %v2568 = vadd.f32 %v2552, %v2532
        %v2569 = vadd.f32 %v2553, %v2535
        %2570 = vst.msk [vmem:[#allocation4] sm:$0xff] %vm1583, %v2554
        %2571 = vst.msk [vmem:[#allocation4 + $0x8] sm:$0xff] %vm1583, %v2555
        %2572 = vst.msk [vmem:[#allocation4 + $0x10] sm:$0xff] %vm1583, %v2556
        %2573 = vst.msk [vmem:[#allocation4 + $0x18] sm:$0xff] %vm1583, %v2557
        %2574 = vst.msk [vmem:[#allocation4 + $0x20] sm:$0xff] %vm1583, %v2558
        %2575 = vst.msk [vmem:[#allocation4 + $0x28] sm:$0xff] %vm1583, %v2559
        %2576 = vst.msk [vmem:[#allocation4 + $0x30] sm:$0xff] %vm1583, %v2560
        %2577 = vst.msk [vmem:[#allocation4 + $0x38] sm:$0xff] %vm1583, %v2561
        %2578 = vst.msk [vmem:[#allocation4 + $0x40] sm:$0xff] %vm1583, %v2562
        %2579 = vst.msk [vmem:[#allocation4 + $0x48] sm:$0xff] %vm1583, %v2563
        %2580 = vst.msk [vmem:[#allocation4 + $0x50] sm:$0xff] %vm1583, %v2564
        %2581 = vst.msk [vmem:[#allocation4 + $0x58] sm:$0xff] %vm1583, %v2565
        %2582 = vst.msk [vmem:[#allocation4 + $0x60] sm:$0xff] %vm1583, %v2566
        %2583 = vst.msk [vmem:[#allocation4 + $0x68] sm:$0xff] %vm1583, %v2567
        %2584 = vst.msk [vmem:[#allocation4 + $0x70] sm:$0xff] %vm1583, %v2568
        %2585 = vst.msk [vmem:[#allocation4 + $0x78] sm:$0xff] %vm1583, %v2569
        %v2586 = vld [vmem:[%s1603 + $0x8] sm:$0x80]
        %v2587 = vld [vmem:[%s1603 + $0x10] sm:$0x7f]
        %v2588 = vld [vmem:[%s1603 + $0x28] sm:$0x80]
        %v2589 = vld [vmem:[%s1603 + $0x30] sm:$0x7f]
        %v2590 = vld [vmem:[%s1603 + $0x48] sm:$0x80]
        %v2591 = vld [vmem:[%s1603 + $0x50] sm:$0x7f]
        %v2592 = vld [vmem:[%s1603 + $0x68] sm:$0x80]
        %v2593 = vld [vmem:[%s1603 + $0x70] sm:$0x7f]
        %v2594 = vld [vmem:[%s1603 + $0x88] sm:$0x80]
        %v2595 = vld [vmem:[%s1603 + $0x90] sm:$0x7f]
        %v2596 = vld [vmem:[%s1603 + $0xa8] sm:$0x80]
        %v2597 = vld [vmem:[%s1603 + $0xb0] sm:$0x7f]
        %v2598 = vld [vmem:[%s1603 + $0xc8] sm:$0x80]
        %v2599 = vld [vmem:[%s1603 + $0xd0] sm:$0x7f]
        %v2600 = vld [vmem:[%s1603 + $0xe8] sm:$0x80]
        %v2601 = vld [vmem:[%s1603 + $0xf0] sm:$0x7f]
        %v2602 = vld [vmem:[%s1603 + $0x108] sm:$0x80]
        %v2603 = vld [vmem:[%s1603 + $0x110] sm:$0x7f]
        %v2604 = vld [vmem:[%s1603 + $0x128] sm:$0x80]
        %v2605 = vld [vmem:[%s1603 + $0x130] sm:$0x7f]
        %v2606 = vld [vmem:[%s1603 + $0x148] sm:$0x80]
        %v2607 = vld [vmem:[%s1603 + $0x150] sm:$0x7f]
        %v2608 = vld [vmem:[%s1603 + $0x168] sm:$0x80]
        %v2609 = vld [vmem:[%s1603 + $0x170] sm:$0x7f]
        %v2610 = vld [vmem:[%s1603 + $0x188] sm:$0x80]
        %v2611 = vld [vmem:[%s1603 + $0x190] sm:$0x7f]
        %v2612 = vld [vmem:[%s1603 + $0x1a8] sm:$0x80]
        %v2613 = vld [vmem:[%s1603 + $0x1b0] sm:$0x7f]
        %v2614 = vld [vmem:[%s1603 + $0x1c8] sm:$0x80]
        %v2615 = vld [vmem:[%s1603 + $0x1d0] sm:$0x7f]
        %v2616 = vld [vmem:[%s1603 + $0x1e8] sm:$0x80]
        %v2617 = vld [vmem:[%s1603 + $0x1f0] sm:$0x7f]
        %v2618 = vld [vmem:[%s1603 + $0x208] sm:$0x80]
        %v2619 = vld [vmem:[%s1603 + $0x210] sm:$0x7f]
        %v2620 = vld [vmem:[%s1603 + $0x228] sm:$0x80]
        %v2621 = vld [vmem:[%s1603 + $0x230] sm:$0x7f]
        %v2622 = vld [vmem:[%s1603 + $0x248] sm:$0x80]
        %v2623 = vld [vmem:[%s1603 + $0x250] sm:$0x7f]
        %v2624 = vld [vmem:[%s1603 + $0x268] sm:$0x80]
        %v2625 = vld [vmem:[%s1603 + $0x270] sm:$0x7f]
        %vm2666 = vcmask 1040384
        %v2667 = vrot.slane %v2586, 7
        %v2668 = vrot.slane %v2587, 7
        %v2669 = vsel %vm2666, %v2667, %v2668
        %v2670 = vrot.slane %v2588, 7
        %v2671 = vrot.slane %v2589, 7
        %v2672 = vsel %vm2666, %v2670, %v2671
        %v2673 = vrot.slane %v2590, 7
        %v2674 = vrot.slane %v2591, 7
        %v2675 = vsel %vm2666, %v2673, %v2674
        %v2676 = vrot.slane %v2592, 7
        %v2677 = vrot.slane %v2593, 7
        %v2678 = vsel %vm2666, %v2676, %v2677
        %v2679 = vrot.slane %v2594, 7
        %v2680 = vrot.slane %v2595, 7
        %v2681 = vsel %vm2666, %v2679, %v2680
        %v2682 = vrot.slane %v2596, 7
        %v2683 = vrot.slane %v2597, 7
        %v2684 = vsel %vm2666, %v2682, %v2683
        %v2685 = vrot.slane %v2598, 7
        %v2686 = vrot.slane %v2599, 7
        %v2687 = vsel %vm2666, %v2685, %v2686
        %v2688 = vrot.slane %v2600, 7
        %v2689 = vrot.slane %v2601, 7
        %v2690 = vsel %vm2666, %v2688, %v2689
        %v2691 = vrot.slane %v2602, 7
        %v2692 = vrot.slane %v2603, 7
        %v2693 = vsel %vm2666, %v2691, %v2692
        %v2694 = vrot.slane %v2604, 7
        %v2695 = vrot.slane %v2605, 7
        %v2696 = vsel %vm2666, %v2694, %v2695
        %v2697 = vrot.slane %v2606, 7
        %v2698 = vrot.slane %v2607, 7
        %v2699 = vsel %vm2666, %v2697, %v2698
        %v2700 = vrot.slane %v2608, 7
        %v2701 = vrot.slane %v2609, 7
        %v2702 = vsel %vm2666, %v2700, %v2701
        %v2703 = vrot.slane %v2610, 7
        %v2704 = vrot.slane %v2611, 7
        %v2705 = vsel %vm2666, %v2703, %v2704
        %v2706 = vrot.slane %v2612, 7
        %v2707 = vrot.slane %v2613, 7
        %v2708 = vsel %vm2666, %v2706, %v2707
        %v2709 = vrot.slane %v2614, 7
        %v2710 = vrot.slane %v2615, 7
        %v2711 = vsel %vm2666, %v2709, %v2710
        %v2712 = vrot.slane %v2616, 7
        %v2713 = vrot.slane %v2617, 7
        %v2714 = vsel %vm2666, %v2712, %v2713
        %v2715 = vrot.slane %v2618, 7
        %v2716 = vrot.slane %v2619, 7
        %v2717 = vsel %vm2666, %v2715, %v2716
        %v2718 = vrot.slane %v2620, 7
        %v2719 = vrot.slane %v2621, 7
        %v2720 = vsel %vm2666, %v2718, %v2719
        %v2721 = vrot.slane %v2622, 7
        %v2722 = vrot.slane %v2623, 7
        %v2723 = vsel %vm2666, %v2721, %v2722
        %v2724 = vrot.slane %v2624, 7
        %v2725 = vrot.slane %v2625, 7
        %v2726 = vsel %vm2666, %v2724, %v2725
        %s2727 = scalar_lea.vmem %s5, 4
        %v2728 = vld [vmem:[%s2727] sm:$0x3]
        %s2729 = scalar_lea.vmem %s5, 10
        %v2730 = vld [vmem:[%s2729] sm:$0x3]
        %v2732 = vsel %vm1264, %v2687, 0
        %v2735 = vsel %vm1264, %v2690, 0
        %v2738 = vsel %vm1264, %v2693, 0
        %v2741 = vsel %vm1264, %v2696, 0
        %v2744 = vsel %vm1264, %v2699, 0
        %v2747 = vsel %vm1264, %v2702, 0
        %v2750 = vsel %vm1264, %v2705, 0
        %v2753 = vsel %vm1264, %v2708, 0
        %v2756 = vsel %vm1289, %v2730, 0
        %2758 = vmatprep.subr.bf16.mxu0 0
        %2759 = vmatpush1.bf16.msra.mxu0 %v2756
        %2760 = vmatprep.subr.bf16.mxu0 0
        %2761 = vmatpush1.bf16.msra.mxu0 0
        %2762 = vmatprep.subr.bf16.mxu0 0
        %2763 = vmatpush1.bf16.msra.mxu0 0
        %2764 = vmatprep.subr.bf16.mxu0 0
        %2765 = vmatpush1.bf16.msra.mxu0 0
        %2766 = vmatprep.subr.bf16.mxu0 0
        %2767 = vmatpush1.bf16.msra.mxu0 0
        %2768 = vmatprep.subr.bf16.mxu0 0
        %2769 = vmatpush1.bf16.msra.mxu0 0
        %2770 = vmatprep.subr.bf16.mxu0 0
        %2771 = vmatpush1.bf16.msra.mxu0 0
        %2772 = vmatprep.subr.bf16.mxu0 0
        %2773 = vmatpush1.bf16.msra.mxu0 0
        %2774 = vmatprep.subr.bf16.mxu0 0
        %2775 = vmatpush1.bf16.msra.mxu0 0
        %2776 = vmatprep.subr.bf16.mxu0 0
        %2777 = vmatpush1.bf16.msra.mxu0 0
        %2778 = vmatprep.subr.bf16.mxu0 0
        %2779 = vmatpush1.bf16.msra.mxu0 0
        %2780 = vmatprep.subr.bf16.mxu0 0
        %2781 = vmatpush1.bf16.msra.mxu0 0
        %2782 = vmatprep.subr.bf16.mxu0 0
        %2783 = vmatpush1.bf16.msra.mxu0 0
        %2784 = vmatprep.subr.bf16.mxu0 0
        %2785 = vmatpush1.bf16.msra.mxu0 0
        %2786 = vmatprep.subr.bf16.mxu0 0
        %2787 = vmatpush1.bf16.msra.mxu0 0
        %2788 = vmatprep.subr.bf16.mxu0 0
        %2789 = vmatpush1.bf16.msra.mxu0 0
        %2790 = vmatprep.mubr.bf16.mxu0 0
        %2791 = vmatmul.mubr.bf16.gmra.mrb[0].mxu0 %v2732
        %v2792 = vpop.f32.mrb[0].mxu0
        %v2793 = vadd.f32 0.0, %v2792
        %v2794 = vpop.f32.mrb[0].mxu0
        %v2795 = vpop.f32.mrb[0].mxu0
        %v2796 = vadd.f32 0.0, %v2795
        %v2797 = vpop.f32.mrb[0].mxu0
        %2798 = vmatprep.mubr.bf16.mxu0 0
        %2799 = vmatmul.mubr.bf16.gmra.mrb[0].mxu0 %v2735
        %v2800 = vpop.f32.mrb[0].mxu0
        %v2801 = vadd.f32 0.0, %v2800
        %v2802 = vpop.f32.mrb[0].mxu0
        %v2803 = vpop.f32.mrb[0].mxu0
        %v2804 = vadd.f32 0.0, %v2803
        %v2805 = vpop.f32.mrb[0].mxu0
        %2806 = vmatprep.mubr.bf16.mxu0 0
        %2807 = vmatmul.mubr.bf16.gmra.mrb[0].mxu0 %v2738
        %v2808 = vpop.f32.mrb[0].mxu0
        %v2809 = vadd.f32 0.0, %v2808
        %v2810 = vpop.f32.mrb[0].mxu0
        %v2811 = vpop.f32.mrb[0].mxu0
        %v2812 = vadd.f32 0.0, %v2811
        %v2813 = vpop.f32.mrb[0].mxu0
        %2814 = vmatprep.mubr.bf16.mxu0 0
        %2815 = vmatmul.mubr.bf16.gmra.mrb[0].mxu0 %v2741
        %v2816 = vpop.f32.mrb[0].mxu0
        %v2817 = vadd.f32 0.0, %v2816
        %v2818 = vpop.f32.mrb[0].mxu0
        %v2819 = vpop.f32.mrb[0].mxu0
        %v2820 = vadd.f32 0.0, %v2819
        %v2821 = vpop.f32.mrb[0].mxu0
        %2822 = vmatprep.mubr.bf16.mxu0 0
        %2823 = vmatmul.mubr.bf16.gmra.mrb[0].mxu0 %v2744
        %v2824 = vpop.f32.mrb[0].mxu0
        %v2825 = vadd.f32 0.0, %v2824
        %v2826 = vpop.f32.mrb[0].mxu0
        %v2827 = vpop.f32.mrb[0].mxu0
        %v2828 = vadd.f32 0.0, %v2827
        %v2829 = vpop.f32.mrb[0].mxu0
        %2830 = vmatprep.mubr.bf16.mxu0 0
        %2831 = vmatmul.mubr.bf16.gmra.mrb[0].mxu0 %v2747
        %v2832 = vpop.f32.mrb[0].mxu0
        %v2833 = vadd.f32 0.0, %v2832
        %v2834 = vpop.f32.mrb[0].mxu0
        %v2835 = vpop.f32.mrb[0].mxu0
        %v2836 = vadd.f32 0.0, %v2835
        %v2837 = vpop.f32.mrb[0].mxu0
        %2838 = vmatprep.mubr.bf16.mxu0 0
        %2839 = vmatmul.mubr.bf16.gmra.mrb[0].mxu0 %v2750
        %v2840 = vpop.f32.mrb[0].mxu0
        %v2841 = vadd.f32 0.0, %v2840
        %v2842 = vpop.f32.mrb[0].mxu0
        %v2843 = vpop.f32.mrb[0].mxu0
        %v2844 = vadd.f32 0.0, %v2843
        %v2845 = vpop.f32.mrb[0].mxu0
        %2846 = vmatprep.mubr.bf16.mxu0 0
        %2847 = vmatmul.mubr.bf16.gmra.mrb[0].mxu0 %v2753
        %v2848 = vpop.f32.mrb[0].mxu0
        %v2849 = vadd.f32 0.0, %v2848
        %v2850 = vpop.f32.mrb[0].mxu0
        %v2851 = vpop.f32.mrb[0].mxu0
        %v2852 = vadd.f32 0.0, %v2851
        %v2853 = vpop.f32.mrb[0].mxu0
        %2854 = vdwg.mxu0
        %v2856 = vsel %vm1264, %v2669, 0
        %v2859 = vsel %vm1264, %v2672, 0
        %v2862 = vsel %vm1264, %v2675, 0
        %v2865 = vsel %vm1264, %v2678, 0
        %v2868 = vsel %vm1264, %v2681, 0
        %v2871 = vsel %vm1264, %v2684, 0
        %v2874 = vsel %vm1289, %v2728, 0
        %2876 = vmatprep.subr.bf16.mxu0 0
        %2877 = vmatpush1.bf16.msra.mxu0 %v2874
        %2878 = vmatprep.subr.bf16.mxu0 0
        %2879 = vmatpush1.bf16.msra.mxu0 0
        %2880 = vmatprep.subr.bf16.mxu0 0
        %2881 = vmatpush1.bf16.msra.mxu0 0
        %2882 = vmatprep.subr.bf16.mxu0 0
        %2883 = vmatpush1.bf16.msra.mxu0 0
        %2884 = vmatprep.subr.bf16.mxu0 0
        %2885 = vmatpush1.bf16.msra.mxu0 0
        %2886 = vmatprep.subr.bf16.mxu0 0
        %2887 = vmatpush1.bf16.msra.mxu0 0
        %2888 = vmatprep.subr.bf16.mxu0 0
        %2889 = vmatpush1.bf16.msra.mxu0 0
        %2890 = vmatprep.subr.bf16.mxu0 0
        %2891 = vmatpush1.bf16.msra.mxu0 0
        %2892 = vmatprep.subr.bf16.mxu0 0
        %2893 = vmatpush1.bf16.msra.mxu0 0
        %2894 = vmatprep.subr.bf16.mxu0 0
        %2895 = vmatpush1.bf16.msra.mxu0 0
        %2896 = vmatprep.subr.bf16.mxu0 0
        %2897 = vmatpush1.bf16.msra.mxu0 0
        %2898 = vmatprep.subr.bf16.mxu0 0
        %2899 = vmatpush1.bf16.msra.mxu0 0
        %2900 = vmatprep.subr.bf16.mxu0 0
        %2901 = vmatpush1.bf16.msra.mxu0 0
        %2902 = vmatprep.subr.bf16.mxu0 0
        %2903 = vmatpush1.bf16.msra.mxu0 0
        %2904 = vmatprep.subr.bf16.mxu0 0
        %2905 = vmatpush1.bf16.msra.mxu0 0
        %2906 = vmatprep.subr.bf16.mxu0 0
        %2907 = vmatpush1.bf16.msra.mxu0 0
        %2908 = vmatprep.mubr.bf16.mxu0 0
        %2909 = vmatmul.mubr.bf16.gmra.mrb[0].mxu0 %v2856
        %v2910 = vpop.f32.mrb[0].mxu0
        %v2911 = vadd.f32 %v2793, %v2910
        %v2912 = vpop.f32.mrb[0].mxu0
        %v2913 = vpop.f32.mrb[0].mxu0
        %v2914 = vadd.f32 %v2796, %v2913
        %v2915 = vpop.f32.mrb[0].mxu0
        %2916 = vmatprep.mubr.bf16.mxu0 0
        %2917 = vmatmul.mubr.bf16.gmra.mrb[0].mxu0 %v2859
        %v2918 = vpop.f32.mrb[0].mxu0
        %v2919 = vadd.f32 %v2801, %v2918
        %v2920 = vpop.f32.mrb[0].mxu0
        %v2921 = vpop.f32.mrb[0].mxu0
        %v2922 = vadd.f32 %v2804, %v2921
        %v2923 = vpop.f32.mrb[0].mxu0
        %2924 = vmatprep.mubr.bf16.mxu0 0
        %2925 = vmatmul.mubr.bf16.gmra.mrb[0].mxu0 %v2862
        %v2926 = vpop.f32.mrb[0].mxu0
        %v2927 = vadd.f32 %v2809, %v2926
        %v2928 = vpop.f32.mrb[0].mxu0
        %v2929 = vpop.f32.mrb[0].mxu0
        %v2930 = vadd.f32 %v2812, %v2929
        %v2931 = vpop.f32.mrb[0].mxu0
        %2932 = vmatprep.mubr.bf16.mxu0 0
        %2933 = vmatmul.mubr.bf16.gmra.mrb[0].mxu0 %v2865
        %v2934 = vpop.f32.mrb[0].mxu0
        %v2935 = vadd.f32 %v2817, %v2934
        %v2936 = vpop.f32.mrb[0].mxu0
        %v2937 = vpop.f32.mrb[0].mxu0
        %v2938 = vadd.f32 %v2820, %v2937
        %v2939 = vpop.f32.mrb[0].mxu0
        %2940 = vmatprep.mubr.bf16.mxu0 0
        %2941 = vmatmul.mubr.bf16.gmra.mrb[0].mxu0 %v2868
        %v2942 = vpop.f32.mrb[0].mxu0
        %v2943 = vadd.f32 %v2825, %v2942
        %v2944 = vpop.f32.mrb[0].mxu0
        %v2945 = vpop.f32.mrb[0].mxu0
        %v2946 = vadd.f32 %v2828, %v2945
        %v2947 = vpop.f32.mrb[0].mxu0
        %2948 = vmatprep.mubr.bf16.mxu0 0
        %2949 = vmatmul.mubr.bf16.gmra.mrb[0].mxu0 %v2871
        %v2950 = vpop.f32.mrb[0].mxu0
        %v2951 = vadd.f32 %v2833, %v2950
        %v2952 = vpop.f32.mrb[0].mxu0
        %v2953 = vpop.f32.mrb[0].mxu0
        %v2954 = vadd.f32 %v2836, %v2953
        %v2955 = vpop.f32.mrb[0].mxu0
        %2956 = vmatprep.mubr.bf16.mxu0 0
        %2957 = vmatmul.mubr.bf16.gmra.mrb[0].mxu0 %v2732
        %v2958 = vpop.f32.mrb[0].mxu0
        %v2959 = vadd.f32 %v2841, %v2958
        %v2960 = vpop.f32.mrb[0].mxu0
        %v2961 = vpop.f32.mrb[0].mxu0
        %v2962 = vadd.f32 %v2844, %v2961
        %v2963 = vpop.f32.mrb[0].mxu0
        %2964 = vmatprep.mubr.bf16.mxu0 0
        %2965 = vmatmul.mubr.bf16.gmra.mrb[0].mxu0 %v2735
        %v2966 = vpop.f32.mrb[0].mxu0
        %v2967 = vadd.f32 %v2849, %v2966
        %v2968 = vpop.f32.mrb[0].mxu0
        %v2969 = vpop.f32.mrb[0].mxu0
        %v2970 = vadd.f32 %v2852, %v2969
        %v2971 = vpop.f32.mrb[0].mxu0
        %2972 = vdwg.mxu0
        %s2973 = scalar_lea.vmem %s5, 16
        %v2974 = vld [vmem:[%s2973] sm:$0x3]
        %v2976 = vsel %vm1264, %v2711, 0
        %v2979 = vsel %vm1264, %v2714, 0
        %v2982 = vsel %vm1264, %v2717, 0
        %v2985 = vsel %vm1264, %v2720, 0
        %v2988 = vsel %vm1264, %v2723, 0
        %v2991 = vsel %vm1264, %v2726, 0
        %v2994 = vsel %vm1289, %v2974, 0
        %2996 = vmatprep.subr.bf16.mxu0 0
        %2997 = vmatpush1.bf16.msra.mxu0 %v2994
        %2998 = vmatprep.subr.bf16.mxu0 0
        %2999 = vmatpush1.bf16.msra.mxu0 0
        %3000 = vmatprep.subr.bf16.mxu0 0
        %3001 = vmatpush1.bf16.msra.mxu0 0
        %3002 = vmatprep.subr.bf16.mxu0 0
        %3003 = vmatpush1.bf16.msra.mxu0 0
        %3004 = vmatprep.subr.bf16.mxu0 0
        %3005 = vmatpush1.bf16.msra.mxu0 0
        %3006 = vmatprep.subr.bf16.mxu0 0
        %3007 = vmatpush1.bf16.msra.mxu0 0
        %3008 = vmatprep.subr.bf16.mxu0 0
        %3009 = vmatpush1.bf16.msra.mxu0 0
        %3010 = vmatprep.subr.bf16.mxu0 0
        %3011 = vmatpush1.bf16.msra.mxu0 0
        %3012 = vmatprep.subr.bf16.mxu0 0
        %3013 = vmatpush1.bf16.msra.mxu0 0
        %3014 = vmatprep.subr.bf16.mxu0 0
        %3015 = vmatpush1.bf16.msra.mxu0 0
        %3016 = vmatprep.subr.bf16.mxu0 0
        %3017 = vmatpush1.bf16.msra.mxu0 0
        %3018 = vmatprep.subr.bf16.mxu0 0
        %3019 = vmatpush1.bf16.msra.mxu0 0
        %3020 = vmatprep.subr.bf16.mxu0 0
        %3021 = vmatpush1.bf16.msra.mxu0 0
        %3022 = vmatprep.subr.bf16.mxu0 0
        %3023 = vmatpush1.bf16.msra.mxu0 0
        %3024 = vmatprep.subr.bf16.mxu0 0
        %3025 = vmatpush1.bf16.msra.mxu0 0
        %3026 = vmatprep.subr.bf16.mxu0 0
        %3027 = vmatpush1.bf16.msra.mxu0 0
        %3028 = vmatprep.mubr.bf16.mxu0 0
        %3029 = vmatmul.mubr.bf16.gmra.mrb[0].mxu0 %v2750
        %v3030 = vpop.f32.mrb[0].mxu0
        %v3031 = vadd.f32 0.0, %v3030
        %v3032 = vpop.f32.mrb[0].mxu0
        %v3033 = vpop.f32.mrb[0].mxu0
        %v3034 = vadd.f32 0.0, %v3033
        %v3035 = vpop.f32.mrb[0].mxu0
        %3036 = vmatprep.mubr.bf16.mxu0 0
        %3037 = vmatmul.mubr.bf16.gmra.mrb[0].mxu0 %v2753
        %v3038 = vpop.f32.mrb[0].mxu0
        %v3039 = vadd.f32 0.0, %v3038
        %v3040 = vpop.f32.mrb[0].mxu0
        %v3041 = vpop.f32.mrb[0].mxu0
        %v3042 = vadd.f32 0.0, %v3041
        %v3043 = vpop.f32.mrb[0].mxu0
        %3044 = vmatprep.mubr.bf16.mxu0 0
        %3045 = vmatmul.mubr.bf16.gmra.mrb[0].mxu0 %v2976
        %v3046 = vpop.f32.mrb[0].mxu0
        %v3047 = vadd.f32 0.0, %v3046
        %v3048 = vpop.f32.mrb[0].mxu0
        %v3049 = vpop.f32.mrb[0].mxu0
        %v3050 = vadd.f32 0.0, %v3049
        %v3051 = vpop.f32.mrb[0].mxu0
        %3052 = vmatprep.mubr.bf16.mxu0 0
        %3053 = vmatmul.mubr.bf16.gmra.mrb[0].mxu0 %v2979
        %v3054 = vpop.f32.mrb[0].mxu0
        %v3055 = vadd.f32 0.0, %v3054
        %v3056 = vpop.f32.mrb[0].mxu0
        %v3057 = vpop.f32.mrb[0].mxu0
        %v3058 = vadd.f32 0.0, %v3057
        %v3059 = vpop.f32.mrb[0].mxu0
        %3060 = vmatprep.mubr.bf16.mxu0 0
        %3061 = vmatmul.mubr.bf16.gmra.mrb[0].mxu0 %v2982
        %v3062 = vpop.f32.mrb[0].mxu0
        %v3063 = vadd.f32 0.0, %v3062
        %v3064 = vpop.f32.mrb[0].mxu0
        %v3065 = vpop.f32.mrb[0].mxu0
        %v3066 = vadd.f32 0.0, %v3065
        %v3067 = vpop.f32.mrb[0].mxu0
        %3068 = vmatprep.mubr.bf16.mxu0 0
        %3069 = vmatmul.mubr.bf16.gmra.mrb[0].mxu0 %v2985
        %v3070 = vpop.f32.mrb[0].mxu0
        %v3071 = vadd.f32 0.0, %v3070
        %v3072 = vpop.f32.mrb[0].mxu0
        %v3073 = vpop.f32.mrb[0].mxu0
        %v3074 = vadd.f32 0.0, %v3073
        %v3075 = vpop.f32.mrb[0].mxu0
        %3076 = vmatprep.mubr.bf16.mxu0 0
        %3077 = vmatmul.mubr.bf16.gmra.mrb[0].mxu0 %v2988
        %v3078 = vpop.f32.mrb[0].mxu0
        %v3079 = vadd.f32 0.0, %v3078
        %v3080 = vpop.f32.mrb[0].mxu0
        %v3081 = vpop.f32.mrb[0].mxu0
        %v3082 = vadd.f32 0.0, %v3081
        %v3083 = vpop.f32.mrb[0].mxu0
        %3084 = vmatprep.mubr.bf16.mxu0 0
        %3085 = vmatmul.mubr.bf16.gmra.mrb[0].mxu0 %v2991
        %v3086 = vpop.f32.mrb[0].mxu0
        %v3087 = vadd.f32 0.0, %v3086
        %v3088 = vpop.f32.mrb[0].mxu0
        %v3089 = vpop.f32.mrb[0].mxu0
        %v3090 = vadd.f32 0.0, %v3089
        %v3091 = vpop.f32.mrb[0].mxu0
        %3092 = vdwg.mxu0
        %v3093 = vadd.f32 %v2911, %v3031
        %v3094 = vadd.f32 %v2914, %v3034
        %v3095 = vadd.f32 %v2919, %v3039
        %v3096 = vadd.f32 %v2922, %v3042
        %v3097 = vadd.f32 %v2927, %v3047
        %v3098 = vadd.f32 %v2930, %v3050
        %v3099 = vadd.f32 %v2935, %v3055
        %v3100 = vadd.f32 %v2938, %v3058
        %v3101 = vadd.f32 %v2943, %v3063
        %v3102 = vadd.f32 %v2946, %v3066
        %v3103 = vadd.f32 %v2951, %v3071
        %v3104 = vadd.f32 %v2954, %v3074
        %v3105 = vadd.f32 %v2959, %v3079
        %v3106 = vadd.f32 %v2962, %v3082
        %v3107 = vadd.f32 %v2967, %v3087
        %v3108 = vadd.f32 %v2970, %v3090
        %v3109 = vld [vmem:[#allocation4] sm:$0xff]
        %v3110 = vld [vmem:[#allocation4 + $0x8] sm:$0xff]
        %v3111 = vld [vmem:[#allocation4 + $0x10] sm:$0xff]
        %v3112 = vld [vmem:[#allocation4 + $0x18] sm:$0xff]
        %v3113 = vld [vmem:[#allocation4 + $0x20] sm:$0xff]
        %v3114 = vld [vmem:[#allocation4 + $0x28] sm:$0xff]
        %v3115 = vld [vmem:[#allocation4 + $0x30] sm:$0xff]
        %v3116 = vld [vmem:[#allocation4 + $0x38] sm:$0xff]
        %v3117 = vld [vmem:[#allocation4 + $0x40] sm:$0xff]
        %v3118 = vld [vmem:[#allocation4 + $0x48] sm:$0xff]
        %v3119 = vld [vmem:[#allocation4 + $0x50] sm:$0xff]
        %v3120 = vld [vmem:[#allocation4 + $0x58] sm:$0xff]
        %v3121 = vld [vmem:[#allocation4 + $0x60] sm:$0xff]
        %v3122 = vld [vmem:[#allocation4 + $0x68] sm:$0xff]
        %v3123 = vld [vmem:[#allocation4 + $0x70] sm:$0xff]
        %v3124 = vld [vmem:[#allocation4 + $0x78] sm:$0xff]
        %v3125 = vadd.f32 %v3109, %v3093
        %v3126 = vadd.f32 %v3110, %v3094
        %v3127 = vadd.f32 %v3111, %v3095
        %v3128 = vadd.f32 %v3112, %v3096
        %v3129 = vadd.f32 %v3113, %v3097
        %v3130 = vadd.f32 %v3114, %v3098
        %v3131 = vadd.f32 %v3115, %v3099
        %v3132 = vadd.f32 %v3116, %v3100
        %v3133 = vadd.f32 %v3117, %v3101
        %v3134 = vadd.f32 %v3118, %v3102
        %v3135 = vadd.f32 %v3119, %v3103
        %v3136 = vadd.f32 %v3120, %v3104
        %v3137 = vadd.f32 %v3121, %v3105
        %v3138 = vadd.f32 %v3122, %v3106
        %v3139 = vadd.f32 %v3123, %v3107
        %v3140 = vadd.f32 %v3124, %v3108
        %3141 = vst.msk [vmem:[#allocation4] sm:$0xff] %vm1583, %v3125
        %3142 = vst.msk [vmem:[#allocation4 + $0x8] sm:$0xff] %vm1583, %v3126
        %3143 = vst.msk [vmem:[#allocation4 + $0x10] sm:$0xff] %vm1583, %v3127
        %3144 = vst.msk [vmem:[#allocation4 + $0x18] sm:$0xff] %vm1583, %v3128
        %3145 = vst.msk [vmem:[#allocation4 + $0x20] sm:$0xff] %vm1583, %v3129
        %3146 = vst.msk [vmem:[#allocation4 + $0x28] sm:$0xff] %vm1583, %v3130
        %3147 = vst.msk [vmem:[#allocation4 + $0x30] sm:$0xff] %vm1583, %v3131
        %3148 = vst.msk [vmem:[#allocation4 + $0x38] sm:$0xff] %vm1583, %v3132
        %3149 = vst.msk [vmem:[#allocation4 + $0x40] sm:$0xff] %vm1583, %v3133
        %3150 = vst.msk [vmem:[#allocation4 + $0x48] sm:$0xff] %vm1583, %v3134
        %3151 = vst.msk [vmem:[#allocation4 + $0x50] sm:$0xff] %vm1583, %v3135
        %3152 = vst.msk [vmem:[#allocation4 + $0x58] sm:$0xff] %vm1583, %v3136
        %3153 = vst.msk [vmem:[#allocation4 + $0x60] sm:$0xff] %vm1583, %v3137
        %3154 = vst.msk [vmem:[#allocation4 + $0x68] sm:$0xff] %vm1583, %v3138
        %3155 = vst.msk [vmem:[#allocation4 + $0x70] sm:$0xff] %vm1583, %v3139
        %3156 = vst.msk [vmem:[#allocation4 + $0x78] sm:$0xff] %vm1583, %v3140
        %v3157 = vld [vmem:[#allocation4] sm:$0xff]
        %v3158 = vld [vmem:[#allocation4 + $0x8] sm:$0xff]
        %v3159 = vld [vmem:[#allocation4 + $0x10] sm:$0xff]
        %v3160 = vld [vmem:[#allocation4 + $0x18] sm:$0xff]
        %v3161 = vld [vmem:[#allocation4 + $0x20] sm:$0xff]
        %v3162 = vld [vmem:[#allocation4 + $0x28] sm:$0xff]
        %v3163 = vld [vmem:[#allocation4 + $0x30] sm:$0xff]
        %v3164 = vld [vmem:[#allocation4 + $0x38] sm:$0xff]
        %v3165 = vld [vmem:[#allocation4 + $0x40] sm:$0xff]
        %v3166 = vld [vmem:[#allocation4 + $0x48] sm:$0xff]
        %v3167 = vld [vmem:[#allocation4 + $0x50] sm:$0xff]
        %v3168 = vld [vmem:[#allocation4 + $0x58] sm:$0xff]
        %v3169 = vld [vmem:[#allocation4 + $0x60] sm:$0xff]
        %v3170 = vld [vmem:[#allocation4 + $0x68] sm:$0xff]
        %v3171 = vld [vmem:[#allocation4 + $0x70] sm:$0xff]
        %v3172 = vld [vmem:[#allocation4 + $0x78] sm:$0xff]
        %v3173 = vmax.f32 %v3157, 0.0
        %v3174 = vmax.f32 %v3158, 0.0
        %v3175 = vmax.f32 %v3159, 0.0
        %v3176 = vmax.f32 %v3160, 0.0
        %v3177 = vmax.f32 %v3161, 0.0
        %v3178 = vmax.f32 %v3162, 0.0
        %v3179 = vmax.f32 %v3163, 0.0
        %v3180 = vmax.f32 %v3164, 0.0
        %v3181 = vmax.f32 %v3165, 0.0
        %v3182 = vmax.f32 %v3166, 0.0
        %v3183 = vmax.f32 %v3167, 0.0
        %v3184 = vmax.f32 %v3168, 0.0
        %v3185 = vmax.f32 %v3169, 0.0
        %v3186 = vmax.f32 %v3170, 0.0
        %v3187 = vmax.f32 %v3171, 0.0
        %v3188 = vmax.f32 %v3172, 0.0
        %v3189 = vpack.c.bf16 %v3174, %v3173
        %v3190 = vpack.c.bf16 %v3176, %v3175
        %v3191 = vpack.c.bf16 %v3178, %v3177
        %v3192 = vpack.c.bf16 %v3180, %v3179
        %v3193 = vpack.c.bf16 %v3182, %v3181
        %v3194 = vpack.c.bf16 %v3184, %v3183
        %v3195 = vpack.c.bf16 %v3186, %v3185
        %v3196 = vpack.c.bf16 %v3188, %v3187
        %v3205 = vunpack.c.l.b16 %v3189
        %v3206 = vunpack.c.h.b16 %v3189
        %v3207 = vunpack.c.l.b16 %v3190
        %v3208 = vunpack.c.h.b16 %v3190
        %v3209 = vunpack.c.l.b16 %v3191
        %v3210 = vunpack.c.h.b16 %v3191
        %v3211 = vunpack.c.l.b16 %v3192
        %v3212 = vunpack.c.h.b16 %v3192
        %v3213 = vunpack.c.l.b16 %v3193
        %v3214 = vunpack.c.h.b16 %v3193
        %v3215 = vunpack.c.l.b16 %v3194
        %v3216 = vunpack.c.h.b16 %v3194
        %v3217 = vunpack.c.l.b16 %v3195
        %v3218 = vunpack.c.h.b16 %v3195
        %v3219 = vunpack.c.l.b16 %v3196
        %v3220 = vunpack.c.h.b16 %v3196
        %v3221 = vpack.c.b16 %v3205, %v3205
        %v3222 = vpack.c.b16 %v3206, %v3206
        %v3223 = vpack.c.b16 %v3207, %v3207
        %v3224 = vpack.c.b16 %v3208, %v3208
        %v3225 = vpack.c.b16 %v3209, %v3209
        %v3226 = vpack.c.b16 %v3210, %v3210
        %v3227 = vpack.c.b16 %v3211, %v3211
        %v3228 = vpack.c.b16 %v3212, %v3212
        %v3229 = vpack.c.b16 %v3213, %v3213
        %v3230 = vpack.c.b16 %v3214, %v3214
        %v3231 = vpack.c.b16 %v3215, %v3215
        %v3232 = vpack.c.b16 %v3216, %v3216
        %v3233 = vpack.c.b16 %v3217, %v3217
        %v3234 = vpack.c.b16 %v3218, %v3218
        %v3235 = vpack.c.b16 %v3219, %v3219
        %v3236 = vpack.c.b16 %v3220, %v3220
        %3237 = vrot.lane.b32.xlu0 %v3221, 96
        %v3238 = vpop.permute.xlu0 %3237
        %3239 = vrot.lane.b32.xlu0 %v3222, 96
        %v3240 = vpop.permute.xlu0 %3239
        %3241 = vrot.lane.b32.xlu0 %v3223, 96
        %v3242 = vpop.permute.xlu0 %3241
        %3243 = vrot.lane.b32.xlu0 %v3224, 96
        %v3244 = vpop.permute.xlu0 %3243
        %3245 = vrot.lane.b32.xlu0 %v3225, 96
        %v3246 = vpop.permute.xlu0 %3245
        %3247 = vrot.lane.b32.xlu0 %v3226, 96
        %v3248 = vpop.permute.xlu0 %3247
        %3249 = vrot.lane.b32.xlu0 %v3227, 96
        %v3250 = vpop.permute.xlu0 %3249
        %3251 = vrot.lane.b32.xlu0 %v3228, 96
        %v3252 = vpop.permute.xlu0 %3251
        %3253 = vrot.lane.b32.xlu0 %v3229, 96
        %v3254 = vpop.permute.xlu0 %3253
        %3255 = vrot.lane.b32.xlu0 %v3230, 96
        %v3256 = vpop.permute.xlu0 %3255
        %3257 = vrot.lane.b32.xlu0 %v3231, 96
        %v3258 = vpop.permute.xlu0 %3257
        %3259 = vrot.lane.b32.xlu0 %v3232, 96
        %v3260 = vpop.permute.xlu0 %3259
        %3261 = vrot.lane.b32.xlu0 %v3233, 96
        %v3262 = vpop.permute.xlu0 %3261
        %3263 = vrot.lane.b32.xlu0 %v3234, 96
        %v3264 = vpop.permute.xlu0 %3263
        %3265 = vrot.lane.b32.xlu0 %v3235, 96
        %v3266 = vpop.permute.xlu0 %3265
        %3267 = vrot.lane.b32.xlu0 %v3236, 96
        %v3268 = vpop.permute.xlu0 %3267
        %vm3285 = vcmask 1044224
        %3286 = vst.msk [vmem:[%s340] sm:$0xf] %vm3285, %v3238
        %3287 = vst.msk [vmem:[%s340 + $0x8] sm:$0xf] %vm3285, %v3240
        %3288 = vst.msk [vmem:[%s340 + $0x10] sm:$0xf] %vm3285, %v3242
        %3289 = vst.msk [vmem:[%s340 + $0x18] sm:$0xf] %vm3285, %v3244
        %3290 = vst.msk [vmem:[%s340 + $0x20] sm:$0xf] %vm3285, %v3246
        %3291 = vst.msk [vmem:[%s340 + $0x28] sm:$0xf] %vm3285, %v3248
        %3292 = vst.msk [vmem:[%s340 + $0x30] sm:$0xf] %vm3285, %v3250
        %3293 = vst.msk [vmem:[%s340 + $0x38] sm:$0xf] %vm3285, %v3252
        %3294 = vst.msk [vmem:[%s340 + $0x40] sm:$0xf] %vm3285, %v3254
        %3295 = vst.msk [vmem:[%s340 + $0x48] sm:$0xf] %vm3285, %v3256
        %3296 = vst.msk [vmem:[%s340 + $0x50] sm:$0xf] %vm3285, %v3258
        %3297 = vst.msk [vmem:[%s340 + $0x58] sm:$0xf] %vm3285, %v3260
        %3298 = vst.msk [vmem:[%s340 + $0x60] sm:$0xf] %vm3285, %v3262
        %3299 = vst.msk [vmem:[%s340 + $0x68] sm:$0xf] %vm3285, %v3264
        %3300 = vst.msk [vmem:[%s340 + $0x70] sm:$0xf] %vm3285, %v3266
        %3301 = vst.msk [vmem:[%s340 + $0x78] sm:$0xf] %vm3285, %v3268
        %3302 = vrot.lane.b32.xlu0 %v1328, 64
        %v3303 = vpop.permute.xlu0 %3302
        %3304 = vrot.lane.b32.xlu0 %v1331, 64
        %v3305 = vpop.permute.xlu0 %3304
        %3306 = vrot.lane.b32.xlu0 %v1336, 64
        %v3307 = vpop.permute.xlu0 %3306
        %3308 = vrot.lane.b32.xlu0 %v1339, 64
        %v3309 = vpop.permute.xlu0 %3308
        %3310 = vrot.lane.b32.xlu0 %v1344, 64
        %v3311 = vpop.permute.xlu0 %3310
        %3312 = vrot.lane.b32.xlu0 %v1347, 64
        %v3313 = vpop.permute.xlu0 %3312
        %3314 = vrot.lane.b32.xlu0 %v1352, 64
        %v3315 = vpop.permute.xlu0 %3314
        %3316 = vrot.lane.b32.xlu0 %v1355, 64
        %v3317 = vpop.permute.xlu0 %3316
        %3318 = vrot.lane.b32.xlu0 %v1360, 64
        %v3319 = vpop.permute.xlu0 %3318
        %3320 = vrot.lane.b32.xlu0 %v1363, 64
        %v3321 = vpop.permute.xlu0 %3320
        %3322 = vrot.lane.b32.xlu0 %v1368, 64
        %v3323 = vpop.permute.xlu0 %3322
        %3324 = vrot.lane.b32.xlu0 %v1371, 64
        %v3325 = vpop.permute.xlu0 %3324
        %3326 = vrot.lane.b32.xlu0 %v1376, 64
        %v3327 = vpop.permute.xlu0 %3326
        %3328 = vrot.lane.b32.xlu0 %v1379, 64
        %v3329 = vpop.permute.xlu0 %3328
        %3330 = vrot.lane.b32.xlu0 %v1384, 64
        %v3331 = vpop.permute.xlu0 %3330
        %3332 = vrot.lane.b32.xlu0 %v1387, 64
        %v3333 = vpop.permute.xlu0 %3332
        %3350 = vst.msk [vmem:[#allocation4] sm:$0xff] %vm1583, %v3303
        %3351 = vst.msk [vmem:[#allocation4 + $0x8] sm:$0xff] %vm1583, %v3305
        %3352 = vst.msk [vmem:[#allocation4 + $0x10] sm:$0xff] %vm1583, %v3307
        %3353 = vst.msk [vmem:[#allocation4 + $0x18] sm:$0xff] %vm1583, %v3309
        %3354 = vst.msk [vmem:[#allocation4 + $0x20] sm:$0xff] %vm1583, %v3311
        %3355 = vst.msk [vmem:[#allocation4 + $0x28] sm:$0xff] %vm1583, %v3313
        %3356 = vst.msk [vmem:[#allocation4 + $0x30] sm:$0xff] %vm1583, %v3315
        %3357 = vst.msk [vmem:[#allocation4 + $0x38] sm:$0xff] %vm1583, %v3317
        %3358 = vst.msk [vmem:[#allocation4 + $0x40] sm:$0xff] %vm1583, %v3319
        %3359 = vst.msk [vmem:[#allocation4 + $0x48] sm:$0xff] %vm1583, %v3321
        %3360 = vst.msk [vmem:[#allocation4 + $0x50] sm:$0xff] %vm1583, %v3323
        %3361 = vst.msk [vmem:[#allocation4 + $0x58] sm:$0xff] %vm1583, %v3325
        %3362 = vst.msk [vmem:[#allocation4 + $0x60] sm:$0xff] %vm1583, %v3327
        %3363 = vst.msk [vmem:[#allocation4 + $0x68] sm:$0xff] %vm1583, %v3329
        %3364 = vst.msk [vmem:[#allocation4 + $0x70] sm:$0xff] %vm1583, %v3331
        %3365 = vst.msk [vmem:[#allocation4 + $0x78] sm:$0xff] %vm1583, %v3333
        %s3366 = sadd.s32 %s923, 6
        %s3367 = smul.u32 %s3366, 4
        %s3368 = smul.addr %s3367, 8
        %s3369 = scalar_lea.vmem [#allocation2], %s3368
        %v3370 = vld [vmem:[%s3369] sm:$0xc0]
        %v3371 = vld [vmem:[%s3369 + $0x8] sm:$0x3f]
        %v3372 = vld [vmem:[%s3369 + $0x20] sm:$0xc0]
        %v3373 = vld [vmem:[%s3369 + $0x28] sm:$0x3f]
        %v3374 = vld [vmem:[%s3369 + $0x40] sm:$0xc0]
        %v3375 = vld [vmem:[%s3369 + $0x48] sm:$0x3f]
        %v3376 = vld [vmem:[%s3369 + $0x60] sm:$0xc0]
        %v3377 = vld [vmem:[%s3369 + $0x68] sm:$0x3f]
        %v3378 = vld [vmem:[%s3369 + $0x80] sm:$0xc0]
        %v3379 = vld [vmem:[%s3369 + $0x88] sm:$0x3f]
        %v3380 = vld [vmem:[%s3369 + $0xa0] sm:$0xc0]
        %v3381 = vld [vmem:[%s3369 + $0xa8] sm:$0x3f]
        %v3382 = vld [vmem:[%s3369 + $0xc0] sm:$0xc0]
        %v3383 = vld [vmem:[%s3369 + $0xc8] sm:$0x3f]
        %v3384 = vld [vmem:[%s3369 + $0xe0] sm:$0xc0]
        %v3385 = vld [vmem:[%s3369 + $0xe8] sm:$0x3f]
        %v3386 = vld [vmem:[%s3369 + $0x180] sm:$0xc0]
        %v3387 = vld [vmem:[%s3369 + $0x188] sm:$0x3f]
        %v3388 = vld [vmem:[%s3369 + $0x1a0] sm:$0xc0]
        %v3389 = vld [vmem:[%s3369 + $0x1a8] sm:$0x3f]
        %v3390 = vld [vmem:[%s3369 + $0x1c0] sm:$0xc0]
        %v3391 = vld [vmem:[%s3369 + $0x1c8] sm:$0x3f]
        %v3392 = vld [vmem:[%s3369 + $0x1e0] sm:$0xc0]
        %v3393 = vld [vmem:[%s3369 + $0x1e8] sm:$0x3f]
        %v3394 = vld [vmem:[%s3369 + $0x200] sm:$0xc0]
        %v3395 = vld [vmem:[%s3369 + $0x208] sm:$0x3f]
        %v3396 = vld [vmem:[%s3369 + $0x220] sm:$0xc0]
        %v3397 = vld [vmem:[%s3369 + $0x228] sm:$0x3f]
        %v3398 = vld [vmem:[%s3369 + $0x240] sm:$0xc0]
        %v3399 = vld [vmem:[%s3369 + $0x248] sm:$0x3f]
        %v3400 = vld [vmem:[%s3369 + $0x260] sm:$0xc0]
        %v3401 = vld [vmem:[%s3369 + $0x268] sm:$0x3f]
        %v3402 = vld [vmem:[%s3369 + $0x300] sm:$0xc0]
        %v3403 = vld [vmem:[%s3369 + $0x308] sm:$0x3f]
        %v3404 = vld [vmem:[%s3369 + $0x320] sm:$0xc0]
        %v3405 = vld [vmem:[%s3369 + $0x328] sm:$0x3f]
        %v3406 = vld [vmem:[%s3369 + $0x340] sm:$0xc0]
        %v3407 = vld [vmem:[%s3369 + $0x348] sm:$0x3f]
        %v3408 = vld [vmem:[%s3369 + $0x360] sm:$0xc0]
        %v3409 = vld [vmem:[%s3369 + $0x368] sm:$0x3f]
        %v3410 = vld [vmem:[%s3369 + $0x380] sm:$0xc0]
        %v3411 = vld [vmem:[%s3369 + $0x388] sm:$0x3f]
        %v3412 = vld [vmem:[%s3369 + $0x3a0] sm:$0xc0]
        %v3413 = vld [vmem:[%s3369 + $0x3a8] sm:$0x3f]
        %v3414 = vld [vmem:[%s3369 + $0x3c0] sm:$0xc0]
        %v3415 = vld [vmem:[%s3369 + $0x3c8] sm:$0x3f]
        %v3416 = vld [vmem:[%s3369 + $0x3e0] sm:$0xc0]
        %v3417 = vld [vmem:[%s3369 + $0x3e8] sm:$0x3f]
        %vm3466 = vcmask 1041408
        %v3467 = vrot.slane %v3370, 6
        %v3468 = vrot.slane %v3371, 6
        %v3469 = vsel %vm3466, %v3467, %v3468
        %v3470 = vrot.slane %v3372, 6
        %v3471 = vrot.slane %v3373, 6
        %v3472 = vsel %vm3466, %v3470, %v3471
        %v3473 = vrot.slane %v3374, 6
        %v3474 = vrot.slane %v3375, 6
        %v3475 = vsel %vm3466, %v3473, %v3474
        %v3476 = vrot.slane %v3376, 6
        %v3477 = vrot.slane %v3377, 6
        %v3478 = vsel %vm3466, %v3476, %v3477
        %v3479 = vrot.slane %v3378, 6
        %v3480 = vrot.slane %v3379, 6
        %v3481 = vsel %vm3466, %v3479, %v3480
        %v3482 = vrot.slane %v3380, 6
        %v3483 = vrot.slane %v3381, 6
        %v3484 = vsel %vm3466, %v3482, %v3483
        %v3485 = vrot.slane %v3382, 6
        %v3486 = vrot.slane %v3383, 6
        %v3487 = vsel %vm3466, %v3485, %v3486
        %v3488 = vrot.slane %v3384, 6
        %v3489 = vrot.slane %v3385, 6
        %v3490 = vsel %vm3466, %v3488, %v3489
        %v3491 = vrot.slane %v3386, 6
        %v3492 = vrot.slane %v3387, 6
        %v3493 = vsel %vm3466, %v3491, %v3492
        %v3494 = vrot.slane %v3388, 6
        %v3495 = vrot.slane %v3389, 6
        %v3496 = vsel %vm3466, %v3494, %v3495
        %v3497 = vrot.slane %v3390, 6
        %v3498 = vrot.slane %v3391, 6
        %v3499 = vsel %vm3466, %v3497, %v3498
        %v3500 = vrot.slane %v3392, 6
        %v3501 = vrot.slane %v3393, 6
        %v3502 = vsel %vm3466, %v3500, %v3501
        %v3503 = vrot.slane %v3394, 6
        %v3504 = vrot.slane %v3395, 6
        %v3505 = vsel %vm3466, %v3503, %v3504
        %v3506 = vrot.slane %v3396, 6
        %v3507 = vrot.slane %v3397, 6
        %v3508 = vsel %vm3466, %v3506, %v3507
        %v3509 = vrot.slane %v3398, 6
        %v3510 = vrot.slane %v3399, 6
        %v3511 = vsel %vm3466, %v3509, %v3510
        %v3512 = vrot.slane %v3400, 6
        %v3513 = vrot.slane %v3401, 6
        %v3514 = vsel %vm3466, %v3512, %v3513
        %v3515 = vrot.slane %v3402, 6
        %v3516 = vrot.slane %v3403, 6
        %v3517 = vsel %vm3466, %v3515, %v3516
        %v3518 = vrot.slane %v3404, 6
        %v3519 = vrot.slane %v3405, 6
        %v3520 = vsel %vm3466, %v3518, %v3519
        %v3521 = vrot.slane %v3406, 6
        %v3522 = vrot.slane %v3407, 6
        %v3523 = vsel %vm3466, %v3521, %v3522
        %v3524 = vrot.slane %v3408, 6
        %v3525 = vrot.slane %v3409, 6
        %v3526 = vsel %vm3466, %v3524, %v3525
        %v3527 = vrot.slane %v3410, 6
        %v3528 = vrot.slane %v3411, 6
        %v3529 = vsel %vm3466, %v3527, %v3528
        %v3530 = vrot.slane %v3412, 6
        %v3531 = vrot.slane %v3413, 6
        %v3532 = vsel %vm3466, %v3530, %v3531
        %v3533 = vrot.slane %v3414, 6
        %v3534 = vrot.slane %v3415, 6
        %v3535 = vsel %vm3466, %v3533, %v3534
        %v3536 = vrot.slane %v3416, 6
        %v3537 = vrot.slane %v3417, 6
        %v3538 = vsel %vm3466, %v3536, %v3537
        %v3539 = vld [vmem:[%s6] sm:$0x3]
        %s3540 = scalar_lea.vmem %s6, 6
        %v3541 = vld [vmem:[%s3540] sm:$0x3]
        %v3543 = vsel %vm1264, %v3493, 0
        %v3546 = vsel %vm1264, %v3496, 0
        %v3549 = vsel %vm1264, %v3499, 0
        %v3552 = vsel %vm1264, %v3502, 0
        %v3555 = vsel %vm1264, %v3505, 0
        %v3558 = vsel %vm1264, %v3508, 0
        %v3561 = vsel %vm1264, %v3511, 0
        %v3564 = vsel %vm1264, %v3514, 0
        %v3567 = vsel %vm1289, %v3541, 0
        %3569 = vmatprep.subr.bf16.mxu0 0
        %3570 = vmatpush1.bf16.msra.mxu0 %v3567
        %3571 = vmatprep.subr.bf16.mxu0 0
        %3572 = vmatpush1.bf16.msra.mxu0 0
        %3573 = vmatprep.subr.bf16.mxu0 0
        %3574 = vmatpush1.bf16.msra.mxu0 0
        %3575 = vmatprep.subr.bf16.mxu0 0
        %3576 = vmatpush1.bf16.msra.mxu0 0
        %3577 = vmatprep.subr.bf16.mxu0 0
        %3578 = vmatpush1.bf16.msra.mxu0 0
        %3579 = vmatprep.subr.bf16.mxu0 0
        %3580 = vmatpush1.bf16.msra.mxu0 0
        %3581 = vmatprep.subr.bf16.mxu0 0
        %3582 = vmatpush1.bf16.msra.mxu0 0
        %3583 = vmatprep.subr.bf16.mxu0 0
        %3584 = vmatpush1.bf16.msra.mxu0 0
        %3585 = vmatprep.subr.bf16.mxu0 0
        %3586 = vmatpush1.bf16.msra.mxu0 0
        %3587 = vmatprep.subr.bf16.mxu0 0
        %3588 = vmatpush1.bf16.msra.mxu0 0
        %3589 = vmatprep.subr.bf16.mxu0 0
        %3590 = vmatpush1.bf16.msra.mxu0 0
        %3591 = vmatprep.subr.bf16.mxu0 0
        %3592 = vmatpush1.bf16.msra.mxu0 0
        %3593 = vmatprep.subr.bf16.mxu0 0
        %3594 = vmatpush1.bf16.msra.mxu0 0
        %3595 = vmatprep.subr.bf16.mxu0 0
        %3596 = vmatpush1.bf16.msra.mxu0 0
        %3597 = vmatprep.subr.bf16.mxu0 0
        %3598 = vmatpush1.bf16.msra.mxu0 0
        %3599 = vmatprep.subr.bf16.mxu0 0
        %3600 = vmatpush1.bf16.msra.mxu0 0
        %3601 = vmatprep.mubr.bf16.mxu0 0
        %3602 = vmatmul.mubr.bf16.gmra.mrb[0].mxu0 %v3543
        %v3603 = vpop.f32.mrb[0].mxu0
        %v3604 = vadd.f32 0.0, %v3603
        %v3605 = vpop.f32.mrb[0].mxu0
        %v3606 = vpop.f32.mrb[0].mxu0
        %v3607 = vadd.f32 0.0, %v3606
        %v3608 = vpop.f32.mrb[0].mxu0
        %3609 = vmatprep.mubr.bf16.mxu0 0
        %3610 = vmatmul.mubr.bf16.gmra.mrb[0].mxu0 %v3546
        %v3611 = vpop.f32.mrb[0].mxu0
        %v3612 = vadd.f32 0.0, %v3611
        %v3613 = vpop.f32.mrb[0].mxu0
        %v3614 = vpop.f32.mrb[0].mxu0
        %v3615 = vadd.f32 0.0, %v3614
        %v3616 = vpop.f32.mrb[0].mxu0
        %3617 = vmatprep.mubr.bf16.mxu0 0
        %3618 = vmatmul.mubr.bf16.gmra.mrb[0].mxu0 %v3549
        %v3619 = vpop.f32.mrb[0].mxu0
        %v3620 = vadd.f32 0.0, %v3619
        %v3621 = vpop.f32.mrb[0].mxu0
        %v3622 = vpop.f32.mrb[0].mxu0
        %v3623 = vadd.f32 0.0, %v3622
        %v3624 = vpop.f32.mrb[0].mxu0
        %3625 = vmatprep.mubr.bf16.mxu0 0
        %3626 = vmatmul.mubr.bf16.gmra.mrb[0].mxu0 %v3552
        %v3627 = vpop.f32.mrb[0].mxu0
        %v3628 = vadd.f32 0.0, %v3627
        %v3629 = vpop.f32.mrb[0].mxu0
        %v3630 = vpop.f32.mrb[0].mxu0
        %v3631 = vadd.f32 0.0, %v3630
        %v3632 = vpop.f32.mrb[0].mxu0
        %3633 = vmatprep.mubr.bf16.mxu0 0
        %3634 = vmatmul.mubr.bf16.gmra.mrb[0].mxu0 %v3555
        %v3635 = vpop.f32.mrb[0].mxu0
        %v3636 = vadd.f32 0.0, %v3635
        %v3637 = vpop.f32.mrb[0].mxu0
        %v3638 = vpop.f32.mrb[0].mxu0
        %v3639 = vadd.f32 0.0, %v3638
        %v3640 = vpop.f32.mrb[0].mxu0
        %3641 = vmatprep.mubr.bf16.mxu0 0
        %3642 = vmatmul.mubr.bf16.gmra.mrb[0].mxu0 %v3558
        %v3643 = vpop.f32.mrb[0].mxu0
        %v3644 = vadd.f32 0.0, %v3643
        %v3645 = vpop.f32.mrb[0].mxu0
        %v3646 = vpop.f32.mrb[0].mxu0
        %v3647 = vadd.f32 0.0, %v3646
        %v3648 = vpop.f32.mrb[0].mxu0
        %3649 = vmatprep.mubr.bf16.mxu0 0
        %3650 = vmatmul.mubr.bf16.gmra.mrb[0].mxu0 %v3561
        %v3651 = vpop.f32.mrb[0].mxu0
        %v3652 = vadd.f32 0.0, %v3651
        %v3653 = vpop.f32.mrb[0].mxu0
        %v3654 = vpop.f32.mrb[0].mxu0
        %v3655 = vadd.f32 0.0, %v3654
        %v3656 = vpop.f32.mrb[0].mxu0
        %3657 = vmatprep.mubr.bf16.mxu0 0
        %3658 = vmatmul.mubr.bf16.gmra.mrb[0].mxu0 %v3564
        %v3659 = vpop.f32.mrb[0].mxu0
        %v3660 = vadd.f32 0.0, %v3659
        %v3661 = vpop.f32.mrb[0].mxu0
        %v3662 = vpop.f32.mrb[0].mxu0
        %v3663 = vadd.f32 0.0, %v3662
        %v3664 = vpop.f32.mrb[0].mxu0
        %3665 = vdwg.mxu0
        %v3667 = vsel %vm1264, %v3469, 0
        %v3670 = vsel %vm1264, %v3472, 0
        %v3673 = vsel %vm1264, %v3475, 0
        %v3676 = vsel %vm1264, %v3478, 0
        %v3679 = vsel %vm1264, %v3481, 0
        %v3682 = vsel %vm1264, %v3484, 0
        %v3685 = vsel %vm1264, %v3487, 0
        %v3688 = vsel %vm1264, %v3490, 0
        %v3691 = vsel %vm1289, %v3539, 0
        %3693 = vmatprep.subr.bf16.mxu0 0
        %3694 = vmatpush1.bf16.msra.mxu0 %v3691
        %3695 = vmatprep.subr.bf16.mxu0 0
        %3696 = vmatpush1.bf16.msra.mxu0 0
        %3697 = vmatprep.subr.bf16.mxu0 0
        %3698 = vmatpush1.bf16.msra.mxu0 0
        %3699 = vmatprep.subr.bf16.mxu0 0
        %3700 = vmatpush1.bf16.msra.mxu0 0
        %3701 = vmatprep.subr.bf16.mxu0 0
        %3702 = vmatpush1.bf16.msra.mxu0 0
        %3703 = vmatprep.subr.bf16.mxu0 0
        %3704 = vmatpush1.bf16.msra.mxu0 0
        %3705 = vmatprep.subr.bf16.mxu0 0
        %3706 = vmatpush1.bf16.msra.mxu0 0
        %3707 = vmatprep.subr.bf16.mxu0 0
        %3708 = vmatpush1.bf16.msra.mxu0 0
        %3709 = vmatprep.subr.bf16.mxu0 0
        %3710 = vmatpush1.bf16.msra.mxu0 0
        %3711 = vmatprep.subr.bf16.mxu0 0
        %3712 = vmatpush1.bf16.msra.mxu0 0
        %3713 = vmatprep.subr.bf16.mxu0 0
        %3714 = vmatpush1.bf16.msra.mxu0 0
        %3715 = vmatprep.subr.bf16.mxu0 0
        %3716 = vmatpush1.bf16.msra.mxu0 0
        %3717 = vmatprep.subr.bf16.mxu0 0
        %3718 = vmatpush1.bf16.msra.mxu0 0
        %3719 = vmatprep.subr.bf16.mxu0 0
        %3720 = vmatpush1.bf16.msra.mxu0 0
        %3721 = vmatprep.subr.bf16.mxu0 0
        %3722 = vmatpush1.bf16.msra.mxu0 0
        %3723 = vmatprep.subr.bf16.mxu0 0
        %3724 = vmatpush1.bf16.msra.mxu0 0
        %3725 = vmatprep.mubr.bf16.mxu0 0
        %3726 = vmatmul.mubr.bf16.gmra.mrb[0].mxu0 %v3667
        %v3727 = vpop.f32.mrb[0].mxu0
        %v3728 = vadd.f32 %v3604, %v3727
        %v3729 = vpop.f32.mrb[0].mxu0
        %v3730 = vpop.f32.mrb[0].mxu0
        %v3731 = vadd.f32 %v3607, %v3730
        %v3732 = vpop.f32.mrb[0].mxu0
        %3733 = vmatprep.mubr.bf16.mxu0 0
        %3734 = vmatmul.mubr.bf16.gmra.mrb[0].mxu0 %v3670
        %v3735 = vpop.f32.mrb[0].mxu0
        %v3736 = vadd.f32 %v3612, %v3735
        %v3737 = vpop.f32.mrb[0].mxu0
        %v3738 = vpop.f32.mrb[0].mxu0
        %v3739 = vadd.f32 %v3615, %v3738
        %v3740 = vpop.f32.mrb[0].mxu0
        %3741 = vmatprep.mubr.bf16.mxu0 0
        %3742 = vmatmul.mubr.bf16.gmra.mrb[0].mxu0 %v3673
        %v3743 = vpop.f32.mrb[0].mxu0
        %v3744 = vadd.f32 %v3620, %v3743
        %v3745 = vpop.f32.mrb[0].mxu0
        %v3746 = vpop.f32.mrb[0].mxu0
        %v3747 = vadd.f32 %v3623, %v3746
        %v3748 = vpop.f32.mrb[0].mxu0
        %3749 = vmatprep.mubr.bf16.mxu0 0
        %3750 = vmatmul.mubr.bf16.gmra.mrb[0].mxu0 %v3676
        %v3751 = vpop.f32.mrb[0].mxu0
        %v3752 = vadd.f32 %v3628, %v3751
        %v3753 = vpop.f32.mrb[0].mxu0
        %v3754 = vpop.f32.mrb[0].mxu0
        %v3755 = vadd.f32 %v3631, %v3754
        %v3756 = vpop.f32.mrb[0].mxu0
        %3757 = vmatprep.mubr.bf16.mxu0 0
        %3758 = vmatmul.mubr.bf16.gmra.mrb[0].mxu0 %v3679
        %v3759 = vpop.f32.mrb[0].mxu0
        %v3760 = vadd.f32 %v3636, %v3759
        %v3761 = vpop.f32.mrb[0].mxu0
        %v3762 = vpop.f32.mrb[0].mxu0
        %v3763 = vadd.f32 %v3639, %v3762
        %v3764 = vpop.f32.mrb[0].mxu0
        %3765 = vmatprep.mubr.bf16.mxu0 0
        %3766 = vmatmul.mubr.bf16.gmra.mrb[0].mxu0 %v3682
        %v3767 = vpop.f32.mrb[0].mxu0
        %v3768 = vadd.f32 %v3644, %v3767
        %v3769 = vpop.f32.mrb[0].mxu0
        %v3770 = vpop.f32.mrb[0].mxu0
        %v3771 = vadd.f32 %v3647, %v3770
        %v3772 = vpop.f32.mrb[0].mxu0
        %3773 = vmatprep.mubr.bf16.mxu0 0
        %3774 = vmatmul.mubr.bf16.gmra.mrb[0].mxu0 %v3685
        %v3775 = vpop.f32.mrb[0].mxu0
        %v3776 = vadd.f32 %v3652, %v3775
        %v3777 = vpop.f32.mrb[0].mxu0
        %v3778 = vpop.f32.mrb[0].mxu0
        %v3779 = vadd.f32 %v3655, %v3778
        %v3780 = vpop.f32.mrb[0].mxu0
        %3781 = vmatprep.mubr.bf16.mxu0 0
        %3782 = vmatmul.mubr.bf16.gmra.mrb[0].mxu0 %v3688
        %v3783 = vpop.f32.mrb[0].mxu0
        %v3784 = vadd.f32 %v3660, %v3783
        %v3785 = vpop.f32.mrb[0].mxu0
        %v3786 = vpop.f32.mrb[0].mxu0
        %v3787 = vadd.f32 %v3663, %v3786
        %v3788 = vpop.f32.mrb[0].mxu0
        %3789 = vdwg.mxu0
        %s3790 = scalar_lea.vmem %s6, 12
        %v3791 = vld [vmem:[%s3790] sm:$0x3]
        %v3793 = vsel %vm1264, %v3517, 0
        %v3796 = vsel %vm1264, %v3520, 0
        %v3799 = vsel %vm1264, %v3523, 0
        %v3802 = vsel %vm1264, %v3526, 0
        %v3805 = vsel %vm1264, %v3529, 0
        %v3808 = vsel %vm1264, %v3532, 0
        %v3811 = vsel %vm1264, %v3535, 0
        %v3814 = vsel %vm1264, %v3538, 0
        %v3817 = vsel %vm1289, %v3791, 0
        %3819 = vmatprep.subr.bf16.mxu0 0
        %3820 = vmatpush1.bf16.msra.mxu0 %v3817
        %3821 = vmatprep.subr.bf16.mxu0 0
        %3822 = vmatpush1.bf16.msra.mxu0 0
        %3823 = vmatprep.subr.bf16.mxu0 0
        %3824 = vmatpush1.bf16.msra.mxu0 0
        %3825 = vmatprep.subr.bf16.mxu0 0
        %3826 = vmatpush1.bf16.msra.mxu0 0
        %3827 = vmatprep.subr.bf16.mxu0 0
        %3828 = vmatpush1.bf16.msra.mxu0 0
        %3829 = vmatprep.subr.bf16.mxu0 0
        %3830 = vmatpush1.bf16.msra.mxu0 0
        %3831 = vmatprep.subr.bf16.mxu0 0
        %3832 = vmatpush1.bf16.msra.mxu0 0
        %3833 = vmatprep.subr.bf16.mxu0 0
        %3834 = vmatpush1.bf16.msra.mxu0 0
        %3835 = vmatprep.subr.bf16.mxu0 0
        %3836 = vmatpush1.bf16.msra.mxu0 0
        %3837 = vmatprep.subr.bf16.mxu0 0
        %3838 = vmatpush1.bf16.msra.mxu0 0
        %3839 = vmatprep.subr.bf16.mxu0 0
        %3840 = vmatpush1.bf16.msra.mxu0 0
        %3841 = vmatprep.subr.bf16.mxu0 0
        %3842 = vmatpush1.bf16.msra.mxu0 0
        %3843 = vmatprep.subr.bf16.mxu0 0
        %3844 = vmatpush1.bf16.msra.mxu0 0
        %3845 = vmatprep.subr.bf16.mxu0 0
        %3846 = vmatpush1.bf16.msra.mxu0 0
        %3847 = vmatprep.subr.bf16.mxu0 0
        %3848 = vmatpush1.bf16.msra.mxu0 0
        %3849 = vmatprep.subr.bf16.mxu0 0
        %3850 = vmatpush1.bf16.msra.mxu0 0
        %3851 = vmatprep.mubr.bf16.mxu0 0
        %3852 = vmatmul.mubr.bf16.gmra.mrb[0].mxu0 %v3793
        %v3853 = vpop.f32.mrb[0].mxu0
        %v3854 = vadd.f32 0.0, %v3853
        %v3855 = vpop.f32.mrb[0].mxu0
        %v3856 = vpop.f32.mrb[0].mxu0
        %v3857 = vadd.f32 0.0, %v3856
        %v3858 = vpop.f32.mrb[0].mxu0
        %3859 = vmatprep.mubr.bf16.mxu0 0
        %3860 = vmatmul.mubr.bf16.gmra.mrb[0].mxu0 %v3796
        %v3861 = vpop.f32.mrb[0].mxu0
        %v3862 = vadd.f32 0.0, %v3861
        %v3863 = vpop.f32.mrb[0].mxu0
        %v3864 = vpop.f32.mrb[0].mxu0
        %v3865 = vadd.f32 0.0, %v3864
        %v3866 = vpop.f32.mrb[0].mxu0
        %3867 = vmatprep.mubr.bf16.mxu0 0
        %3868 = vmatmul.mubr.bf16.gmra.mrb[0].mxu0 %v3799
        %v3869 = vpop.f32.mrb[0].mxu0
        %v3870 = vadd.f32 0.0, %v3869
        %v3871 = vpop.f32.mrb[0].mxu0
        %v3872 = vpop.f32.mrb[0].mxu0
        %v3873 = vadd.f32 0.0, %v3872
        %v3874 = vpop.f32.mrb[0].mxu0
        %3875 = vmatprep.mubr.bf16.mxu0 0
        %3876 = vmatmul.mubr.bf16.gmra.mrb[0].mxu0 %v3802
        %v3877 = vpop.f32.mrb[0].mxu0
        %v3878 = vadd.f32 0.0, %v3877
        %v3879 = vpop.f32.mrb[0].mxu0
        %v3880 = vpop.f32.mrb[0].mxu0
        %v3881 = vadd.f32 0.0, %v3880
        %v3882 = vpop.f32.mrb[0].mxu0
        %3883 = vmatprep.mubr.bf16.mxu0 0
        %3884 = vmatmul.mubr.bf16.gmra.mrb[0].mxu0 %v3805
        %v3885 = vpop.f32.mrb[0].mxu0
        %v3886 = vadd.f32 0.0, %v3885
        %v3887 = vpop.f32.mrb[0].mxu0
        %v3888 = vpop.f32.mrb[0].mxu0
        %v3889 = vadd.f32 0.0, %v3888
        %v3890 = vpop.f32.mrb[0].mxu0
        %3891 = vmatprep.mubr.bf16.mxu0 0
        %3892 = vmatmul.mubr.bf16.gmra.mrb[0].mxu0 %v3808
        %v3893 = vpop.f32.mrb[0].mxu0
        %v3894 = vadd.f32 0.0, %v3893
        %v3895 = vpop.f32.mrb[0].mxu0
        %v3896 = vpop.f32.mrb[0].mxu0
        %v3897 = vadd.f32 0.0, %v3896
        %v3898 = vpop.f32.mrb[0].mxu0
        %3899 = vmatprep.mubr.bf16.mxu0 0
        %3900 = vmatmul.mubr.bf16.gmra.mrb[0].mxu0 %v3811
        %v3901 = vpop.f32.mrb[0].mxu0
        %v3902 = vadd.f32 0.0, %v3901
        %v3903 = vpop.f32.mrb[0].mxu0
        %v3904 = vpop.f32.mrb[0].mxu0
        %v3905 = vadd.f32 0.0, %v3904
        %v3906 = vpop.f32.mrb[0].mxu0
        %3907 = vmatprep.mubr.bf16.mxu0 0
        %3908 = vmatmul.mubr.bf16.gmra.mrb[0].mxu0 %v3814
        %v3909 = vpop.f32.mrb[0].mxu0
        %v3910 = vadd.f32 0.0, %v3909
        %v3911 = vpop.f32.mrb[0].mxu0
        %v3912 = vpop.f32.mrb[0].mxu0
        %v3913 = vadd.f32 0.0, %v3912
        %v3914 = vpop.f32.mrb[0].mxu0
        %3915 = vdwg.mxu0
        %v3916 = vadd.f32 %v3728, %v3854
        %v3917 = vadd.f32 %v3731, %v3857
        %v3918 = vadd.f32 %v3736, %v3862
        %v3919 = vadd.f32 %v3739, %v3865
        %v3920 = vadd.f32 %v3744, %v3870
        %v3921 = vadd.f32 %v3747, %v3873
        %v3922 = vadd.f32 %v3752, %v3878
        %v3923 = vadd.f32 %v3755, %v3881
        %v3924 = vadd.f32 %v3760, %v3886
        %v3925 = vadd.f32 %v3763, %v3889
        %v3926 = vadd.f32 %v3768, %v3894
        %v3927 = vadd.f32 %v3771, %v3897
        %v3928 = vadd.f32 %v3776, %v3902
        %v3929 = vadd.f32 %v3779, %v3905
        %v3930 = vadd.f32 %v3784, %v3910
        %v3931 = vadd.f32 %v3787, %v3913
        %v3932 = vld [vmem:[#allocation4] sm:$0xff]
        %v3933 = vld [vmem:[#allocation4 + $0x8] sm:$0xff]
        %v3934 = vld [vmem:[#allocation4 + $0x10] sm:$0xff]
        %v3935 = vld [vmem:[#allocation4 + $0x18] sm:$0xff]
        %v3936 = vld [vmem:[#allocation4 + $0x20] sm:$0xff]
        %v3937 = vld [vmem:[#allocation4 + $0x28] sm:$0xff]
        %v3938 = vld [vmem:[#allocation4 + $0x30] sm:$0xff]
        %v3939 = vld [vmem:[#allocation4 + $0x38] sm:$0xff]
        %v3940 = vld [vmem:[#allocation4 + $0x40] sm:$0xff]
        %v3941 = vld [vmem:[#allocation4 + $0x48] sm:$0xff]
        %v3942 = vld [vmem:[#allocation4 + $0x50] sm:$0xff]
        %v3943 = vld [vmem:[#allocation4 + $0x58] sm:$0xff]
        %v3944 = vld [vmem:[#allocation4 + $0x60] sm:$0xff]
        %v3945 = vld [vmem:[#allocation4 + $0x68] sm:$0xff]
        %v3946 = vld [vmem:[#allocation4 + $0x70] sm:$0xff]
        %v3947 = vld [vmem:[#allocation4 + $0x78] sm:$0xff]
        %v3948 = vadd.f32 %v3932, %v3916
        %v3949 = vadd.f32 %v3933, %v3917
        %v3950 = vadd.f32 %v3934, %v3918
        %v3951 = vadd.f32 %v3935, %v3919
        %v3952 = vadd.f32 %v3936, %v3920
        %v3953 = vadd.f32 %v3937, %v3921
        %v3954 = vadd.f32 %v3938, %v3922
        %v3955 = vadd.f32 %v3939, %v3923
        %v3956 = vadd.f32 %v3940, %v3924
        %v3957 = vadd.f32 %v3941, %v3925
        %v3958 = vadd.f32 %v3942, %v3926
        %v3959 = vadd.f32 %v3943, %v3927
        %v3960 = vadd.f32 %v3944, %v3928
        %v3961 = vadd.f32 %v3945, %v3929
        %v3962 = vadd.f32 %v3946, %v3930
        %v3963 = vadd.f32 %v3947, %v3931
        %3964 = vst.msk [vmem:[#allocation4] sm:$0xff] %vm1583, %v3948
        %3965 = vst.msk [vmem:[#allocation4 + $0x8] sm:$0xff] %vm1583, %v3949
        %3966 = vst.msk [vmem:[#allocation4 + $0x10] sm:$0xff] %vm1583, %v3950
        %3967 = vst.msk [vmem:[#allocation4 + $0x18] sm:$0xff] %vm1583, %v3951
        %3968 = vst.msk [vmem:[#allocation4 + $0x20] sm:$0xff] %vm1583, %v3952
        %3969 = vst.msk [vmem:[#allocation4 + $0x28] sm:$0xff] %vm1583, %v3953
        %3970 = vst.msk [vmem:[#allocation4 + $0x30] sm:$0xff] %vm1583, %v3954
        %3971 = vst.msk [vmem:[#allocation4 + $0x38] sm:$0xff] %vm1583, %v3955
        %3972 = vst.msk [vmem:[#allocation4 + $0x40] sm:$0xff] %vm1583, %v3956
        %3973 = vst.msk [vmem:[#allocation4 + $0x48] sm:$0xff] %vm1583, %v3957
        %3974 = vst.msk [vmem:[#allocation4 + $0x50] sm:$0xff] %vm1583, %v3958
        %3975 = vst.msk [vmem:[#allocation4 + $0x58] sm:$0xff] %vm1583, %v3959
        %3976 = vst.msk [vmem:[#allocation4 + $0x60] sm:$0xff] %vm1583, %v3960
        %3977 = vst.msk [vmem:[#allocation4 + $0x68] sm:$0xff] %vm1583, %v3961
        %3978 = vst.msk [vmem:[#allocation4 + $0x70] sm:$0xff] %vm1583, %v3962
        %3979 = vst.msk [vmem:[#allocation4 + $0x78] sm:$0xff] %vm1583, %v3963
        %v3980 = vld [vmem:[%s3369 + $0x8] sm:$0xf0]
        %v3981 = vld [vmem:[%s3369 + $0x10] sm:$0xf]
        %v3982 = vld [vmem:[%s3369 + $0x28] sm:$0xf0]
        %v3983 = vld [vmem:[%s3369 + $0x30] sm:$0xf]
        %v3984 = vld [vmem:[%s3369 + $0x48] sm:$0xf0]
        %v3985 = vld [vmem:[%s3369 + $0x50] sm:$0xf]
        %v3986 = vld [vmem:[%s3369 + $0x68] sm:$0xf0]
        %v3987 = vld [vmem:[%s3369 + $0x70] sm:$0xf]
        %v3988 = vld [vmem:[%s3369 + $0x88] sm:$0xf0]
        %v3989 = vld [vmem:[%s3369 + $0x90] sm:$0xf]
        %v3990 = vld [vmem:[%s3369 + $0xa8] sm:$0xf0]
        %v3991 = vld [vmem:[%s3369 + $0xb0] sm:$0xf]
        %v3992 = vld [vmem:[%s3369 + $0xc8] sm:$0xf0]
        %v3993 = vld [vmem:[%s3369 + $0xd0] sm:$0xf]
        %v3994 = vld [vmem:[%s3369 + $0xe8] sm:$0xf0]
        %v3995 = vld [vmem:[%s3369 + $0xf0] sm:$0xf]
        %v3996 = vld [vmem:[%s3369 + $0x308] sm:$0xf0]
        %v3997 = vld [vmem:[%s3369 + $0x310] sm:$0xf]
        %v3998 = vld [vmem:[%s3369 + $0x328] sm:$0xf0]
        %v3999 = vld [vmem:[%s3369 + $0x330] sm:$0xf]
        %v4000 = vld [vmem:[%s3369 + $0x348] sm:$0xf0]
        %v4001 = vld [vmem:[%s3369 + $0x350] sm:$0xf]
        %v4002 = vld [vmem:[%s3369 + $0x368] sm:$0xf0]
        %v4003 = vld [vmem:[%s3369 + $0x370] sm:$0xf]
        %v4004 = vld [vmem:[%s3369 + $0x388] sm:$0xf0]
        %v4005 = vld [vmem:[%s3369 + $0x390] sm:$0xf]
        %v4006 = vld [vmem:[%s3369 + $0x3a8] sm:$0xf0]
        %v4007 = vld [vmem:[%s3369 + $0x3b0] sm:$0xf]
        %v4008 = vld [vmem:[%s3369 + $0x3c8] sm:$0xf0]
        %v4009 = vld [vmem:[%s3369 + $0x3d0] sm:$0xf]
        %v4010 = vld [vmem:[%s3369 + $0x3e8] sm:$0xf0]
        %v4011 = vld [vmem:[%s3369 + $0x3f0] sm:$0xf]
        %v4044 = vrot.slane %v3980, 4
        %v4045 = vrot.slane %v3981, 4
        %v4046 = vsel %vm1238, %v4044, %v4045
        %v4047 = vrot.slane %v3982, 4
        %v4048 = vrot.slane %v3983, 4
        %v4049 = vsel %vm1238, %v4047, %v4048
        %v4050 = vrot.slane %v3984, 4
        %v4051 = vrot.slane %v3985, 4
        %v4052 = vsel %vm1238, %v4050, %v4051
        %v4053 = vrot.slane %v3986, 4
        %v4054 = vrot.slane %v3987, 4
        %v4055 = vsel %vm1238, %v4053, %v4054
        %v4056 = vrot.slane %v3988, 4
        %v4057 = vrot.slane %v3989, 4
        %v4058 = vsel %vm1238, %v4056, %v4057
        %v4059 = vrot.slane %v3990, 4
        %v4060 = vrot.slane %v3991, 4
        %v4061 = vsel %vm1238, %v4059, %v4060
        %v4062 = vrot.slane %v3992, 4
        %v4063 = vrot.slane %v3993, 4
        %v4064 = vsel %vm1238, %v4062, %v4063
        %v4065 = vrot.slane %v3994, 4
        %v4066 = vrot.slane %v3995, 4
        %v4067 = vsel %vm1238, %v4065, %v4066
        %v4068 = vrot.slane %v3996, 4
        %v4069 = vrot.slane %v3997, 4
        %v4070 = vsel %vm1238, %v4068, %v4069
        %v4071 = vrot.slane %v3998, 4
        %v4072 = vrot.slane %v3999, 4
        %v4073 = vsel %vm1238, %v4071, %v4072
        %v4074 = vrot.slane %v4000, 4
        %v4075 = vrot.slane %v4001, 4
        %v4076 = vsel %vm1238, %v4074, %v4075
        %v4077 = vrot.slane %v4002, 4
        %v4078 = vrot.slane %v4003, 4
        %v4079 = vsel %vm1238, %v4077, %v4078
        %v4080 = vrot.slane %v4004, 4
        %v4081 = vrot.slane %v4005, 4
        %v4082 = vsel %vm1238, %v4080, %v4081
        %v4083 = vrot.slane %v4006, 4
        %v4084 = vrot.slane %v4007, 4
        %v4085 = vsel %vm1238, %v4083, %v4084
        %v4086 = vrot.slane %v4008, 4
        %v4087 = vrot.slane %v4009, 4
        %v4088 = vsel %vm1238, %v4086, %v4087
        %v4089 = vrot.slane %v4010, 4
        %v4090 = vrot.slane %v4011, 4
        %v4091 = vsel %vm1238, %v4089, %v4090
        %s4092 = scalar_lea.vmem %s6, 2
        %v4093 = vld [vmem:[%s4092] sm:$0x3]
        %s4094 = scalar_lea.vmem %s6, 14
        %v4095 = vld [vmem:[%s4094] sm:$0x3]
        %v4097 = vsel %vm1264, %v4070, 0
        %v4100 = vsel %vm1264, %v4073, 0
        %v4103 = vsel %vm1264, %v4076, 0
        %v4106 = vsel %vm1264, %v4079, 0
        %v4109 = vsel %vm1264, %v4082, 0
        %v4112 = vsel %vm1264, %v4085, 0
        %v4115 = vsel %vm1264, %v4088, 0
        %v4118 = vsel %vm1264, %v4091, 0
        %v4121 = vsel %vm1289, %v4095, 0
        %4123 = vmatprep.subr.bf16.mxu0 0
        %4124 = vmatpush1.bf16.msra.mxu0 %v4121
        %4125 = vmatprep.subr.bf16.mxu0 0
        %4126 = vmatpush1.bf16.msra.mxu0 0
        %4127 = vmatprep.subr.bf16.mxu0 0
        %4128 = vmatpush1.bf16.msra.mxu0 0
        %4129 = vmatprep.subr.bf16.mxu0 0
        %4130 = vmatpush1.bf16.msra.mxu0 0
        %4131 = vmatprep.subr.bf16.mxu0 0
        %4132 = vmatpush1.bf16.msra.mxu0 0
        %4133 = vmatprep.subr.bf16.mxu0 0
        %4134 = vmatpush1.bf16.msra.mxu0 0
        %4135 = vmatprep.subr.bf16.mxu0 0
        %4136 = vmatpush1.bf16.msra.mxu0 0
        %4137 = vmatprep.subr.bf16.mxu0 0
        %4138 = vmatpush1.bf16.msra.mxu0 0
        %4139 = vmatprep.subr.bf16.mxu0 0
        %4140 = vmatpush1.bf16.msra.mxu0 0
        %4141 = vmatprep.subr.bf16.mxu0 0
        %4142 = vmatpush1.bf16.msra.mxu0 0
        %4143 = vmatprep.subr.bf16.mxu0 0
        %4144 = vmatpush1.bf16.msra.mxu0 0
        %4145 = vmatprep.subr.bf16.mxu0 0
        %4146 = vmatpush1.bf16.msra.mxu0 0
        %4147 = vmatprep.subr.bf16.mxu0 0
        %4148 = vmatpush1.bf16.msra.mxu0 0
        %4149 = vmatprep.subr.bf16.mxu0 0
        %4150 = vmatpush1.bf16.msra.mxu0 0
        %4151 = vmatprep.subr.bf16.mxu0 0
        %4152 = vmatpush1.bf16.msra.mxu0 0
        %4153 = vmatprep.subr.bf16.mxu0 0
        %4154 = vmatpush1.bf16.msra.mxu0 0
        %4155 = vmatprep.mubr.bf16.mxu0 0
        %4156 = vmatmul.mubr.bf16.gmra.mrb[0].mxu0 %v4097
        %v4157 = vpop.f32.mrb[0].mxu0
        %v4158 = vadd.f32 0.0, %v4157
        %v4159 = vpop.f32.mrb[0].mxu0
        %v4160 = vpop.f32.mrb[0].mxu0
        %v4161 = vadd.f32 0.0, %v4160
        %v4162 = vpop.f32.mrb[0].mxu0
        %4163 = vmatprep.mubr.bf16.mxu0 0
        %4164 = vmatmul.mubr.bf16.gmra.mrb[0].mxu0 %v4100
        %v4165 = vpop.f32.mrb[0].mxu0
        %v4166 = vadd.f32 0.0, %v4165
        %v4167 = vpop.f32.mrb[0].mxu0
        %v4168 = vpop.f32.mrb[0].mxu0
        %v4169 = vadd.f32 0.0, %v4168
        %v4170 = vpop.f32.mrb[0].mxu0
        %4171 = vmatprep.mubr.bf16.mxu0 0
        %4172 = vmatmul.mubr.bf16.gmra.mrb[0].mxu0 %v4103
        %v4173 = vpop.f32.mrb[0].mxu0
        %v4174 = vadd.f32 0.0, %v4173
        %v4175 = vpop.f32.mrb[0].mxu0
        %v4176 = vpop.f32.mrb[0].mxu0
        %v4177 = vadd.f32 0.0, %v4176
        %v4178 = vpop.f32.mrb[0].mxu0
        %4179 = vmatprep.mubr.bf16.mxu0 0
        %4180 = vmatmul.mubr.bf16.gmra.mrb[0].mxu0 %v4106
        %v4181 = vpop.f32.mrb[0].mxu0
        %v4182 = vadd.f32 0.0, %v4181
        %v4183 = vpop.f32.mrb[0].mxu0
        %v4184 = vpop.f32.mrb[0].mxu0
        %v4185 = vadd.f32 0.0, %v4184
        %v4186 = vpop.f32.mrb[0].mxu0
        %4187 = vmatprep.mubr.bf16.mxu0 0
        %4188 = vmatmul.mubr.bf16.gmra.mrb[0].mxu0 %v4109
        %v4189 = vpop.f32.mrb[0].mxu0
        %v4190 = vadd.f32 0.0, %v4189
        %v4191 = vpop.f32.mrb[0].mxu0
        %v4192 = vpop.f32.mrb[0].mxu0
        %v4193 = vadd.f32 0.0, %v4192
        %v4194 = vpop.f32.mrb[0].mxu0
        %4195 = vmatprep.mubr.bf16.mxu0 0
        %4196 = vmatmul.mubr.bf16.gmra.mrb[0].mxu0 %v4112
        %v4197 = vpop.f32.mrb[0].mxu0
        %v4198 = vadd.f32 0.0, %v4197
        %v4199 = vpop.f32.mrb[0].mxu0
        %v4200 = vpop.f32.mrb[0].mxu0
        %v4201 = vadd.f32 0.0, %v4200
        %v4202 = vpop.f32.mrb[0].mxu0
        %4203 = vmatprep.mubr.bf16.mxu0 0
        %4204 = vmatmul.mubr.bf16.gmra.mrb[0].mxu0 %v4115
        %v4205 = vpop.f32.mrb[0].mxu0
        %v4206 = vadd.f32 0.0, %v4205
        %v4207 = vpop.f32.mrb[0].mxu0
        %v4208 = vpop.f32.mrb[0].mxu0
        %v4209 = vadd.f32 0.0, %v4208
        %v4210 = vpop.f32.mrb[0].mxu0
        %4211 = vmatprep.mubr.bf16.mxu0 0
        %4212 = vmatmul.mubr.bf16.gmra.mrb[0].mxu0 %v4118
        %v4213 = vpop.f32.mrb[0].mxu0
        %v4214 = vadd.f32 0.0, %v4213
        %v4215 = vpop.f32.mrb[0].mxu0
        %v4216 = vpop.f32.mrb[0].mxu0
        %v4217 = vadd.f32 0.0, %v4216
        %v4218 = vpop.f32.mrb[0].mxu0
        %4219 = vdwg.mxu0
        %v4221 = vsel %vm1264, %v4046, 0
        %v4224 = vsel %vm1264, %v4049, 0
        %v4227 = vsel %vm1264, %v4052, 0
        %v4230 = vsel %vm1264, %v4055, 0
        %v4233 = vsel %vm1264, %v4058, 0
        %v4236 = vsel %vm1264, %v4061, 0
        %v4239 = vsel %vm1264, %v4064, 0
        %v4242 = vsel %vm1264, %v4067, 0
        %v4245 = vsel %vm1289, %v4093, 0
        %4247 = vmatprep.subr.bf16.mxu0 0
        %4248 = vmatpush1.bf16.msra.mxu0 %v4245
        %4249 = vmatprep.subr.bf16.mxu0 0
        %4250 = vmatpush1.bf16.msra.mxu0 0
        %4251 = vmatprep.subr.bf16.mxu0 0
        %4252 = vmatpush1.bf16.msra.mxu0 0
        %4253 = vmatprep.subr.bf16.mxu0 0
        %4254 = vmatpush1.bf16.msra.mxu0 0
        %4255 = vmatprep.subr.bf16.mxu0 0
        %4256 = vmatpush1.bf16.msra.mxu0 0
        %4257 = vmatprep.subr.bf16.mxu0 0
        %4258 = vmatpush1.bf16.msra.mxu0 0
        %4259 = vmatprep.subr.bf16.mxu0 0
        %4260 = vmatpush1.bf16.msra.mxu0 0
        %4261 = vmatprep.subr.bf16.mxu0 0
        %4262 = vmatpush1.bf16.msra.mxu0 0
        %4263 = vmatprep.subr.bf16.mxu0 0
        %4264 = vmatpush1.bf16.msra.mxu0 0
        %4265 = vmatprep.subr.bf16.mxu0 0
        %4266 = vmatpush1.bf16.msra.mxu0 0
        %4267 = vmatprep.subr.bf16.mxu0 0
        %4268 = vmatpush1.bf16.msra.mxu0 0
        %4269 = vmatprep.subr.bf16.mxu0 0
        %4270 = vmatpush1.bf16.msra.mxu0 0
        %4271 = vmatprep.subr.bf16.mxu0 0
        %4272 = vmatpush1.bf16.msra.mxu0 0
        %4273 = vmatprep.subr.bf16.mxu0 0
        %4274 = vmatpush1.bf16.msra.mxu0 0
        %4275 = vmatprep.subr.bf16.mxu0 0
        %4276 = vmatpush1.bf16.msra.mxu0 0
        %4277 = vmatprep.subr.bf16.mxu0 0
        %4278 = vmatpush1.bf16.msra.mxu0 0
        %4279 = vmatprep.mubr.bf16.mxu0 0
        %4280 = vmatmul.mubr.bf16.gmra.mrb[0].mxu0 %v4221
        %v4281 = vpop.f32.mrb[0].mxu0
        %v4282 = vadd.f32 %v4158, %v4281
        %v4283 = vpop.f32.mrb[0].mxu0
        %v4284 = vpop.f32.mrb[0].mxu0
        %v4285 = vadd.f32 %v4161, %v4284
        %v4286 = vpop.f32.mrb[0].mxu0
        %4287 = vmatprep.mubr.bf16.mxu0 0
        %4288 = vmatmul.mubr.bf16.gmra.mrb[0].mxu0 %v4224
        %v4289 = vpop.f32.mrb[0].mxu0
        %v4290 = vadd.f32 %v4166, %v4289
        %v4291 = vpop.f32.mrb[0].mxu0
        %v4292 = vpop.f32.mrb[0].mxu0
        %v4293 = vadd.f32 %v4169, %v4292
        %v4294 = vpop.f32.mrb[0].mxu0
        %4295 = vmatprep.mubr.bf16.mxu0 0
        %4296 = vmatmul.mubr.bf16.gmra.mrb[0].mxu0 %v4227
        %v4297 = vpop.f32.mrb[0].mxu0
        %v4298 = vadd.f32 %v4174, %v4297
        %v4299 = vpop.f32.mrb[0].mxu0
        %v4300 = vpop.f32.mrb[0].mxu0
        %v4301 = vadd.f32 %v4177, %v4300
        %v4302 = vpop.f32.mrb[0].mxu0
        %4303 = vmatprep.mubr.bf16.mxu0 0
        %4304 = vmatmul.mubr.bf16.gmra.mrb[0].mxu0 %v4230
        %v4305 = vpop.f32.mrb[0].mxu0
        %v4306 = vadd.f32 %v4182, %v4305
        %v4307 = vpop.f32.mrb[0].mxu0
        %v4308 = vpop.f32.mrb[0].mxu0
        %v4309 = vadd.f32 %v4185, %v4308
        %v4310 = vpop.f32.mrb[0].mxu0
        %4311 = vmatprep.mubr.bf16.mxu0 0
        %4312 = vmatmul.mubr.bf16.gmra.mrb[0].mxu0 %v4233
        %v4313 = vpop.f32.mrb[0].mxu0
        %v4314 = vadd.f32 %v4190, %v4313
        %v4315 = vpop.f32.mrb[0].mxu0
        %v4316 = vpop.f32.mrb[0].mxu0
        %v4317 = vadd.f32 %v4193, %v4316
        %v4318 = vpop.f32.mrb[0].mxu0
        %4319 = vmatprep.mubr.bf16.mxu0 0
        %4320 = vmatmul.mubr.bf16.gmra.mrb[0].mxu0 %v4236
        %v4321 = vpop.f32.mrb[0].mxu0
        %v4322 = vadd.f32 %v4198, %v4321
        %v4323 = vpop.f32.mrb[0].mxu0
        %v4324 = vpop.f32.mrb[0].mxu0
        %v4325 = vadd.f32 %v4201, %v4324
        %v4326 = vpop.f32.mrb[0].mxu0
        %4327 = vmatprep.mubr.bf16.mxu0 0
        %4328 = vmatmul.mubr.bf16.gmra.mrb[0].mxu0 %v4239
        %v4329 = vpop.f32.mrb[0].mxu0
        %v4330 = vadd.f32 %v4206, %v4329
        %v4331 = vpop.f32.mrb[0].mxu0
        %v4332 = vpop.f32.mrb[0].mxu0
        %v4333 = vadd.f32 %v4209, %v4332
        %v4334 = vpop.f32.mrb[0].mxu0
        %4335 = vmatprep.mubr.bf16.mxu0 0
        %4336 = vmatmul.mubr.bf16.gmra.mrb[0].mxu0 %v4242
        %v4337 = vpop.f32.mrb[0].mxu0
        %v4338 = vadd.f32 %v4214, %v4337
        %v4339 = vpop.f32.mrb[0].mxu0
        %v4340 = vpop.f32.mrb[0].mxu0
        %v4341 = vadd.f32 %v4217, %v4340
        %v4342 = vpop.f32.mrb[0].mxu0
        %4343 = vdwg.mxu0
        %v4344 = vld [vmem:[#allocation4] sm:$0xff]
        %v4345 = vld [vmem:[#allocation4 + $0x8] sm:$0xff]
        %v4346 = vld [vmem:[#allocation4 + $0x10] sm:$0xff]
        %v4347 = vld [vmem:[#allocation4 + $0x18] sm:$0xff]
        %v4348 = vld [vmem:[#allocation4 + $0x20] sm:$0xff]
        %v4349 = vld [vmem:[#allocation4 + $0x28] sm:$0xff]
        %v4350 = vld [vmem:[#allocation4 + $0x30] sm:$0xff]
        %v4351 = vld [vmem:[#allocation4 + $0x38] sm:$0xff]
        %v4352 = vld [vmem:[#allocation4 + $0x40] sm:$0xff]
        %v4353 = vld [vmem:[#allocation4 + $0x48] sm:$0xff]
        %v4354 = vld [vmem:[#allocation4 + $0x50] sm:$0xff]
        %v4355 = vld [vmem:[#allocation4 + $0x58] sm:$0xff]
        %v4356 = vld [vmem:[#allocation4 + $0x60] sm:$0xff]
        %v4357 = vld [vmem:[#allocation4 + $0x68] sm:$0xff]
        %v4358 = vld [vmem:[#allocation4 + $0x70] sm:$0xff]
        %v4359 = vld [vmem:[#allocation4 + $0x78] sm:$0xff]
        %v4360 = vadd.f32 %v4344, %v4282
        %v4361 = vadd.f32 %v4345, %v4285
        %v4362 = vadd.f32 %v4346, %v4290
        %v4363 = vadd.f32 %v4347, %v4293
        %v4364 = vadd.f32 %v4348, %v4298
        %v4365 = vadd.f32 %v4349, %v4301
        %v4366 = vadd.f32 %v4350, %v4306
        %v4367 = vadd.f32 %v4351, %v4309
        %v4368 = vadd.f32 %v4352, %v4314
        %v4369 = vadd.f32 %v4353, %v4317
        %v4370 = vadd.f32 %v4354, %v4322
        %v4371 = vadd.f32 %v4355, %v4325
        %v4372 = vadd.f32 %v4356, %v4330
        %v4373 = vadd.f32 %v4357, %v4333
        %v4374 = vadd.f32 %v4358, %v4338
        %v4375 = vadd.f32 %v4359, %v4341
        %4376 = vst.msk [vmem:[#allocation4] sm:$0xff] %vm1583, %v4360
        %4377 = vst.msk [vmem:[#allocation4 + $0x8] sm:$0xff] %vm1583, %v4361
        %4378 = vst.msk [vmem:[#allocation4 + $0x10] sm:$0xff] %vm1583, %v4362
        %4379 = vst.msk [vmem:[#allocation4 + $0x18] sm:$0xff] %vm1583, %v4363
        %4380 = vst.msk [vmem:[#allocation4 + $0x20] sm:$0xff] %vm1583, %v4364
        %4381 = vst.msk [vmem:[#allocation4 + $0x28] sm:$0xff] %vm1583, %v4365
        %4382 = vst.msk [vmem:[#allocation4 + $0x30] sm:$0xff] %vm1583, %v4366
        %4383 = vst.msk [vmem:[#allocation4 + $0x38] sm:$0xff] %vm1583, %v4367
        %4384 = vst.msk [vmem:[#allocation4 + $0x40] sm:$0xff] %vm1583, %v4368
        %4385 = vst.msk [vmem:[#allocation4 + $0x48] sm:$0xff] %vm1583, %v4369
        %4386 = vst.msk [vmem:[#allocation4 + $0x50] sm:$0xff] %vm1583, %v4370
        %4387 = vst.msk [vmem:[#allocation4 + $0x58] sm:$0xff] %vm1583, %v4371
        %4388 = vst.msk [vmem:[#allocation4 + $0x60] sm:$0xff] %vm1583, %v4372
        %4389 = vst.msk [vmem:[#allocation4 + $0x68] sm:$0xff] %vm1583, %v4373
        %4390 = vst.msk [vmem:[#allocation4 + $0x70] sm:$0xff] %vm1583, %v4374
        %4391 = vst.msk [vmem:[#allocation4 + $0x78] sm:$0xff] %vm1583, %v4375
        %v4392 = vld [vmem:[%s3369 + $0x10] sm:$0xfc]
        %v4393 = vld [vmem:[%s3369 + $0x18] sm:$0x3]
        %v4394 = vld [vmem:[%s3369 + $0x30] sm:$0xfc]
        %v4395 = vld [vmem:[%s3369 + $0x38] sm:$0x3]
        %v4396 = vld [vmem:[%s3369 + $0x50] sm:$0xfc]
        %v4397 = vld [vmem:[%s3369 + $0x58] sm:$0x3]
        %v4398 = vld [vmem:[%s3369 + $0x70] sm:$0xfc]
        %v4399 = vld [vmem:[%s3369 + $0x78] sm:$0x3]
        %v4400 = vld [vmem:[%s3369 + $0x90] sm:$0xfc]
        %v4401 = vld [vmem:[%s3369 + $0x98] sm:$0x3]
        %v4402 = vld [vmem:[%s3369 + $0xb0] sm:$0xfc]
        %v4403 = vld [vmem:[%s3369 + $0xb8] sm:$0x3]
        %v4404 = vld [vmem:[%s3369 + $0xd0] sm:$0xfc]
        %v4405 = vld [vmem:[%s3369 + $0xd8] sm:$0x3]
        %v4406 = vld [vmem:[%s3369 + $0xf0] sm:$0xfc]
        %v4407 = vld [vmem:[%s3369 + $0xf8] sm:$0x3]
        %v4408 = vld [vmem:[%s3369 + $0x190] sm:$0xfc]
        %v4409 = vld [vmem:[%s3369 + $0x198] sm:$0x3]
        %v4410 = vld [vmem:[%s3369 + $0x1b0] sm:$0xfc]
        %v4411 = vld [vmem:[%s3369 + $0x1b8] sm:$0x3]
        %v4412 = vld [vmem:[%s3369 + $0x1d0] sm:$0xfc]
        %v4413 = vld [vmem:[%s3369 + $0x1d8] sm:$0x3]
        %v4414 = vld [vmem:[%s3369 + $0x1f0] sm:$0xfc]
        %v4415 = vld [vmem:[%s3369 + $0x1f8] sm:$0x3]
        %v4416 = vld [vmem:[%s3369 + $0x210] sm:$0xfc]
        %v4417 = vld [vmem:[%s3369 + $0x218] sm:$0x3]
        %v4418 = vld [vmem:[%s3369 + $0x230] sm:$0xfc]
        %v4419 = vld [vmem:[%s3369 + $0x238] sm:$0x3]
        %v4420 = vld [vmem:[%s3369 + $0x250] sm:$0xfc]
        %v4421 = vld [vmem:[%s3369 + $0x258] sm:$0x3]
        %v4422 = vld [vmem:[%s3369 + $0x270] sm:$0xfc]
        %v4423 = vld [vmem:[%s3369 + $0x278] sm:$0x3]
        %v4424 = vld [vmem:[%s3369 + $0x310] sm:$0xfc]
        %v4425 = vld [vmem:[%s3369 + $0x318] sm:$0x3]
        %v4426 = vld [vmem:[%s3369 + $0x330] sm:$0xfc]
        %v4427 = vld [vmem:[%s3369 + $0x338] sm:$0x3]
        %v4428 = vld [vmem:[%s3369 + $0x350] sm:$0xfc]
        %v4429 = vld [vmem:[%s3369 + $0x358] sm:$0x3]
        %v4430 = vld [vmem:[%s3369 + $0x370] sm:$0xfc]
        %v4431 = vld [vmem:[%s3369 + $0x378] sm:$0x3]
        %v4432 = vld [vmem:[%s3369 + $0x390] sm:$0xfc]
        %v4433 = vld [vmem:[%s3369 + $0x398] sm:$0x3]
        %v4434 = vld [vmem:[%s3369 + $0x3b0] sm:$0xfc]
        %v4435 = vld [vmem:[%s3369 + $0x3b8] sm:$0x3]
        %v4436 = vld [vmem:[%s3369 + $0x3d0] sm:$0xfc]
        %v4437 = vld [vmem:[%s3369 + $0x3d8] sm:$0x3]
        %v4438 = vld [vmem:[%s3369 + $0x3f0] sm:$0xfc]
        %v4439 = vld [vmem:[%s3369 + $0x3f8] sm:$0x3]
        %vm4488 = vcmask 1045504
        %v4489 = vrot.slane %v4392, 2
        %v4490 = vrot.slane %v4393, 2
        %v4491 = vsel %vm4488, %v4489, %v4490
        %v4492 = vrot.slane %v4394, 2
        %v4493 = vrot.slane %v4395, 2
        %v4494 = vsel %vm4488, %v4492, %v4493
        %v4495 = vrot.slane %v4396, 2
        %v4496 = vrot.slane %v4397, 2
        %v4497 = vsel %vm4488, %v4495, %v4496
        %v4498 = vrot.slane %v4398, 2
        %v4499 = vrot.slane %v4399, 2
        %v4500 = vsel %vm4488, %v4498, %v4499
        %v4501 = vrot.slane %v4400, 2
        %v4502 = vrot.slane %v4401, 2
        %v4503 = vsel %vm4488, %v4501, %v4502
        %v4504 = vrot.slane %v4402, 2
        %v4505 = vrot.slane %v4403, 2
        %v4506 = vsel %vm4488, %v4504, %v4505
        %v4507 = vrot.slane %v4404, 2
        %v4508 = vrot.slane %v4405, 2
        %v4509 = vsel %vm4488, %v4507, %v4508
        %v4510 = vrot.slane %v4406, 2
        %v4511 = vrot.slane %v4407, 2
        %v4512 = vsel %vm4488, %v4510, %v4511
        %v4513 = vrot.slane %v4408, 2
        %v4514 = vrot.slane %v4409, 2
        %v4515 = vsel %vm4488, %v4513, %v4514
        %v4516 = vrot.slane %v4410, 2
        %v4517 = vrot.slane %v4411, 2
        %v4518 = vsel %vm4488, %v4516, %v4517
        %v4519 = vrot.slane %v4412, 2
        %v4520 = vrot.slane %v4413, 2
        %v4521 = vsel %vm4488, %v4519, %v4520
        %v4522 = vrot.slane %v4414, 2
        %v4523 = vrot.slane %v4415, 2
        %v4524 = vsel %vm4488, %v4522, %v4523
        %v4525 = vrot.slane %v4416, 2
        %v4526 = vrot.slane %v4417, 2
        %v4527 = vsel %vm4488, %v4525, %v4526
        %v4528 = vrot.slane %v4418, 2
        %v4529 = vrot.slane %v4419, 2
        %v4530 = vsel %vm4488, %v4528, %v4529
        %v4531 = vrot.slane %v4420, 2
        %v4532 = vrot.slane %v4421, 2
        %v4533 = vsel %vm4488, %v4531, %v4532
        %v4534 = vrot.slane %v4422, 2
        %v4535 = vrot.slane %v4423, 2
        %v4536 = vsel %vm4488, %v4534, %v4535
        %v4537 = vrot.slane %v4424, 2
        %v4538 = vrot.slane %v4425, 2
        %v4539 = vsel %vm4488, %v4537, %v4538
        %v4540 = vrot.slane %v4426, 2
        %v4541 = vrot.slane %v4427, 2
        %v4542 = vsel %vm4488, %v4540, %v4541
        %v4543 = vrot.slane %v4428, 2
        %v4544 = vrot.slane %v4429, 2
        %v4545 = vsel %vm4488, %v4543, %v4544
        %v4546 = vrot.slane %v4430, 2
        %v4547 = vrot.slane %v4431, 2
        %v4548 = vsel %vm4488, %v4546, %v4547
        %v4549 = vrot.slane %v4432, 2
        %v4550 = vrot.slane %v4433, 2
        %v4551 = vsel %vm4488, %v4549, %v4550
        %v4552 = vrot.slane %v4434, 2
        %v4553 = vrot.slane %v4435, 2
        %v4554 = vsel %vm4488, %v4552, %v4553
        %v4555 = vrot.slane %v4436, 2
        %v4556 = vrot.slane %v4437, 2
        %v4557 = vsel %vm4488, %v4555, %v4556
        %v4558 = vrot.slane %v4438, 2
        %v4559 = vrot.slane %v4439, 2
        %v4560 = vsel %vm4488, %v4558, %v4559
        %s4561 = scalar_lea.vmem %s6, 4
        %v4562 = vld [vmem:[%s4561] sm:$0x3]
        %s4563 = scalar_lea.vmem %s6, 10
        %v4564 = vld [vmem:[%s4563] sm:$0x3]
        %v4566 = vsel %vm1264, %v4515, 0
        %v4569 = vsel %vm1264, %v4518, 0
        %v4572 = vsel %vm1264, %v4521, 0
        %v4575 = vsel %vm1264, %v4524, 0
        %v4578 = vsel %vm1264, %v4527, 0
        %v4581 = vsel %vm1264, %v4530, 0
        %v4584 = vsel %vm1264, %v4533, 0
        %v4587 = vsel %vm1264, %v4536, 0
        %v4590 = vsel %vm1289, %v4564, 0
        %4592 = vmatprep.subr.bf16.mxu0 0
        %4593 = vmatpush1.bf16.msra.mxu0 %v4590
        %4594 = vmatprep.subr.bf16.mxu0 0
        %4595 = vmatpush1.bf16.msra.mxu0 0
        %4596 = vmatprep.subr.bf16.mxu0 0
        %4597 = vmatpush1.bf16.msra.mxu0 0
        %4598 = vmatprep.subr.bf16.mxu0 0
        %4599 = vmatpush1.bf16.msra.mxu0 0
        %4600 = vmatprep.subr.bf16.mxu0 0
        %4601 = vmatpush1.bf16.msra.mxu0 0
        %4602 = vmatprep.subr.bf16.mxu0 0
        %4603 = vmatpush1.bf16.msra.mxu0 0
        %4604 = vmatprep.subr.bf16.mxu0 0
        %4605 = vmatpush1.bf16.msra.mxu0 0
        %4606 = vmatprep.subr.bf16.mxu0 0
        %4607 = vmatpush1.bf16.msra.mxu0 0
        %4608 = vmatprep.subr.bf16.mxu0 0
        %4609 = vmatpush1.bf16.msra.mxu0 0
        %4610 = vmatprep.subr.bf16.mxu0 0
        %4611 = vmatpush1.bf16.msra.mxu0 0
        %4612 = vmatprep.subr.bf16.mxu0 0
        %4613 = vmatpush1.bf16.msra.mxu0 0
        %4614 = vmatprep.subr.bf16.mxu0 0
        %4615 = vmatpush1.bf16.msra.mxu0 0
        %4616 = vmatprep.subr.bf16.mxu0 0
        %4617 = vmatpush1.bf16.msra.mxu0 0
        %4618 = vmatprep.subr.bf16.mxu0 0
        %4619 = vmatpush1.bf16.msra.mxu0 0
        %4620 = vmatprep.subr.bf16.mxu0 0
        %4621 = vmatpush1.bf16.msra.mxu0 0
        %4622 = vmatprep.subr.bf16.mxu0 0
        %4623 = vmatpush1.bf16.msra.mxu0 0
        %4624 = vmatprep.mubr.bf16.mxu0 0
        %4625 = vmatmul.mubr.bf16.gmra.mrb[0].mxu0 %v4566
        %v4626 = vpop.f32.mrb[0].mxu0
        %v4627 = vadd.f32 0.0, %v4626
        %v4628 = vpop.f32.mrb[0].mxu0
        %v4629 = vpop.f32.mrb[0].mxu0
        %v4630 = vadd.f32 0.0, %v4629
        %v4631 = vpop.f32.mrb[0].mxu0
        %4632 = vmatprep.mubr.bf16.mxu0 0
        %4633 = vmatmul.mubr.bf16.gmra.mrb[0].mxu0 %v4569
        %v4634 = vpop.f32.mrb[0].mxu0
        %v4635 = vadd.f32 0.0, %v4634
        %v4636 = vpop.f32.mrb[0].mxu0
        %v4637 = vpop.f32.mrb[0].mxu0
        %v4638 = vadd.f32 0.0, %v4637
        %v4639 = vpop.f32.mrb[0].mxu0
        %4640 = vmatprep.mubr.bf16.mxu0 0
        %4641 = vmatmul.mubr.bf16.gmra.mrb[0].mxu0 %v4572
        %v4642 = vpop.f32.mrb[0].mxu0
        %v4643 = vadd.f32 0.0, %v4642
        %v4644 = vpop.f32.mrb[0].mxu0
        %v4645 = vpop.f32.mrb[0].mxu0
        %v4646 = vadd.f32 0.0, %v4645
        %v4647 = vpop.f32.mrb[0].mxu0
        %4648 = vmatprep.mubr.bf16.mxu0 0
        %4649 = vmatmul.mubr.bf16.gmra.mrb[0].mxu0 %v4575
        %v4650 = vpop.f32.mrb[0].mxu0
        %v4651 = vadd.f32 0.0, %v4650
        %v4652 = vpop.f32.mrb[0].mxu0
        %v4653 = vpop.f32.mrb[0].mxu0
        %v4654 = vadd.f32 0.0, %v4653
        %v4655 = vpop.f32.mrb[0].mxu0
        %4656 = vmatprep.mubr.bf16.mxu0 0
        %4657 = vmatmul.mubr.bf16.gmra.mrb[0].mxu0 %v4578
        %v4658 = vpop.f32.mrb[0].mxu0
        %v4659 = vadd.f32 0.0, %v4658
        %v4660 = vpop.f32.mrb[0].mxu0
        %v4661 = vpop.f32.mrb[0].mxu0
        %v4662 = vadd.f32 0.0, %v4661
        %v4663 = vpop.f32.mrb[0].mxu0
        %4664 = vmatprep.mubr.bf16.mxu0 0
        %4665 = vmatmul.mubr.bf16.gmra.mrb[0].mxu0 %v4581
        %v4666 = vpop.f32.mrb[0].mxu0
        %v4667 = vadd.f32 0.0, %v4666
        %v4668 = vpop.f32.mrb[0].mxu0
        %v4669 = vpop.f32.mrb[0].mxu0
        %v4670 = vadd.f32 0.0, %v4669
        %v4671 = vpop.f32.mrb[0].mxu0
        %4672 = vmatprep.mubr.bf16.mxu0 0
        %4673 = vmatmul.mubr.bf16.gmra.mrb[0].mxu0 %v4584
        %v4674 = vpop.f32.mrb[0].mxu0
        %v4675 = vadd.f32 0.0, %v4674
        %v4676 = vpop.f32.mrb[0].mxu0
        %v4677 = vpop.f32.mrb[0].mxu0
        %v4678 = vadd.f32 0.0, %v4677
        %v4679 = vpop.f32.mrb[0].mxu0
        %4680 = vmatprep.mubr.bf16.mxu0 0
        %4681 = vmatmul.mubr.bf16.gmra.mrb[0].mxu0 %v4587
        %v4682 = vpop.f32.mrb[0].mxu0
        %v4683 = vadd.f32 0.0, %v4682
        %v4684 = vpop.f32.mrb[0].mxu0
        %v4685 = vpop.f32.mrb[0].mxu0
        %v4686 = vadd.f32 0.0, %v4685
        %v4687 = vpop.f32.mrb[0].mxu0
        %4688 = vdwg.mxu0
        %v4690 = vsel %vm1264, %v4491, 0
        %v4693 = vsel %vm1264, %v4494, 0
        %v4696 = vsel %vm1264, %v4497, 0
        %v4699 = vsel %vm1264, %v4500, 0
        %v4702 = vsel %vm1264, %v4503, 0
        %v4705 = vsel %vm1264, %v4506, 0
        %v4708 = vsel %vm1264, %v4509, 0
        %v4711 = vsel %vm1264, %v4512, 0
        %v4714 = vsel %vm1289, %v4562, 0
        %4716 = vmatprep.subr.bf16.mxu0 0
        %4717 = vmatpush1.bf16.msra.mxu0 %v4714
        %4718 = vmatprep.subr.bf16.mxu0 0
        %4719 = vmatpush1.bf16.msra.mxu0 0
        %4720 = vmatprep.subr.bf16.mxu0 0
        %4721 = vmatpush1.bf16.msra.mxu0 0
        %4722 = vmatprep.subr.bf16.mxu0 0
        %4723 = vmatpush1.bf16.msra.mxu0 0
        %4724 = vmatprep.subr.bf16.mxu0 0
        %4725 = vmatpush1.bf16.msra.mxu0 0
        %4726 = vmatprep.subr.bf16.mxu0 0
        %4727 = vmatpush1.bf16.msra.mxu0 0
        %4728 = vmatprep.subr.bf16.mxu0 0
        %4729 = vmatpush1.bf16.msra.mxu0 0
        %4730 = vmatprep.subr.bf16.mxu0 0
        %4731 = vmatpush1.bf16.msra.mxu0 0
        %4732 = vmatprep.subr.bf16.mxu0 0
        %4733 = vmatpush1.bf16.msra.mxu0 0
        %4734 = vmatprep.subr.bf16.mxu0 0
        %4735 = vmatpush1.bf16.msra.mxu0 0
        %4736 = vmatprep.subr.bf16.mxu0 0
        %4737 = vmatpush1.bf16.msra.mxu0 0
        %4738 = vmatprep.subr.bf16.mxu0 0
        %4739 = vmatpush1.bf16.msra.mxu0 0
        %4740 = vmatprep.subr.bf16.mxu0 0
        %4741 = vmatpush1.bf16.msra.mxu0 0
        %4742 = vmatprep.subr.bf16.mxu0 0
        %4743 = vmatpush1.bf16.msra.mxu0 0
        %4744 = vmatprep.subr.bf16.mxu0 0
        %4745 = vmatpush1.bf16.msra.mxu0 0
        %4746 = vmatprep.subr.bf16.mxu0 0
        %4747 = vmatpush1.bf16.msra.mxu0 0
        %4748 = vmatprep.mubr.bf16.mxu0 0
        %4749 = vmatmul.mubr.bf16.gmra.mrb[0].mxu0 %v4690
        %v4750 = vpop.f32.mrb[0].mxu0
        %v4751 = vadd.f32 %v4627, %v4750
        %v4752 = vpop.f32.mrb[0].mxu0
        %v4753 = vpop.f32.mrb[0].mxu0
        %v4754 = vadd.f32 %v4630, %v4753
        %v4755 = vpop.f32.mrb[0].mxu0
        %4756 = vmatprep.mubr.bf16.mxu0 0
        %4757 = vmatmul.mubr.bf16.gmra.mrb[0].mxu0 %v4693
        %v4758 = vpop.f32.mrb[0].mxu0
        %v4759 = vadd.f32 %v4635, %v4758
        %v4760 = vpop.f32.mrb[0].mxu0
        %v4761 = vpop.f32.mrb[0].mxu0
        %v4762 = vadd.f32 %v4638, %v4761
        %v4763 = vpop.f32.mrb[0].mxu0
        %4764 = vmatprep.mubr.bf16.mxu0 0
        %4765 = vmatmul.mubr.bf16.gmra.mrb[0].mxu0 %v4696
        %v4766 = vpop.f32.mrb[0].mxu0
        %v4767 = vadd.f32 %v4643, %v4766
        %v4768 = vpop.f32.mrb[0].mxu0
        %v4769 = vpop.f32.mrb[0].mxu0
        %v4770 = vadd.f32 %v4646, %v4769
        %v4771 = vpop.f32.mrb[0].mxu0
        %4772 = vmatprep.mubr.bf16.mxu0 0
        %4773 = vmatmul.mubr.bf16.gmra.mrb[0].mxu0 %v4699
        %v4774 = vpop.f32.mrb[0].mxu0
        %v4775 = vadd.f32 %v4651, %v4774
        %v4776 = vpop.f32.mrb[0].mxu0
        %v4777 = vpop.f32.mrb[0].mxu0
        %v4778 = vadd.f32 %v4654, %v4777
        %v4779 = vpop.f32.mrb[0].mxu0
        %4780 = vmatprep.mubr.bf16.mxu0 0
        %4781 = vmatmul.mubr.bf16.gmra.mrb[0].mxu0 %v4702
        %v4782 = vpop.f32.mrb[0].mxu0
        %v4783 = vadd.f32 %v4659, %v4782
        %v4784 = vpop.f32.mrb[0].mxu0
        %v4785 = vpop.f32.mrb[0].mxu0
        %v4786 = vadd.f32 %v4662, %v4785
        %v4787 = vpop.f32.mrb[0].mxu0
        %4788 = vmatprep.mubr.bf16.mxu0 0
        %4789 = vmatmul.mubr.bf16.gmra.mrb[0].mxu0 %v4705
        %v4790 = vpop.f32.mrb[0].mxu0
        %v4791 = vadd.f32 %v4667, %v4790
        %v4792 = vpop.f32.mrb[0].mxu0
        %v4793 = vpop.f32.mrb[0].mxu0
        %v4794 = vadd.f32 %v4670, %v4793
        %v4795 = vpop.f32.mrb[0].mxu0
        %4796 = vmatprep.mubr.bf16.mxu0 0
        %4797 = vmatmul.mubr.bf16.gmra.mrb[0].mxu0 %v4708
        %v4798 = vpop.f32.mrb[0].mxu0
        %v4799 = vadd.f32 %v4675, %v4798
        %v4800 = vpop.f32.mrb[0].mxu0
        %v4801 = vpop.f32.mrb[0].mxu0
        %v4802 = vadd.f32 %v4678, %v4801
        %v4803 = vpop.f32.mrb[0].mxu0
        %4804 = vmatprep.mubr.bf16.mxu0 0
        %4805 = vmatmul.mubr.bf16.gmra.mrb[0].mxu0 %v4711
        %v4806 = vpop.f32.mrb[0].mxu0
        %v4807 = vadd.f32 %v4683, %v4806
        %v4808 = vpop.f32.mrb[0].mxu0
        %v4809 = vpop.f32.mrb[0].mxu0
        %v4810 = vadd.f32 %v4686, %v4809
        %v4811 = vpop.f32.mrb[0].mxu0
        %4812 = vdwg.mxu0
        %s4813 = scalar_lea.vmem %s6, 16
        %v4814 = vld [vmem:[%s4813] sm:$0x3]
        %v4816 = vsel %vm1264, %v4539, 0
        %v4819 = vsel %vm1264, %v4542, 0
        %v4822 = vsel %vm1264, %v4545, 0
        %v4825 = vsel %vm1264, %v4548, 0
        %v4828 = vsel %vm1264, %v4551, 0
        %v4831 = vsel %vm1264, %v4554, 0
        %v4834 = vsel %vm1264, %v4557, 0
        %v4837 = vsel %vm1264, %v4560, 0
        %v4840 = vsel %vm1289, %v4814, 0
        %4842 = vmatprep.subr.bf16.mxu0 0
        %4843 = vmatpush1.bf16.msra.mxu0 %v4840
        %4844 = vmatprep.subr.bf16.mxu0 0
        %4845 = vmatpush1.bf16.msra.mxu0 0
        %4846 = vmatprep.subr.bf16.mxu0 0
        %4847 = vmatpush1.bf16.msra.mxu0 0
        %4848 = vmatprep.subr.bf16.mxu0 0
        %4849 = vmatpush1.bf16.msra.mxu0 0
        %4850 = vmatprep.subr.bf16.mxu0 0
        %4851 = vmatpush1.bf16.msra.mxu0 0
        %4852 = vmatprep.subr.bf16.mxu0 0
        %4853 = vmatpush1.bf16.msra.mxu0 0
        %4854 = vmatprep.subr.bf16.mxu0 0
        %4855 = vmatpush1.bf16.msra.mxu0 0
        %4856 = vmatprep.subr.bf16.mxu0 0
        %4857 = vmatpush1.bf16.msra.mxu0 0
        %4858 = vmatprep.subr.bf16.mxu0 0
        %4859 = vmatpush1.bf16.msra.mxu0 0
        %4860 = vmatprep.subr.bf16.mxu0 0
        %4861 = vmatpush1.bf16.msra.mxu0 0
        %4862 = vmatprep.subr.bf16.mxu0 0
        %4863 = vmatpush1.bf16.msra.mxu0 0
        %4864 = vmatprep.subr.bf16.mxu0 0
        %4865 = vmatpush1.bf16.msra.mxu0 0
        %4866 = vmatprep.subr.bf16.mxu0 0
        %4867 = vmatpush1.bf16.msra.mxu0 0
        %4868 = vmatprep.subr.bf16.mxu0 0
        %4869 = vmatpush1.bf16.msra.mxu0 0
        %4870 = vmatprep.subr.bf16.mxu0 0
        %4871 = vmatpush1.bf16.msra.mxu0 0
        %4872 = vmatprep.subr.bf16.mxu0 0
        %4873 = vmatpush1.bf16.msra.mxu0 0
        %4874 = vmatprep.mubr.bf16.mxu0 0
        %4875 = vmatmul.mubr.bf16.gmra.mrb[0].mxu0 %v4816
        %v4876 = vpop.f32.mrb[0].mxu0
        %v4877 = vadd.f32 0.0, %v4876
        %v4878 = vpop.f32.mrb[0].mxu0
        %v4879 = vpop.f32.mrb[0].mxu0
        %v4880 = vadd.f32 0.0, %v4879
        %v4881 = vpop.f32.mrb[0].mxu0
        %4882 = vmatprep.mubr.bf16.mxu0 0
        %4883 = vmatmul.mubr.bf16.gmra.mrb[0].mxu0 %v4819
        %v4884 = vpop.f32.mrb[0].mxu0
        %v4885 = vadd.f32 0.0, %v4884
        %v4886 = vpop.f32.mrb[0].mxu0
        %v4887 = vpop.f32.mrb[0].mxu0
        %v4888 = vadd.f32 0.0, %v4887
        %v4889 = vpop.f32.mrb[0].mxu0
        %4890 = vmatprep.mubr.bf16.mxu0 0
        %4891 = vmatmul.mubr.bf16.gmra.mrb[0].mxu0 %v4822
        %v4892 = vpop.f32.mrb[0].mxu0
        %v4893 = vadd.f32 0.0, %v4892
        %v4894 = vpop.f32.mrb[0].mxu0
        %v4895 = vpop.f32.mrb[0].mxu0
        %v4896 = vadd.f32 0.0, %v4895
        %v4897 = vpop.f32.mrb[0].mxu0
        %4898 = vmatprep.mubr.bf16.mxu0 0
        %4899 = vmatmul.mubr.bf16.gmra.mrb[0].mxu0 %v4825
        %v4900 = vpop.f32.mrb[0].mxu0
        %v4901 = vadd.f32 0.0, %v4900
        %v4902 = vpop.f32.mrb[0].mxu0
        %v4903 = vpop.f32.mrb[0].mxu0
        %v4904 = vadd.f32 0.0, %v4903
        %v4905 = vpop.f32.mrb[0].mxu0
        %4906 = vmatprep.mubr.bf16.mxu0 0
        %4907 = vmatmul.mubr.bf16.gmra.mrb[0].mxu0 %v4828
        %v4908 = vpop.f32.mrb[0].mxu0
        %v4909 = vadd.f32 0.0, %v4908
        %v4910 = vpop.f32.mrb[0].mxu0
        %v4911 = vpop.f32.mrb[0].mxu0
        %v4912 = vadd.f32 0.0, %v4911
        %v4913 = vpop.f32.mrb[0].mxu0
        %4914 = vmatprep.mubr.bf16.mxu0 0
        %4915 = vmatmul.mubr.bf16.gmra.mrb[0].mxu0 %v4831
        %v4916 = vpop.f32.mrb[0].mxu0
        %v4917 = vadd.f32 0.0, %v4916
        %v4918 = vpop.f32.mrb[0].mxu0
        %v4919 = vpop.f32.mrb[0].mxu0
        %v4920 = vadd.f32 0.0, %v4919
        %v4921 = vpop.f32.mrb[0].mxu0
        %4922 = vmatprep.mubr.bf16.mxu0 0
        %4923 = vmatmul.mubr.bf16.gmra.mrb[0].mxu0 %v4834
        %v4924 = vpop.f32.mrb[0].mxu0
        %v4925 = vadd.f32 0.0, %v4924
        %v4926 = vpop.f32.mrb[0].mxu0
        %v4927 = vpop.f32.mrb[0].mxu0
        %v4928 = vadd.f32 0.0, %v4927
        %v4929 = vpop.f32.mrb[0].mxu0
        %4930 = vmatprep.mubr.bf16.mxu0 0
        %4931 = vmatmul.mubr.bf16.gmra.mrb[0].mxu0 %v4837
        %v4932 = vpop.f32.mrb[0].mxu0
        %v4933 = vadd.f32 0.0, %v4932
        %v4934 = vpop.f32.mrb[0].mxu0
        %v4935 = vpop.f32.mrb[0].mxu0
        %v4936 = vadd.f32 0.0, %v4935
        %v4937 = vpop.f32.mrb[0].mxu0
        %4938 = vdwg.mxu0
        %v4939 = vadd.f32 %v4751, %v4877
        %v4940 = vadd.f32 %v4754, %v4880
        %v4941 = vadd.f32 %v4759, %v4885
        %v4942 = vadd.f32 %v4762, %v4888
        %v4943 = vadd.f32 %v4767, %v4893
        %v4944 = vadd.f32 %v4770, %v4896
        %v4945 = vadd.f32 %v4775, %v4901
        %v4946 = vadd.f32 %v4778, %v4904
        %v4947 = vadd.f32 %v4783, %v4909
        %v4948 = vadd.f32 %v4786, %v4912
        %v4949 = vadd.f32 %v4791, %v4917
        %v4950 = vadd.f32 %v4794, %v4920
        %v4951 = vadd.f32 %v4799, %v4925
        %v4952 = vadd.f32 %v4802, %v4928
        %v4953 = vadd.f32 %v4807, %v4933
        %v4954 = vadd.f32 %v4810, %v4936
        %v4955 = vld [vmem:[#allocation4] sm:$0xff]
        %v4956 = vld [vmem:[#allocation4 + $0x8] sm:$0xff]
        %v4957 = vld [vmem:[#allocation4 + $0x10] sm:$0xff]
        %v4958 = vld [vmem:[#allocation4 + $0x18] sm:$0xff]
        %v4959 = vld [vmem:[#allocation4 + $0x20] sm:$0xff]
        %v4960 = vld [vmem:[#allocation4 + $0x28] sm:$0xff]
        %v4961 = vld [vmem:[#allocation4 + $0x30] sm:$0xff]
        %v4962 = vld [vmem:[#allocation4 + $0x38] sm:$0xff]
        %v4963 = vld [vmem:[#allocation4 + $0x40] sm:$0xff]
        %v4964 = vld [vmem:[#allocation4 + $0x48] sm:$0xff]
        %v4965 = vld [vmem:[#allocation4 + $0x50] sm:$0xff]
        %v4966 = vld [vmem:[#allocation4 + $0x58] sm:$0xff]
        %v4967 = vld [vmem:[#allocation4 + $0x60] sm:$0xff]
        %v4968 = vld [vmem:[#allocation4 + $0x68] sm:$0xff]
        %v4969 = vld [vmem:[#allocation4 + $0x70] sm:$0xff]
        %v4970 = vld [vmem:[#allocation4 + $0x78] sm:$0xff]
        %v4971 = vadd.f32 %v4955, %v4939
        %v4972 = vadd.f32 %v4956, %v4940
        %v4973 = vadd.f32 %v4957, %v4941
        %v4974 = vadd.f32 %v4958, %v4942
        %v4975 = vadd.f32 %v4959, %v4943
        %v4976 = vadd.f32 %v4960, %v4944
        %v4977 = vadd.f32 %v4961, %v4945
        %v4978 = vadd.f32 %v4962, %v4946
        %v4979 = vadd.f32 %v4963, %v4947
        %v4980 = vadd.f32 %v4964, %v4948
        %v4981 = vadd.f32 %v4965, %v4949
        %v4982 = vadd.f32 %v4966, %v4950
        %v4983 = vadd.f32 %v4967, %v4951
        %v4984 = vadd.f32 %v4968, %v4952
        %v4985 = vadd.f32 %v4969, %v4953
        %v4986 = vadd.f32 %v4970, %v4954
        %4987 = vst.msk [vmem:[#allocation4] sm:$0xff] %vm1583, %v4971
        %4988 = vst.msk [vmem:[#allocation4 + $0x8] sm:$0xff] %vm1583, %v4972
        %4989 = vst.msk [vmem:[#allocation4 + $0x10] sm:$0xff] %vm1583, %v4973
        %4990 = vst.msk [vmem:[#allocation4 + $0x18] sm:$0xff] %vm1583, %v4974
        %4991 = vst.msk [vmem:[#allocation4 + $0x20] sm:$0xff] %vm1583, %v4975
        %4992 = vst.msk [vmem:[#allocation4 + $0x28] sm:$0xff] %vm1583, %v4976
        %4993 = vst.msk [vmem:[#allocation4 + $0x30] sm:$0xff] %vm1583, %v4977
        %4994 = vst.msk [vmem:[#allocation4 + $0x38] sm:$0xff] %vm1583, %v4978
        %4995 = vst.msk [vmem:[#allocation4 + $0x40] sm:$0xff] %vm1583, %v4979
        %4996 = vst.msk [vmem:[#allocation4 + $0x48] sm:$0xff] %vm1583, %v4980
        %4997 = vst.msk [vmem:[#allocation4 + $0x50] sm:$0xff] %vm1583, %v4981
        %4998 = vst.msk [vmem:[#allocation4 + $0x58] sm:$0xff] %vm1583, %v4982
        %4999 = vst.msk [vmem:[#allocation4 + $0x60] sm:$0xff] %vm1583, %v4983
        %5000 = vst.msk [vmem:[#allocation4 + $0x68] sm:$0xff] %vm1583, %v4984
        %5001 = vst.msk [vmem:[#allocation4 + $0x70] sm:$0xff] %vm1583, %v4985
        %5002 = vst.msk [vmem:[#allocation4 + $0x78] sm:$0xff] %vm1583, %v4986
        %v5003 = vld [vmem:[#allocation4] sm:$0xff]
        %v5004 = vld [vmem:[#allocation4 + $0x8] sm:$0xff]
        %v5005 = vld [vmem:[#allocation4 + $0x10] sm:$0xff]
        %v5006 = vld [vmem:[#allocation4 + $0x18] sm:$0xff]
        %v5007 = vld [vmem:[#allocation4 + $0x20] sm:$0xff]
        %v5008 = vld [vmem:[#allocation4 + $0x28] sm:$0xff]
        %v5009 = vld [vmem:[#allocation4 + $0x30] sm:$0xff]
        %v5010 = vld [vmem:[#allocation4 + $0x38] sm:$0xff]
        %v5011 = vld [vmem:[#allocation4 + $0x40] sm:$0xff]
        %v5012 = vld [vmem:[#allocation4 + $0x48] sm:$0xff]
        %v5013 = vld [vmem:[#allocation4 + $0x50] sm:$0xff]
        %v5014 = vld [vmem:[#allocation4 + $0x58] sm:$0xff]
        %v5015 = vld [vmem:[#allocation4 + $0x60] sm:$0xff]
        %v5016 = vld [vmem:[#allocation4 + $0x68] sm:$0xff]
        %v5017 = vld [vmem:[#allocation4 + $0x70] sm:$0xff]
        %v5018 = vld [vmem:[#allocation4 + $0x78] sm:$0xff]
        %v5019 = vmax.f32 %v5003, 0.0
        %v5020 = vmax.f32 %v5004, 0.0
        %v5021 = vmax.f32 %v5005, 0.0
        %v5022 = vmax.f32 %v5006, 0.0
        %v5023 = vmax.f32 %v5007, 0.0
        %v5024 = vmax.f32 %v5008, 0.0
        %v5025 = vmax.f32 %v5009, 0.0
        %v5026 = vmax.f32 %v5010, 0.0
        %v5027 = vmax.f32 %v5011, 0.0
        %v5028 = vmax.f32 %v5012, 0.0
        %v5029 = vmax.f32 %v5013, 0.0
        %v5030 = vmax.f32 %v5014, 0.0
        %v5031 = vmax.f32 %v5015, 0.0
        %v5032 = vmax.f32 %v5016, 0.0
        %v5033 = vmax.f32 %v5017, 0.0
        %v5034 = vmax.f32 %v5018, 0.0
        %v5035 = vpack.c.bf16 %v5020, %v5019
        %v5036 = vpack.c.bf16 %v5022, %v5021
        %v5037 = vpack.c.bf16 %v5024, %v5023
        %v5038 = vpack.c.bf16 %v5026, %v5025
        %v5039 = vpack.c.bf16 %v5028, %v5027
        %v5040 = vpack.c.bf16 %v5030, %v5029
        %v5041 = vpack.c.bf16 %v5032, %v5031
        %v5042 = vpack.c.bf16 %v5034, %v5033
        %v5051 = vunpack.c.l.b16 %v5035
        %v5052 = vunpack.c.h.b16 %v5035
        %v5053 = vunpack.c.l.b16 %v5036
        %v5054 = vunpack.c.h.b16 %v5036
        %v5055 = vunpack.c.l.b16 %v5037
        %v5056 = vunpack.c.h.b16 %v5037
        %v5057 = vunpack.c.l.b16 %v5038
        %v5058 = vunpack.c.h.b16 %v5038
        %v5059 = vunpack.c.l.b16 %v5039
        %v5060 = vunpack.c.h.b16 %v5039
        %v5061 = vunpack.c.l.b16 %v5040
        %v5062 = vunpack.c.h.b16 %v5040
        %v5063 = vunpack.c.l.b16 %v5041
        %v5064 = vunpack.c.h.b16 %v5041
        %v5065 = vunpack.c.l.b16 %v5042
        %v5066 = vunpack.c.h.b16 %v5042
        %v5067 = vpack.c.b16 %v5051, %v5051
        %v5068 = vpack.c.b16 %v5052, %v5052
        %v5069 = vpack.c.b16 %v5053, %v5053
        %v5070 = vpack.c.b16 %v5054, %v5054
        %v5071 = vpack.c.b16 %v5055, %v5055
        %v5072 = vpack.c.b16 %v5056, %v5056
        %v5073 = vpack.c.b16 %v5057, %v5057
        %v5074 = vpack.c.b16 %v5058, %v5058
        %v5075 = vpack.c.b16 %v5059, %v5059
        %v5076 = vpack.c.b16 %v5060, %v5060
        %v5077 = vpack.c.b16 %v5061, %v5061
        %v5078 = vpack.c.b16 %v5062, %v5062
        %v5079 = vpack.c.b16 %v5063, %v5063
        %v5080 = vpack.c.b16 %v5064, %v5064
        %v5081 = vpack.c.b16 %v5065, %v5065
        %v5082 = vpack.c.b16 %v5066, %v5066
        %5099 = vst.msk [vmem:[%s340 + $0x4] sm:$0xf] %vm937, %v5067
        %5100 = vst.msk [vmem:[%s340 + $0xc] sm:$0xf] %vm937, %v5068
        %5101 = vst.msk [vmem:[%s340 + $0x14] sm:$0xf] %vm937, %v5069
        %5102 = vst.msk [vmem:[%s340 + $0x1c] sm:$0xf] %vm937, %v5070
        %5103 = vst.msk [vmem:[%s340 + $0x24] sm:$0xf] %vm937, %v5071
        %5104 = vst.msk [vmem:[%s340 + $0x2c] sm:$0xf] %vm937, %v5072
        %5105 = vst.msk [vmem:[%s340 + $0x34] sm:$0xf] %vm937, %v5073
        %5106 = vst.msk [vmem:[%s340 + $0x3c] sm:$0xf] %vm937, %v5074
        %5107 = vst.msk [vmem:[%s340 + $0x44] sm:$0xf] %vm937, %v5075
        %5108 = vst.msk [vmem:[%s340 + $0x4c] sm:$0xf] %vm937, %v5076
        %5109 = vst.msk [vmem:[%s340 + $0x54] sm:$0xf] %vm937, %v5077
        %5110 = vst.msk [vmem:[%s340 + $0x5c] sm:$0xf] %vm937, %v5078
        %5111 = vst.msk [vmem:[%s340 + $0x64] sm:$0xf] %vm937, %v5079
        %5112 = vst.msk [vmem:[%s340 + $0x6c] sm:$0xf] %vm937, %v5080
        %5113 = vst.msk [vmem:[%s340 + $0x74] sm:$0xf] %vm937, %v5081
        %5114 = vst.msk [vmem:[%s340 + $0x7c] sm:$0xf] %vm937, %v5082
        %5115 = vrot.lane.b32.xlu0 %v1328, 32
        %v5116 = vpop.permute.xlu0 %5115
        %5117 = vrot.lane.b32.xlu0 %v1331, 32
        %v5118 = vpop.permute.xlu0 %5117
        %5119 = vrot.lane.b32.xlu0 %v1336, 32
        %v5120 = vpop.permute.xlu0 %5119
        %5121 = vrot.lane.b32.xlu0 %v1339, 32
        %v5122 = vpop.permute.xlu0 %5121
        %5123 = vrot.lane.b32.xlu0 %v1344, 32
        %v5124 = vpop.permute.xlu0 %5123
        %5125 = vrot.lane.b32.xlu0 %v1347, 32
        %v5126 = vpop.permute.xlu0 %5125
        %5127 = vrot.lane.b32.xlu0 %v1352, 32
        %v5128 = vpop.permute.xlu0 %5127
        %5129 = vrot.lane.b32.xlu0 %v1355, 32
        %v5130 = vpop.permute.xlu0 %5129
        %5131 = vrot.lane.b32.xlu0 %v1360, 32
        %v5132 = vpop.permute.xlu0 %5131
        %5133 = vrot.lane.b32.xlu0 %v1363, 32
        %v5134 = vpop.permute.xlu0 %5133
        %5135 = vrot.lane.b32.xlu0 %v1368, 32
        %v5136 = vpop.permute.xlu0 %5135
        %5137 = vrot.lane.b32.xlu0 %v1371, 32
        %v5138 = vpop.permute.xlu0 %5137
        %5139 = vrot.lane.b32.xlu0 %v1376, 32
        %v5140 = vpop.permute.xlu0 %5139
        %5141 = vrot.lane.b32.xlu0 %v1379, 32
        %v5142 = vpop.permute.xlu0 %5141
        %5143 = vrot.lane.b32.xlu0 %v1384, 32
        %v5144 = vpop.permute.xlu0 %5143
        %5145 = vrot.lane.b32.xlu0 %v1387, 32
        %v5146 = vpop.permute.xlu0 %5145
        %5163 = vst.msk [vmem:[#allocation4] sm:$0xff] %vm1583, %v5116
        %5164 = vst.msk [vmem:[#allocation4 + $0x8] sm:$0xff] %vm1583, %v5118
        %5165 = vst.msk [vmem:[#allocation4 + $0x10] sm:$0xff] %vm1583, %v5120
        %5166 = vst.msk [vmem:[#allocation4 + $0x18] sm:$0xff] %vm1583, %v5122
        %5167 = vst.msk [vmem:[#allocation4 + $0x20] sm:$0xff] %vm1583, %v5124
        %5168 = vst.msk [vmem:[#allocation4 + $0x28] sm:$0xff] %vm1583, %v5126
        %5169 = vst.msk [vmem:[#allocation4 + $0x30] sm:$0xff] %vm1583, %v5128
        %5170 = vst.msk [vmem:[#allocation4 + $0x38] sm:$0xff] %vm1583, %v5130
        %5171 = vst.msk [vmem:[#allocation4 + $0x40] sm:$0xff] %vm1583, %v5132
        %5172 = vst.msk [vmem:[#allocation4 + $0x48] sm:$0xff] %vm1583, %v5134
        %5173 = vst.msk [vmem:[#allocation4 + $0x50] sm:$0xff] %vm1583, %v5136
        %5174 = vst.msk [vmem:[#allocation4 + $0x58] sm:$0xff] %vm1583, %v5138
        %5175 = vst.msk [vmem:[#allocation4 + $0x60] sm:$0xff] %vm1583, %v5140
        %5176 = vst.msk [vmem:[#allocation4 + $0x68] sm:$0xff] %vm1583, %v5142
        %5177 = vst.msk [vmem:[#allocation4 + $0x70] sm:$0xff] %vm1583, %v5144
        %5178 = vst.msk [vmem:[#allocation4 + $0x78] sm:$0xff] %vm1583, %v5146
        %s5179 = smul.u32 %s923, 4
        %s5180 = smul.addr %s5179, 8
        %s5181 = scalar_lea.vmem [#allocation2], %s5180
        %v5182 = vld [vmem:[%s5181] sm:$0xf8]
        %v5183 = vld [vmem:[%s5181 + $0x8] sm:$0x7]
        %v5184 = vld [vmem:[%s5181 + $0x20] sm:$0xf8]
        %v5185 = vld [vmem:[%s5181 + $0x28] sm:$0x7]
        %v5186 = vld [vmem:[%s5181 + $0x40] sm:$0xf8]
        %v5187 = vld [vmem:[%s5181 + $0x48] sm:$0x7]
        %v5188 = vld [vmem:[%s5181 + $0x60] sm:$0xf8]
        %v5189 = vld [vmem:[%s5181 + $0x68] sm:$0x7]
        %v5190 = vld [vmem:[%s5181 + $0x80] sm:$0xf8]
        %v5191 = vld [vmem:[%s5181 + $0x88] sm:$0x7]
        %v5192 = vld [vmem:[%s5181 + $0xa0] sm:$0xf8]
        %v5193 = vld [vmem:[%s5181 + $0xa8] sm:$0x7]
        %v5194 = vld [vmem:[%s5181 + $0xc0] sm:$0xf8]
        %v5195 = vld [vmem:[%s5181 + $0xc8] sm:$0x7]
        %v5196 = vld [vmem:[%s5181 + $0xe0] sm:$0xf8]
        %v5197 = vld [vmem:[%s5181 + $0xe8] sm:$0x7]
        %v5198 = vld [vmem:[%s5181 + $0x240] sm:$0xf8]
        %v5199 = vld [vmem:[%s5181 + $0x248] sm:$0x7]
        %v5200 = vld [vmem:[%s5181 + $0x260] sm:$0xf8]
        %v5201 = vld [vmem:[%s5181 + $0x268] sm:$0x7]
        %v5202 = vld [vmem:[%s5181 + $0x280] sm:$0xf8]
        %v5203 = vld [vmem:[%s5181 + $0x288] sm:$0x7]
        %v5204 = vld [vmem:[%s5181 + $0x2a0] sm:$0xf8]
        %v5205 = vld [vmem:[%s5181 + $0x2a8] sm:$0x7]
        %v5206 = vld [vmem:[%s5181 + $0x2c0] sm:$0xf8]
        %v5207 = vld [vmem:[%s5181 + $0x2c8] sm:$0x7]
        %v5208 = vld [vmem:[%s5181 + $0x2e0] sm:$0xf8]
        %v5209 = vld [vmem:[%s5181 + $0x2e8] sm:$0x7]
        %v5210 = vld [vmem:[%s5181 + $0x300] sm:$0xf8]
        %v5211 = vld [vmem:[%s5181 + $0x308] sm:$0x7]
        %v5212 = vld [vmem:[%s5181 + $0x320] sm:$0xf8]
        %v5213 = vld [vmem:[%s5181 + $0x328] sm:$0x7]
        %v5214 = vld [vmem:[%s5181 + $0x480] sm:$0xf8]
        %v5215 = vld [vmem:[%s5181 + $0x488] sm:$0x7]
        %v5216 = vld [vmem:[%s5181 + $0x4a0] sm:$0xf8]
        %v5217 = vld [vmem:[%s5181 + $0x4a8] sm:$0x7]
        %v5218 = vld [vmem:[%s5181 + $0x4c0] sm:$0xf8]
        %v5219 = vld [vmem:[%s5181 + $0x4c8] sm:$0x7]
        %v5220 = vld [vmem:[%s5181 + $0x4e0] sm:$0xf8]
        %v5221 = vld [vmem:[%s5181 + $0x4e8] sm:$0x7]
        %v5222 = vld [vmem:[%s5181 + $0x500] sm:$0xf8]
        %v5223 = vld [vmem:[%s5181 + $0x508] sm:$0x7]
        %v5224 = vld [vmem:[%s5181 + $0x520] sm:$0xf8]
        %v5225 = vld [vmem:[%s5181 + $0x528] sm:$0x7]
        %v5226 = vld [vmem:[%s5181 + $0x540] sm:$0xf8]
        %v5227 = vld [vmem:[%s5181 + $0x548] sm:$0x7]
        %v5228 = vld [vmem:[%s5181 + $0x560] sm:$0xf8]
        %v5229 = vld [vmem:[%s5181 + $0x568] sm:$0x7]
        %vm5278 = vcmask 1044480
        %v5279 = vrot.slane %v5182, 3
        %v5280 = vrot.slane %v5183, 3
        %v5281 = vsel %vm5278, %v5279, %v5280
        %v5282 = vrot.slane %v5184, 3
        %v5283 = vrot.slane %v5185, 3
        %v5284 = vsel %vm5278, %v5282, %v5283
        %v5285 = vrot.slane %v5186, 3
        %v5286 = vrot.slane %v5187, 3
        %v5287 = vsel %vm5278, %v5285, %v5286
        %v5288 = vrot.slane %v5188, 3
        %v5289 = vrot.slane %v5189, 3
        %v5290 = vsel %vm5278, %v5288, %v5289
        %v5291 = vrot.slane %v5190, 3
        %v5292 = vrot.slane %v5191, 3
        %v5293 = vsel %vm5278, %v5291, %v5292
        %v5294 = vrot.slane %v5192, 3
        %v5295 = vrot.slane %v5193, 3
        %v5296 = vsel %vm5278, %v5294, %v5295
        %v5297 = vrot.slane %v5194, 3
        %v5298 = vrot.slane %v5195, 3
        %v5299 = vsel %vm5278, %v5297, %v5298
        %v5300 = vrot.slane %v5196, 3
        %v5301 = vrot.slane %v5197, 3
        %v5302 = vsel %vm5278, %v5300, %v5301
        %v5303 = vrot.slane %v5198, 3
        %v5304 = vrot.slane %v5199, 3
        %v5305 = vsel %vm5278, %v5303, %v5304
        %v5306 = vrot.slane %v5200, 3
        %v5307 = vrot.slane %v5201, 3
        %v5308 = vsel %vm5278, %v5306, %v5307
        %v5309 = vrot.slane %v5202, 3
        %v5310 = vrot.slane %v5203, 3
        %v5311 = vsel %vm5278, %v5309, %v5310
        %v5312 = vrot.slane %v5204, 3
        %v5313 = vrot.slane %v5205, 3
        %v5314 = vsel %vm5278, %v5312, %v5313
        %v5315 = vrot.slane %v5206, 3
        %v5316 = vrot.slane %v5207, 3
        %v5317 = vsel %vm5278, %v5315, %v5316
        %v5318 = vrot.slane %v5208, 3
        %v5319 = vrot.slane %v5209, 3
        %v5320 = vsel %vm5278, %v5318, %v5319
        %v5321 = vrot.slane %v5210, 3
        %v5322 = vrot.slane %v5211, 3
        %v5323 = vsel %vm5278, %v5321, %v5322
        %v5324 = vrot.slane %v5212, 3
        %v5325 = vrot.slane %v5213, 3
        %v5326 = vsel %vm5278, %v5324, %v5325
        %v5327 = vrot.slane %v5214, 3
        %v5328 = vrot.slane %v5215, 3
        %v5329 = vsel %vm5278, %v5327, %v5328
        %v5330 = vrot.slane %v5216, 3
        %v5331 = vrot.slane %v5217, 3
        %v5332 = vsel %vm5278, %v5330, %v5331
        %v5333 = vrot.slane %v5218, 3
        %v5334 = vrot.slane %v5219, 3
        %v5335 = vsel %vm5278, %v5333, %v5334
        %v5336 = vrot.slane %v5220, 3
        %v5337 = vrot.slane %v5221, 3
        %v5338 = vsel %vm5278, %v5336, %v5337
        %v5339 = vrot.slane %v5222, 3
        %v5340 = vrot.slane %v5223, 3
        %v5341 = vsel %vm5278, %v5339, %v5340
        %v5342 = vrot.slane %v5224, 3
        %v5343 = vrot.slane %v5225, 3
        %v5344 = vsel %vm5278, %v5342, %v5343
        %v5345 = vrot.slane %v5226, 3
        %v5346 = vrot.slane %v5227, 3
        %v5347 = vsel %vm5278, %v5345, %v5346
        %v5348 = vrot.slane %v5228, 3
        %v5349 = vrot.slane %v5229, 3
        %v5350 = vsel %vm5278, %v5348, %v5349
        %v5351 = vld [vmem:[%s7] sm:$0x3]
        %s5352 = scalar_lea.vmem %s7, 6
        %v5353 = vld [vmem:[%s5352] sm:$0x3]
        %v5355 = vsel %vm1264, %v5305, 0
        %v5358 = vsel %vm1264, %v5308, 0
        %v5361 = vsel %vm1264, %v5311, 0
        %v5364 = vsel %vm1264, %v5314, 0
        %v5367 = vsel %vm1264, %v5317, 0
        %v5370 = vsel %vm1264, %v5320, 0
        %v5373 = vsel %vm1264, %v5323, 0
        %v5376 = vsel %vm1264, %v5326, 0
        %v5379 = vsel %vm1289, %v5353, 0
        %5381 = vmatprep.subr.bf16.mxu0 0
        %5382 = vmatpush1.bf16.msra.mxu0 %v5379
        %5383 = vmatprep.subr.bf16.mxu0 0
        %5384 = vmatpush1.bf16.msra.mxu0 0
        %5385 = vmatprep.subr.bf16.mxu0 0
        %5386 = vmatpush1.bf16.msra.mxu0 0
        %5387 = vmatprep.subr.bf16.mxu0 0
        %5388 = vmatpush1.bf16.msra.mxu0 0
        %5389 = vmatprep.subr.bf16.mxu0 0
        %5390 = vmatpush1.bf16.msra.mxu0 0
        %5391 = vmatprep.subr.bf16.mxu0 0
        %5392 = vmatpush1.bf16.msra.mxu0 0
        %5393 = vmatprep.subr.bf16.mxu0 0
        %5394 = vmatpush1.bf16.msra.mxu0 0
        %5395 = vmatprep.subr.bf16.mxu0 0
        %5396 = vmatpush1.bf16.msra.mxu0 0
        %5397 = vmatprep.subr.bf16.mxu0 0
        %5398 = vmatpush1.bf16.msra.mxu0 0
        %5399 = vmatprep.subr.bf16.mxu0 0
        %5400 = vmatpush1.bf16.msra.mxu0 0
        %5401 = vmatprep.subr.bf16.mxu0 0
        %5402 = vmatpush1.bf16.msra.mxu0 0
        %5403 = vmatprep.subr.bf16.mxu0 0
        %5404 = vmatpush1.bf16.msra.mxu0 0
        %5405 = vmatprep.subr.bf16.mxu0 0
        %5406 = vmatpush1.bf16.msra.mxu0 0
        %5407 = vmatprep.subr.bf16.mxu0 0
        %5408 = vmatpush1.bf16.msra.mxu0 0
        %5409 = vmatprep.subr.bf16.mxu0 0
        %5410 = vmatpush1.bf16.msra.mxu0 0
        %5411 = vmatprep.subr.bf16.mxu0 0
        %5412 = vmatpush1.bf16.msra.mxu0 0
        %5413 = vmatprep.mubr.bf16.mxu0 0
        %5414 = vmatmul.mubr.bf16.gmra.mrb[0].mxu0 %v5355
        %v5415 = vpop.f32.mrb[0].mxu0
        %v5416 = vadd.f32 0.0, %v5415
        %v5417 = vpop.f32.mrb[0].mxu0
        %v5418 = vpop.f32.mrb[0].mxu0
        %v5419 = vadd.f32 0.0, %v5418
        %v5420 = vpop.f32.mrb[0].mxu0
        %5421 = vmatprep.mubr.bf16.mxu0 0
        %5422 = vmatmul.mubr.bf16.gmra.mrb[0].mxu0 %v5358
        %v5423 = vpop.f32.mrb[0].mxu0
        %v5424 = vadd.f32 0.0, %v5423
        %v5425 = vpop.f32.mrb[0].mxu0
        %v5426 = vpop.f32.mrb[0].mxu0
        %v5427 = vadd.f32 0.0, %v5426
        %v5428 = vpop.f32.mrb[0].mxu0
        %5429 = vmatprep.mubr.bf16.mxu0 0
        %5430 = vmatmul.mubr.bf16.gmra.mrb[0].mxu0 %v5361
        %v5431 = vpop.f32.mrb[0].mxu0
        %v5432 = vadd.f32 0.0, %v5431
        %v5433 = vpop.f32.mrb[0].mxu0
        %v5434 = vpop.f32.mrb[0].mxu0
        %v5435 = vadd.f32 0.0, %v5434
        %v5436 = vpop.f32.mrb[0].mxu0
        %5437 = vmatprep.mubr.bf16.mxu0 0
        %5438 = vmatmul.mubr.bf16.gmra.mrb[0].mxu0 %v5364
        %v5439 = vpop.f32.mrb[0].mxu0
        %v5440 = vadd.f32 0.0, %v5439
        %v5441 = vpop.f32.mrb[0].mxu0
        %v5442 = vpop.f32.mrb[0].mxu0
        %v5443 = vadd.f32 0.0, %v5442
        %v5444 = vpop.f32.mrb[0].mxu0
        %5445 = vmatprep.mubr.bf16.mxu0 0
        %5446 = vmatmul.mubr.bf16.gmra.mrb[0].mxu0 %v5367
        %v5447 = vpop.f32.mrb[0].mxu0
        %v5448 = vadd.f32 0.0, %v5447
        %v5449 = vpop.f32.mrb[0].mxu0
        %v5450 = vpop.f32.mrb[0].mxu0
        %v5451 = vadd.f32 0.0, %v5450
        %v5452 = vpop.f32.mrb[0].mxu0
        %5453 = vmatprep.mubr.bf16.mxu0 0
        %5454 = vmatmul.mubr.bf16.gmra.mrb[0].mxu0 %v5370
        %v5455 = vpop.f32.mrb[0].mxu0
        %v5456 = vadd.f32 0.0, %v5455
        %v5457 = vpop.f32.mrb[0].mxu0
        %v5458 = vpop.f32.mrb[0].mxu0
        %v5459 = vadd.f32 0.0, %v5458
        %v5460 = vpop.f32.mrb[0].mxu0
        %5461 = vmatprep.mubr.bf16.mxu0 0
        %5462 = vmatmul.mubr.bf16.gmra.mrb[0].mxu0 %v5373
        %v5463 = vpop.f32.mrb[0].mxu0
        %v5464 = vadd.f32 0.0, %v5463
        %v5465 = vpop.f32.mrb[0].mxu0
        %v5466 = vpop.f32.mrb[0].mxu0
        %v5467 = vadd.f32 0.0, %v5466
        %v5468 = vpop.f32.mrb[0].mxu0
        %5469 = vmatprep.mubr.bf16.mxu0 0
        %5470 = vmatmul.mubr.bf16.gmra.mrb[0].mxu0 %v5376
        %v5471 = vpop.f32.mrb[0].mxu0
        %v5472 = vadd.f32 0.0, %v5471
        %v5473 = vpop.f32.mrb[0].mxu0
        %v5474 = vpop.f32.mrb[0].mxu0
        %v5475 = vadd.f32 0.0, %v5474
        %v5476 = vpop.f32.mrb[0].mxu0
        %5477 = vdwg.mxu0
        %v5479 = vsel %vm1264, %v5281, 0
        %v5482 = vsel %vm1264, %v5284, 0
        %v5485 = vsel %vm1264, %v5287, 0
        %v5488 = vsel %vm1264, %v5290, 0
        %v5491 = vsel %vm1264, %v5293, 0
        %v5494 = vsel %vm1264, %v5296, 0
        %v5497 = vsel %vm1264, %v5299, 0
        %v5500 = vsel %vm1264, %v5302, 0
        %v5503 = vsel %vm1289, %v5351, 0
        %5505 = vmatprep.subr.bf16.mxu0 0
        %5506 = vmatpush1.bf16.msra.mxu0 %v5503
        %5507 = vmatprep.subr.bf16.mxu0 0
        %5508 = vmatpush1.bf16.msra.mxu0 0
        %5509 = vmatprep.subr.bf16.mxu0 0
        %5510 = vmatpush1.bf16.msra.mxu0 0
        %5511 = vmatprep.subr.bf16.mxu0 0
        %5512 = vmatpush1.bf16.msra.mxu0 0
        %5513 = vmatprep.subr.bf16.mxu0 0
        %5514 = vmatpush1.bf16.msra.mxu0 0
        %5515 = vmatprep.subr.bf16.mxu0 0
        %5516 = vmatpush1.bf16.msra.mxu0 0
        %5517 = vmatprep.subr.bf16.mxu0 0
        %5518 = vmatpush1.bf16.msra.mxu0 0
        %5519 = vmatprep.subr.bf16.mxu0 0
        %5520 = vmatpush1.bf16.msra.mxu0 0
        %5521 = vmatprep.subr.bf16.mxu0 0
        %5522 = vmatpush1.bf16.msra.mxu0 0
        %5523 = vmatprep.subr.bf16.mxu0 0
        %5524 = vmatpush1.bf16.msra.mxu0 0
        %5525 = vmatprep.subr.bf16.mxu0 0
        %5526 = vmatpush1.bf16.msra.mxu0 0
        %5527 = vmatprep.subr.bf16.mxu0 0
        %5528 = vmatpush1.bf16.msra.mxu0 0
        %5529 = vmatprep.subr.bf16.mxu0 0
        %5530 = vmatpush1.bf16.msra.mxu0 0
        %5531 = vmatprep.subr.bf16.mxu0 0
        %5532 = vmatpush1.bf16.msra.mxu0 0
        %5533 = vmatprep.subr.bf16.mxu0 0
        %5534 = vmatpush1.bf16.msra.mxu0 0
        %5535 = vmatprep.subr.bf16.mxu0 0
        %5536 = vmatpush1.bf16.msra.mxu0 0
        %5537 = vmatprep.mubr.bf16.mxu0 0
        %5538 = vmatmul.mubr.bf16.gmra.mrb[0].mxu0 %v5479
        %v5539 = vpop.f32.mrb[0].mxu0
        %v5540 = vadd.f32 %v5416, %v5539
        %v5541 = vpop.f32.mrb[0].mxu0
        %v5542 = vpop.f32.mrb[0].mxu0
        %v5543 = vadd.f32 %v5419, %v5542
        %v5544 = vpop.f32.mrb[0].mxu0
        %5545 = vmatprep.mubr.bf16.mxu0 0
        %5546 = vmatmul.mubr.bf16.gmra.mrb[0].mxu0 %v5482
        %v5547 = vpop.f32.mrb[0].mxu0
        %v5548 = vadd.f32 %v5424, %v5547
        %v5549 = vpop.f32.mrb[0].mxu0
        %v5550 = vpop.f32.mrb[0].mxu0
        %v5551 = vadd.f32 %v5427, %v5550
        %v5552 = vpop.f32.mrb[0].mxu0
        %5553 = vmatprep.mubr.bf16.mxu0 0
        %5554 = vmatmul.mubr.bf16.gmra.mrb[0].mxu0 %v5485
        %v5555 = vpop.f32.mrb[0].mxu0
        %v5556 = vadd.f32 %v5432, %v5555
        %v5557 = vpop.f32.mrb[0].mxu0
        %v5558 = vpop.f32.mrb[0].mxu0
        %v5559 = vadd.f32 %v5435, %v5558
        %v5560 = vpop.f32.mrb[0].mxu0
        %5561 = vmatprep.mubr.bf16.mxu0 0
        %5562 = vmatmul.mubr.bf16.gmra.mrb[0].mxu0 %v5488
        %v5563 = vpop.f32.mrb[0].mxu0
        %v5564 = vadd.f32 %v5440, %v5563
        %v5565 = vpop.f32.mrb[0].mxu0
        %v5566 = vpop.f32.mrb[0].mxu0
        %v5567 = vadd.f32 %v5443, %v5566
        %v5568 = vpop.f32.mrb[0].mxu0
        %5569 = vmatprep.mubr.bf16.mxu0 0
        %5570 = vmatmul.mubr.bf16.gmra.mrb[0].mxu0 %v5491
        %v5571 = vpop.f32.mrb[0].mxu0
        %v5572 = vadd.f32 %v5448, %v5571
        %v5573 = vpop.f32.mrb[0].mxu0
        %v5574 = vpop.f32.mrb[0].mxu0
        %v5575 = vadd.f32 %v5451, %v5574
        %v5576 = vpop.f32.mrb[0].mxu0
        %5577 = vmatprep.mubr.bf16.mxu0 0
        %5578 = vmatmul.mubr.bf16.gmra.mrb[0].mxu0 %v5494
        %v5579 = vpop.f32.mrb[0].mxu0
        %v5580 = vadd.f32 %v5456, %v5579
        %v5581 = vpop.f32.mrb[0].mxu0
        %v5582 = vpop.f32.mrb[0].mxu0
        %v5583 = vadd.f32 %v5459, %v5582
        %v5584 = vpop.f32.mrb[0].mxu0
        %5585 = vmatprep.mubr.bf16.mxu0 0
        %5586 = vmatmul.mubr.bf16.gmra.mrb[0].mxu0 %v5497
        %v5587 = vpop.f32.mrb[0].mxu0
        %v5588 = vadd.f32 %v5464, %v5587
        %v5589 = vpop.f32.mrb[0].mxu0
        %v5590 = vpop.f32.mrb[0].mxu0
        %v5591 = vadd.f32 %v5467, %v5590
        %v5592 = vpop.f32.mrb[0].mxu0
        %5593 = vmatprep.mubr.bf16.mxu0 0
        %5594 = vmatmul.mubr.bf16.gmra.mrb[0].mxu0 %v5500
        %v5595 = vpop.f32.mrb[0].mxu0
        %v5596 = vadd.f32 %v5472, %v5595
        %v5597 = vpop.f32.mrb[0].mxu0
        %v5598 = vpop.f32.mrb[0].mxu0
        %v5599 = vadd.f32 %v5475, %v5598
        %v5600 = vpop.f32.mrb[0].mxu0
        %5601 = vdwg.mxu0
        %s5602 = scalar_lea.vmem %s7, 12
        %v5603 = vld [vmem:[%s5602] sm:$0x3]
        %v5605 = vsel %vm1264, %v5329, 0
        %v5608 = vsel %vm1264, %v5332, 0
        %v5611 = vsel %vm1264, %v5335, 0
        %v5614 = vsel %vm1264, %v5338, 0
        %v5617 = vsel %vm1264, %v5341, 0
        %v5620 = vsel %vm1264, %v5344, 0
        %v5623 = vsel %vm1264, %v5347, 0
        %v5626 = vsel %vm1264, %v5350, 0
        %v5629 = vsel %vm1289, %v5603, 0
        %5631 = vmatprep.subr.bf16.mxu0 0
        %5632 = vmatpush1.bf16.msra.mxu0 %v5629
        %5633 = vmatprep.subr.bf16.mxu0 0
        %5634 = vmatpush1.bf16.msra.mxu0 0
        %5635 = vmatprep.subr.bf16.mxu0 0
        %5636 = vmatpush1.bf16.msra.mxu0 0
        %5637 = vmatprep.subr.bf16.mxu0 0
        %5638 = vmatpush1.bf16.msra.mxu0 0
        %5639 = vmatprep.subr.bf16.mxu0 0
        %5640 = vmatpush1.bf16.msra.mxu0 0
        %5641 = vmatprep.subr.bf16.mxu0 0
        %5642 = vmatpush1.bf16.msra.mxu0 0
        %5643 = vmatprep.subr.bf16.mxu0 0
        %5644 = vmatpush1.bf16.msra.mxu0 0
        %5645 = vmatprep.subr.bf16.mxu0 0
        %5646 = vmatpush1.bf16.msra.mxu0 0
        %5647 = vmatprep.subr.bf16.mxu0 0
        %5648 = vmatpush1.bf16.msra.mxu0 0
        %5649 = vmatprep.subr.bf16.mxu0 0
        %5650 = vmatpush1.bf16.msra.mxu0 0
        %5651 = vmatprep.subr.bf16.mxu0 0
        %5652 = vmatpush1.bf16.msra.mxu0 0
        %5653 = vmatprep.subr.bf16.mxu0 0
        %5654 = vmatpush1.bf16.msra.mxu0 0
        %5655 = vmatprep.subr.bf16.mxu0 0
        %5656 = vmatpush1.bf16.msra.mxu0 0
        %5657 = vmatprep.subr.bf16.mxu0 0
        %5658 = vmatpush1.bf16.msra.mxu0 0
        %5659 = vmatprep.subr.bf16.mxu0 0
        %5660 = vmatpush1.bf16.msra.mxu0 0
        %5661 = vmatprep.subr.bf16.mxu0 0
        %5662 = vmatpush1.bf16.msra.mxu0 0
        %5663 = vmatprep.mubr.bf16.mxu0 0
        %5664 = vmatmul.mubr.bf16.gmra.mrb[0].mxu0 %v5605
        %v5665 = vpop.f32.mrb[0].mxu0
        %v5666 = vadd.f32 0.0, %v5665
        %v5667 = vpop.f32.mrb[0].mxu0
        %v5668 = vpop.f32.mrb[0].mxu0
        %v5669 = vadd.f32 0.0, %v5668
        %v5670 = vpop.f32.mrb[0].mxu0
        %5671 = vmatprep.mubr.bf16.mxu0 0
        %5672 = vmatmul.mubr.bf16.gmra.mrb[0].mxu0 %v5608
        %v5673 = vpop.f32.mrb[0].mxu0
        %v5674 = vadd.f32 0.0, %v5673
        %v5675 = vpop.f32.mrb[0].mxu0
        %v5676 = vpop.f32.mrb[0].mxu0
        %v5677 = vadd.f32 0.0, %v5676
        %v5678 = vpop.f32.mrb[0].mxu0
        %5679 = vmatprep.mubr.bf16.mxu0 0
        %5680 = vmatmul.mubr.bf16.gmra.mrb[0].mxu0 %v5611
        %v5681 = vpop.f32.mrb[0].mxu0
        %v5682 = vadd.f32 0.0, %v5681
        %v5683 = vpop.f32.mrb[0].mxu0
        %v5684 = vpop.f32.mrb[0].mxu0
        %v5685 = vadd.f32 0.0, %v5684
        %v5686 = vpop.f32.mrb[0].mxu0
        %5687 = vmatprep.mubr.bf16.mxu0 0
        %5688 = vmatmul.mubr.bf16.gmra.mrb[0].mxu0 %v5614
        %v5689 = vpop.f32.mrb[0].mxu0
        %v5690 = vadd.f32 0.0, %v5689
        %v5691 = vpop.f32.mrb[0].mxu0
        %v5692 = vpop.f32.mrb[0].mxu0
        %v5693 = vadd.f32 0.0, %v5692
        %v5694 = vpop.f32.mrb[0].mxu0
        %5695 = vmatprep.mubr.bf16.mxu0 0
        %5696 = vmatmul.mubr.bf16.gmra.mrb[0].mxu0 %v5617
        %v5697 = vpop.f32.mrb[0].mxu0
        %v5698 = vadd.f32 0.0, %v5697
        %v5699 = vpop.f32.mrb[0].mxu0
        %v5700 = vpop.f32.mrb[0].mxu0
        %v5701 = vadd.f32 0.0, %v5700
        %v5702 = vpop.f32.mrb[0].mxu0
        %5703 = vmatprep.mubr.bf16.mxu0 0
        %5704 = vmatmul.mubr.bf16.gmra.mrb[0].mxu0 %v5620
        %v5705 = vpop.f32.mrb[0].mxu0
        %v5706 = vadd.f32 0.0, %v5705
        %v5707 = vpop.f32.mrb[0].mxu0
        %v5708 = vpop.f32.mrb[0].mxu0
        %v5709 = vadd.f32 0.0, %v5708
        %v5710 = vpop.f32.mrb[0].mxu0
        %5711 = vmatprep.mubr.bf16.mxu0 0
        %5712 = vmatmul.mubr.bf16.gmra.mrb[0].mxu0 %v5623
        %v5713 = vpop.f32.mrb[0].mxu0
        %v5714 = vadd.f32 0.0, %v5713
        %v5715 = vpop.f32.mrb[0].mxu0
        %v5716 = vpop.f32.mrb[0].mxu0
        %v5717 = vadd.f32 0.0, %v5716
        %v5718 = vpop.f32.mrb[0].mxu0
        %5719 = vmatprep.mubr.bf16.mxu0 0
        %5720 = vmatmul.mubr.bf16.gmra.mrb[0].mxu0 %v5626
        %v5721 = vpop.f32.mrb[0].mxu0
        %v5722 = vadd.f32 0.0, %v5721
        %v5723 = vpop.f32.mrb[0].mxu0
        %v5724 = vpop.f32.mrb[0].mxu0
        %v5725 = vadd.f32 0.0, %v5724
        %v5726 = vpop.f32.mrb[0].mxu0
        %5727 = vdwg.mxu0
        %v5728 = vadd.f32 %v5540, %v5666
        %v5729 = vadd.f32 %v5543, %v5669
        %v5730 = vadd.f32 %v5548, %v5674
        %v5731 = vadd.f32 %v5551, %v5677
        %v5732 = vadd.f32 %v5556, %v5682
        %v5733 = vadd.f32 %v5559, %v5685
        %v5734 = vadd.f32 %v5564, %v5690
        %v5735 = vadd.f32 %v5567, %v5693
        %v5736 = vadd.f32 %v5572, %v5698
        %v5737 = vadd.f32 %v5575, %v5701
        %v5738 = vadd.f32 %v5580, %v5706
        %v5739 = vadd.f32 %v5583, %v5709
        %v5740 = vadd.f32 %v5588, %v5714
        %v5741 = vadd.f32 %v5591, %v5717
        %v5742 = vadd.f32 %v5596, %v5722
        %v5743 = vadd.f32 %v5599, %v5725
        %v5744 = vld [vmem:[#allocation4] sm:$0xff]
        %v5745 = vld [vmem:[#allocation4 + $0x8] sm:$0xff]
        %v5746 = vld [vmem:[#allocation4 + $0x10] sm:$0xff]
        %v5747 = vld [vmem:[#allocation4 + $0x18] sm:$0xff]
        %v5748 = vld [vmem:[#allocation4 + $0x20] sm:$0xff]
        %v5749 = vld [vmem:[#allocation4 + $0x28] sm:$0xff]
        %v5750 = vld [vmem:[#allocation4 + $0x30] sm:$0xff]
        %v5751 = vld [vmem:[#allocation4 + $0x38] sm:$0xff]
        %v5752 = vld [vmem:[#allocation4 + $0x40] sm:$0xff]
        %v5753 = vld [vmem:[#allocation4 + $0x48] sm:$0xff]
        %v5754 = vld [vmem:[#allocation4 + $0x50] sm:$0xff]
        %v5755 = vld [vmem:[#allocation4 + $0x58] sm:$0xff]
        %v5756 = vld [vmem:[#allocation4 + $0x60] sm:$0xff]
        %v5757 = vld [vmem:[#allocation4 + $0x68] sm:$0xff]
        %v5758 = vld [vmem:[#allocation4 + $0x70] sm:$0xff]
        %v5759 = vld [vmem:[#allocation4 + $0x78] sm:$0xff]
        %v5760 = vadd.f32 %v5744, %v5728
        %v5761 = vadd.f32 %v5745, %v5729
        %v5762 = vadd.f32 %v5746, %v5730
        %v5763 = vadd.f32 %v5747, %v5731
        %v5764 = vadd.f32 %v5748, %v5732
        %v5765 = vadd.f32 %v5749, %v5733
        %v5766 = vadd.f32 %v5750, %v5734
        %v5767 = vadd.f32 %v5751, %v5735
        %v5768 = vadd.f32 %v5752, %v5736
        %v5769 = vadd.f32 %v5753, %v5737
        %v5770 = vadd.f32 %v5754, %v5738
        %v5771 = vadd.f32 %v5755, %v5739
        %v5772 = vadd.f32 %v5756, %v5740
        %v5773 = vadd.f32 %v5757, %v5741
        %v5774 = vadd.f32 %v5758, %v5742
        %v5775 = vadd.f32 %v5759, %v5743
        %5776 = vst.msk [vmem:[#allocation4] sm:$0xff] %vm1583, %v5760
        %5777 = vst.msk [vmem:[#allocation4 + $0x8] sm:$0xff] %vm1583, %v5761
        %5778 = vst.msk [vmem:[#allocation4 + $0x10] sm:$0xff] %vm1583, %v5762
        %5779 = vst.msk [vmem:[#allocation4 + $0x18] sm:$0xff] %vm1583, %v5763
        %5780 = vst.msk [vmem:[#allocation4 + $0x20] sm:$0xff] %vm1583, %v5764
        %5781 = vst.msk [vmem:[#allocation4 + $0x28] sm:$0xff] %vm1583, %v5765
        %5782 = vst.msk [vmem:[#allocation4 + $0x30] sm:$0xff] %vm1583, %v5766
        %5783 = vst.msk [vmem:[#allocation4 + $0x38] sm:$0xff] %vm1583, %v5767
        %5784 = vst.msk [vmem:[#allocation4 + $0x40] sm:$0xff] %vm1583, %v5768
        %5785 = vst.msk [vmem:[#allocation4 + $0x48] sm:$0xff] %vm1583, %v5769
        %5786 = vst.msk [vmem:[#allocation4 + $0x50] sm:$0xff] %vm1583, %v5770
        %5787 = vst.msk [vmem:[#allocation4 + $0x58] sm:$0xff] %vm1583, %v5771
        %5788 = vst.msk [vmem:[#allocation4 + $0x60] sm:$0xff] %vm1583, %v5772
        %5789 = vst.msk [vmem:[#allocation4 + $0x68] sm:$0xff] %vm1583, %v5773
        %5790 = vst.msk [vmem:[#allocation4 + $0x70] sm:$0xff] %vm1583, %v5774
        %5791 = vst.msk [vmem:[#allocation4 + $0x78] sm:$0xff] %vm1583, %v5775
        %v5792 = vld [vmem:[%s5181 + $0x8] sm:$0xf0]
        %v5793 = vld [vmem:[%s5181 + $0x10] sm:$0xf]
        %v5794 = vld [vmem:[%s5181 + $0x28] sm:$0xf0]
        %v5795 = vld [vmem:[%s5181 + $0x30] sm:$0xf]
        %v5796 = vld [vmem:[%s5181 + $0x48] sm:$0xf0]
        %v5797 = vld [vmem:[%s5181 + $0x50] sm:$0xf]
        %v5798 = vld [vmem:[%s5181 + $0x68] sm:$0xf0]
        %v5799 = vld [vmem:[%s5181 + $0x70] sm:$0xf]
        %v5800 = vld [vmem:[%s5181 + $0x88] sm:$0xf0]
        %v5801 = vld [vmem:[%s5181 + $0x90] sm:$0xf]
        %v5802 = vld [vmem:[%s5181 + $0xa8] sm:$0xf0]
        %v5803 = vld [vmem:[%s5181 + $0xb0] sm:$0xf]
        %v5804 = vld [vmem:[%s5181 + $0xc8] sm:$0xf0]
        %v5805 = vld [vmem:[%s5181 + $0xd0] sm:$0xf]
        %v5806 = vld [vmem:[%s5181 + $0xe8] sm:$0xf0]
        %v5807 = vld [vmem:[%s5181 + $0xf0] sm:$0xf]
        %v5808 = vld [vmem:[%s5181 + $0x488] sm:$0xf0]
        %v5809 = vld [vmem:[%s5181 + $0x490] sm:$0xf]
        %v5810 = vld [vmem:[%s5181 + $0x4a8] sm:$0xf0]
        %v5811 = vld [vmem:[%s5181 + $0x4b0] sm:$0xf]
        %v5812 = vld [vmem:[%s5181 + $0x4c8] sm:$0xf0]
        %v5813 = vld [vmem:[%s5181 + $0x4d0] sm:$0xf]
        %v5814 = vld [vmem:[%s5181 + $0x4e8] sm:$0xf0]
        %v5815 = vld [vmem:[%s5181 + $0x4f0] sm:$0xf]
        %v5816 = vld [vmem:[%s5181 + $0x508] sm:$0xf0]
        %v5817 = vld [vmem:[%s5181 + $0x510] sm:$0xf]
        %v5818 = vld [vmem:[%s5181 + $0x528] sm:$0xf0]
        %v5819 = vld [vmem:[%s5181 + $0x530] sm:$0xf]
        %v5820 = vld [vmem:[%s5181 + $0x548] sm:$0xf0]
        %v5821 = vld [vmem:[%s5181 + $0x550] sm:$0xf]
        %v5822 = vld [vmem:[%s5181 + $0x568] sm:$0xf0]
        %v5823 = vld [vmem:[%s5181 + $0x570] sm:$0xf]
        %v5856 = vrot.slane %v5792, 4
        %v5857 = vrot.slane %v5793, 4
        %v5858 = vsel %vm1238, %v5856, %v5857
        %v5859 = vrot.slane %v5794, 4
        %v5860 = vrot.slane %v5795, 4
        %v5861 = vsel %vm1238, %v5859, %v5860
        %v5862 = vrot.slane %v5796, 4
        %v5863 = vrot.slane %v5797, 4
        %v5864 = vsel %vm1238, %v5862, %v5863
        %v5865 = vrot.slane %v5798, 4
        %v5866 = vrot.slane %v5799, 4
        %v5867 = vsel %vm1238, %v5865, %v5866
        %v5868 = vrot.slane %v5800, 4
        %v5869 = vrot.slane %v5801, 4
        %v5870 = vsel %vm1238, %v5868, %v5869
        %v5871 = vrot.slane %v5802, 4
        %v5872 = vrot.slane %v5803, 4
        %v5873 = vsel %vm1238, %v5871, %v5872
        %v5874 = vrot.slane %v5804, 4
        %v5875 = vrot.slane %v5805, 4
        %v5876 = vsel %vm1238, %v5874, %v5875
        %v5877 = vrot.slane %v5806, 4
        %v5878 = vrot.slane %v5807, 4
        %v5879 = vsel %vm1238, %v5877, %v5878
        %v5880 = vrot.slane %v5808, 4
        %v5881 = vrot.slane %v5809, 4
        %v5882 = vsel %vm1238, %v5880, %v5881
        %v5883 = vrot.slane %v5810, 4
        %v5884 = vrot.slane %v5811, 4
        %v5885 = vsel %vm1238, %v5883, %v5884
        %v5886 = vrot.slane %v5812, 4
        %v5887 = vrot.slane %v5813, 4
        %v5888 = vsel %vm1238, %v5886, %v5887
        %v5889 = vrot.slane %v5814, 4
        %v5890 = vrot.slane %v5815, 4
        %v5891 = vsel %vm1238, %v5889, %v5890
        %v5892 = vrot.slane %v5816, 4
        %v5893 = vrot.slane %v5817, 4
        %v5894 = vsel %vm1238, %v5892, %v5893
        %v5895 = vrot.slane %v5818, 4
        %v5896 = vrot.slane %v5819, 4
        %v5897 = vsel %vm1238, %v5895, %v5896
        %v5898 = vrot.slane %v5820, 4
        %v5899 = vrot.slane %v5821, 4
        %v5900 = vsel %vm1238, %v5898, %v5899
        %v5901 = vrot.slane %v5822, 4
        %v5902 = vrot.slane %v5823, 4
        %v5903 = vsel %vm1238, %v5901, %v5902
        %s5904 = scalar_lea.vmem %s7, 2
        %v5905 = vld [vmem:[%s5904] sm:$0x3]
        %s5906 = scalar_lea.vmem %s7, 14
        %v5907 = vld [vmem:[%s5906] sm:$0x3]
        %v5909 = vsel %vm1264, %v5882, 0
        %v5912 = vsel %vm1264, %v5885, 0
        %v5915 = vsel %vm1264, %v5888, 0
        %v5918 = vsel %vm1264, %v5891, 0
        %v5921 = vsel %vm1264, %v5894, 0
        %v5924 = vsel %vm1264, %v5897, 0
        %v5927 = vsel %vm1264, %v5900, 0
        %v5930 = vsel %vm1264, %v5903, 0
        %v5933 = vsel %vm1289, %v5907, 0
        %5935 = vmatprep.subr.bf16.mxu0 0
        %5936 = vmatpush1.bf16.msra.mxu0 %v5933
        %5937 = vmatprep.subr.bf16.mxu0 0
        %5938 = vmatpush1.bf16.msra.mxu0 0
        %5939 = vmatprep.subr.bf16.mxu0 0
        %5940 = vmatpush1.bf16.msra.mxu0 0
        %5941 = vmatprep.subr.bf16.mxu0 0
        %5942 = vmatpush1.bf16.msra.mxu0 0
        %5943 = vmatprep.subr.bf16.mxu0 0
        %5944 = vmatpush1.bf16.msra.mxu0 0
        %5945 = vmatprep.subr.bf16.mxu0 0
        %5946 = vmatpush1.bf16.msra.mxu0 0
        %5947 = vmatprep.subr.bf16.mxu0 0
        %5948 = vmatpush1.bf16.msra.mxu0 0
        %5949 = vmatprep.subr.bf16.mxu0 0
        %5950 = vmatpush1.bf16.msra.mxu0 0
        %5951 = vmatprep.subr.bf16.mxu0 0
        %5952 = vmatpush1.bf16.msra.mxu0 0
        %5953 = vmatprep.subr.bf16.mxu0 0
        %5954 = vmatpush1.bf16.msra.mxu0 0
        %5955 = vmatprep.subr.bf16.mxu0 0
        %5956 = vmatpush1.bf16.msra.mxu0 0
        %5957 = vmatprep.subr.bf16.mxu0 0
        %5958 = vmatpush1.bf16.msra.mxu0 0
        %5959 = vmatprep.subr.bf16.mxu0 0
        %5960 = vmatpush1.bf16.msra.mxu0 0
        %5961 = vmatprep.subr.bf16.mxu0 0
        %5962 = vmatpush1.bf16.msra.mxu0 0
        %5963 = vmatprep.subr.bf16.mxu0 0
        %5964 = vmatpush1.bf16.msra.mxu0 0
        %5965 = vmatprep.subr.bf16.mxu0 0
        %5966 = vmatpush1.bf16.msra.mxu0 0
        %5967 = vmatprep.mubr.bf16.mxu0 0
        %5968 = vmatmul.mubr.bf16.gmra.mrb[0].mxu0 %v5909
        %v5969 = vpop.f32.mrb[0].mxu0
        %v5970 = vadd.f32 0.0, %v5969
        %v5971 = vpop.f32.mrb[0].mxu0
        %v5972 = vpop.f32.mrb[0].mxu0
        %v5973 = vadd.f32 0.0, %v5972
        %v5974 = vpop.f32.mrb[0].mxu0
        %5975 = vmatprep.mubr.bf16.mxu0 0
        %5976 = vmatmul.mubr.bf16.gmra.mrb[0].mxu0 %v5912
        %v5977 = vpop.f32.mrb[0].mxu0
        %v5978 = vadd.f32 0.0, %v5977
        %v5979 = vpop.f32.mrb[0].mxu0
        %v5980 = vpop.f32.mrb[0].mxu0
        %v5981 = vadd.f32 0.0, %v5980
        %v5982 = vpop.f32.mrb[0].mxu0
        %5983 = vmatprep.mubr.bf16.mxu0 0
        %5984 = vmatmul.mubr.bf16.gmra.mrb[0].mxu0 %v5915
        %v5985 = vpop.f32.mrb[0].mxu0
        %v5986 = vadd.f32 0.0, %v5985
        %v5987 = vpop.f32.mrb[0].mxu0
        %v5988 = vpop.f32.mrb[0].mxu0
        %v5989 = vadd.f32 0.0, %v5988
        %v5990 = vpop.f32.mrb[0].mxu0
        %5991 = vmatprep.mubr.bf16.mxu0 0
        %5992 = vmatmul.mubr.bf16.gmra.mrb[0].mxu0 %v5918
        %v5993 = vpop.f32.mrb[0].mxu0
        %v5994 = vadd.f32 0.0, %v5993
        %v5995 = vpop.f32.mrb[0].mxu0
        %v5996 = vpop.f32.mrb[0].mxu0
        %v5997 = vadd.f32 0.0, %v5996
        %v5998 = vpop.f32.mrb[0].mxu0
        %5999 = vmatprep.mubr.bf16.mxu0 0
        %6000 = vmatmul.mubr.bf16.gmra.mrb[0].mxu0 %v5921
        %v6001 = vpop.f32.mrb[0].mxu0
        %v6002 = vadd.f32 0.0, %v6001
        %v6003 = vpop.f32.mrb[0].mxu0
        %v6004 = vpop.f32.mrb[0].mxu0
        %v6005 = vadd.f32 0.0, %v6004
        %v6006 = vpop.f32.mrb[0].mxu0
        %6007 = vmatprep.mubr.bf16.mxu0 0
        %6008 = vmatmul.mubr.bf16.gmra.mrb[0].mxu0 %v5924
        %v6009 = vpop.f32.mrb[0].mxu0
        %v6010 = vadd.f32 0.0, %v6009
        %v6011 = vpop.f32.mrb[0].mxu0
        %v6012 = vpop.f32.mrb[0].mxu0
        %v6013 = vadd.f32 0.0, %v6012
        %v6014 = vpop.f32.mrb[0].mxu0
        %6015 = vmatprep.mubr.bf16.mxu0 0
        %6016 = vmatmul.mubr.bf16.gmra.mrb[0].mxu0 %v5927
        %v6017 = vpop.f32.mrb[0].mxu0
        %v6018 = vadd.f32 0.0, %v6017
        %v6019 = vpop.f32.mrb[0].mxu0
        %v6020 = vpop.f32.mrb[0].mxu0
        %v6021 = vadd.f32 0.0, %v6020
        %v6022 = vpop.f32.mrb[0].mxu0
        %6023 = vmatprep.mubr.bf16.mxu0 0
        %6024 = vmatmul.mubr.bf16.gmra.mrb[0].mxu0 %v5930
        %v6025 = vpop.f32.mrb[0].mxu0
        %v6026 = vadd.f32 0.0, %v6025
        %v6027 = vpop.f32.mrb[0].mxu0
        %v6028 = vpop.f32.mrb[0].mxu0
        %v6029 = vadd.f32 0.0, %v6028
        %v6030 = vpop.f32.mrb[0].mxu0
        %6031 = vdwg.mxu0
        %v6033 = vsel %vm1264, %v5858, 0
        %v6036 = vsel %vm1264, %v5861, 0
        %v6039 = vsel %vm1264, %v5864, 0
        %v6042 = vsel %vm1264, %v5867, 0
        %v6045 = vsel %vm1264, %v5870, 0
        %v6048 = vsel %vm1264, %v5873, 0
        %v6051 = vsel %vm1264, %v5876, 0
        %v6054 = vsel %vm1264, %v5879, 0
        %v6057 = vsel %vm1289, %v5905, 0
        %6059 = vmatprep.subr.bf16.mxu0 0
        %6060 = vmatpush1.bf16.msra.mxu0 %v6057
        %6061 = vmatprep.subr.bf16.mxu0 0
        %6062 = vmatpush1.bf16.msra.mxu0 0
        %6063 = vmatprep.subr.bf16.mxu0 0
        %6064 = vmatpush1.bf16.msra.mxu0 0
        %6065 = vmatprep.subr.bf16.mxu0 0
        %6066 = vmatpush1.bf16.msra.mxu0 0
        %6067 = vmatprep.subr.bf16.mxu0 0
        %6068 = vmatpush1.bf16.msra.mxu0 0
        %6069 = vmatprep.subr.bf16.mxu0 0
        %6070 = vmatpush1.bf16.msra.mxu0 0
        %6071 = vmatprep.subr.bf16.mxu0 0
        %6072 = vmatpush1.bf16.msra.mxu0 0
        %6073 = vmatprep.subr.bf16.mxu0 0
        %6074 = vmatpush1.bf16.msra.mxu0 0
        %6075 = vmatprep.subr.bf16.mxu0 0
        %6076 = vmatpush1.bf16.msra.mxu0 0
        %6077 = vmatprep.subr.bf16.mxu0 0
        %6078 = vmatpush1.bf16.msra.mxu0 0
        %6079 = vmatprep.subr.bf16.mxu0 0
        %6080 = vmatpush1.bf16.msra.mxu0 0
        %6081 = vmatprep.subr.bf16.mxu0 0
        %6082 = vmatpush1.bf16.msra.mxu0 0
        %6083 = vmatprep.subr.bf16.mxu0 0
        %6084 = vmatpush1.bf16.msra.mxu0 0
        %6085 = vmatprep.subr.bf16.mxu0 0
        %6086 = vmatpush1.bf16.msra.mxu0 0
        %6087 = vmatprep.subr.bf16.mxu0 0
        %6088 = vmatpush1.bf16.msra.mxu0 0
        %6089 = vmatprep.subr.bf16.mxu0 0
        %6090 = vmatpush1.bf16.msra.mxu0 0
        %6091 = vmatprep.mubr.bf16.mxu0 0
        %6092 = vmatmul.mubr.bf16.gmra.mrb[0].mxu0 %v6033
        %v6093 = vpop.f32.mrb[0].mxu0
        %v6094 = vadd.f32 %v5970, %v6093
        %v6095 = vpop.f32.mrb[0].mxu0
        %v6096 = vpop.f32.mrb[0].mxu0
        %v6097 = vadd.f32 %v5973, %v6096
        %v6098 = vpop.f32.mrb[0].mxu0
        %6099 = vmatprep.mubr.bf16.mxu0 0
        %6100 = vmatmul.mubr.bf16.gmra.mrb[0].mxu0 %v6036
        %v6101 = vpop.f32.mrb[0].mxu0
        %v6102 = vadd.f32 %v5978, %v6101
        %v6103 = vpop.f32.mrb[0].mxu0
        %v6104 = vpop.f32.mrb[0].mxu0
        %v6105 = vadd.f32 %v5981, %v6104
        %v6106 = vpop.f32.mrb[0].mxu0
        %6107 = vmatprep.mubr.bf16.mxu0 0
        %6108 = vmatmul.mubr.bf16.gmra.mrb[0].mxu0 %v6039
        %v6109 = vpop.f32.mrb[0].mxu0
        %v6110 = vadd.f32 %v5986, %v6109
        %v6111 = vpop.f32.mrb[0].mxu0
        %v6112 = vpop.f32.mrb[0].mxu0
        %v6113 = vadd.f32 %v5989, %v6112
        %v6114 = vpop.f32.mrb[0].mxu0
        %6115 = vmatprep.mubr.bf16.mxu0 0
        %6116 = vmatmul.mubr.bf16.gmra.mrb[0].mxu0 %v6042
        %v6117 = vpop.f32.mrb[0].mxu0
        %v6118 = vadd.f32 %v5994, %v6117
        %v6119 = vpop.f32.mrb[0].mxu0
        %v6120 = vpop.f32.mrb[0].mxu0
        %v6121 = vadd.f32 %v5997, %v6120
        %v6122 = vpop.f32.mrb[0].mxu0
        %6123 = vmatprep.mubr.bf16.mxu0 0
        %6124 = vmatmul.mubr.bf16.gmra.mrb[0].mxu0 %v6045
        %v6125 = vpop.f32.mrb[0].mxu0
        %v6126 = vadd.f32 %v6002, %v6125
        %v6127 = vpop.f32.mrb[0].mxu0
        %v6128 = vpop.f32.mrb[0].mxu0
        %v6129 = vadd.f32 %v6005, %v6128
        %v6130 = vpop.f32.mrb[0].mxu0
        %6131 = vmatprep.mubr.bf16.mxu0 0
        %6132 = vmatmul.mubr.bf16.gmra.mrb[0].mxu0 %v6048
        %v6133 = vpop.f32.mrb[0].mxu0
        %v6134 = vadd.f32 %v6010, %v6133
        %v6135 = vpop.f32.mrb[0].mxu0
        %v6136 = vpop.f32.mrb[0].mxu0
        %v6137 = vadd.f32 %v6013, %v6136
        %v6138 = vpop.f32.mrb[0].mxu0
        %6139 = vmatprep.mubr.bf16.mxu0 0
        %6140 = vmatmul.mubr.bf16.gmra.mrb[0].mxu0 %v6051
        %v6141 = vpop.f32.mrb[0].mxu0
        %v6142 = vadd.f32 %v6018, %v6141
        %v6143 = vpop.f32.mrb[0].mxu0
        %v6144 = vpop.f32.mrb[0].mxu0
        %v6145 = vadd.f32 %v6021, %v6144
        %v6146 = vpop.f32.mrb[0].mxu0
        %6147 = vmatprep.mubr.bf16.mxu0 0
        %6148 = vmatmul.mubr.bf16.gmra.mrb[0].mxu0 %v6054
        %v6149 = vpop.f32.mrb[0].mxu0
        %v6150 = vadd.f32 %v6026, %v6149
        %v6151 = vpop.f32.mrb[0].mxu0
        %v6152 = vpop.f32.mrb[0].mxu0
        %v6153 = vadd.f32 %v6029, %v6152
        %v6154 = vpop.f32.mrb[0].mxu0
        %6155 = vdwg.mxu0
        %v6156 = vld [vmem:[#allocation4] sm:$0xff]
        %v6157 = vld [vmem:[#allocation4 + $0x8] sm:$0xff]
        %v6158 = vld [vmem:[#allocation4 + $0x10] sm:$0xff]
        %v6159 = vld [vmem:[#allocation4 + $0x18] sm:$0xff]
        %v6160 = vld [vmem:[#allocation4 + $0x20] sm:$0xff]
        %v6161 = vld [vmem:[#allocation4 + $0x28] sm:$0xff]
        %v6162 = vld [vmem:[#allocation4 + $0x30] sm:$0xff]
        %v6163 = vld [vmem:[#allocation4 + $0x38] sm:$0xff]
        %v6164 = vld [vmem:[#allocation4 + $0x40] sm:$0xff]
        %v6165 = vld [vmem:[#allocation4 + $0x48] sm:$0xff]
        %v6166 = vld [vmem:[#allocation4 + $0x50] sm:$0xff]
        %v6167 = vld [vmem:[#allocation4 + $0x58] sm:$0xff]
        %v6168 = vld [vmem:[#allocation4 + $0x60] sm:$0xff]
        %v6169 = vld [vmem:[#allocation4 + $0x68] sm:$0xff]
        %v6170 = vld [vmem:[#allocation4 + $0x70] sm:$0xff]
        %v6171 = vld [vmem:[#allocation4 + $0x78] sm:$0xff]
        %v6172 = vadd.f32 %v6156, %v6094
        %v6173 = vadd.f32 %v6157, %v6097
        %v6174 = vadd.f32 %v6158, %v6102
        %v6175 = vadd.f32 %v6159, %v6105
        %v6176 = vadd.f32 %v6160, %v6110
        %v6177 = vadd.f32 %v6161, %v6113
        %v6178 = vadd.f32 %v6162, %v6118
        %v6179 = vadd.f32 %v6163, %v6121
        %v6180 = vadd.f32 %v6164, %v6126
        %v6181 = vadd.f32 %v6165, %v6129
        %v6182 = vadd.f32 %v6166, %v6134
        %v6183 = vadd.f32 %v6167, %v6137
        %v6184 = vadd.f32 %v6168, %v6142
        %v6185 = vadd.f32 %v6169, %v6145
        %v6186 = vadd.f32 %v6170, %v6150
        %v6187 = vadd.f32 %v6171, %v6153
        %6188 = vst.msk [vmem:[#allocation4] sm:$0xff] %vm1583, %v6172
        %6189 = vst.msk [vmem:[#allocation4 + $0x8] sm:$0xff] %vm1583, %v6173
        %6190 = vst.msk [vmem:[#allocation4 + $0x10] sm:$0xff] %vm1583, %v6174
        %6191 = vst.msk [vmem:[#allocation4 + $0x18] sm:$0xff] %vm1583, %v6175
        %6192 = vst.msk [vmem:[#allocation4 + $0x20] sm:$0xff] %vm1583, %v6176
        %6193 = vst.msk [vmem:[#allocation4 + $0x28] sm:$0xff] %vm1583, %v6177
        %6194 = vst.msk [vmem:[#allocation4 + $0x30] sm:$0xff] %vm1583, %v6178
        %6195 = vst.msk [vmem:[#allocation4 + $0x38] sm:$0xff] %vm1583, %v6179
        %6196 = vst.msk [vmem:[#allocation4 + $0x40] sm:$0xff] %vm1583, %v6180
        %6197 = vst.msk [vmem:[#allocation4 + $0x48] sm:$0xff] %vm1583, %v6181
        %6198 = vst.msk [vmem:[#allocation4 + $0x50] sm:$0xff] %vm1583, %v6182
        %6199 = vst.msk [vmem:[#allocation4 + $0x58] sm:$0xff] %vm1583, %v6183
        %6200 = vst.msk [vmem:[#allocation4 + $0x60] sm:$0xff] %vm1583, %v6184
        %6201 = vst.msk [vmem:[#allocation4 + $0x68] sm:$0xff] %vm1583, %v6185
        %6202 = vst.msk [vmem:[#allocation4 + $0x70] sm:$0xff] %vm1583, %v6186
        %6203 = vst.msk [vmem:[#allocation4 + $0x78] sm:$0xff] %vm1583, %v6187
        %v6204 = vld [vmem:[%s5181 + $0x10] sm:$0xe0]
        %v6205 = vld [vmem:[%s5181 + $0x18] sm:$0x1f]
        %v6206 = vld [vmem:[%s5181 + $0x30] sm:$0xe0]
        %v6207 = vld [vmem:[%s5181 + $0x38] sm:$0x1f]
        %v6208 = vld [vmem:[%s5181 + $0x50] sm:$0xe0]
        %v6209 = vld [vmem:[%s5181 + $0x58] sm:$0x1f]
        %v6210 = vld [vmem:[%s5181 + $0x70] sm:$0xe0]
        %v6211 = vld [vmem:[%s5181 + $0x78] sm:$0x1f]
        %v6212 = vld [vmem:[%s5181 + $0x90] sm:$0xe0]
        %v6213 = vld [vmem:[%s5181 + $0x98] sm:$0x1f]
        %v6214 = vld [vmem:[%s5181 + $0xb0] sm:$0xe0]
        %v6215 = vld [vmem:[%s5181 + $0xb8] sm:$0x1f]
        %v6216 = vld [vmem:[%s5181 + $0xd0] sm:$0xe0]
        %v6217 = vld [vmem:[%s5181 + $0xd8] sm:$0x1f]
        %v6218 = vld [vmem:[%s5181 + $0xf0] sm:$0xe0]
        %v6219 = vld [vmem:[%s5181 + $0xf8] sm:$0x1f]
        %v6220 = vld [vmem:[%s5181 + $0x250] sm:$0xe0]
        %v6221 = vld [vmem:[%s5181 + $0x258] sm:$0x1f]
        %v6222 = vld [vmem:[%s5181 + $0x270] sm:$0xe0]
        %v6223 = vld [vmem:[%s5181 + $0x278] sm:$0x1f]
        %v6224 = vld [vmem:[%s5181 + $0x290] sm:$0xe0]
        %v6225 = vld [vmem:[%s5181 + $0x298] sm:$0x1f]
        %v6226 = vld [vmem:[%s5181 + $0x2b0] sm:$0xe0]
        %v6227 = vld [vmem:[%s5181 + $0x2b8] sm:$0x1f]
        %v6228 = vld [vmem:[%s5181 + $0x2d0] sm:$0xe0]
        %v6229 = vld [vmem:[%s5181 + $0x2d8] sm:$0x1f]
        %v6230 = vld [vmem:[%s5181 + $0x2f0] sm:$0xe0]
        %v6231 = vld [vmem:[%s5181 + $0x2f8] sm:$0x1f]
        %v6232 = vld [vmem:[%s5181 + $0x310] sm:$0xe0]
        %v6233 = vld [vmem:[%s5181 + $0x318] sm:$0x1f]
        %v6234 = vld [vmem:[%s5181 + $0x330] sm:$0xe0]
        %v6235 = vld [vmem:[%s5181 + $0x338] sm:$0x1f]
        %v6236 = vld [vmem:[%s5181 + $0x490] sm:$0xe0]
        %v6237 = vld [vmem:[%s5181 + $0x498] sm:$0x1f]
        %v6238 = vld [vmem:[%s5181 + $0x4b0] sm:$0xe0]
        %v6239 = vld [vmem:[%s5181 + $0x4b8] sm:$0x1f]
        %v6240 = vld [vmem:[%s5181 + $0x4d0] sm:$0xe0]
        %v6241 = vld [vmem:[%s5181 + $0x4d8] sm:$0x1f]
        %v6242 = vld [vmem:[%s5181 + $0x4f0] sm:$0xe0]
        %v6243 = vld [vmem:[%s5181 + $0x4f8] sm:$0x1f]
        %v6244 = vld [vmem:[%s5181 + $0x510] sm:$0xe0]
        %v6245 = vld [vmem:[%s5181 + $0x518] sm:$0x1f]
        %v6246 = vld [vmem:[%s5181 + $0x530] sm:$0xe0]
        %v6247 = vld [vmem:[%s5181 + $0x538] sm:$0x1f]
        %v6248 = vld [vmem:[%s5181 + $0x550] sm:$0xe0]
        %v6249 = vld [vmem:[%s5181 + $0x558] sm:$0x1f]
        %v6250 = vld [vmem:[%s5181 + $0x570] sm:$0xe0]
        %v6251 = vld [vmem:[%s5181 + $0x578] sm:$0x1f]
        %vm6300 = vcmask 1042432
        %v6301 = vrot.slane %v6204, 5
        %v6302 = vrot.slane %v6205, 5
        %v6303 = vsel %vm6300, %v6301, %v6302
        %v6304 = vrot.slane %v6206, 5
        %v6305 = vrot.slane %v6207, 5
        %v6306 = vsel %vm6300, %v6304, %v6305
        %v6307 = vrot.slane %v6208, 5
        %v6308 = vrot.slane %v6209, 5
        %v6309 = vsel %vm6300, %v6307, %v6308
        %v6310 = vrot.slane %v6210, 5
        %v6311 = vrot.slane %v6211, 5
        %v6312 = vsel %vm6300, %v6310, %v6311
        %v6313 = vrot.slane %v6212, 5
        %v6314 = vrot.slane %v6213, 5
        %v6315 = vsel %vm6300, %v6313, %v6314
        %v6316 = vrot.slane %v6214, 5
        %v6317 = vrot.slane %v6215, 5
        %v6318 = vsel %vm6300, %v6316, %v6317
        %v6319 = vrot.slane %v6216, 5
        %v6320 = vrot.slane %v6217, 5
        %v6321 = vsel %vm6300, %v6319, %v6320
        %v6322 = vrot.slane %v6218, 5
        %v6323 = vrot.slane %v6219, 5
        %v6324 = vsel %vm6300, %v6322, %v6323
        %v6325 = vrot.slane %v6220, 5
        %v6326 = vrot.slane %v6221, 5
        %v6327 = vsel %vm6300, %v6325, %v6326
        %v6328 = vrot.slane %v6222, 5
        %v6329 = vrot.slane %v6223, 5
        %v6330 = vsel %vm6300, %v6328, %v6329
        %v6331 = vrot.slane %v6224, 5
        %v6332 = vrot.slane %v6225, 5
        %v6333 = vsel %vm6300, %v6331, %v6332
        %v6334 = vrot.slane %v6226, 5
        %v6335 = vrot.slane %v6227, 5
        %v6336 = vsel %vm6300, %v6334, %v6335
        %v6337 = vrot.slane %v6228, 5
        %v6338 = vrot.slane %v6229, 5
        %v6339 = vsel %vm6300, %v6337, %v6338
        %v6340 = vrot.slane %v6230, 5
        %v6341 = vrot.slane %v6231, 5
        %v6342 = vsel %vm6300, %v6340, %v6341
        %v6343 = vrot.slane %v6232, 5
        %v6344 = vrot.slane %v6233, 5
        %v6345 = vsel %vm6300, %v6343, %v6344
        %v6346 = vrot.slane %v6234, 5
        %v6347 = vrot.slane %v6235, 5
        %v6348 = vsel %vm6300, %v6346, %v6347
        %v6349 = vrot.slane %v6236, 5
        %v6350 = vrot.slane %v6237, 5
        %v6351 = vsel %vm6300, %v6349, %v6350
        %v6352 = vrot.slane %v6238, 5
        %v6353 = vrot.slane %v6239, 5
        %v6354 = vsel %vm6300, %v6352, %v6353
        %v6355 = vrot.slane %v6240, 5
        %v6356 = vrot.slane %v6241, 5
        %v6357 = vsel %vm6300, %v6355, %v6356
        %v6358 = vrot.slane %v6242, 5
        %v6359 = vrot.slane %v6243, 5
        %v6360 = vsel %vm6300, %v6358, %v6359
        %v6361 = vrot.slane %v6244, 5
        %v6362 = vrot.slane %v6245, 5
        %v6363 = vsel %vm6300, %v6361, %v6362
        %v6364 = vrot.slane %v6246, 5
        %v6365 = vrot.slane %v6247, 5
        %v6366 = vsel %vm6300, %v6364, %v6365
        %v6367 = vrot.slane %v6248, 5
        %v6368 = vrot.slane %v6249, 5
        %v6369 = vsel %vm6300, %v6367, %v6368
        %v6370 = vrot.slane %v6250, 5
        %v6371 = vrot.slane %v6251, 5
        %v6372 = vsel %vm6300, %v6370, %v6371
        %s6373 = scalar_lea.vmem %s7, 4
        %v6374 = vld [vmem:[%s6373] sm:$0x3]
        %s6375 = scalar_lea.vmem %s7, 10
        %v6376 = vld [vmem:[%s6375] sm:$0x3]
        %v6378 = vsel %vm1264, %v6327, 0
        %v6381 = vsel %vm1264, %v6330, 0
        %v6384 = vsel %vm1264, %v6333, 0
        %v6387 = vsel %vm1264, %v6336, 0
        %v6390 = vsel %vm1264, %v6339, 0
        %v6393 = vsel %vm1264, %v6342, 0
        %v6396 = vsel %vm1264, %v6345, 0
        %v6399 = vsel %vm1264, %v6348, 0
        %v6402 = vsel %vm1289, %v6376, 0
        %6404 = vmatprep.subr.bf16.mxu0 0
        %6405 = vmatpush1.bf16.msra.mxu0 %v6402
        %6406 = vmatprep.subr.bf16.mxu0 0
        %6407 = vmatpush1.bf16.msra.mxu0 0
        %6408 = vmatprep.subr.bf16.mxu0 0
        %6409 = vmatpush1.bf16.msra.mxu0 0
        %6410 = vmatprep.subr.bf16.mxu0 0
        %6411 = vmatpush1.bf16.msra.mxu0 0
        %6412 = vmatprep.subr.bf16.mxu0 0
        %6413 = vmatpush1.bf16.msra.mxu0 0
        %6414 = vmatprep.subr.bf16.mxu0 0
        %6415 = vmatpush1.bf16.msra.mxu0 0
        %6416 = vmatprep.subr.bf16.mxu0 0
        %6417 = vmatpush1.bf16.msra.mxu0 0
        %6418 = vmatprep.subr.bf16.mxu0 0
        %6419 = vmatpush1.bf16.msra.mxu0 0
        %6420 = vmatprep.subr.bf16.mxu0 0
        %6421 = vmatpush1.bf16.msra.mxu0 0
        %6422 = vmatprep.subr.bf16.mxu0 0
        %6423 = vmatpush1.bf16.msra.mxu0 0
        %6424 = vmatprep.subr.bf16.mxu0 0
        %6425 = vmatpush1.bf16.msra.mxu0 0
        %6426 = vmatprep.subr.bf16.mxu0 0
        %6427 = vmatpush1.bf16.msra.mxu0 0
        %6428 = vmatprep.subr.bf16.mxu0 0
        %6429 = vmatpush1.bf16.msra.mxu0 0
        %6430 = vmatprep.subr.bf16.mxu0 0
        %6431 = vmatpush1.bf16.msra.mxu0 0
        %6432 = vmatprep.subr.bf16.mxu0 0
        %6433 = vmatpush1.bf16.msra.mxu0 0
        %6434 = vmatprep.subr.bf16.mxu0 0
        %6435 = vmatpush1.bf16.msra.mxu0 0
        %6436 = vmatprep.mubr.bf16.mxu0 0
        %6437 = vmatmul.mubr.bf16.gmra.mrb[0].mxu0 %v6378
        %v6438 = vpop.f32.mrb[0].mxu0
        %v6439 = vadd.f32 0.0, %v6438
        %v6440 = vpop.f32.mrb[0].mxu0
        %v6441 = vpop.f32.mrb[0].mxu0
        %v6442 = vadd.f32 0.0, %v6441
        %v6443 = vpop.f32.mrb[0].mxu0
        %6444 = vmatprep.mubr.bf16.mxu0 0
        %6445 = vmatmul.mubr.bf16.gmra.mrb[0].mxu0 %v6381
        %v6446 = vpop.f32.mrb[0].mxu0
        %v6447 = vadd.f32 0.0, %v6446
        %v6448 = vpop.f32.mrb[0].mxu0
        %v6449 = vpop.f32.mrb[0].mxu0
        %v6450 = vadd.f32 0.0, %v6449
        %v6451 = vpop.f32.mrb[0].mxu0
        %6452 = vmatprep.mubr.bf16.mxu0 0
        %6453 = vmatmul.mubr.bf16.gmra.mrb[0].mxu0 %v6384
        %v6454 = vpop.f32.mrb[0].mxu0
        %v6455 = vadd.f32 0.0, %v6454
        %v6456 = vpop.f32.mrb[0].mxu0
        %v6457 = vpop.f32.mrb[0].mxu0
        %v6458 = vadd.f32 0.0, %v6457
        %v6459 = vpop.f32.mrb[0].mxu0
        %6460 = vmatprep.mubr.bf16.mxu0 0
        %6461 = vmatmul.mubr.bf16.gmra.mrb[0].mxu0 %v6387
        %v6462 = vpop.f32.mrb[0].mxu0
        %v6463 = vadd.f32 0.0, %v6462
        %v6464 = vpop.f32.mrb[0].mxu0
        %v6465 = vpop.f32.mrb[0].mxu0
        %v6466 = vadd.f32 0.0, %v6465
        %v6467 = vpop.f32.mrb[0].mxu0
        %6468 = vmatprep.mubr.bf16.mxu0 0
        %6469 = vmatmul.mubr.bf16.gmra.mrb[0].mxu0 %v6390
        %v6470 = vpop.f32.mrb[0].mxu0
        %v6471 = vadd.f32 0.0, %v6470
        %v6472 = vpop.f32.mrb[0].mxu0
        %v6473 = vpop.f32.mrb[0].mxu0
        %v6474 = vadd.f32 0.0, %v6473
        %v6475 = vpop.f32.mrb[0].mxu0
        %6476 = vmatprep.mubr.bf16.mxu0 0
        %6477 = vmatmul.mubr.bf16.gmra.mrb[0].mxu0 %v6393
        %v6478 = vpop.f32.mrb[0].mxu0
        %v6479 = vadd.f32 0.0, %v6478
        %v6480 = vpop.f32.mrb[0].mxu0
        %v6481 = vpop.f32.mrb[0].mxu0
        %v6482 = vadd.f32 0.0, %v6481
        %v6483 = vpop.f32.mrb[0].mxu0
        %6484 = vmatprep.mubr.bf16.mxu0 0
        %6485 = vmatmul.mubr.bf16.gmra.mrb[0].mxu0 %v6396
        %v6486 = vpop.f32.mrb[0].mxu0
        %v6487 = vadd.f32 0.0, %v6486
        %v6488 = vpop.f32.mrb[0].mxu0
        %v6489 = vpop.f32.mrb[0].mxu0
        %v6490 = vadd.f32 0.0, %v6489
        %v6491 = vpop.f32.mrb[0].mxu0
        %6492 = vmatprep.mubr.bf16.mxu0 0
        %6493 = vmatmul.mubr.bf16.gmra.mrb[0].mxu0 %v6399
        %v6494 = vpop.f32.mrb[0].mxu0
        %v6495 = vadd.f32 0.0, %v6494
        %v6496 = vpop.f32.mrb[0].mxu0
        %v6497 = vpop.f32.mrb[0].mxu0
        %v6498 = vadd.f32 0.0, %v6497
        %v6499 = vpop.f32.mrb[0].mxu0
        %6500 = vdwg.mxu0
        %v6502 = vsel %vm1264, %v6303, 0
        %v6505 = vsel %vm1264, %v6306, 0
        %v6508 = vsel %vm1264, %v6309, 0
        %v6511 = vsel %vm1264, %v6312, 0
        %v6514 = vsel %vm1264, %v6315, 0
        %v6517 = vsel %vm1264, %v6318, 0
        %v6520 = vsel %vm1264, %v6321, 0
        %v6523 = vsel %vm1264, %v6324, 0
        %v6526 = vsel %vm1289, %v6374, 0
        %6528 = vmatprep.subr.bf16.mxu0 0
        %6529 = vmatpush1.bf16.msra.mxu0 %v6526
        %6530 = vmatprep.subr.bf16.mxu0 0
        %6531 = vmatpush1.bf16.msra.mxu0 0
        %6532 = vmatprep.subr.bf16.mxu0 0
        %6533 = vmatpush1.bf16.msra.mxu0 0
        %6534 = vmatprep.subr.bf16.mxu0 0
        %6535 = vmatpush1.bf16.msra.mxu0 0
        %6536 = vmatprep.subr.bf16.mxu0 0
        %6537 = vmatpush1.bf16.msra.mxu0 0
        %6538 = vmatprep.subr.bf16.mxu0 0
        %6539 = vmatpush1.bf16.msra.mxu0 0
        %6540 = vmatprep.subr.bf16.mxu0 0
        %6541 = vmatpush1.bf16.msra.mxu0 0
        %6542 = vmatprep.subr.bf16.mxu0 0
        %6543 = vmatpush1.bf16.msra.mxu0 0
        %6544 = vmatprep.subr.bf16.mxu0 0
        %6545 = vmatpush1.bf16.msra.mxu0 0
        %6546 = vmatprep.subr.bf16.mxu0 0
        %6547 = vmatpush1.bf16.msra.mxu0 0
        %6548 = vmatprep.subr.bf16.mxu0 0
        %6549 = vmatpush1.bf16.msra.mxu0 0
        %6550 = vmatprep.subr.bf16.mxu0 0
        %6551 = vmatpush1.bf16.msra.mxu0 0
        %6552 = vmatprep.subr.bf16.mxu0 0
        %6553 = vmatpush1.bf16.msra.mxu0 0
        %6554 = vmatprep.subr.bf16.mxu0 0
        %6555 = vmatpush1.bf16.msra.mxu0 0
        %6556 = vmatprep.subr.bf16.mxu0 0
        %6557 = vmatpush1.bf16.msra.mxu0 0
        %6558 = vmatprep.subr.bf16.mxu0 0
        %6559 = vmatpush1.bf16.msra.mxu0 0
        %6560 = vmatprep.mubr.bf16.mxu0 0
        %6561 = vmatmul.mubr.bf16.gmra.mrb[0].mxu0 %v6502
        %v6562 = vpop.f32.mrb[0].mxu0
        %v6563 = vadd.f32 %v6439, %v6562
        %v6564 = vpop.f32.mrb[0].mxu0
        %v6565 = vpop.f32.mrb[0].mxu0
        %v6566 = vadd.f32 %v6442, %v6565
        %v6567 = vpop.f32.mrb[0].mxu0
        %6568 = vmatprep.mubr.bf16.mxu0 0
        %6569 = vmatmul.mubr.bf16.gmra.mrb[0].mxu0 %v6505
        %v6570 = vpop.f32.mrb[0].mxu0
        %v6571 = vadd.f32 %v6447, %v6570
        %v6572 = vpop.f32.mrb[0].mxu0
        %v6573 = vpop.f32.mrb[0].mxu0
        %v6574 = vadd.f32 %v6450, %v6573
        %v6575 = vpop.f32.mrb[0].mxu0
        %6576 = vmatprep.mubr.bf16.mxu0 0
        %6577 = vmatmul.mubr.bf16.gmra.mrb[0].mxu0 %v6508
        %v6578 = vpop.f32.mrb[0].mxu0
        %v6579 = vadd.f32 %v6455, %v6578
        %v6580 = vpop.f32.mrb[0].mxu0
        %v6581 = vpop.f32.mrb[0].mxu0
        %v6582 = vadd.f32 %v6458, %v6581
        %v6583 = vpop.f32.mrb[0].mxu0
        %6584 = vmatprep.mubr.bf16.mxu0 0
        %6585 = vmatmul.mubr.bf16.gmra.mrb[0].mxu0 %v6511
        %v6586 = vpop.f32.mrb[0].mxu0
        %v6587 = vadd.f32 %v6463, %v6586
        %v6588 = vpop.f32.mrb[0].mxu0
        %v6589 = vpop.f32.mrb[0].mxu0
        %v6590 = vadd.f32 %v6466, %v6589
        %v6591 = vpop.f32.mrb[0].mxu0
        %6592 = vmatprep.mubr.bf16.mxu0 0
        %6593 = vmatmul.mubr.bf16.gmra.mrb[0].mxu0 %v6514
        %v6594 = vpop.f32.mrb[0].mxu0
        %v6595 = vadd.f32 %v6471, %v6594
        %v6596 = vpop.f32.mrb[0].mxu0
        %v6597 = vpop.f32.mrb[0].mxu0
        %v6598 = vadd.f32 %v6474, %v6597
        %v6599 = vpop.f32.mrb[0].mxu0
        %6600 = vmatprep.mubr.bf16.mxu0 0
        %6601 = vmatmul.mubr.bf16.gmra.mrb[0].mxu0 %v6517
        %v6602 = vpop.f32.mrb[0].mxu0
        %v6603 = vadd.f32 %v6479, %v6602
        %v6604 = vpop.f32.mrb[0].mxu0
        %v6605 = vpop.f32.mrb[0].mxu0
        %v6606 = vadd.f32 %v6482, %v6605
        %v6607 = vpop.f32.mrb[0].mxu0
        %6608 = vmatprep.mubr.bf16.mxu0 0
        %6609 = vmatmul.mubr.bf16.gmra.mrb[0].mxu0 %v6520
        %v6610 = vpop.f32.mrb[0].mxu0
        %v6611 = vadd.f32 %v6487, %v6610
        %v6612 = vpop.f32.mrb[0].mxu0
        %v6613 = vpop.f32.mrb[0].mxu0
        %v6614 = vadd.f32 %v6490, %v6613
        %v6615 = vpop.f32.mrb[0].mxu0
        %6616 = vmatprep.mubr.bf16.mxu0 0
        %6617 = vmatmul.mubr.bf16.gmra.mrb[0].mxu0 %v6523
        %v6618 = vpop.f32.mrb[0].mxu0
        %v6619 = vadd.f32 %v6495, %v6618
        %v6620 = vpop.f32.mrb[0].mxu0
        %v6621 = vpop.f32.mrb[0].mxu0
        %v6622 = vadd.f32 %v6498, %v6621
        %v6623 = vpop.f32.mrb[0].mxu0
        %6624 = vdwg.mxu0
        %s6625 = scalar_lea.vmem %s7, 16
        %v6626 = vld [vmem:[%s6625] sm:$0x3]
        %v6628 = vsel %vm1264, %v6351, 0
        %v6631 = vsel %vm1264, %v6354, 0
        %v6634 = vsel %vm1264, %v6357, 0
        %v6637 = vsel %vm1264, %v6360, 0
        %v6640 = vsel %vm1264, %v6363, 0
        %v6643 = vsel %vm1264, %v6366, 0
        %v6646 = vsel %vm1264, %v6369, 0
        %v6649 = vsel %vm1264, %v6372, 0
        %v6652 = vsel %vm1289, %v6626, 0
        %6654 = vmatprep.subr.bf16.mxu0 0
        %6655 = vmatpush1.bf16.msra.mxu0 %v6652
        %6656 = vmatprep.subr.bf16.mxu0 0
        %6657 = vmatpush1.bf16.msra.mxu0 0
        %6658 = vmatprep.subr.bf16.mxu0 0
        %6659 = vmatpush1.bf16.msra.mxu0 0
        %6660 = vmatprep.subr.bf16.mxu0 0
        %6661 = vmatpush1.bf16.msra.mxu0 0
        %6662 = vmatprep.subr.bf16.mxu0 0
        %6663 = vmatpush1.bf16.msra.mxu0 0
        %6664 = vmatprep.subr.bf16.mxu0 0
        %6665 = vmatpush1.bf16.msra.mxu0 0
        %6666 = vmatprep.subr.bf16.mxu0 0
        %6667 = vmatpush1.bf16.msra.mxu0 0
        %6668 = vmatprep.subr.bf16.mxu0 0
        %6669 = vmatpush1.bf16.msra.mxu0 0
        %6670 = vmatprep.subr.bf16.mxu0 0
        %6671 = vmatpush1.bf16.msra.mxu0 0
        %6672 = vmatprep.subr.bf16.mxu0 0
        %6673 = vmatpush1.bf16.msra.mxu0 0
        %6674 = vmatprep.subr.bf16.mxu0 0
        %6675 = vmatpush1.bf16.msra.mxu0 0
        %6676 = vmatprep.subr.bf16.mxu0 0
        %6677 = vmatpush1.bf16.msra.mxu0 0
        %6678 = vmatprep.subr.bf16.mxu0 0
        %6679 = vmatpush1.bf16.msra.mxu0 0
        %6680 = vmatprep.subr.bf16.mxu0 0
        %6681 = vmatpush1.bf16.msra.mxu0 0
        %6682 = vmatprep.subr.bf16.mxu0 0
        %6683 = vmatpush1.bf16.msra.mxu0 0
        %6684 = vmatprep.subr.bf16.mxu0 0
        %6685 = vmatpush1.bf16.msra.mxu0 0
        %6686 = vmatprep.mubr.bf16.mxu0 0
        %6687 = vmatmul.mubr.bf16.gmra.mrb[0].mxu0 %v6628
        %v6688 = vpop.f32.mrb[0].mxu0
        %v6689 = vadd.f32 0.0, %v6688
        %v6690 = vpop.f32.mrb[0].mxu0
        %v6691 = vpop.f32.mrb[0].mxu0
        %v6692 = vadd.f32 0.0, %v6691
        %v6693 = vpop.f32.mrb[0].mxu0
        %6694 = vmatprep.mubr.bf16.mxu0 0
        %6695 = vmatmul.mubr.bf16.gmra.mrb[0].mxu0 %v6631
        %v6696 = vpop.f32.mrb[0].mxu0
        %v6697 = vadd.f32 0.0, %v6696
        %v6698 = vpop.f32.mrb[0].mxu0
        %v6699 = vpop.f32.mrb[0].mxu0
        %v6700 = vadd.f32 0.0, %v6699
        %v6701 = vpop.f32.mrb[0].mxu0
        %6702 = vmatprep.mubr.bf16.mxu0 0
        %6703 = vmatmul.mubr.bf16.gmra.mrb[0].mxu0 %v6634
        %v6704 = vpop.f32.mrb[0].mxu0
        %v6705 = vadd.f32 0.0, %v6704
        %v6706 = vpop.f32.mrb[0].mxu0
        %v6707 = vpop.f32.mrb[0].mxu0
        %v6708 = vadd.f32 0.0, %v6707
        %v6709 = vpop.f32.mrb[0].mxu0
        %6710 = vmatprep.mubr.bf16.mxu0 0
        %6711 = vmatmul.mubr.bf16.gmra.mrb[0].mxu0 %v6637
        %v6712 = vpop.f32.mrb[0].mxu0
        %v6713 = vadd.f32 0.0, %v6712
        %v6714 = vpop.f32.mrb[0].mxu0
        %v6715 = vpop.f32.mrb[0].mxu0
        %v6716 = vadd.f32 0.0, %v6715
        %v6717 = vpop.f32.mrb[0].mxu0
        %6718 = vmatprep.mubr.bf16.mxu0 0
        %6719 = vmatmul.mubr.bf16.gmra.mrb[0].mxu0 %v6640
        %v6720 = vpop.f32.mrb[0].mxu0
        %v6721 = vadd.f32 0.0, %v6720
        %v6722 = vpop.f32.mrb[0].mxu0
        %v6723 = vpop.f32.mrb[0].mxu0
        %v6724 = vadd.f32 0.0, %v6723
        %v6725 = vpop.f32.mrb[0].mxu0
        %6726 = vmatprep.mubr.bf16.mxu0 0
        %6727 = vmatmul.mubr.bf16.gmra.mrb[0].mxu0 %v6643
        %v6728 = vpop.f32.mrb[0].mxu0
        %v6729 = vadd.f32 0.0, %v6728
        %v6730 = vpop.f32.mrb[0].mxu0
        %v6731 = vpop.f32.mrb[0].mxu0
        %v6732 = vadd.f32 0.0, %v6731
        %v6733 = vpop.f32.mrb[0].mxu0
        %6734 = vmatprep.mubr.bf16.mxu0 0
        %6735 = vmatmul.mubr.bf16.gmra.mrb[0].mxu0 %v6646
        %v6736 = vpop.f32.mrb[0].mxu0
        %v6737 = vadd.f32 0.0, %v6736
        %v6738 = vpop.f32.mrb[0].mxu0
        %v6739 = vpop.f32.mrb[0].mxu0
        %v6740 = vadd.f32 0.0, %v6739
        %v6741 = vpop.f32.mrb[0].mxu0
        %6742 = vmatprep.mubr.bf16.mxu0 0
        %6743 = vmatmul.mubr.bf16.gmra.mrb[0].mxu0 %v6649
        %v6744 = vpop.f32.mrb[0].mxu0
        %v6745 = vadd.f32 0.0, %v6744
        %v6746 = vpop.f32.mrb[0].mxu0
        %v6747 = vpop.f32.mrb[0].mxu0
        %v6748 = vadd.f32 0.0, %v6747
        %v6749 = vpop.f32.mrb[0].mxu0
        %6750 = vdwg.mxu0
        %v6751 = vadd.f32 %v6563, %v6689
        %v6752 = vadd.f32 %v6566, %v6692
        %v6753 = vadd.f32 %v6571, %v6697
        %v6754 = vadd.f32 %v6574, %v6700
        %v6755 = vadd.f32 %v6579, %v6705
        %v6756 = vadd.f32 %v6582, %v6708
        %v6757 = vadd.f32 %v6587, %v6713
        %v6758 = vadd.f32 %v6590, %v6716
        %v6759 = vadd.f32 %v6595, %v6721
        %v6760 = vadd.f32 %v6598, %v6724
        %v6761 = vadd.f32 %v6603, %v6729
        %v6762 = vadd.f32 %v6606, %v6732
        %v6763 = vadd.f32 %v6611, %v6737
        %v6764 = vadd.f32 %v6614, %v6740
        %v6765 = vadd.f32 %v6619, %v6745
        %v6766 = vadd.f32 %v6622, %v6748
        %v6767 = vld [vmem:[#allocation4] sm:$0xff]
        %v6768 = vld [vmem:[#allocation4 + $0x8] sm:$0xff]
        %v6769 = vld [vmem:[#allocation4 + $0x10] sm:$0xff]
        %v6770 = vld [vmem:[#allocation4 + $0x18] sm:$0xff]
        %v6771 = vld [vmem:[#allocation4 + $0x20] sm:$0xff]
        %v6772 = vld [vmem:[#allocation4 + $0x28] sm:$0xff]
        %v6773 = vld [vmem:[#allocation4 + $0x30] sm:$0xff]
        %v6774 = vld [vmem:[#allocation4 + $0x38] sm:$0xff]
        %v6775 = vld [vmem:[#allocation4 + $0x40] sm:$0xff]
        %v6776 = vld [vmem:[#allocation4 + $0x48] sm:$0xff]
        %v6777 = vld [vmem:[#allocation4 + $0x50] sm:$0xff]
        %v6778 = vld [vmem:[#allocation4 + $0x58] sm:$0xff]
        %v6779 = vld [vmem:[#allocation4 + $0x60] sm:$0xff]
        %v6780 = vld [vmem:[#allocation4 + $0x68] sm:$0xff]
        %v6781 = vld [vmem:[#allocation4 + $0x70] sm:$0xff]
        %v6782 = vld [vmem:[#allocation4 + $0x78] sm:$0xff]
        %v6783 = vadd.f32 %v6767, %v6751
        %v6784 = vadd.f32 %v6768, %v6752
        %v6785 = vadd.f32 %v6769, %v6753
        %v6786 = vadd.f32 %v6770, %v6754
        %v6787 = vadd.f32 %v6771, %v6755
        %v6788 = vadd.f32 %v6772, %v6756
        %v6789 = vadd.f32 %v6773, %v6757
        %v6790 = vadd.f32 %v6774, %v6758
        %v6791 = vadd.f32 %v6775, %v6759
        %v6792 = vadd.f32 %v6776, %v6760
        %v6793 = vadd.f32 %v6777, %v6761
        %v6794 = vadd.f32 %v6778, %v6762
        %v6795 = vadd.f32 %v6779, %v6763
        %v6796 = vadd.f32 %v6780, %v6764
        %v6797 = vadd.f32 %v6781, %v6765
        %v6798 = vadd.f32 %v6782, %v6766
        %6799 = vst.msk [vmem:[#allocation4] sm:$0xff] %vm1583, %v6783
        %6800 = vst.msk [vmem:[#allocation4 + $0x8] sm:$0xff] %vm1583, %v6784
        %6801 = vst.msk [vmem:[#allocation4 + $0x10] sm:$0xff] %vm1583, %v6785
        %6802 = vst.msk [vmem:[#allocation4 + $0x18] sm:$0xff] %vm1583, %v6786
        %6803 = vst.msk [vmem:[#allocation4 + $0x20] sm:$0xff] %vm1583, %v6787
        %6804 = vst.msk [vmem:[#allocation4 + $0x28] sm:$0xff] %vm1583, %v6788
        %6805 = vst.msk [vmem:[#allocation4 + $0x30] sm:$0xff] %vm1583, %v6789
        %6806 = vst.msk [vmem:[#allocation4 + $0x38] sm:$0xff] %vm1583, %v6790
        %6807 = vst.msk [vmem:[#allocation4 + $0x40] sm:$0xff] %vm1583, %v6791
        %6808 = vst.msk [vmem:[#allocation4 + $0x48] sm:$0xff] %vm1583, %v6792
        %6809 = vst.msk [vmem:[#allocation4 + $0x50] sm:$0xff] %vm1583, %v6793
        %6810 = vst.msk [vmem:[#allocation4 + $0x58] sm:$0xff] %vm1583, %v6794
        %6811 = vst.msk [vmem:[#allocation4 + $0x60] sm:$0xff] %vm1583, %v6795
        %6812 = vst.msk [vmem:[#allocation4 + $0x68] sm:$0xff] %vm1583, %v6796
        %6813 = vst.msk [vmem:[#allocation4 + $0x70] sm:$0xff] %vm1583, %v6797
        %6814 = vst.msk [vmem:[#allocation4 + $0x78] sm:$0xff] %vm1583, %v6798
        %v6815 = vld [vmem:[#allocation4] sm:$0xff]
        %v6816 = vld [vmem:[#allocation4 + $0x8] sm:$0xff]
        %v6817 = vld [vmem:[#allocation4 + $0x10] sm:$0xff]
        %v6818 = vld [vmem:[#allocation4 + $0x18] sm:$0xff]
        %v6819 = vld [vmem:[#allocation4 + $0x20] sm:$0xff]
        %v6820 = vld [vmem:[#allocation4 + $0x28] sm:$0xff]
        %v6821 = vld [vmem:[#allocation4 + $0x30] sm:$0xff]
        %v6822 = vld [vmem:[#allocation4 + $0x38] sm:$0xff]
        %v6823 = vld [vmem:[#allocation4 + $0x40] sm:$0xff]
        %v6824 = vld [vmem:[#allocation4 + $0x48] sm:$0xff]
        %v6825 = vld [vmem:[#allocation4 + $0x50] sm:$0xff]
        %v6826 = vld [vmem:[#allocation4 + $0x58] sm:$0xff]
        %v6827 = vld [vmem:[#allocation4 + $0x60] sm:$0xff]
        %v6828 = vld [vmem:[#allocation4 + $0x68] sm:$0xff]
        %v6829 = vld [vmem:[#allocation4 + $0x70] sm:$0xff]
        %v6830 = vld [vmem:[#allocation4 + $0x78] sm:$0xff]
        %v6831 = vmax.f32 %v6815, 0.0
        %v6832 = vmax.f32 %v6816, 0.0
        %v6833 = vmax.f32 %v6817, 0.0
        %v6834 = vmax.f32 %v6818, 0.0
        %v6835 = vmax.f32 %v6819, 0.0
        %v6836 = vmax.f32 %v6820, 0.0
        %v6837 = vmax.f32 %v6821, 0.0
        %v6838 = vmax.f32 %v6822, 0.0
        %v6839 = vmax.f32 %v6823, 0.0
        %v6840 = vmax.f32 %v6824, 0.0
        %v6841 = vmax.f32 %v6825, 0.0
        %v6842 = vmax.f32 %v6826, 0.0
        %v6843 = vmax.f32 %v6827, 0.0
        %v6844 = vmax.f32 %v6828, 0.0
        %v6845 = vmax.f32 %v6829, 0.0
        %v6846 = vmax.f32 %v6830, 0.0
        %v6847 = vpack.c.bf16 %v6832, %v6831
        %v6848 = vpack.c.bf16 %v6834, %v6833
        %v6849 = vpack.c.bf16 %v6836, %v6835
        %v6850 = vpack.c.bf16 %v6838, %v6837
        %v6851 = vpack.c.bf16 %v6840, %v6839
        %v6852 = vpack.c.bf16 %v6842, %v6841
        %v6853 = vpack.c.bf16 %v6844, %v6843
        %v6854 = vpack.c.bf16 %v6846, %v6845
        %v6863 = vunpack.c.l.b16 %v6847
        %v6864 = vunpack.c.h.b16 %v6847
        %v6865 = vunpack.c.l.b16 %v6848
        %v6866 = vunpack.c.h.b16 %v6848
        %v6867 = vunpack.c.l.b16 %v6849
        %v6868 = vunpack.c.h.b16 %v6849
        %v6869 = vunpack.c.l.b16 %v6850
        %v6870 = vunpack.c.h.b16 %v6850
        %v6871 = vunpack.c.l.b16 %v6851
        %v6872 = vunpack.c.h.b16 %v6851
        %v6873 = vunpack.c.l.b16 %v6852
        %v6874 = vunpack.c.h.b16 %v6852
        %v6875 = vunpack.c.l.b16 %v6853
        %v6876 = vunpack.c.h.b16 %v6853
        %v6877 = vunpack.c.l.b16 %v6854
        %v6878 = vunpack.c.h.b16 %v6854
        %v6879 = vpack.c.b16 %v6863, %v6863
        %v6880 = vpack.c.b16 %v6864, %v6864
        %v6881 = vpack.c.b16 %v6865, %v6865
        %v6882 = vpack.c.b16 %v6866, %v6866
        %v6883 = vpack.c.b16 %v6867, %v6867
        %v6884 = vpack.c.b16 %v6868, %v6868
        %v6885 = vpack.c.b16 %v6869, %v6869
        %v6886 = vpack.c.b16 %v6870, %v6870
        %v6887 = vpack.c.b16 %v6871, %v6871
        %v6888 = vpack.c.b16 %v6872, %v6872
        %v6889 = vpack.c.b16 %v6873, %v6873
        %v6890 = vpack.c.b16 %v6874, %v6874
        %v6891 = vpack.c.b16 %v6875, %v6875
        %v6892 = vpack.c.b16 %v6876, %v6876
        %v6893 = vpack.c.b16 %v6877, %v6877
        %v6894 = vpack.c.b16 %v6878, %v6878
        %6895 = vrot.lane.b32.xlu0 %v6879, 32
        %v6896 = vpop.permute.xlu0 %6895
        %6897 = vrot.lane.b32.xlu0 %v6880, 32
        %v6898 = vpop.permute.xlu0 %6897
        %6899 = vrot.lane.b32.xlu0 %v6881, 32
        %v6900 = vpop.permute.xlu0 %6899
        %6901 = vrot.lane.b32.xlu0 %v6882, 32
        %v6902 = vpop.permute.xlu0 %6901
        %6903 = vrot.lane.b32.xlu0 %v6883, 32
        %v6904 = vpop.permute.xlu0 %6903
        %6905 = vrot.lane.b32.xlu0 %v6884, 32
        %v6906 = vpop.permute.xlu0 %6905
        %6907 = vrot.lane.b32.xlu0 %v6885, 32
        %v6908 = vpop.permute.xlu0 %6907
        %6909 = vrot.lane.b32.xlu0 %v6886, 32
        %v6910 = vpop.permute.xlu0 %6909
        %6911 = vrot.lane.b32.xlu0 %v6887, 32
        %v6912 = vpop.permute.xlu0 %6911
        %6913 = vrot.lane.b32.xlu0 %v6888, 32
        %v6914 = vpop.permute.xlu0 %6913
        %6915 = vrot.lane.b32.xlu0 %v6889, 32
        %v6916 = vpop.permute.xlu0 %6915
        %6917 = vrot.lane.b32.xlu0 %v6890, 32
        %v6918 = vpop.permute.xlu0 %6917
        %6919 = vrot.lane.b32.xlu0 %v6891, 32
        %v6920 = vpop.permute.xlu0 %6919
        %6921 = vrot.lane.b32.xlu0 %v6892, 32
        %v6922 = vpop.permute.xlu0 %6921
        %6923 = vrot.lane.b32.xlu0 %v6893, 32
        %v6924 = vpop.permute.xlu0 %6923
        %6925 = vrot.lane.b32.xlu0 %v6894, 32
        %v6926 = vpop.permute.xlu0 %6925
        %6943 = vst.msk [vmem:[%s340 + $0x4] sm:$0xf] %vm1185, %v6896
        %6944 = vst.msk [vmem:[%s340 + $0xc] sm:$0xf] %vm1185, %v6898
        %6945 = vst.msk [vmem:[%s340 + $0x14] sm:$0xf] %vm1185, %v6900
        %6946 = vst.msk [vmem:[%s340 + $0x1c] sm:$0xf] %vm1185, %v6902
        %6947 = vst.msk [vmem:[%s340 + $0x24] sm:$0xf] %vm1185, %v6904
        %6948 = vst.msk [vmem:[%s340 + $0x2c] sm:$0xf] %vm1185, %v6906
        %6949 = vst.msk [vmem:[%s340 + $0x34] sm:$0xf] %vm1185, %v6908
        %6950 = vst.msk [vmem:[%s340 + $0x3c] sm:$0xf] %vm1185, %v6910
        %6951 = vst.msk [vmem:[%s340 + $0x44] sm:$0xf] %vm1185, %v6912
        %6952 = vst.msk [vmem:[%s340 + $0x4c] sm:$0xf] %vm1185, %v6914
        %6953 = vst.msk [vmem:[%s340 + $0x54] sm:$0xf] %vm1185, %v6916
        %6954 = vst.msk [vmem:[%s340 + $0x5c] sm:$0xf] %vm1185, %v6918
        %6955 = vst.msk [vmem:[%s340 + $0x64] sm:$0xf] %vm1185, %v6920
        %6956 = vst.msk [vmem:[%s340 + $0x6c] sm:$0xf] %vm1185, %v6922
        %6957 = vst.msk [vmem:[%s340 + $0x74] sm:$0xf] %vm1185, %v6924
        %6958 = vst.msk [vmem:[%s340 + $0x7c] sm:$0xf] %vm1185, %v6926
        %s6959 = sand.u32 %s224, 1
        %s6960 = scalar_lea.sflag [#allocation6], %s6959
        %s6961 = sand.u32 %s224, 1
        %s6962 = smul.addr %s6961, 128
        %s6963 = scalar_lea.vmem [#allocation5], %s6962
        // Predicated region
        $region57: #{tpu_custom_call.1} parent=51 // pred_check
          %p6964 = pneg %p234
        $region58: #{tpu_custom_call.1} parent=51 // pred_check_branch
          %6966 = sbr.rel (%p6964) target = $region60
        $region59: #{tpu_custom_call.1} parent=51 // pred_region
          %s6967 = smul.u32 8, %s27
          %s6969 = ssub.s32 2048, 2048
          %6970 = vsyncadd %s6960, %s6969
          %s6971 = smul.addr %s6967, 4
          %s6972 = smul.addr %s26, 64
          %s6973 = sadd.s32 %s6971, %s6972
          %s6974 = smul.addr %s6973, 64
          %s6975 = scalar_lea.hbm %s8, %s6974
          %s6976 = sshll.u32 %s6963, 4
          %s6977 = int_to_ptr.vmem [resolvable:$true] %s6976
          %6982 = dma.vmem_to_hbm [thread:$0]  %s6977, 2048, %s6975, %s6960, 128, 128, 8
        $region60: #{tpu_custom_call.1} parent=51 // pred_fallthru
          _
      $region52: #{tpu_custom_call.1} parent=5 // pred_fallthru
        _
      %p6983 = scmp.le.s32.totalorder 2, %s17
      // Predicated region
      $region61: #{tpu_custom_call.1} parent=5 // pred_check
        %p6984 = pneg %p6983
      $region62: #{tpu_custom_call.1} parent=5 // pred_check_branch
        %6986 = sbr.rel (%p6984) target = $region64
      $region63: #{tpu_custom_call.1} parent=5 // pred_region
        %s6987 = ssub.s32 %s17, 2
        // Predicated region
        $region65: #{tpu_custom_call.1} parent=63 // pred_check
          %p6988 = pneg %p240
        $region66: #{tpu_custom_call.1} parent=63 // pred_check_branch
          %6990 = sbr.rel (%p6988) target = $region68
        $region67: #{tpu_custom_call.1} parent=63 // pred_region
          %s6991 = sand.u32 %s225, 1
          %s6992 = scalar_lea.sflag [#allocation6], %s6991
          %s6993 = sand.u32 %s225, 1
          %s6994 = smul.addr %s6993, 128
          %s6995 = scalar_lea.vmem [#allocation5], %s6994
          %6996 = dma.done %s6992, 2048
        $region68: #{tpu_custom_call.1} parent=63 // pred_fallthru
          _
      $region64: #{tpu_custom_call.1} parent=5 // pred_fallthru
        _
    $region6: #{tpu_custom_call.1} parent=1 // loop_footer
      %s21 = sadd.s32 1, %s17
    $region7: #{tpu_custom_call.1} parent=1 // loop_footer_branch
      %16 = sbr.rel target = $region3
    $region8: #{tpu_custom_call.1} parent=1 // loop_exit
      _
    %6997 = vsyncpa [#allocation6], 1
    %s6998 = scalar_lea.sflag [#allocation6], 1
    %6999 = vsyncpa %s6998, 1

</llo_original>
